<compile_context>
chip_gen: v5e
topology: v5e:2x2
jax: 0.10.0
libtpu: 0.0.40
codegen_flags: <defaults>
</compile_context>

<pallas_src>
import jax
import jax.numpy as jnp
from jax import random
from jax.experimental import pallas as pl
from jax.experimental.pallas import tpu as pltpu

# ---- hyperparameters (small shapes consistent with the module) --------------
B = 2             # batch
S = 8             # seq_len (== config.seq_len, so the contents slice is identity)
N = B * S         # flattened token count
H = 32            # bert_config.hidden_size
NH = 4            # attention heads
HD = H // NH      # head dim
I = 64            # FFN intermediate size
C = 16            # config.content_dim
K = 7             # KB concepts retrieved per token (before the sentinel slot)
K1 = K + 1        # + sentinel
V = 50            # KB embedding vocab size
NUM_LAYERS = 6    # config.num_hidden_layers  (>= ne_end == 6)
D = H + C         # self-matching feature dim (config.wordnet=True, config.nell=False)
NEG = -10000.0
WN_START, WN_END, NE_START, NE_END = 3, 4, 5, 6

# ---- packed "smalls" buffer row layout (shared by glue packer and kernel) ----
ROWS_PER_LAYER = 7
L_BB_ATTN, L_BB_I, L_BB_O, L_LN = 0, 1, 2, 3          # per-layer rows
BRANCH_BASE = NUM_LAYERS * ROWS_PER_LAYER             # 42
ROWS_PER_BRANCH = 9
BR_KI_B2, BR_SM_W, BR_SM_B, BR_MG_BM, BR_MG_AB, BR_MG_LN = 0, 1, 4, 5, 6, 7
SMALLS_ROWS = 64                                       # 60 used rows, padded to 64


# ---- helpers traced inside the kernel ----------------------------------------
def _layernorm(x, g, b, eps=1e-12):
    mu = jnp.mean(x, axis=-1, keepdims=True)
    var = jnp.mean((x - mu) ** 2, axis=-1, keepdims=True)
    return (x - mu) * jax.lax.rsqrt(var + eps) * g + b


def _gelu(x):
    # TODO(synk): tanh approximation; torch nn.GELU default is the exact erf form.
    c = 0.7978845608028654  # sqrt(2/pi)
    return 0.5 * x * (1.0 + jnp.tanh(c * (x + 0.044715 * x * x * x)))


def _softmax_last(x):
    # divide moved to the EUP slot (review opt: ~34 softmaxes on the serial path)
    x = x - jnp.max(x, axis=-1, keepdims=True)
    e = jnp.exp(x)
    return e * pl.reciprocal(jnp.sum(e, axis=-1, keepdims=True), approx=True)


def _dot_bt(a, b):
    # a @ b.T without materializing a transpose (MXU trans_b path).
    return jax.lax.dot_general(a, b, (((1,), (1,)), ((), ())),
                               preferred_element_type=jnp.float32)


def _attend(q_src, kv_src, k_off, v_off, full_mask, w, b_row):
    # Shared attention core.  Heads are sliced straight out of the fused
    # projections; the output projection is accumulated per head (no ctx concat).
    wo = w[:, 3 * H:4 * H]                       # [H, H], sliced once per call
    scale = 1.0 / float(HD) ** 0.5
    acc = None
    for hh in range(NH):
        sl = slice(hh * HD, (hh + 1) * HD)
        q_h = q_src[:, sl]
        k_h = kv_src[:, k_off + hh * HD: k_off + (hh + 1) * HD]
        v_h = kv_src[:, v_off + hh * HD: v_off + (hh + 1) * HD]
        p = _softmax_last(_dot_bt(q_h, k_h) * scale + full_mask)      # [N, N]
        head = jnp.dot(p, v_h, preferred_element_type=jnp.float32)    # [N, HD]
        contrib = jnp.dot(head, wo[sl, :], preferred_element_type=jnp.float32)
        acc = contrib if acc is None else acc + contrib
    return acc + b_row[:, 3 * H:4 * H]


def _mha_self(x_f, full_mask, w, b_row):
    # fused QKV: one [N,H]@[H,3H] matmul instead of three (review opt).
    qkv = jnp.dot(x_f, w[:, 0:3 * H], preferred_element_type=jnp.float32) \
        + b_row[:, 0:3 * H]
    return _attend(qkv, qkv, H, 2 * H, full_mask, w, b_row)


def _mha_cross(xq, xkv, full_mask, w, b_row):
    # query source != key/value source -> Q alone, K|V packed in one matmul.
    q = jnp.dot(xq, w[:, 0:H], preferred_element_type=jnp.float32) + b_row[:, 0:H]
    kv = jnp.dot(xkv, w[:, H:3 * H], preferred_element_type=jnp.float32) \
        + b_row[:, H:3 * H]
    return _attend(q, kv, 0, H, full_mask, w, b_row)


def _ki(x_f, kb, cmask3, G, wl, w2, b2_row):
    # knowledge_integration, fully vectorized.
    #   kb:     [K, N, C]   concept-major KB contents
    #   cmask3: [K1, N, 1]  content mask (concept axis leading)
    #   G:      [N, N]      constant 0/1 selector: row n picks position S-2 of
    #                       token n's batch (sentinel gather as a matmul).
    # score_k(n) = content_k(n) . (x(n) @ W_l); the b_l . x term is constant
    # across the K1 columns so it cancels in the softmax and is dropped.
    sent_full = jnp.dot(jnp.dot(G, x_f, preferred_element_type=jnp.float32), w2,
                        preferred_element_type=jnp.float32) + b2_row          # [N, C]
    xw = jnp.dot(x_f, wl, preferred_element_type=jnp.float32)                 # [N, C]
    kb_all = jnp.concatenate([kb, sent_full[None, :, :]], axis=0)             # [K1, N, C]
    score = jnp.sum(kb_all * xw[None, :, :], axis=-1, keepdims=True)          # [K1, N, 1]
    score = score + (1.0 - cmask3) * NEG
    # softmax over the concept axis (axis 0), divide on the EUP
    score = score - jnp.max(score, axis=0, keepdims=True)
    e = jnp.exp(score)
    wgt = e * pl.reciprocal(jnp.sum(e, axis=0, keepdims=True), approx=True)
    wgt = wgt * cmask3                                                        # [K1, N, 1]
    return jnp.sum(wgt * kb_all, axis=0)                                      # [N, C]


# ---- the single fused kernel --------------------------------------------------
def fused_encoder_kernel(consts_ref, x_ref, kb_cont_ref, kb_cmask_ref,
                         bw_attn_ref, bw_i_ref, bw_o_ref,
                         ki_w_ref, mg_wm_ref, mg_aw_ref, smalls_ref, o_ref):
    full_mask = consts_ref[0]          # [N, N] additive block-diag + key-padding mask
    G = consts_ref[1]                  # [N, N] sentinel row-gather selector
    h = x_ref[...]                     # [N, H]

    def bert_layer(l, hh):
        # TODO(synk): BertLayer source not provided; implemented as a standard
        # post-LayerNorm BERT encoder layer (masked MHA + GELU FFN + residuals).
        base = l * ROWS_PER_LAYER
        attn = _mha_self(hh, full_mask, bw_attn_ref[l],
                         smalls_ref[base + L_BB_ATTN: base + L_BB_ATTN + 1, :])
        h1 = _layernorm(hh + attn,
                        smalls_ref[base + L_LN + 0: base + L_LN + 1, 0:H],
                        smalls_ref[base + L_LN + 1: base + L_LN + 2, 0:H])
        inter = _gelu(jnp.dot(h1, bw_i_ref[l], preferred_element_type=jnp.float32)
                      + smalls_ref[base + L_BB_I: base + L_BB_I + 1, 0:I])
        ff = jnp.dot(inter, bw_o_ref[l], preferred_element_type=jnp.float32) \
            + smalls_ref[base + L_BB_O: base + L_BB_O + 1, 0:H]
        return _layernorm(h1 + ff,
                          smalls_ref[base + L_LN + 2: base + L_LN + 3, 0:H],
                          smalls_ref[base + L_LN + 3: base + L_LN + 4, 0:H])

    def branch(b, hh):
        # `hh` doubles as KI / self-matching input AND merge query: at both branch
        # points hiddens[start] == hiddens[-1] (review opt: hiddens list removed).
        base = BRANCH_BASE + b * ROWS_PER_BRANCH
        ki_out = _ki(hh, kb_cont_ref[b], kb_cmask_ref[b], G,
                     ki_w_ref[b, 0], ki_w_ref[b, 1],
                     smalls_ref[base + BR_KI_B2: base + BR_KI_B2 + 1, 0:C])

        # self_matching fused with the merge linear: the [N,3D]/[N,6D] concats are
        # never built; score(i,j) = w1.z_i + w2.z_j + w3.(z_i*z_j) + bias.
        z = jnp.concatenate([hh, ki_out], axis=-1)                     # [N, D]
        w1 = smalls_ref[base + BR_SM_W + 0: base + BR_SM_W + 1, 0:D]
        w2r = smalls_ref[base + BR_SM_W + 1: base + BR_SM_W + 2, 0:D]
        w3 = smalls_ref[base + BR_SM_W + 2: base + BR_SM_W + 3, 0:D]
        sm_bias = smalls_ref[base + BR_SM_B: base + BR_SM_B + 1, 0:1]
        s1 = jnp.sum(z * w1, axis=-1, keepdims=True)                   # [N, 1]
        A = _softmax_last(_dot_bt(z * w3 + w2r, z) + s1 + sm_bias + full_mask)
        V1 = jnp.dot(A, z, preferred_element_type=jnp.float32)         # [N, D]
        V2 = jnp.dot(A, V1, preferred_element_type=jnp.float32)        # == (A@A)@z

        # merge.linear over the virtual concat [z, V1, z-V1, z*V1, V2, z-V2] with
        # weights algebraically pre-folded in glue to 4 blocks (review opt).
        proj = (jnp.dot(z, mg_wm_ref[b, 0], preferred_element_type=jnp.float32)
                + jnp.dot(V1, mg_wm_ref[b, 1], preferred_element_type=jnp.float32)
                + jnp.dot(V2, mg_wm_ref[b, 2], preferred_element_type=jnp.float32)
                + jnp.dot(z * V1, mg_wm_ref[b, 3], preferred_element_type=jnp.float32)
                + smalls_ref[base + BR_MG_BM: base + BR_MG_BM + 1, 0:H])

        # TODO(synk): GATResMergerLayer source not provided; implemented as masked
        # multi-head cross-attention (query=bert_output, key/value=proj) + res + LN.
        attn = _mha_cross(hh, proj, full_mask, mg_aw_ref[b],
                          smalls_ref[base + BR_MG_AB: base + BR_MG_AB + 1, :])
        return _layernorm(hh + attn,
                          smalls_ref[base + BR_MG_LN + 0: base + BR_MG_LN + 1, 0:H],
                          smalls_ref[base + BR_MG_LN + 1: base + BR_MG_LN + 2, 0:H])

    for i in range(WN_END):                      # layers 0..3
        h = bert_layer(i, h)
    h = branch(0, h)                             # wordnet branch
    for j in range(WN_END, NE_END):              # layers 4..5
        h = bert_layer(j, h)
    h = branch(1, h)                             # nell branch
    for kk in range(NE_END, NUM_LAYERS):         # empty when NUM_LAYERS == 6
        h = bert_layer(kk, h)

    o_ref[...] = h


# ---- glue: pack all small parameters into one [64, 128] buffer ----------------
def _pad_row(v):
    v = jnp.asarray(v, jnp.float32).reshape(-1)
    return jnp.pad(v, (0, 128 - v.shape[0]))


def _pack_smalls(p):
    rows = []
    for l in range(NUM_LAYERS):
        rows += [_pad_row(p['bb_attn'][l]), _pad_row(p['bb_i'][l]), _pad_row(p['bb_o'][l])]
        rows += [_pad_row(p['b_ln'][l, r]) for r in range(4)]
    for b in range(2):
        rows.append(_pad_row(p['ki_b2'][b]))
        rows += [_pad_row(p['sm_w'][b, r]) for r in range(3)]
        rows += [_pad_row(p['sm_b'][b]), _pad_row(p['mg_bm'][b]), _pad_row(p['mg_ab'][b])]
        rows += [_pad_row(p['mg_ln'][b, r]) for r in range(2)]
    while len(rows) < SMALLS_ROWS:
        rows.append(jnp.zeros((128,), jnp.float32))
    return jnp.stack(rows)                                  # [64, 128]


# ---- full forward (mirrors double_base_mix_encoder.forward) ------------------
def double_base_mix_encoder_forward(params, input_embedding, attention_mask,
                                    wordnet_content_id, nell_content_id,
                                    wn_mask, ne_mask):
    # glue: KB embedding gathers -> concept-major [K, N, C]
    def gather(table, ids):
        c = jnp.take(table, ids, axis=0)                    # [B, S, K, C]
        # (seq_len == S, so torch's `[:, seq_len - S:, ...]` slice is identity)
        return jnp.transpose(c, (2, 0, 1, 3)).reshape(K, N, C)

    kb_cont = jnp.stack([gather(params['wordnet_embed'], wordnet_content_id),
                         gather(params['nell_embed'], nell_content_id)])        # [2, K, N, C]
    kb_cmask = jnp.stack([
        jnp.transpose(wn_mask.reshape(N, K1))[:, :, None],
        jnp.transpose(ne_mask.reshape(N, K1))[:, :, None]]).astype(jnp.float32)  # [2, K1, N, 1]

    # glue: additive mask = key padding mask + block-diagonal batch separation,
    # so attention / self-matching over flattened [N, N] scores is exactly
    # equivalent to the per-batch [S, S] computation.
    am = attention_mask.astype(jnp.float32)
    key_mask = ((1.0 - am) * NEG).reshape(1, N)                                  # [1, N]
    bid = jnp.repeat(jnp.arange(B), S)
    block = jnp.where(bid[:, None] == bid[None, :], 0.0, NEG).astype(jnp.float32)
    full_mask = block + key_mask                                                 # [N, N]

    # glue: sentinel gather selector (row n -> position S-2 of its batch)
    tgt = (jnp.arange(N) // S) * S + (S - 2)
    G = (jnp.arange(N)[None, :] == tgt[:, None]).astype(jnp.float32)             # [N, N]
    consts = jnp.stack([full_mask, G])                                           # [2, N, N]

    x_flat = input_embedding.reshape(N, H).astype(jnp.float32)

    # glue: parameter packing / algebraic folding (tiny, outside the kernel)
    ki_w = jnp.stack([params['ki_wl'], params['ki_w2']], axis=1)                 # [2, 2, H, C]
    wm = params['mg_wm']                                                         # [2, 6, D, H]
    mg_wm_folded = jnp.stack([wm[:, 0] + wm[:, 2] + wm[:, 5],                    # acts on z
                              wm[:, 1] - wm[:, 2],                               # acts on V1
                              wm[:, 4] - wm[:, 5],                               # acts on V2
                              wm[:, 3]], axis=1)                                 # acts on z*V1
    smalls = _pack_smalls(params)                                                # [64, 128]

    args = (consts, x_flat, kb_cont, kb_cmask,
            params['bw_attn'], params['bw_i'], params['bw_o'],
            ki_w, mg_wm_folded, params['mg_aw'], smalls)

    # TODO(synk): on v7x split the two independent batches across the 2 TensorCores
    # (grid=(B,), dimension_semantics=("parallel",)) and consider bf16 matmul
    # operands on v6e/v7x; on v5e/v6e (1 TC) a grid only adds per-step overhead,
    # so the whole network stays a single program here.
    out_flat = pl.pallas_call(
        fused_encoder_kernel,
        out_shape=jax.ShapeDtypeStruct((N, H), jnp.float32),
        in_specs=[pl.BlockSpec(memory_space=pltpu.MemorySpace.VMEM) for _ in args],
        out_specs=pl.BlockSpec(memory_space=pltpu.MemorySpace.VMEM),
    )(*args)
    return out_flat.reshape(B, S, H)


# ---- deterministic parameter init (packed / stacked layouts) -----------------
def init_params(key):
    ks = iter(random.split(key, 64))

    def dense(*shape):
        return random.normal(next(ks), shape, jnp.float32) * 0.02

    ln4 = jnp.stack([jnp.ones(H), jnp.zeros(H), jnp.ones(H), jnp.zeros(H)])      # g1,be1,g2,be2
    ln2 = jnp.stack([jnp.ones(H), jnp.zeros(H)])                                 # g, be

    return dict(
        # BERT stack: per-layer weights stacked on the leading axis, q|k|v|o packed.
        bw_attn=dense(NUM_LAYERS, H, 4 * H),
        bb_attn=jnp.zeros((NUM_LAYERS, 1, 4 * H), jnp.float32),
        bw_i=dense(NUM_LAYERS, H, I),
        bb_i=jnp.zeros((NUM_LAYERS, 1, I), jnp.float32),
        bw_o=dense(NUM_LAYERS, I, H),
        bb_o=jnp.zeros((NUM_LAYERS, 1, H), jnp.float32),
        b_ln=jnp.tile(ln4[None], (NUM_LAYERS, 1, 1)).astype(jnp.float32),
        # knowledge_integration (wordnet, nell stacked on axis 0)
        ki_wl=dense(2, H, C),                      # linear (C->H) weight, torch layout [H,C]
        ki_bl=jnp.zeros((2, 1, H), jnp.float32),   # linear bias: softmax-invariant -> unused
        ki_w2=dense(2, H, C),                      # linear2 (H->C), y = x @ W
        ki_b2=jnp.zeros((2, 1, C), jnp.float32),
        # self_matching
        sm_w=dense(2, 3, D),                       # rows: w1, w2, w3 of Linear(3D, 1)
        sm_b=jnp.zeros((2, 1, 1), jnp.float32),
        # merge: linear split into 6 [D,H] blocks + packed cross-attention + LN
        mg_wm=dense(2, 6, D, H),
        mg_bm=jnp.zeros((2, 1, H), jnp.float32),
        mg_aw=dense(2, H, 4 * H),
        mg_ab=jnp.zeros((2, 1, 4 * H), jnp.float32),
        mg_ln=jnp.tile(ln2[None], (2, 1, 1)).astype(jnp.float32),
        # KB embedding tables
        wordnet_embed=dense(V, C),
        nell_embed=dense(V, C),
    )


if __name__ == "__main__":
    key = random.PRNGKey(0)
    pkey, xkey, wkey, nkey, wmk, nmk = random.split(key, 6)
    params = init_params(pkey)

    input_embedding = random.normal(xkey, (B, S, H), jnp.float32)
    attention_mask = jnp.ones((B, S), jnp.float32).at[1, S - 1].set(0.0)
    wordnet_content_id = random.randint(wkey, (B, S, K), 0, V)
    nell_content_id = random.randint(nkey, (B, S, K), 0, V)
    wn_mask = random.bernoulli(wmk, 0.8, (B, S, K1)).astype(jnp.float32).at[:, :, K].set(1.0)
    ne_mask = random.bernoulli(nmk, 0.8, (B, S, K1)).astype(jnp.float32).at[:, :, K].set(1.0)

    out = jax.jit(double_base_mix_encoder_forward)(
        params, input_embedding, attention_mask,
        wordnet_content_id, nell_content_id, wn_mask, ne_mask)
    out = jax.block_until_ready(out)

    assert out.shape == (B, S, H), out.shape
    assert bool(jnp.all(jnp.isfinite(out)))
    print("KERNEL_OK")
</pallas_src>

<mosaic_0001>
module attributes {stable_mosaic.version = 11 : i64} {
  func.func @fused_encoder_kernel(%arg0: memref<2x16x16xf32, #tpu.memory_space<vmem>>, %arg1: memref<16x32xf32, #tpu.memory_space<vmem>>, %arg2: memref<2x7x16x16xf32, #tpu.memory_space<vmem>>, %arg3: memref<2x8x16x1xf32, #tpu.memory_space<vmem>>, %arg4: memref<6x32x128xf32, #tpu.memory_space<vmem>>, %arg5: memref<6x32x64xf32, #tpu.memory_space<vmem>>, %arg6: memref<6x64x32xf32, #tpu.memory_space<vmem>>, %arg7: memref<2x2x32x16xf32, #tpu.memory_space<vmem>>, %arg8: memref<2x4x48x32xf32, #tpu.memory_space<vmem>>, %arg9: memref<2x32x128xf32, #tpu.memory_space<vmem>>, %arg10: memref<64x128xf32, #tpu.memory_space<vmem>>, %arg11: memref<16x32xf32, #tpu.memory_space<vmem>>) attributes {dimension_semantics = [], scalar_prefetch = 0 : i64, scratch_operands = 0 : i64, tpu.core_type = #tpu.core_type<tc>} {
    %c0 = arith.constant 0 : index
    %c0_0 = arith.constant 0 : index
    %c0_1 = arith.constant 0 : index
    %0 = vector.load %arg0[%c0, %c0_0, %c0_1] : memref<2x16x16xf32, #tpu.memory_space<vmem>>, vector<1x16x16xf32>
    %1 = vector.shape_cast %0 : vector<1x16x16xf32> to vector<16x16xf32>
    %c1 = arith.constant 1 : index
    %c0_2 = arith.constant 0 : index
    %c0_3 = arith.constant 0 : index
    %2 = vector.load %arg0[%c1, %c0_2, %c0_3] : memref<2x16x16xf32, #tpu.memory_space<vmem>>, vector<1x16x16xf32>
    %3 = vector.shape_cast %2 : vector<1x16x16xf32> to vector<16x16xf32>
    %c0_4 = arith.constant 0 : index
    %c0_5 = arith.constant 0 : index
    %4 = vector.load %arg1[%c0_4, %c0_5] : memref<16x32xf32, #tpu.memory_space<vmem>>, vector<16x32xf32>
    %c0_6 = arith.constant 0 : index
    %c0_7 = arith.constant 0 : index
    %c0_8 = arith.constant 0 : index
    %5 = vector.load %arg4[%c0_6, %c0_7, %c0_8] : memref<6x32x128xf32, #tpu.memory_space<vmem>>, vector<1x32x128xf32>
    %6 = vector.shape_cast %5 : vector<1x32x128xf32> to vector<32x128xf32>
    %c0_9 = arith.constant 0 : index
    %c0_10 = arith.constant 0 : index
    %7 = vector.load %arg10[%c0_9, %c0_10] : memref<64x128xf32, #tpu.memory_space<vmem>>, vector<1x128xf32>
    %8 = vector.extract_strided_slice %6 {offsets = [0, 0], sizes = [32, 96], strides = [1, 1]} : vector<32x128xf32> to vector<32x96xf32>
    %cst = arith.constant dense<0.000000e+00> : vector<16x96xf32>
    %9 = tpu.matmul %4, %8, %cst {dimension_numbers = #tpu.dot_dimension_numbers<[1], [0], [0], [1], [0, 0, 1, 1], [], []>} : vector<16x32xf32>, vector<32x96xf32>, vector<16x96xf32> -> vector<16x96xf32>
    %10 = vector.extract_strided_slice %7 {offsets = [0, 0], sizes = [1, 96], strides = [1, 1]} : vector<1x128xf32> to vector<1x96xf32>
    %11 = vector.broadcast %10 : vector<1x96xf32> to vector<16x96xf32>
    %12 = arith.addf %9, %11 : vector<16x96xf32>
    %13 = vector.extract_strided_slice %6 {offsets = [0, 96], sizes = [32, 32], strides = [1, 1]} : vector<32x128xf32> to vector<32x32xf32>
    %14 = vector.extract_strided_slice %12 {offsets = [0, 0], sizes = [16, 8], strides = [1, 1]} : vector<16x96xf32> to vector<16x8xf32>
    %15 = vector.extract_strided_slice %12 {offsets = [0, 32], sizes = [16, 8], strides = [1, 1]} : vector<16x96xf32> to vector<16x8xf32>
    %16 = vector.extract_strided_slice %12 {offsets = [0, 64], sizes = [16, 8], strides = [1, 1]} : vector<16x96xf32> to vector<16x8xf32>
    %cst_11 = arith.constant dense<0.000000e+00> : vector<16x16xf32>
    %17 = tpu.matmul %14, %15, %cst_11 {dimension_numbers = #tpu.dot_dimension_numbers<[1], [1], [0], [0], [0, 0, 1, 0], [], []>} : vector<16x8xf32>, vector<16x8xf32>, vector<16x16xf32> -> vector<16x16xf32>
    %cst_12 = arith.constant 0.353553385 : f32
    %18 = vector.broadcast %cst_12 : f32 to vector<16x16xf32>
    %19 = arith.mulf %17, %18 : vector<16x16xf32>
    %20 = arith.addf %19, %1 : vector<16x16xf32>
    %cst_13 = arith.constant dense<0xFF800000> : vector<16xf32>
    %21 = vector.multi_reduction <maximumf>, %20, %cst_13 [1] : vector<16x16xf32> to vector<16xf32>
    %22 = vector.shape_cast %21 : vector<16xf32> to vector<16x1xf32>
    %23 = vector.broadcast %22 : vector<16x1xf32> to vector<16x16xf32>
    %24 = arith.subf %20, %23 : vector<16x16xf32>
    %25 = math.exp %24 : vector<16x16xf32>
    %cst_14 = arith.constant dense<0.000000e+00> : vector<16xf32>
    %26 = vector.multi_reduction <add>, %25, %cst_14 [1] : vector<16x16xf32> to vector<16xf32>
    %27 = vector.shape_cast %26 : vector<16xf32> to vector<16x1xf32>
    %28 = tpu.reciprocal %27 {approx = true} : vector<16x1xf32> -> vector<16x1xf32>
    %29 = vector.broadcast %28 : vector<16x1xf32> to vector<16x16xf32>
    %30 = arith.mulf %25, %29 : vector<16x16xf32>
    %cst_15 = arith.constant dense<0.000000e+00> : vector<16x8xf32>
    %31 = tpu.matmul %30, %16, %cst_15 {dimension_numbers = #tpu.dot_dimension_numbers<[1], [0], [0], [1], [0, 0, 1, 1], [], []>} : vector<16x16xf32>, vector<16x8xf32>, vector<16x8xf32> -> vector<16x8xf32>
    %32 = vector.extract_strided_slice %13 {offsets = [0, 0], sizes = [8, 32], strides = [1, 1]} : vector<32x32xf32> to vector<8x32xf32>
    %cst_16 = arith.constant dense<0.000000e+00> : vector<16x32xf32>
    %33 = tpu.matmul %31, %32, %cst_16 {dimension_numbers = #tpu.dot_dimension_numbers<[1], [0], [0], [1], [0, 0, 1, 1], [], []>} : vector<16x8xf32>, vector<8x32xf32>, vector<16x32xf32> -> vector<16x32xf32>
    %34 = vector.extract_strided_slice %12 {offsets = [0, 8], sizes = [16, 8], strides = [1, 1]} : vector<16x96xf32> to vector<16x8xf32>
    %35 = vector.extract_strided_slice %12 {offsets = [0, 40], sizes = [16, 8], strides = [1, 1]} : vector<16x96xf32> to vector<16x8xf32>
    %36 = vector.extract_strided_slice %12 {offsets = [0, 72], sizes = [16, 8], strides = [1, 1]} : vector<16x96xf32> to vector<16x8xf32>
    %cst_17 = arith.constant dense<0.000000e+00> : vector<16x16xf32>
    %37 = tpu.matmul %34, %35, %cst_17 {dimension_numbers = #tpu.dot_dimension_numbers<[1], [1], [0], [0], [0, 0, 1, 0], [], []>} : vector<16x8xf32>, vector<16x8xf32>, vector<16x16xf32> -> vector<16x16xf32>
    %cst_18 = arith.constant 0.353553385 : f32
    %38 = vector.broadcast %cst_18 : f32 to vector<16x16xf32>
    %39 = arith.mulf %37, %38 : vector<16x16xf32>
    %40 = arith.addf %39, %1 : vector<16x16xf32>
    %cst_19 = arith.constant dense<0xFF800000> : vector<16xf32>
    %41 = vector.multi_reduction <maximumf>, %40, %cst_19 [1] : vector<16x16xf32> to vector<16xf32>
    %42 = vector.shape_cast %41 : vector<16xf32> to vector<16x1xf32>
    %43 = vector.broadcast %42 : vector<16x1xf32> to vector<16x16xf32>
    %44 = arith.subf %40, %43 : vector<16x16xf32>
    %45 = math.exp %44 : vector<16x16xf32>
    %cst_20 = arith.constant dense<0.000000e+00> : vector<16xf32>
    %46 = vector.multi_reduction <add>, %45, %cst_20 [1] : vector<16x16xf32> to vector<16xf32>
    %47 = vector.shape_cast %46 : vector<16xf32> to vector<16x1xf32>
    %48 = tpu.reciprocal %47 {approx = true} : vector<16x1xf32> -> vector<16x1xf32>
    %49 = vector.broadcast %48 : vector<16x1xf32> to vector<16x16xf32>
    %50 = arith.mulf %45, %49 : vector<16x16xf32>
    %cst_21 = arith.constant dense<0.000000e+00> : vector<16x8xf32>
    %51 = tpu.matmul %50, %36, %cst_21 {dimension_numbers = #tpu.dot_dimension_numbers<[1], [0], [0], [1], [0, 0, 1, 1], [], []>} : vector<16x16xf32>, vector<16x8xf32>, vector<16x8xf32> -> vector<16x8xf32>
    %52 = vector.extract_strided_slice %13 {offsets = [8, 0], sizes = [8, 32], strides = [1, 1]} : vector<32x32xf32> to vector<8x32xf32>
    %cst_22 = arith.constant dense<0.000000e+00> : vector<16x32xf32>
    %53 = tpu.matmul %51, %52, %cst_22 {dimension_numbers = #tpu.dot_dimension_numbers<[1], [0], [0], [1], [0, 0, 1, 1], [], []>} : vector<16x8xf32>, vector<8x32xf32>, vector<16x32xf32> -> vector<16x32xf32>
    %54 = arith.addf %33, %53 : vector<16x32xf32>
    %55 = vector.extract_strided_slice %12 {offsets = [0, 16], sizes = [16, 8], strides = [1, 1]} : vector<16x96xf32> to vector<16x8xf32>
    %56 = vector.extract_strided_slice %12 {offsets = [0, 48], sizes = [16, 8], strides = [1, 1]} : vector<16x96xf32> to vector<16x8xf32>
    %57 = vector.extract_strided_slice %12 {offsets = [0, 80], sizes = [16, 8], strides = [1, 1]} : vector<16x96xf32> to vector<16x8xf32>
    %cst_23 = arith.constant dense<0.000000e+00> : vector<16x16xf32>
    %58 = tpu.matmul %55, %56, %cst_23 {dimension_numbers = #tpu.dot_dimension_numbers<[1], [1], [0], [0], [0, 0, 1, 0], [], []>} : vector<16x8xf32>, vector<16x8xf32>, vector<16x16xf32> -> vector<16x16xf32>
    %cst_24 = arith.constant 0.353553385 : f32
    %59 = vector.broadcast %cst_24 : f32 to vector<16x16xf32>
    %60 = arith.mulf %58, %59 : vector<16x16xf32>
    %61 = arith.addf %60, %1 : vector<16x16xf32>
    %cst_25 = arith.constant dense<0xFF800000> : vector<16xf32>
    %62 = vector.multi_reduction <maximumf>, %61, %cst_25 [1] : vector<16x16xf32> to vector<16xf32>
    %63 = vector.shape_cast %62 : vector<16xf32> to vector<16x1xf32>
    %64 = vector.broadcast %63 : vector<16x1xf32> to vector<16x16xf32>
    %65 = arith.subf %61, %64 : vector<16x16xf32>
    %66 = math.exp %65 : vector<16x16xf32>
    %cst_26 = arith.constant dense<0.000000e+00> : vector<16xf32>
    %67 = vector.multi_reduction <add>, %66, %cst_26 [1] : vector<16x16xf32> to vector<16xf32>
    %68 = vector.shape_cast %67 : vector<16xf32> to vector<16x1xf32>
    %69 = tpu.reciprocal %68 {approx = true} : vector<16x1xf32> -> vector<16x1xf32>
    %70 = vector.broadcast %69 : vector<16x1xf32> to vector<16x16xf32>
    %71 = arith.mulf %66, %70 : vector<16x16xf32>
    %cst_27 = arith.constant dense<0.000000e+00> : vector<16x8xf32>
    %72 = tpu.matmul %71, %57, %cst_27 {dimension_numbers = #tpu.dot_dimension_numbers<[1], [0], [0], [1], [0, 0, 1, 1], [], []>} : vector<16x16xf32>, vector<16x8xf32>, vector<16x8xf32> -> vector<16x8xf32>
    %73 = vector.extract_strided_slice %13 {offsets = [16, 0], sizes = [8, 32], strides = [1, 1]} : vector<32x32xf32> to vector<8x32xf32>
    %cst_28 = arith.constant dense<0.000000e+00> : vector<16x32xf32>
    %74 = tpu.matmul %72, %73, %cst_28 {dimension_numbers = #tpu.dot_dimension_numbers<[1], [0], [0], [1], [0, 0, 1, 1], [], []>} : vector<16x8xf32>, vector<8x32xf32>, vector<16x32xf32> -> vector<16x32xf32>
    %75 = arith.addf %54, %74 : vector<16x32xf32>
    %76 = vector.extract_strided_slice %12 {offsets = [0, 24], sizes = [16, 8], strides = [1, 1]} : vector<16x96xf32> to vector<16x8xf32>
    %77 = vector.extract_strided_slice %12 {offsets = [0, 56], sizes = [16, 8], strides = [1, 1]} : vector<16x96xf32> to vector<16x8xf32>
    %78 = vector.extract_strided_slice %12 {offsets = [0, 88], sizes = [16, 8], strides = [1, 1]} : vector<16x96xf32> to vector<16x8xf32>
    %cst_29 = arith.constant dense<0.000000e+00> : vector<16x16xf32>
    %79 = tpu.matmul %76, %77, %cst_29 {dimension_numbers = #tpu.dot_dimension_numbers<[1], [1], [0], [0], [0, 0, 1, 0], [], []>} : vector<16x8xf32>, vector<16x8xf32>, vector<16x16xf32> -> vector<16x16xf32>
    %cst_30 = arith.constant 0.353553385 : f32
    %80 = vector.broadcast %cst_30 : f32 to vector<16x16xf32>
    %81 = arith.mulf %79, %80 : vector<16x16xf32>
    %82 = arith.addf %81, %1 : vector<16x16xf32>
    %cst_31 = arith.constant dense<0xFF800000> : vector<16xf32>
    %83 = vector.multi_reduction <maximumf>, %82, %cst_31 [1] : vector<16x16xf32> to vector<16xf32>
    %84 = vector.shape_cast %83 : vector<16xf32> to vector<16x1xf32>
    %85 = vector.broadcast %84 : vector<16x1xf32> to vector<16x16xf32>
    %86 = arith.subf %82, %85 : vector<16x16xf32>
    %87 = math.exp %86 : vector<16x16xf32>
    %cst_32 = arith.constant dense<0.000000e+00> : vector<16xf32>
    %88 = vector.multi_reduction <add>, %87, %cst_32 [1] : vector<16x16xf32> to vector<16xf32>
    %89 = vector.shape_cast %88 : vector<16xf32> to vector<16x1xf32>
    %90 = tpu.reciprocal %89 {approx = true} : vector<16x1xf32> -> vector<16x1xf32>
    %91 = vector.broadcast %90 : vector<16x1xf32> to vector<16x16xf32>
    %92 = arith.mulf %87, %91 : vector<16x16xf32>
    %cst_33 = arith.constant dense<0.000000e+00> : vector<16x8xf32>
    %93 = tpu.matmul %92, %78, %cst_33 {dimension_numbers = #tpu.dot_dimension_numbers<[1], [0], [0], [1], [0, 0, 1, 1], [], []>} : vector<16x16xf32>, vector<16x8xf32>, vector<16x8xf32> -> vector<16x8xf32>
    %94 = vector.extract_strided_slice %13 {offsets = [24, 0], sizes = [8, 32], strides = [1, 1]} : vector<32x32xf32> to vector<8x32xf32>
    %cst_34 = arith.constant dense<0.000000e+00> : vector<16x32xf32>
    %95 = tpu.matmul %93, %94, %cst_34 {dimension_numbers = #tpu.dot_dimension_numbers<[1], [0], [0], [1], [0, 0, 1, 1], [], []>} : vector<16x8xf32>, vector<8x32xf32>, vector<16x32xf32> -> vector<16x32xf32>
    %96 = arith.addf %75, %95 : vector<16x32xf32>
    %97 = vector.extract_strided_slice %7 {offsets = [0, 96], sizes = [1, 32], strides = [1, 1]} : vector<1x128xf32> to vector<1x32xf32>
    %98 = vector.broadcast %97 : vector<1x32xf32> to vector<16x32xf32>
    %99 = arith.addf %96, %98 : vector<16x32xf32>
    %100 = arith.addf %4, %99 : vector<16x32xf32>
    %c3 = arith.constant 3 : index
    %c0_35 = arith.constant 0 : index
    %101 = vector.load %arg10[%c3, %c0_35] : memref<64x128xf32, #tpu.memory_space<vmem>>, vector<1x32xf32>
    %c4 = arith.constant 4 : index
    %c0_36 = arith.constant 0 : index
    %102 = vector.load %arg10[%c4, %c0_36] : memref<64x128xf32, #tpu.memory_space<vmem>>, vector<1x32xf32>
    %cst_37 = arith.constant dense<0.000000e+00> : vector<16xf32>
    %103 = vector.multi_reduction <add>, %100, %cst_37 [1] : vector<16x32xf32> to vector<16xf32>
    %104 = vector.shape_cast %103 : vector<16xf32> to vector<16x1xf32>
    %cst_38 = arith.constant 3.200000e+01 : f32
    %105 = vector.broadcast %cst_38 : f32 to vector<16x1xf32>
    %106 = arith.divf %104, %105 : vector<16x1xf32>
    %107 = vector.broadcast %106 : vector<16x1xf32> to vector<16x32xf32>
    %108 = arith.subf %100, %107 : vector<16x32xf32>
    %109 = arith.mulf %108, %108 : vector<16x32xf32>
    %cst_39 = arith.constant dense<0.000000e+00> : vector<16xf32>
    %110 = vector.multi_reduction <add>, %109, %cst_39 [1] : vector<16x32xf32> to vector<16xf32>
    %111 = vector.shape_cast %110 : vector<16xf32> to vector<16x1xf32>
    %cst_40 = arith.constant 3.200000e+01 : f32
    %112 = vector.broadcast %cst_40 : f32 to vector<16x1xf32>
    %113 = arith.divf %111, %112 : vector<16x1xf32>
    %114 = vector.broadcast %106 : vector<16x1xf32> to vector<16x32xf32>
    %115 = arith.subf %100, %114 : vector<16x32xf32>
    %cst_41 = arith.constant 9.99999996E-13 : f32
    %116 = vector.broadcast %cst_41 : f32 to vector<16x1xf32>
    %117 = arith.addf %113, %116 : vector<16x1xf32>
    %118 = math.rsqrt %117 : vector<16x1xf32>
    %119 = vector.broadcast %118 : vector<16x1xf32> to vector<16x32xf32>
    %120 = arith.mulf %115, %119 : vector<16x32xf32>
    %121 = vector.broadcast %101 : vector<1x32xf32> to vector<16x32xf32>
    %122 = arith.mulf %120, %121 : vector<16x32xf32>
    %123 = vector.broadcast %102 : vector<1x32xf32> to vector<16x32xf32>
    %124 = arith.addf %122, %123 : vector<16x32xf32>
    %c0_42 = arith.constant 0 : index
    %c0_43 = arith.constant 0 : index
    %c0_44 = arith.constant 0 : index
    %125 = vector.load %arg5[%c0_42, %c0_43, %c0_44] : memref<6x32x64xf32, #tpu.memory_space<vmem>>, vector<1x32x64xf32>
    %126 = vector.shape_cast %125 : vector<1x32x64xf32> to vector<32x64xf32>
    %cst_45 = arith.constant dense<0.000000e+00> : vector<16x64xf32>
    %127 = tpu.matmul %124, %126, %cst_45 {dimension_numbers = #tpu.dot_dimension_numbers<[1], [0], [0], [1], [0, 0, 1, 1], [], []>} : vector<16x32xf32>, vector<32x64xf32>, vector<16x64xf32> -> vector<16x64xf32>
    %c1_46 = arith.constant 1 : index
    %c0_47 = arith.constant 0 : index
    %128 = vector.load %arg10[%c1_46, %c0_47] : memref<64x128xf32, #tpu.memory_space<vmem>>, vector<1x64xf32>
    %129 = vector.broadcast %128 : vector<1x64xf32> to vector<16x64xf32>
    %130 = arith.addf %127, %129 : vector<16x64xf32>
    %cst_48 = arith.constant 5.000000e-01 : f32
    %131 = vector.broadcast %cst_48 : f32 to vector<16x64xf32>
    %132 = arith.mulf %131, %130 : vector<16x64xf32>
    %cst_49 = arith.constant 4.471500e-02 : f32
    %133 = vector.broadcast %cst_49 : f32 to vector<16x64xf32>
    %134 = arith.mulf %133, %130 : vector<16x64xf32>
    %135 = arith.mulf %134, %130 : vector<16x64xf32>
    %136 = arith.mulf %135, %130 : vector<16x64xf32>
    %137 = arith.addf %130, %136 : vector<16x64xf32>
    %cst_50 = arith.constant 0.797884583 : f32
    %138 = vector.broadcast %cst_50 : f32 to vector<16x64xf32>
    %139 = arith.mulf %138, %137 : vector<16x64xf32>
    %140 = math.tanh %139 : vector<16x64xf32>
    %cst_51 = arith.constant 1.000000e+00 : f32
    %141 = vector.broadcast %cst_51 : f32 to vector<16x64xf32>
    %142 = arith.addf %141, %140 : vector<16x64xf32>
    %143 = arith.mulf %132, %142 : vector<16x64xf32>
    %c0_52 = arith.constant 0 : index
    %c0_53 = arith.constant 0 : index
    %c0_54 = arith.constant 0 : index
    %144 = vector.load %arg6[%c0_52, %c0_53, %c0_54] : memref<6x64x32xf32, #tpu.memory_space<vmem>>, vector<1x64x32xf32>
    %145 = vector.shape_cast %144 : vector<1x64x32xf32> to vector<64x32xf32>
    %cst_55 = arith.constant dense<0.000000e+00> : vector<16x32xf32>
    %146 = tpu.matmul %143, %145, %cst_55 {dimension_numbers = #tpu.dot_dimension_numbers<[1], [0], [0], [1], [0, 0, 1, 1], [], []>} : vector<16x64xf32>, vector<64x32xf32>, vector<16x32xf32> -> vector<16x32xf32>
    %c2 = arith.constant 2 : index
    %c0_56 = arith.constant 0 : index
    %147 = vector.load %arg10[%c2, %c0_56] : memref<64x128xf32, #tpu.memory_space<vmem>>, vector<1x32xf32>
    %148 = vector.broadcast %147 : vector<1x32xf32> to vector<16x32xf32>
    %149 = arith.addf %146, %148 : vector<16x32xf32>
    %150 = arith.addf %124, %149 : vector<16x32xf32>
    %c5 = arith.constant 5 : index
    %c0_57 = arith.constant 0 : index
    %151 = vector.load %arg10[%c5, %c0_57] : memref<64x128xf32, #tpu.memory_space<vmem>>, vector<1x32xf32>
    %c6 = arith.constant 6 : index
    %c0_58 = arith.constant 0 : index
    %152 = vector.load %arg10[%c6, %c0_58] : memref<64x128xf32, #tpu.memory_space<vmem>>, vector<1x32xf32>
    %cst_59 = arith.constant dense<0.000000e+00> : vector<16xf32>
    %153 = vector.multi_reduction <add>, %150, %cst_59 [1] : vector<16x32xf32> to vector<16xf32>
    %154 = vector.shape_cast %153 : vector<16xf32> to vector<16x1xf32>
    %cst_60 = arith.constant 3.200000e+01 : f32
    %155 = vector.broadcast %cst_60 : f32 to vector<16x1xf32>
    %156 = arith.divf %154, %155 : vector<16x1xf32>
    %157 = vector.broadcast %156 : vector<16x1xf32> to vector<16x32xf32>
    %158 = arith.subf %150, %157 : vector<16x32xf32>
    %159 = arith.mulf %158, %158 : vector<16x32xf32>
    %cst_61 = arith.constant dense<0.000000e+00> : vector<16xf32>
    %160 = vector.multi_reduction <add>, %159, %cst_61 [1] : vector<16x32xf32> to vector<16xf32>
    %161 = vector.shape_cast %160 : vector<16xf32> to vector<16x1xf32>
    %cst_62 = arith.constant 3.200000e+01 : f32
    %162 = vector.broadcast %cst_62 : f32 to vector<16x1xf32>
    %163 = arith.divf %161, %162 : vector<16x1xf32>
    %164 = vector.broadcast %156 : vector<16x1xf32> to vector<16x32xf32>
    %165 = arith.subf %150, %164 : vector<16x32xf32>
    %cst_63 = arith.constant 9.99999996E-13 : f32
    %166 = vector.broadcast %cst_63 : f32 to vector<16x1xf32>
    %167 = arith.addf %163, %166 : vector<16x1xf32>
    %168 = math.rsqrt %167 : vector<16x1xf32>
    %169 = vector.broadcast %168 : vector<16x1xf32> to vector<16x32xf32>
    %170 = arith.mulf %165, %169 : vector<16x32xf32>
    %171 = vector.broadcast %151 : vector<1x32xf32> to vector<16x32xf32>
    %172 = arith.mulf %170, %171 : vector<16x32xf32>
    %173 = vector.broadcast %152 : vector<1x32xf32> to vector<16x32xf32>
    %174 = arith.addf %172, %173 : vector<16x32xf32>
    %c1_64 = arith.constant 1 : index
    %c0_65 = arith.constant 0 : index
    %c0_66 = arith.constant 0 : index
    %175 = vector.load %arg4[%c1_64, %c0_65, %c0_66] : memref<6x32x128xf32, #tpu.memory_space<vmem>>, vector<1x32x128xf32>
    %176 = vector.shape_cast %175 : vector<1x32x128xf32> to vector<32x128xf32>
    %c7 = arith.constant 7 : index
    %c0_67 = arith.constant 0 : index
    %177 = vector.load %arg10[%c7, %c0_67] : memref<64x128xf32, #tpu.memory_space<vmem>>, vector<1x128xf32>
    %178 = vector.extract_strided_slice %176 {offsets = [0, 0], sizes = [32, 96], strides = [1, 1]} : vector<32x128xf32> to vector<32x96xf32>
    %cst_68 = arith.constant dense<0.000000e+00> : vector<16x96xf32>
    %179 = tpu.matmul %174, %178, %cst_68 {dimension_numbers = #tpu.dot_dimension_numbers<[1], [0], [0], [1], [0, 0, 1, 1], [], []>} : vector<16x32xf32>, vector<32x96xf32>, vector<16x96xf32> -> vector<16x96xf32>
    %180 = vector.extract_strided_slice %177 {offsets = [0, 0], sizes = [1, 96], strides = [1, 1]} : vector<1x128xf32> to vector<1x96xf32>
    %181 = vector.broadcast %180 : vector<1x96xf32> to vector<16x96xf32>
    %182 = arith.addf %179, %181 : vector<16x96xf32>
    %183 = vector.extract_strided_slice %176 {offsets = [0, 96], sizes = [32, 32], strides = [1, 1]} : vector<32x128xf32> to vector<32x32xf32>
    %184 = vector.extract_strided_slice %182 {offsets = [0, 0], sizes = [16, 8], strides = [1, 1]} : vector<16x96xf32> to vector<16x8xf32>
    %185 = vector.extract_strided_slice %182 {offsets = [0, 32], sizes = [16, 8], strides = [1, 1]} : vector<16x96xf32> to vector<16x8xf32>
    %186 = vector.extract_strided_slice %182 {offsets = [0, 64], sizes = [16, 8], strides = [1, 1]} : vector<16x96xf32> to vector<16x8xf32>
    %cst_69 = arith.constant dense<0.000000e+00> : vector<16x16xf32>
    %187 = tpu.matmul %184, %185, %cst_69 {dimension_numbers = #tpu.dot_dimension_numbers<[1], [1], [0], [0], [0, 0, 1, 0], [], []>} : vector<16x8xf32>, vector<16x8xf32>, vector<16x16xf32> -> vector<16x16xf32>
    %cst_70 = arith.constant 0.353553385 : f32
    %188 = vector.broadcast %cst_70 : f32 to vector<16x16xf32>
    %189 = arith.mulf %187, %188 : vector<16x16xf32>
    %190 = arith.addf %189, %1 : vector<16x16xf32>
    %cst_71 = arith.constant dense<0xFF800000> : vector<16xf32>
    %191 = vector.multi_reduction <maximumf>, %190, %cst_71 [1] : vector<16x16xf32> to vector<16xf32>
    %192 = vector.shape_cast %191 : vector<16xf32> to vector<16x1xf32>
    %193 = vector.broadcast %192 : vector<16x1xf32> to vector<16x16xf32>
    %194 = arith.subf %190, %193 : vector<16x16xf32>
    %195 = math.exp %194 : vector<16x16xf32>
    %cst_72 = arith.constant dense<0.000000e+00> : vector<16xf32>
    %196 = vector.multi_reduction <add>, %195, %cst_72 [1] : vector<16x16xf32> to vector<16xf32>
    %197 = vector.shape_cast %196 : vector<16xf32> to vector<16x1xf32>
    %198 = tpu.reciprocal %197 {approx = true} : vector<16x1xf32> -> vector<16x1xf32>
    %199 = vector.broadcast %198 : vector<16x1xf32> to vector<16x16xf32>
    %200 = arith.mulf %195, %199 : vector<16x16xf32>
    %cst_73 = arith.constant dense<0.000000e+00> : vector<16x8xf32>
    %201 = tpu.matmul %200, %186, %cst_73 {dimension_numbers = #tpu.dot_dimension_numbers<[1], [0], [0], [1], [0, 0, 1, 1], [], []>} : vector<16x16xf32>, vector<16x8xf32>, vector<16x8xf32> -> vector<16x8xf32>
    %202 = vector.extract_strided_slice %183 {offsets = [0, 0], sizes = [8, 32], strides = [1, 1]} : vector<32x32xf32> to vector<8x32xf32>
    %cst_74 = arith.constant dense<0.000000e+00> : vector<16x32xf32>
    %203 = tpu.matmul %201, %202, %cst_74 {dimension_numbers = #tpu.dot_dimension_numbers<[1], [0], [0], [1], [0, 0, 1, 1], [], []>} : vector<16x8xf32>, vector<8x32xf32>, vector<16x32xf32> -> vector<16x32xf32>
    %204 = vector.extract_strided_slice %182 {offsets = [0, 8], sizes = [16, 8], strides = [1, 1]} : vector<16x96xf32> to vector<16x8xf32>
    %205 = vector.extract_strided_slice %182 {offsets = [0, 40], sizes = [16, 8], strides = [1, 1]} : vector<16x96xf32> to vector<16x8xf32>
    %206 = vector.extract_strided_slice %182 {offsets = [0, 72], sizes = [16, 8], strides = [1, 1]} : vector<16x96xf32> to vector<16x8xf32>
    %cst_75 = arith.constant dense<0.000000e+00> : vector<16x16xf32>
    %207 = tpu.matmul %204, %205, %cst_75 {dimension_numbers = #tpu.dot_dimension_numbers<[1], [1], [0], [0], [0, 0, 1, 0], [], []>} : vector<16x8xf32>, vector<16x8xf32>, vector<16x16xf32> -> vector<16x16xf32>
    %cst_76 = arith.constant 0.353553385 : f32
    %208 = vector.broadcast %cst_76 : f32 to vector<16x16xf32>
    %209 = arith.mulf %207, %208 : vector<16x16xf32>
    %210 = arith.addf %209, %1 : vector<16x16xf32>
    %cst_77 = arith.constant dense<0xFF800000> : vector<16xf32>
    %211 = vector.multi_reduction <maximumf>, %210, %cst_77 [1] : vector<16x16xf32> to vector<16xf32>
    %212 = vector.shape_cast %211 : vector<16xf32> to vector<16x1xf32>
    %213 = vector.broadcast %212 : vector<16x1xf32> to vector<16x16xf32>
    %214 = arith.subf %210, %213 : vector<16x16xf32>
    %215 = math.exp %214 : vector<16x16xf32>
    %cst_78 = arith.constant dense<0.000000e+00> : vector<16xf32>
    %216 = vector.multi_reduction <add>, %215, %cst_78 [1] : vector<16x16xf32> to vector<16xf32>
    %217 = vector.shape_cast %216 : vector<16xf32> to vector<16x1xf32>
    %218 = tpu.reciprocal %217 {approx = true} : vector<16x1xf32> -> vector<16x1xf32>
    %219 = vector.broadcast %218 : vector<16x1xf32> to vector<16x16xf32>
    %220 = arith.mulf %215, %219 : vector<16x16xf32>
    %cst_79 = arith.constant dense<0.000000e+00> : vector<16x8xf32>
    %221 = tpu.matmul %220, %206, %cst_79 {dimension_numbers = #tpu.dot_dimension_numbers<[1], [0], [0], [1], [0, 0, 1, 1], [], []>} : vector<16x16xf32>, vector<16x8xf32>, vector<16x8xf32> -> vector<16x8xf32>
    %222 = vector.extract_strided_slice %183 {offsets = [8, 0], sizes = [8, 32], strides = [1, 1]} : vector<32x32xf32> to vector<8x32xf32>
    %cst_80 = arith.constant dense<0.000000e+00> : vector<16x32xf32>
    %223 = tpu.matmul %221, %222, %cst_80 {dimension_numbers = #tpu.dot_dimension_numbers<[1], [0], [0], [1], [0, 0, 1, 1], [], []>} : vector<16x8xf32>, vector<8x32xf32>, vector<16x32xf32> -> vector<16x32xf32>
    %224 = arith.addf %203, %223 : vector<16x32xf32>
    %225 = vector.extract_strided_slice %182 {offsets = [0, 16], sizes = [16, 8], strides = [1, 1]} : vector<16x96xf32> to vector<16x8xf32>
    %226 = vector.extract_strided_slice %182 {offsets = [0, 48], sizes = [16, 8], strides = [1, 1]} : vector<16x96xf32> to vector<16x8xf32>
    %227 = vector.extract_strided_slice %182 {offsets = [0, 80], sizes = [16, 8], strides = [1, 1]} : vector<16x96xf32> to vector<16x8xf32>
    %cst_81 = arith.constant dense<0.000000e+00> : vector<16x16xf32>
    %228 = tpu.matmul %225, %226, %cst_81 {dimension_numbers = #tpu.dot_dimension_numbers<[1], [1], [0], [0], [0, 0, 1, 0], [], []>} : vector<16x8xf32>, vector<16x8xf32>, vector<16x16xf32> -> vector<16x16xf32>
    %cst_82 = arith.constant 0.353553385 : f32
    %229 = vector.broadcast %cst_82 : f32 to vector<16x16xf32>
    %230 = arith.mulf %228, %229 : vector<16x16xf32>
    %231 = arith.addf %230, %1 : vector<16x16xf32>
    %cst_83 = arith.constant dense<0xFF800000> : vector<16xf32>
    %232 = vector.multi_reduction <maximumf>, %231, %cst_83 [1] : vector<16x16xf32> to vector<16xf32>
    %233 = vector.shape_cast %232 : vector<16xf32> to vector<16x1xf32>
    %234 = vector.broadcast %233 : vector<16x1xf32> to vector<16x16xf32>
    %235 = arith.subf %231, %234 : vector<16x16xf32>
    %236 = math.exp %235 : vector<16x16xf32>
    %cst_84 = arith.constant dense<0.000000e+00> : vector<16xf32>
    %237 = vector.multi_reduction <add>, %236, %cst_84 [1] : vector<16x16xf32> to vector<16xf32>
    %238 = vector.shape_cast %237 : vector<16xf32> to vector<16x1xf32>
    %239 = tpu.reciprocal %238 {approx = true} : vector<16x1xf32> -> vector<16x1xf32>
    %240 = vector.broadcast %239 : vector<16x1xf32> to vector<16x16xf32>
    %241 = arith.mulf %236, %240 : vector<16x16xf32>
    %cst_85 = arith.constant dense<0.000000e+00> : vector<16x8xf32>
    %242 = tpu.matmul %241, %227, %cst_85 {dimension_numbers = #tpu.dot_dimension_numbers<[1], [0], [0], [1], [0, 0, 1, 1], [], []>} : vector<16x16xf32>, vector<16x8xf32>, vector<16x8xf32> -> vector<16x8xf32>
    %243 = vector.extract_strided_slice %183 {offsets = [16, 0], sizes = [8, 32], strides = [1, 1]} : vector<32x32xf32> to vector<8x32xf32>
    %cst_86 = arith.constant dense<0.000000e+00> : vector<16x32xf32>
    %244 = tpu.matmul %242, %243, %cst_86 {dimension_numbers = #tpu.dot_dimension_numbers<[1], [0], [0], [1], [0, 0, 1, 1], [], []>} : vector<16x8xf32>, vector<8x32xf32>, vector<16x32xf32> -> vector<16x32xf32>
    %245 = arith.addf %224, %244 : vector<16x32xf32>
    %246 = vector.extract_strided_slice %182 {offsets = [0, 24], sizes = [16, 8], strides = [1, 1]} : vector<16x96xf32> to vector<16x8xf32>
    %247 = vector.extract_strided_slice %182 {offsets = [0, 56], sizes = [16, 8], strides = [1, 1]} : vector<16x96xf32> to vector<16x8xf32>
    %248 = vector.extract_strided_slice %182 {offsets = [0, 88], sizes = [16, 8], strides = [1, 1]} : vector<16x96xf32> to vector<16x8xf32>
    %cst_87 = arith.constant dense<0.000000e+00> : vector<16x16xf32>
    %249 = tpu.matmul %246, %247, %cst_87 {dimension_numbers = #tpu.dot_dimension_numbers<[1], [1], [0], [0], [0, 0, 1, 0], [], []>} : vector<16x8xf32>, vector<16x8xf32>, vector<16x16xf32> -> vector<16x16xf32>
    %cst_88 = arith.constant 0.353553385 : f32
    %250 = vector.broadcast %cst_88 : f32 to vector<16x16xf32>
    %251 = arith.mulf %249, %250 : vector<16x16xf32>
    %252 = arith.addf %251, %1 : vector<16x16xf32>
    %cst_89 = arith.constant dense<0xFF800000> : vector<16xf32>
    %253 = vector.multi_reduction <maximumf>, %252, %cst_89 [1] : vector<16x16xf32> to vector<16xf32>
    %254 = vector.shape_cast %253 : vector<16xf32> to vector<16x1xf32>
    %255 = vector.broadcast %254 : vector<16x1xf32> to vector<16x16xf32>
    %256 = arith.subf %252, %255 : vector<16x16xf32>
    %257 = math.exp %256 : vector<16x16xf32>
    %cst_90 = arith.constant dense<0.000000e+00> : vector<16xf32>
    %258 = vector.multi_reduction <add>, %257, %cst_90 [1] : vector<16x16xf32> to vector<16xf32>
    %259 = vector.shape_cast %258 : vector<16xf32> to vector<16x1xf32>
    %260 = tpu.reciprocal %259 {approx = true} : vector<16x1xf32> -> vector<16x1xf32>
    %261 = vector.broadcast %260 : vector<16x1xf32> to vector<16x16xf32>
    %262 = arith.mulf %257, %261 : vector<16x16xf32>
    %cst_91 = arith.constant dense<0.000000e+00> : vector<16x8xf32>
    %263 = tpu.matmul %262, %248, %cst_91 {dimension_numbers = #tpu.dot_dimension_numbers<[1], [0], [0], [1], [0, 0, 1, 1], [], []>} : vector<16x16xf32>, vector<16x8xf32>, vector<16x8xf32> -> vector<16x8xf32>
    %264 = vector.extract_strided_slice %183 {offsets = [24, 0], sizes = [8, 32], strides = [1, 1]} : vector<32x32xf32> to vector<8x32xf32>
    %cst_92 = arith.constant dense<0.000000e+00> : vector<16x32xf32>
    %265 = tpu.matmul %263, %264, %cst_92 {dimension_numbers = #tpu.dot_dimension_numbers<[1], [0], [0], [1], [0, 0, 1, 1], [], []>} : vector<16x8xf32>, vector<8x32xf32>, vector<16x32xf32> -> vector<16x32xf32>
    %266 = arith.addf %245, %265 : vector<16x32xf32>
    %267 = vector.extract_strided_slice %177 {offsets = [0, 96], sizes = [1, 32], strides = [1, 1]} : vector<1x128xf32> to vector<1x32xf32>
    %268 = vector.broadcast %267 : vector<1x32xf32> to vector<16x32xf32>
    %269 = arith.addf %266, %268 : vector<16x32xf32>
    %270 = arith.addf %174, %269 : vector<16x32xf32>
    %c10 = arith.constant 10 : index
    %c0_93 = arith.constant 0 : index
    %271 = vector.load %arg10[%c10, %c0_93] : memref<64x128xf32, #tpu.memory_space<vmem>>, vector<1x32xf32>
    %c11 = arith.constant 11 : index
    %c0_94 = arith.constant 0 : index
    %272 = vector.load %arg10[%c11, %c0_94] : memref<64x128xf32, #tpu.memory_space<vmem>>, vector<1x32xf32>
    %cst_95 = arith.constant dense<0.000000e+00> : vector<16xf32>
    %273 = vector.multi_reduction <add>, %270, %cst_95 [1] : vector<16x32xf32> to vector<16xf32>
    %274 = vector.shape_cast %273 : vector<16xf32> to vector<16x1xf32>
    %cst_96 = arith.constant 3.200000e+01 : f32
    %275 = vector.broadcast %cst_96 : f32 to vector<16x1xf32>
    %276 = arith.divf %274, %275 : vector<16x1xf32>
    %277 = vector.broadcast %276 : vector<16x1xf32> to vector<16x32xf32>
    %278 = arith.subf %270, %277 : vector<16x32xf32>
    %279 = arith.mulf %278, %278 : vector<16x32xf32>
    %cst_97 = arith.constant dense<0.000000e+00> : vector<16xf32>
    %280 = vector.multi_reduction <add>, %279, %cst_97 [1] : vector<16x32xf32> to vector<16xf32>
    %281 = vector.shape_cast %280 : vector<16xf32> to vector<16x1xf32>
    %cst_98 = arith.constant 3.200000e+01 : f32
    %282 = vector.broadcast %cst_98 : f32 to vector<16x1xf32>
    %283 = arith.divf %281, %282 : vector<16x1xf32>
    %284 = vector.broadcast %276 : vector<16x1xf32> to vector<16x32xf32>
    %285 = arith.subf %270, %284 : vector<16x32xf32>
    %cst_99 = arith.constant 9.99999996E-13 : f32
    %286 = vector.broadcast %cst_99 : f32 to vector<16x1xf32>
    %287 = arith.addf %283, %286 : vector<16x1xf32>
    %288 = math.rsqrt %287 : vector<16x1xf32>
    %289 = vector.broadcast %288 : vector<16x1xf32> to vector<16x32xf32>
    %290 = arith.mulf %285, %289 : vector<16x32xf32>
    %291 = vector.broadcast %271 : vector<1x32xf32> to vector<16x32xf32>
    %292 = arith.mulf %290, %291 : vector<16x32xf32>
    %293 = vector.broadcast %272 : vector<1x32xf32> to vector<16x32xf32>
    %294 = arith.addf %292, %293 : vector<16x32xf32>
    %c1_100 = arith.constant 1 : index
    %c0_101 = arith.constant 0 : index
    %c0_102 = arith.constant 0 : index
    %295 = vector.load %arg5[%c1_100, %c0_101, %c0_102] : memref<6x32x64xf32, #tpu.memory_space<vmem>>, vector<1x32x64xf32>
    %296 = vector.shape_cast %295 : vector<1x32x64xf32> to vector<32x64xf32>
    %cst_103 = arith.constant dense<0.000000e+00> : vector<16x64xf32>
    %297 = tpu.matmul %294, %296, %cst_103 {dimension_numbers = #tpu.dot_dimension_numbers<[1], [0], [0], [1], [0, 0, 1, 1], [], []>} : vector<16x32xf32>, vector<32x64xf32>, vector<16x64xf32> -> vector<16x64xf32>
    %c8 = arith.constant 8 : index
    %c0_104 = arith.constant 0 : index
    %298 = vector.load %arg10[%c8, %c0_104] : memref<64x128xf32, #tpu.memory_space<vmem>>, vector<1x64xf32>
    %299 = vector.broadcast %298 : vector<1x64xf32> to vector<16x64xf32>
    %300 = arith.addf %297, %299 : vector<16x64xf32>
    %cst_105 = arith.constant 5.000000e-01 : f32
    %301 = vector.broadcast %cst_105 : f32 to vector<16x64xf32>
    %302 = arith.mulf %301, %300 : vector<16x64xf32>
    %cst_106 = arith.constant 4.471500e-02 : f32
    %303 = vector.broadcast %cst_106 : f32 to vector<16x64xf32>
    %304 = arith.mulf %303, %300 : vector<16x64xf32>
    %305 = arith.mulf %304, %300 : vector<16x64xf32>
    %306 = arith.mulf %305, %300 : vector<16x64xf32>
    %307 = arith.addf %300, %306 : vector<16x64xf32>
    %cst_107 = arith.constant 0.797884583 : f32
    %308 = vector.broadcast %cst_107 : f32 to vector<16x64xf32>
    %309 = arith.mulf %308, %307 : vector<16x64xf32>
    %310 = math.tanh %309 : vector<16x64xf32>
    %cst_108 = arith.constant 1.000000e+00 : f32
    %311 = vector.broadcast %cst_108 : f32 to vector<16x64xf32>
    %312 = arith.addf %311, %310 : vector<16x64xf32>
    %313 = arith.mulf %302, %312 : vector<16x64xf32>
    %c1_109 = arith.constant 1 : index
    %c0_110 = arith.constant 0 : index
    %c0_111 = arith.constant 0 : index
    %314 = vector.load %arg6[%c1_109, %c0_110, %c0_111] : memref<6x64x32xf32, #tpu.memory_space<vmem>>, vector<1x64x32xf32>
    %315 = vector.shape_cast %314 : vector<1x64x32xf32> to vector<64x32xf32>
    %cst_112 = arith.constant dense<0.000000e+00> : vector<16x32xf32>
    %316 = tpu.matmul %313, %315, %cst_112 {dimension_numbers = #tpu.dot_dimension_numbers<[1], [0], [0], [1], [0, 0, 1, 1], [], []>} : vector<16x64xf32>, vector<64x32xf32>, vector<16x32xf32> -> vector<16x32xf32>
    %c9 = arith.constant 9 : index
    %c0_113 = arith.constant 0 : index
    %317 = vector.load %arg10[%c9, %c0_113] : memref<64x128xf32, #tpu.memory_space<vmem>>, vector<1x32xf32>
    %318 = vector.broadcast %317 : vector<1x32xf32> to vector<16x32xf32>
    %319 = arith.addf %316, %318 : vector<16x32xf32>
    %320 = arith.addf %294, %319 : vector<16x32xf32>
    %c12 = arith.constant 12 : index
    %c0_114 = arith.constant 0 : index
    %321 = vector.load %arg10[%c12, %c0_114] : memref<64x128xf32, #tpu.memory_space<vmem>>, vector<1x32xf32>
    %c13 = arith.constant 13 : index
    %c0_115 = arith.constant 0 : index
    %322 = vector.load %arg10[%c13, %c0_115] : memref<64x128xf32, #tpu.memory_space<vmem>>, vector<1x32xf32>
    %cst_116 = arith.constant dense<0.000000e+00> : vector<16xf32>
    %323 = vector.multi_reduction <add>, %320, %cst_116 [1] : vector<16x32xf32> to vector<16xf32>
    %324 = vector.shape_cast %323 : vector<16xf32> to vector<16x1xf32>
    %cst_117 = arith.constant 3.200000e+01 : f32
    %325 = vector.broadcast %cst_117 : f32 to vector<16x1xf32>
    %326 = arith.divf %324, %325 : vector<16x1xf32>
    %327 = vector.broadcast %326 : vector<16x1xf32> to vector<16x32xf32>
    %328 = arith.subf %320, %327 : vector<16x32xf32>
    %329 = arith.mulf %328, %328 : vector<16x32xf32>
    %cst_118 = arith.constant dense<0.000000e+00> : vector<16xf32>
    %330 = vector.multi_reduction <add>, %329, %cst_118 [1] : vector<16x32xf32> to vector<16xf32>
    %331 = vector.shape_cast %330 : vector<16xf32> to vector<16x1xf32>
    %cst_119 = arith.constant 3.200000e+01 : f32
    %332 = vector.broadcast %cst_119 : f32 to vector<16x1xf32>
    %333 = arith.divf %331, %332 : vector<16x1xf32>
    %334 = vector.broadcast %326 : vector<16x1xf32> to vector<16x32xf32>
    %335 = arith.subf %320, %334 : vector<16x32xf32>
    %cst_120 = arith.constant 9.99999996E-13 : f32
    %336 = vector.broadcast %cst_120 : f32 to vector<16x1xf32>
    %337 = arith.addf %333, %336 : vector<16x1xf32>
    %338 = math.rsqrt %337 : vector<16x1xf32>
    %339 = vector.broadcast %338 : vector<16x1xf32> to vector<16x32xf32>
    %340 = arith.mulf %335, %339 : vector<16x32xf32>
    %341 = vector.broadcast %321 : vector<1x32xf32> to vector<16x32xf32>
    %342 = arith.mulf %340, %341 : vector<16x32xf32>
    %343 = vector.broadcast %322 : vector<1x32xf32> to vector<16x32xf32>
    %344 = arith.addf %342, %343 : vector<16x32xf32>
    %c2_121 = arith.constant 2 : index
    %c0_122 = arith.constant 0 : index
    %c0_123 = arith.constant 0 : index
    %345 = vector.load %arg4[%c2_121, %c0_122, %c0_123] : memref<6x32x128xf32, #tpu.memory_space<vmem>>, vector<1x32x128xf32>
    %346 = vector.shape_cast %345 : vector<1x32x128xf32> to vector<32x128xf32>
    %c14 = arith.constant 14 : index
    %c0_124 = arith.constant 0 : index
    %347 = vector.load %arg10[%c14, %c0_124] : memref<64x128xf32, #tpu.memory_space<vmem>>, vector<1x128xf32>
    %348 = vector.extract_strided_slice %346 {offsets = [0, 0], sizes = [32, 96], strides = [1, 1]} : vector<32x128xf32> to vector<32x96xf32>
    %cst_125 = arith.constant dense<0.000000e+00> : vector<16x96xf32>
    %349 = tpu.matmul %344, %348, %cst_125 {dimension_numbers = #tpu.dot_dimension_numbers<[1], [0], [0], [1], [0, 0, 1, 1], [], []>} : vector<16x32xf32>, vector<32x96xf32>, vector<16x96xf32> -> vector<16x96xf32>
    %350 = vector.extract_strided_slice %347 {offsets = [0, 0], sizes = [1, 96], strides = [1, 1]} : vector<1x128xf32> to vector<1x96xf32>
    %351 = vector.broadcast %350 : vector<1x96xf32> to vector<16x96xf32>
    %352 = arith.addf %349, %351 : vector<16x96xf32>
    %353 = vector.extract_strided_slice %346 {offsets = [0, 96], sizes = [32, 32], strides = [1, 1]} : vector<32x128xf32> to vector<32x32xf32>
    %354 = vector.extract_strided_slice %352 {offsets = [0, 0], sizes = [16, 8], strides = [1, 1]} : vector<16x96xf32> to vector<16x8xf32>
    %355 = vector.extract_strided_slice %352 {offsets = [0, 32], sizes = [16, 8], strides = [1, 1]} : vector<16x96xf32> to vector<16x8xf32>
    %356 = vector.extract_strided_slice %352 {offsets = [0, 64], sizes = [16, 8], strides = [1, 1]} : vector<16x96xf32> to vector<16x8xf32>
    %cst_126 = arith.constant dense<0.000000e+00> : vector<16x16xf32>
    %357 = tpu.matmul %354, %355, %cst_126 {dimension_numbers = #tpu.dot_dimension_numbers<[1], [1], [0], [0], [0, 0, 1, 0], [], []>} : vector<16x8xf32>, vector<16x8xf32>, vector<16x16xf32> -> vector<16x16xf32>
    %cst_127 = arith.constant 0.353553385 : f32
    %358 = vector.broadcast %cst_127 : f32 to vector<16x16xf32>
    %359 = arith.mulf %357, %358 : vector<16x16xf32>
    %360 = arith.addf %359, %1 : vector<16x16xf32>
    %cst_128 = arith.constant dense<0xFF800000> : vector<16xf32>
    %361 = vector.multi_reduction <maximumf>, %360, %cst_128 [1] : vector<16x16xf32> to vector<16xf32>
    %362 = vector.shape_cast %361 : vector<16xf32> to vector<16x1xf32>
    %363 = vector.broadcast %362 : vector<16x1xf32> to vector<16x16xf32>
    %364 = arith.subf %360, %363 : vector<16x16xf32>
    %365 = math.exp %364 : vector<16x16xf32>
    %cst_129 = arith.constant dense<0.000000e+00> : vector<16xf32>
    %366 = vector.multi_reduction <add>, %365, %cst_129 [1] : vector<16x16xf32> to vector<16xf32>
    %367 = vector.shape_cast %366 : vector<16xf32> to vector<16x1xf32>
    %368 = tpu.reciprocal %367 {approx = true} : vector<16x1xf32> -> vector<16x1xf32>
    %369 = vector.broadcast %368 : vector<16x1xf32> to vector<16x16xf32>
    %370 = arith.mulf %365, %369 : vector<16x16xf32>
    %cst_130 = arith.constant dense<0.000000e+00> : vector<16x8xf32>
    %371 = tpu.matmul %370, %356, %cst_130 {dimension_numbers = #tpu.dot_dimension_numbers<[1], [0], [0], [1], [0, 0, 1, 1], [], []>} : vector<16x16xf32>, vector<16x8xf32>, vector<16x8xf32> -> vector<16x8xf32>
    %372 = vector.extract_strided_slice %353 {offsets = [0, 0], sizes = [8, 32], strides = [1, 1]} : vector<32x32xf32> to vector<8x32xf32>
    %cst_131 = arith.constant dense<0.000000e+00> : vector<16x32xf32>
    %373 = tpu.matmul %371, %372, %cst_131 {dimension_numbers = #tpu.dot_dimension_numbers<[1], [0], [0], [1], [0, 0, 1, 1], [], []>} : vector<16x8xf32>, vector<8x32xf32>, vector<16x32xf32> -> vector<16x32xf32>
    %374 = vector.extract_strided_slice %352 {offsets = [0, 8], sizes = [16, 8], strides = [1, 1]} : vector<16x96xf32> to vector<16x8xf32>
    %375 = vector.extract_strided_slice %352 {offsets = [0, 40], sizes = [16, 8], strides = [1, 1]} : vector<16x96xf32> to vector<16x8xf32>
    %376 = vector.extract_strided_slice %352 {offsets = [0, 72], sizes = [16, 8], strides = [1, 1]} : vector<16x96xf32> to vector<16x8xf32>
    %cst_132 = arith.constant dense<0.000000e+00> : vector<16x16xf32>
    %377 = tpu.matmul %374, %375, %cst_132 {dimension_numbers = #tpu.dot_dimension_numbers<[1], [1], [0], [0], [0, 0, 1, 0], [], []>} : vector<16x8xf32>, vector<16x8xf32>, vector<16x16xf32> -> vector<16x16xf32>
    %cst_133 = arith.constant 0.353553385 : f32
    %378 = vector.broadcast %cst_133 : f32 to vector<16x16xf32>
    %379 = arith.mulf %377, %378 : vector<16x16xf32>
    %380 = arith.addf %379, %1 : vector<16x16xf32>
    %cst_134 = arith.constant dense<0xFF800000> : vector<16xf32>
    %381 = vector.multi_reduction <maximumf>, %380, %cst_134 [1] : vector<16x16xf32> to vector<16xf32>
    %382 = vector.shape_cast %381 : vector<16xf32> to vector<16x1xf32>
    %383 = vector.broadcast %382 : vector<16x1xf32> to vector<16x16xf32>
    %384 = arith.subf %380, %383 : vector<16x16xf32>
    %385 = math.exp %384 : vector<16x16xf32>
    %cst_135 = arith.constant dense<0.000000e+00> : vector<16xf32>
    %386 = vector.multi_reduction <add>, %385, %cst_135 [1] : vector<16x16xf32> to vector<16xf32>
    %387 = vector.shape_cast %386 : vector<16xf32> to vector<16x1xf32>
    %388 = tpu.reciprocal %387 {approx = true} : vector<16x1xf32> -> vector<16x1xf32>
    %389 = vector.broadcast %388 : vector<16x1xf32> to vector<16x16xf32>
    %390 = arith.mulf %385, %389 : vector<16x16xf32>
    %cst_136 = arith.constant dense<0.000000e+00> : vector<16x8xf32>
    %391 = tpu.matmul %390, %376, %cst_136 {dimension_numbers = #tpu.dot_dimension_numbers<[1], [0], [0], [1], [0, 0, 1, 1], [], []>} : vector<16x16xf32>, vector<16x8xf32>, vector<16x8xf32> -> vector<16x8xf32>
    %392 = vector.extract_strided_slice %353 {offsets = [8, 0], sizes = [8, 32], strides = [1, 1]} : vector<32x32xf32> to vector<8x32xf32>
    %cst_137 = arith.constant dense<0.000000e+00> : vector<16x32xf32>
    %393 = tpu.matmul %391, %392, %cst_137 {dimension_numbers = #tpu.dot_dimension_numbers<[1], [0], [0], [1], [0, 0, 1, 1], [], []>} : vector<16x8xf32>, vector<8x32xf32>, vector<16x32xf32> -> vector<16x32xf32>
    %394 = arith.addf %373, %393 : vector<16x32xf32>
    %395 = vector.extract_strided_slice %352 {offsets = [0, 16], sizes = [16, 8], strides = [1, 1]} : vector<16x96xf32> to vector<16x8xf32>
    %396 = vector.extract_strided_slice %352 {offsets = [0, 48], sizes = [16, 8], strides = [1, 1]} : vector<16x96xf32> to vector<16x8xf32>
    %397 = vector.extract_strided_slice %352 {offsets = [0, 80], sizes = [16, 8], strides = [1, 1]} : vector<16x96xf32> to vector<16x8xf32>
    %cst_138 = arith.constant dense<0.000000e+00> : vector<16x16xf32>
    %398 = tpu.matmul %395, %396, %cst_138 {dimension_numbers = #tpu.dot_dimension_numbers<[1], [1], [0], [0], [0, 0, 1, 0], [], []>} : vector<16x8xf32>, vector<16x8xf32>, vector<16x16xf32> -> vector<16x16xf32>
    %cst_139 = arith.constant 0.353553385 : f32
    %399 = vector.broadcast %cst_139 : f32 to vector<16x16xf32>
    %400 = arith.mulf %398, %399 : vector<16x16xf32>
    %401 = arith.addf %400, %1 : vector<16x16xf32>
    %cst_140 = arith.constant dense<0xFF800000> : vector<16xf32>
    %402 = vector.multi_reduction <maximumf>, %401, %cst_140 [1] : vector<16x16xf32> to vector<16xf32>
    %403 = vector.shape_cast %402 : vector<16xf32> to vector<16x1xf32>
    %404 = vector.broadcast %403 : vector<16x1xf32> to vector<16x16xf32>
    %405 = arith.subf %401, %404 : vector<16x16xf32>
    %406 = math.exp %405 : vector<16x16xf32>
    %cst_141 = arith.constant dense<0.000000e+00> : vector<16xf32>
    %407 = vector.multi_reduction <add>, %406, %cst_141 [1] : vector<16x16xf32> to vector<16xf32>
    %408 = vector.shape_cast %407 : vector<16xf32> to vector<16x1xf32>
    %409 = tpu.reciprocal %408 {approx = true} : vector<16x1xf32> -> vector<16x1xf32>
    %410 = vector.broadcast %409 : vector<16x1xf32> to vector<16x16xf32>
    %411 = arith.mulf %406, %410 : vector<16x16xf32>
    %cst_142 = arith.constant dense<0.000000e+00> : vector<16x8xf32>
    %412 = tpu.matmul %411, %397, %cst_142 {dimension_numbers = #tpu.dot_dimension_numbers<[1], [0], [0], [1], [0, 0, 1, 1], [], []>} : vector<16x16xf32>, vector<16x8xf32>, vector<16x8xf32> -> vector<16x8xf32>
    %413 = vector.extract_strided_slice %353 {offsets = [16, 0], sizes = [8, 32], strides = [1, 1]} : vector<32x32xf32> to vector<8x32xf32>
    %cst_143 = arith.constant dense<0.000000e+00> : vector<16x32xf32>
    %414 = tpu.matmul %412, %413, %cst_143 {dimension_numbers = #tpu.dot_dimension_numbers<[1], [0], [0], [1], [0, 0, 1, 1], [], []>} : vector<16x8xf32>, vector<8x32xf32>, vector<16x32xf32> -> vector<16x32xf32>
    %415 = arith.addf %394, %414 : vector<16x32xf32>
    %416 = vector.extract_strided_slice %352 {offsets = [0, 24], sizes = [16, 8], strides = [1, 1]} : vector<16x96xf32> to vector<16x8xf32>
    %417 = vector.extract_strided_slice %352 {offsets = [0, 56], sizes = [16, 8], strides = [1, 1]} : vector<16x96xf32> to vector<16x8xf32>
    %418 = vector.extract_strided_slice %352 {offsets = [0, 88], sizes = [16, 8], strides = [1, 1]} : vector<16x96xf32> to vector<16x8xf32>
    %cst_144 = arith.constant dense<0.000000e+00> : vector<16x16xf32>
    %419 = tpu.matmul %416, %417, %cst_144 {dimension_numbers = #tpu.dot_dimension_numbers<[1], [1], [0], [0], [0, 0, 1, 0], [], []>} : vector<16x8xf32>, vector<16x8xf32>, vector<16x16xf32> -> vector<16x16xf32>
    %cst_145 = arith.constant 0.353553385 : f32
    %420 = vector.broadcast %cst_145 : f32 to vector<16x16xf32>
    %421 = arith.mulf %419, %420 : vector<16x16xf32>
    %422 = arith.addf %421, %1 : vector<16x16xf32>
    %cst_146 = arith.constant dense<0xFF800000> : vector<16xf32>
    %423 = vector.multi_reduction <maximumf>, %422, %cst_146 [1] : vector<16x16xf32> to vector<16xf32>
    %424 = vector.shape_cast %423 : vector<16xf32> to vector<16x1xf32>
    %425 = vector.broadcast %424 : vector<16x1xf32> to vector<16x16xf32>
    %426 = arith.subf %422, %425 : vector<16x16xf32>
    %427 = math.exp %426 : vector<16x16xf32>
    %cst_147 = arith.constant dense<0.000000e+00> : vector<16xf32>
    %428 = vector.multi_reduction <add>, %427, %cst_147 [1] : vector<16x16xf32> to vector<16xf32>
    %429 = vector.shape_cast %428 : vector<16xf32> to vector<16x1xf32>
    %430 = tpu.reciprocal %429 {approx = true} : vector<16x1xf32> -> vector<16x1xf32>
    %431 = vector.broadcast %430 : vector<16x1xf32> to vector<16x16xf32>
    %432 = arith.mulf %427, %431 : vector<16x16xf32>
    %cst_148 = arith.constant dense<0.000000e+00> : vector<16x8xf32>
    %433 = tpu.matmul %432, %418, %cst_148 {dimension_numbers = #tpu.dot_dimension_numbers<[1], [0], [0], [1], [0, 0, 1, 1], [], []>} : vector<16x16xf32>, vector<16x8xf32>, vector<16x8xf32> -> vector<16x8xf32>
    %434 = vector.extract_strided_slice %353 {offsets = [24, 0], sizes = [8, 32], strides = [1, 1]} : vector<32x32xf32> to vector<8x32xf32>
    %cst_149 = arith.constant dense<0.000000e+00> : vector<16x32xf32>
    %435 = tpu.matmul %433, %434, %cst_149 {dimension_numbers = #tpu.dot_dimension_numbers<[1], [0], [0], [1], [0, 0, 1, 1], [], []>} : vector<16x8xf32>, vector<8x32xf32>, vector<16x32xf32> -> vector<16x32xf32>
    %436 = arith.addf %415, %435 : vector<16x32xf32>
    %437 = vector.extract_strided_slice %347 {offsets = [0, 96], sizes = [1, 32], strides = [1, 1]} : vector<1x128xf32> to vector<1x32xf32>
    %438 = vector.broadcast %437 : vector<1x32xf32> to vector<16x32xf32>
    %439 = arith.addf %436, %438 : vector<16x32xf32>
    %440 = arith.addf %344, %439 : vector<16x32xf32>
    %c17 = arith.constant 17 : index
    %c0_150 = arith.constant 0 : index
    %441 = vector.load %arg10[%c17, %c0_150] : memref<64x128xf32, #tpu.memory_space<vmem>>, vector<1x32xf32>
    %c18 = arith.constant 18 : index
    %c0_151 = arith.constant 0 : index
    %442 = vector.load %arg10[%c18, %c0_151] : memref<64x128xf32, #tpu.memory_space<vmem>>, vector<1x32xf32>
    %cst_152 = arith.constant dense<0.000000e+00> : vector<16xf32>
    %443 = vector.multi_reduction <add>, %440, %cst_152 [1] : vector<16x32xf32> to vector<16xf32>
    %444 = vector.shape_cast %443 : vector<16xf32> to vector<16x1xf32>
    %cst_153 = arith.constant 3.200000e+01 : f32
    %445 = vector.broadcast %cst_153 : f32 to vector<16x1xf32>
    %446 = arith.divf %444, %445 : vector<16x1xf32>
    %447 = vector.broadcast %446 : vector<16x1xf32> to vector<16x32xf32>
    %448 = arith.subf %440, %447 : vector<16x32xf32>
    %449 = arith.mulf %448, %448 : vector<16x32xf32>
    %cst_154 = arith.constant dense<0.000000e+00> : vector<16xf32>
    %450 = vector.multi_reduction <add>, %449, %cst_154 [1] : vector<16x32xf32> to vector<16xf32>
    %451 = vector.shape_cast %450 : vector<16xf32> to vector<16x1xf32>
    %cst_155 = arith.constant 3.200000e+01 : f32
    %452 = vector.broadcast %cst_155 : f32 to vector<16x1xf32>
    %453 = arith.divf %451, %452 : vector<16x1xf32>
    %454 = vector.broadcast %446 : vector<16x1xf32> to vector<16x32xf32>
    %455 = arith.subf %440, %454 : vector<16x32xf32>
    %cst_156 = arith.constant 9.99999996E-13 : f32
    %456 = vector.broadcast %cst_156 : f32 to vector<16x1xf32>
    %457 = arith.addf %453, %456 : vector<16x1xf32>
    %458 = math.rsqrt %457 : vector<16x1xf32>
    %459 = vector.broadcast %458 : vector<16x1xf32> to vector<16x32xf32>
    %460 = arith.mulf %455, %459 : vector<16x32xf32>
    %461 = vector.broadcast %441 : vector<1x32xf32> to vector<16x32xf32>
    %462 = arith.mulf %460, %461 : vector<16x32xf32>
    %463 = vector.broadcast %442 : vector<1x32xf32> to vector<16x32xf32>
    %464 = arith.addf %462, %463 : vector<16x32xf32>
    %c2_157 = arith.constant 2 : index
    %c0_158 = arith.constant 0 : index
    %c0_159 = arith.constant 0 : index
    %465 = vector.load %arg5[%c2_157, %c0_158, %c0_159] : memref<6x32x64xf32, #tpu.memory_space<vmem>>, vector<1x32x64xf32>
    %466 = vector.shape_cast %465 : vector<1x32x64xf32> to vector<32x64xf32>
    %cst_160 = arith.constant dense<0.000000e+00> : vector<16x64xf32>
    %467 = tpu.matmul %464, %466, %cst_160 {dimension_numbers = #tpu.dot_dimension_numbers<[1], [0], [0], [1], [0, 0, 1, 1], [], []>} : vector<16x32xf32>, vector<32x64xf32>, vector<16x64xf32> -> vector<16x64xf32>
    %c15 = arith.constant 15 : index
    %c0_161 = arith.constant 0 : index
    %468 = vector.load %arg10[%c15, %c0_161] : memref<64x128xf32, #tpu.memory_space<vmem>>, vector<1x64xf32>
    %469 = vector.broadcast %468 : vector<1x64xf32> to vector<16x64xf32>
    %470 = arith.addf %467, %469 : vector<16x64xf32>
    %cst_162 = arith.constant 5.000000e-01 : f32
    %471 = vector.broadcast %cst_162 : f32 to vector<16x64xf32>
    %472 = arith.mulf %471, %470 : vector<16x64xf32>
    %cst_163 = arith.constant 4.471500e-02 : f32
    %473 = vector.broadcast %cst_163 : f32 to vector<16x64xf32>
    %474 = arith.mulf %473, %470 : vector<16x64xf32>
    %475 = arith.mulf %474, %470 : vector<16x64xf32>
    %476 = arith.mulf %475, %470 : vector<16x64xf32>
    %477 = arith.addf %470, %476 : vector<16x64xf32>
    %cst_164 = arith.constant 0.797884583 : f32
    %478 = vector.broadcast %cst_164 : f32 to vector<16x64xf32>
    %479 = arith.mulf %478, %477 : vector<16x64xf32>
    %480 = math.tanh %479 : vector<16x64xf32>
    %cst_165 = arith.constant 1.000000e+00 : f32
    %481 = vector.broadcast %cst_165 : f32 to vector<16x64xf32>
    %482 = arith.addf %481, %480 : vector<16x64xf32>
    %483 = arith.mulf %472, %482 : vector<16x64xf32>
    %c2_166 = arith.constant 2 : index
    %c0_167 = arith.constant 0 : index
    %c0_168 = arith.constant 0 : index
    %484 = vector.load %arg6[%c2_166, %c0_167, %c0_168] : memref<6x64x32xf32, #tpu.memory_space<vmem>>, vector<1x64x32xf32>
    %485 = vector.shape_cast %484 : vector<1x64x32xf32> to vector<64x32xf32>
    %cst_169 = arith.constant dense<0.000000e+00> : vector<16x32xf32>
    %486 = tpu.matmul %483, %485, %cst_169 {dimension_numbers = #tpu.dot_dimension_numbers<[1], [0], [0], [1], [0, 0, 1, 1], [], []>} : vector<16x64xf32>, vector<64x32xf32>, vector<16x32xf32> -> vector<16x32xf32>
    %c16 = arith.constant 16 : index
    %c0_170 = arith.constant 0 : index
    %487 = vector.load %arg10[%c16, %c0_170] : memref<64x128xf32, #tpu.memory_space<vmem>>, vector<1x32xf32>
    %488 = vector.broadcast %487 : vector<1x32xf32> to vector<16x32xf32>
    %489 = arith.addf %486, %488 : vector<16x32xf32>
    %490 = arith.addf %464, %489 : vector<16x32xf32>
    %c19 = arith.constant 19 : index
    %c0_171 = arith.constant 0 : index
    %491 = vector.load %arg10[%c19, %c0_171] : memref<64x128xf32, #tpu.memory_space<vmem>>, vector<1x32xf32>
    %c20 = arith.constant 20 : index
    %c0_172 = arith.constant 0 : index
    %492 = vector.load %arg10[%c20, %c0_172] : memref<64x128xf32, #tpu.memory_space<vmem>>, vector<1x32xf32>
    %cst_173 = arith.constant dense<0.000000e+00> : vector<16xf32>
    %493 = vector.multi_reduction <add>, %490, %cst_173 [1] : vector<16x32xf32> to vector<16xf32>
    %494 = vector.shape_cast %493 : vector<16xf32> to vector<16x1xf32>
    %cst_174 = arith.constant 3.200000e+01 : f32
    %495 = vector.broadcast %cst_174 : f32 to vector<16x1xf32>
    %496 = arith.divf %494, %495 : vector<16x1xf32>
    %497 = vector.broadcast %496 : vector<16x1xf32> to vector<16x32xf32>
    %498 = arith.subf %490, %497 : vector<16x32xf32>
    %499 = arith.mulf %498, %498 : vector<16x32xf32>
    %cst_175 = arith.constant dense<0.000000e+00> : vector<16xf32>
    %500 = vector.multi_reduction <add>, %499, %cst_175 [1] : vector<16x32xf32> to vector<16xf32>
    %501 = vector.shape_cast %500 : vector<16xf32> to vector<16x1xf32>
    %cst_176 = arith.constant 3.200000e+01 : f32
    %502 = vector.broadcast %cst_176 : f32 to vector<16x1xf32>
    %503 = arith.divf %501, %502 : vector<16x1xf32>
    %504 = vector.broadcast %496 : vector<16x1xf32> to vector<16x32xf32>
    %505 = arith.subf %490, %504 : vector<16x32xf32>
    %cst_177 = arith.constant 9.99999996E-13 : f32
    %506 = vector.broadcast %cst_177 : f32 to vector<16x1xf32>
    %507 = arith.addf %503, %506 : vector<16x1xf32>
    %508 = math.rsqrt %507 : vector<16x1xf32>
    %509 = vector.broadcast %508 : vector<16x1xf32> to vector<16x32xf32>
    %510 = arith.mulf %505, %509 : vector<16x32xf32>
    %511 = vector.broadcast %491 : vector<1x32xf32> to vector<16x32xf32>
    %512 = arith.mulf %510, %511 : vector<16x32xf32>
    %513 = vector.broadcast %492 : vector<1x32xf32> to vector<16x32xf32>
    %514 = arith.addf %512, %513 : vector<16x32xf32>
    %c3_178 = arith.constant 3 : index
    %c0_179 = arith.constant 0 : index
    %c0_180 = arith.constant 0 : index
    %515 = vector.load %arg4[%c3_178, %c0_179, %c0_180] : memref<6x32x128xf32, #tpu.memory_space<vmem>>, vector<1x32x128xf32>
    %516 = vector.shape_cast %515 : vector<1x32x128xf32> to vector<32x128xf32>
    %c21 = arith.constant 21 : index
    %c0_181 = arith.constant 0 : index
    %517 = vector.load %arg10[%c21, %c0_181] : memref<64x128xf32, #tpu.memory_space<vmem>>, vector<1x128xf32>
    %518 = vector.extract_strided_slice %516 {offsets = [0, 0], sizes = [32, 96], strides = [1, 1]} : vector<32x128xf32> to vector<32x96xf32>
    %cst_182 = arith.constant dense<0.000000e+00> : vector<16x96xf32>
    %519 = tpu.matmul %514, %518, %cst_182 {dimension_numbers = #tpu.dot_dimension_numbers<[1], [0], [0], [1], [0, 0, 1, 1], [], []>} : vector<16x32xf32>, vector<32x96xf32>, vector<16x96xf32> -> vector<16x96xf32>
    %520 = vector.extract_strided_slice %517 {offsets = [0, 0], sizes = [1, 96], strides = [1, 1]} : vector<1x128xf32> to vector<1x96xf32>
    %521 = vector.broadcast %520 : vector<1x96xf32> to vector<16x96xf32>
    %522 = arith.addf %519, %521 : vector<16x96xf32>
    %523 = vector.extract_strided_slice %516 {offsets = [0, 96], sizes = [32, 32], strides = [1, 1]} : vector<32x128xf32> to vector<32x32xf32>
    %524 = vector.extract_strided_slice %522 {offsets = [0, 0], sizes = [16, 8], strides = [1, 1]} : vector<16x96xf32> to vector<16x8xf32>
    %525 = vector.extract_strided_slice %522 {offsets = [0, 32], sizes = [16, 8], strides = [1, 1]} : vector<16x96xf32> to vector<16x8xf32>
    %526 = vector.extract_strided_slice %522 {offsets = [0, 64], sizes = [16, 8], strides = [1, 1]} : vector<16x96xf32> to vector<16x8xf32>
    %cst_183 = arith.constant dense<0.000000e+00> : vector<16x16xf32>
    %527 = tpu.matmul %524, %525, %cst_183 {dimension_numbers = #tpu.dot_dimension_numbers<[1], [1], [0], [0], [0, 0, 1, 0], [], []>} : vector<16x8xf32>, vector<16x8xf32>, vector<16x16xf32> -> vector<16x16xf32>
    %cst_184 = arith.constant 0.353553385 : f32
    %528 = vector.broadcast %cst_184 : f32 to vector<16x16xf32>
    %529 = arith.mulf %527, %528 : vector<16x16xf32>
    %530 = arith.addf %529, %1 : vector<16x16xf32>
    %cst_185 = arith.constant dense<0xFF800000> : vector<16xf32>
    %531 = vector.multi_reduction <maximumf>, %530, %cst_185 [1] : vector<16x16xf32> to vector<16xf32>
    %532 = vector.shape_cast %531 : vector<16xf32> to vector<16x1xf32>
    %533 = vector.broadcast %532 : vector<16x1xf32> to vector<16x16xf32>
    %534 = arith.subf %530, %533 : vector<16x16xf32>
    %535 = math.exp %534 : vector<16x16xf32>
    %cst_186 = arith.constant dense<0.000000e+00> : vector<16xf32>
    %536 = vector.multi_reduction <add>, %535, %cst_186 [1] : vector<16x16xf32> to vector<16xf32>
    %537 = vector.shape_cast %536 : vector<16xf32> to vector<16x1xf32>
    %538 = tpu.reciprocal %537 {approx = true} : vector<16x1xf32> -> vector<16x1xf32>
    %539 = vector.broadcast %538 : vector<16x1xf32> to vector<16x16xf32>
    %540 = arith.mulf %535, %539 : vector<16x16xf32>
    %cst_187 = arith.constant dense<0.000000e+00> : vector<16x8xf32>
    %541 = tpu.matmul %540, %526, %cst_187 {dimension_numbers = #tpu.dot_dimension_numbers<[1], [0], [0], [1], [0, 0, 1, 1], [], []>} : vector<16x16xf32>, vector<16x8xf32>, vector<16x8xf32> -> vector<16x8xf32>
    %542 = vector.extract_strided_slice %523 {offsets = [0, 0], sizes = [8, 32], strides = [1, 1]} : vector<32x32xf32> to vector<8x32xf32>
    %cst_188 = arith.constant dense<0.000000e+00> : vector<16x32xf32>
    %543 = tpu.matmul %541, %542, %cst_188 {dimension_numbers = #tpu.dot_dimension_numbers<[1], [0], [0], [1], [0, 0, 1, 1], [], []>} : vector<16x8xf32>, vector<8x32xf32>, vector<16x32xf32> -> vector<16x32xf32>
    %544 = vector.extract_strided_slice %522 {offsets = [0, 8], sizes = [16, 8], strides = [1, 1]} : vector<16x96xf32> to vector<16x8xf32>
    %545 = vector.extract_strided_slice %522 {offsets = [0, 40], sizes = [16, 8], strides = [1, 1]} : vector<16x96xf32> to vector<16x8xf32>
    %546 = vector.extract_strided_slice %522 {offsets = [0, 72], sizes = [16, 8], strides = [1, 1]} : vector<16x96xf32> to vector<16x8xf32>
    %cst_189 = arith.constant dense<0.000000e+00> : vector<16x16xf32>
    %547 = tpu.matmul %544, %545, %cst_189 {dimension_numbers = #tpu.dot_dimension_numbers<[1], [1], [0], [0], [0, 0, 1, 0], [], []>} : vector<16x8xf32>, vector<16x8xf32>, vector<16x16xf32> -> vector<16x16xf32>
    %cst_190 = arith.constant 0.353553385 : f32
    %548 = vector.broadcast %cst_190 : f32 to vector<16x16xf32>
    %549 = arith.mulf %547, %548 : vector<16x16xf32>
    %550 = arith.addf %549, %1 : vector<16x16xf32>
    %cst_191 = arith.constant dense<0xFF800000> : vector<16xf32>
    %551 = vector.multi_reduction <maximumf>, %550, %cst_191 [1] : vector<16x16xf32> to vector<16xf32>
    %552 = vector.shape_cast %551 : vector<16xf32> to vector<16x1xf32>
    %553 = vector.broadcast %552 : vector<16x1xf32> to vector<16x16xf32>
    %554 = arith.subf %550, %553 : vector<16x16xf32>
    %555 = math.exp %554 : vector<16x16xf32>
    %cst_192 = arith.constant dense<0.000000e+00> : vector<16xf32>
    %556 = vector.multi_reduction <add>, %555, %cst_192 [1] : vector<16x16xf32> to vector<16xf32>
    %557 = vector.shape_cast %556 : vector<16xf32> to vector<16x1xf32>
    %558 = tpu.reciprocal %557 {approx = true} : vector<16x1xf32> -> vector<16x1xf32>
    %559 = vector.broadcast %558 : vector<16x1xf32> to vector<16x16xf32>
    %560 = arith.mulf %555, %559 : vector<16x16xf32>
    %cst_193 = arith.constant dense<0.000000e+00> : vector<16x8xf32>
    %561 = tpu.matmul %560, %546, %cst_193 {dimension_numbers = #tpu.dot_dimension_numbers<[1], [0], [0], [1], [0, 0, 1, 1], [], []>} : vector<16x16xf32>, vector<16x8xf32>, vector<16x8xf32> -> vector<16x8xf32>
    %562 = vector.extract_strided_slice %523 {offsets = [8, 0], sizes = [8, 32], strides = [1, 1]} : vector<32x32xf32> to vector<8x32xf32>
    %cst_194 = arith.constant dense<0.000000e+00> : vector<16x32xf32>
    %563 = tpu.matmul %561, %562, %cst_194 {dimension_numbers = #tpu.dot_dimension_numbers<[1], [0], [0], [1], [0, 0, 1, 1], [], []>} : vector<16x8xf32>, vector<8x32xf32>, vector<16x32xf32> -> vector<16x32xf32>
    %564 = arith.addf %543, %563 : vector<16x32xf32>
    %565 = vector.extract_strided_slice %522 {offsets = [0, 16], sizes = [16, 8], strides = [1, 1]} : vector<16x96xf32> to vector<16x8xf32>
    %566 = vector.extract_strided_slice %522 {offsets = [0, 48], sizes = [16, 8], strides = [1, 1]} : vector<16x96xf32> to vector<16x8xf32>
    %567 = vector.extract_strided_slice %522 {offsets = [0, 80], sizes = [16, 8], strides = [1, 1]} : vector<16x96xf32> to vector<16x8xf32>
    %cst_195 = arith.constant dense<0.000000e+00> : vector<16x16xf32>
    %568 = tpu.matmul %565, %566, %cst_195 {dimension_numbers = #tpu.dot_dimension_numbers<[1], [1], [0], [0], [0, 0, 1, 0], [], []>} : vector<16x8xf32>, vector<16x8xf32>, vector<16x16xf32> -> vector<16x16xf32>
    %cst_196 = arith.constant 0.353553385 : f32
    %569 = vector.broadcast %cst_196 : f32 to vector<16x16xf32>
    %570 = arith.mulf %568, %569 : vector<16x16xf32>
    %571 = arith.addf %570, %1 : vector<16x16xf32>
    %cst_197 = arith.constant dense<0xFF800000> : vector<16xf32>
    %572 = vector.multi_reduction <maximumf>, %571, %cst_197 [1] : vector<16x16xf32> to vector<16xf32>
    %573 = vector.shape_cast %572 : vector<16xf32> to vector<16x1xf32>
    %574 = vector.broadcast %573 : vector<16x1xf32> to vector<16x16xf32>
    %575 = arith.subf %571, %574 : vector<16x16xf32>
    %576 = math.exp %575 : vector<16x16xf32>
    %cst_198 = arith.constant dense<0.000000e+00> : vector<16xf32>
    %577 = vector.multi_reduction <add>, %576, %cst_198 [1] : vector<16x16xf32> to vector<16xf32>
    %578 = vector.shape_cast %577 : vector<16xf32> to vector<16x1xf32>
    %579 = tpu.reciprocal %578 {approx = true} : vector<16x1xf32> -> vector<16x1xf32>
    %580 = vector.broadcast %579 : vector<16x1xf32> to vector<16x16xf32>
    %581 = arith.mulf %576, %580 : vector<16x16xf32>
    %cst_199 = arith.constant dense<0.000000e+00> : vector<16x8xf32>
    %582 = tpu.matmul %581, %567, %cst_199 {dimension_numbers = #tpu.dot_dimension_numbers<[1], [0], [0], [1], [0, 0, 1, 1], [], []>} : vector<16x16xf32>, vector<16x8xf32>, vector<16x8xf32> -> vector<16x8xf32>
    %583 = vector.extract_strided_slice %523 {offsets = [16, 0], sizes = [8, 32], strides = [1, 1]} : vector<32x32xf32> to vector<8x32xf32>
    %cst_200 = arith.constant dense<0.000000e+00> : vector<16x32xf32>
    %584 = tpu.matmul %582, %583, %cst_200 {dimension_numbers = #tpu.dot_dimension_numbers<[1], [0], [0], [1], [0, 0, 1, 1], [], []>} : vector<16x8xf32>, vector<8x32xf32>, vector<16x32xf32> -> vector<16x32xf32>
    %585 = arith.addf %564, %584 : vector<16x32xf32>
    %586 = vector.extract_strided_slice %522 {offsets = [0, 24], sizes = [16, 8], strides = [1, 1]} : vector<16x96xf32> to vector<16x8xf32>
    %587 = vector.extract_strided_slice %522 {offsets = [0, 56], sizes = [16, 8], strides = [1, 1]} : vector<16x96xf32> to vector<16x8xf32>
    %588 = vector.extract_strided_slice %522 {offsets = [0, 88], sizes = [16, 8], strides = [1, 1]} : vector<16x96xf32> to vector<16x8xf32>
    %cst_201 = arith.constant dense<0.000000e+00> : vector<16x16xf32>
    %589 = tpu.matmul %586, %587, %cst_201 {dimension_numbers = #tpu.dot_dimension_numbers<[1], [1], [0], [0], [0, 0, 1, 0], [], []>} : vector<16x8xf32>, vector<16x8xf32>, vector<16x16xf32> -> vector<16x16xf32>
    %cst_202 = arith.constant 0.353553385 : f32
    %590 = vector.broadcast %cst_202 : f32 to vector<16x16xf32>
    %591 = arith.mulf %589, %590 : vector<16x16xf32>
    %592 = arith.addf %591, %1 : vector<16x16xf32>
    %cst_203 = arith.constant dense<0xFF800000> : vector<16xf32>
    %593 = vector.multi_reduction <maximumf>, %592, %cst_203 [1] : vector<16x16xf32> to vector<16xf32>
    %594 = vector.shape_cast %593 : vector<16xf32> to vector<16x1xf32>
    %595 = vector.broadcast %594 : vector<16x1xf32> to vector<16x16xf32>
    %596 = arith.subf %592, %595 : vector<16x16xf32>
    %597 = math.exp %596 : vector<16x16xf32>
    %cst_204 = arith.constant dense<0.000000e+00> : vector<16xf32>
    %598 = vector.multi_reduction <add>, %597, %cst_204 [1] : vector<16x16xf32> to vector<16xf32>
    %599 = vector.shape_cast %598 : vector<16xf32> to vector<16x1xf32>
    %600 = tpu.reciprocal %599 {approx = true} : vector<16x1xf32> -> vector<16x1xf32>
    %601 = vector.broadcast %600 : vector<16x1xf32> to vector<16x16xf32>
    %602 = arith.mulf %597, %601 : vector<16x16xf32>
    %cst_205 = arith.constant dense<0.000000e+00> : vector<16x8xf32>
    %603 = tpu.matmul %602, %588, %cst_205 {dimension_numbers = #tpu.dot_dimension_numbers<[1], [0], [0], [1], [0, 0, 1, 1], [], []>} : vector<16x16xf32>, vector<16x8xf32>, vector<16x8xf32> -> vector<16x8xf32>
    %604 = vector.extract_strided_slice %523 {offsets = [24, 0], sizes = [8, 32], strides = [1, 1]} : vector<32x32xf32> to vector<8x32xf32>
    %cst_206 = arith.constant dense<0.000000e+00> : vector<16x32xf32>
    %605 = tpu.matmul %603, %604, %cst_206 {dimension_numbers = #tpu.dot_dimension_numbers<[1], [0], [0], [1], [0, 0, 1, 1], [], []>} : vector<16x8xf32>, vector<8x32xf32>, vector<16x32xf32> -> vector<16x32xf32>
    %606 = arith.addf %585, %605 : vector<16x32xf32>
    %607 = vector.extract_strided_slice %517 {offsets = [0, 96], sizes = [1, 32], strides = [1, 1]} : vector<1x128xf32> to vector<1x32xf32>
    %608 = vector.broadcast %607 : vector<1x32xf32> to vector<16x32xf32>
    %609 = arith.addf %606, %608 : vector<16x32xf32>
    %610 = arith.addf %514, %609 : vector<16x32xf32>
    %c24 = arith.constant 24 : index
    %c0_207 = arith.constant 0 : index
    %611 = vector.load %arg10[%c24, %c0_207] : memref<64x128xf32, #tpu.memory_space<vmem>>, vector<1x32xf32>
    %c25 = arith.constant 25 : index
    %c0_208 = arith.constant 0 : index
    %612 = vector.load %arg10[%c25, %c0_208] : memref<64x128xf32, #tpu.memory_space<vmem>>, vector<1x32xf32>
    %cst_209 = arith.constant dense<0.000000e+00> : vector<16xf32>
    %613 = vector.multi_reduction <add>, %610, %cst_209 [1] : vector<16x32xf32> to vector<16xf32>
    %614 = vector.shape_cast %613 : vector<16xf32> to vector<16x1xf32>
    %cst_210 = arith.constant 3.200000e+01 : f32
    %615 = vector.broadcast %cst_210 : f32 to vector<16x1xf32>
    %616 = arith.divf %614, %615 : vector<16x1xf32>
    %617 = vector.broadcast %616 : vector<16x1xf32> to vector<16x32xf32>
    %618 = arith.subf %610, %617 : vector<16x32xf32>
    %619 = arith.mulf %618, %618 : vector<16x32xf32>
    %cst_211 = arith.constant dense<0.000000e+00> : vector<16xf32>
    %620 = vector.multi_reduction <add>, %619, %cst_211 [1] : vector<16x32xf32> to vector<16xf32>
    %621 = vector.shape_cast %620 : vector<16xf32> to vector<16x1xf32>
    %cst_212 = arith.constant 3.200000e+01 : f32
    %622 = vector.broadcast %cst_212 : f32 to vector<16x1xf32>
    %623 = arith.divf %621, %622 : vector<16x1xf32>
    %624 = vector.broadcast %616 : vector<16x1xf32> to vector<16x32xf32>
    %625 = arith.subf %610, %624 : vector<16x32xf32>
    %cst_213 = arith.constant 9.99999996E-13 : f32
    %626 = vector.broadcast %cst_213 : f32 to vector<16x1xf32>
    %627 = arith.addf %623, %626 : vector<16x1xf32>
    %628 = math.rsqrt %627 : vector<16x1xf32>
    %629 = vector.broadcast %628 : vector<16x1xf32> to vector<16x32xf32>
    %630 = arith.mulf %625, %629 : vector<16x32xf32>
    %631 = vector.broadcast %611 : vector<1x32xf32> to vector<16x32xf32>
    %632 = arith.mulf %630, %631 : vector<16x32xf32>
    %633 = vector.broadcast %612 : vector<1x32xf32> to vector<16x32xf32>
    %634 = arith.addf %632, %633 : vector<16x32xf32>
    %c3_214 = arith.constant 3 : index
    %c0_215 = arith.constant 0 : index
    %c0_216 = arith.constant 0 : index
    %635 = vector.load %arg5[%c3_214, %c0_215, %c0_216] : memref<6x32x64xf32, #tpu.memory_space<vmem>>, vector<1x32x64xf32>
    %636 = vector.shape_cast %635 : vector<1x32x64xf32> to vector<32x64xf32>
    %cst_217 = arith.constant dense<0.000000e+00> : vector<16x64xf32>
    %637 = tpu.matmul %634, %636, %cst_217 {dimension_numbers = #tpu.dot_dimension_numbers<[1], [0], [0], [1], [0, 0, 1, 1], [], []>} : vector<16x32xf32>, vector<32x64xf32>, vector<16x64xf32> -> vector<16x64xf32>
    %c22 = arith.constant 22 : index
    %c0_218 = arith.constant 0 : index
    %638 = vector.load %arg10[%c22, %c0_218] : memref<64x128xf32, #tpu.memory_space<vmem>>, vector<1x64xf32>
    %639 = vector.broadcast %638 : vector<1x64xf32> to vector<16x64xf32>
    %640 = arith.addf %637, %639 : vector<16x64xf32>
    %cst_219 = arith.constant 5.000000e-01 : f32
    %641 = vector.broadcast %cst_219 : f32 to vector<16x64xf32>
    %642 = arith.mulf %641, %640 : vector<16x64xf32>
    %cst_220 = arith.constant 4.471500e-02 : f32
    %643 = vector.broadcast %cst_220 : f32 to vector<16x64xf32>
    %644 = arith.mulf %643, %640 : vector<16x64xf32>
    %645 = arith.mulf %644, %640 : vector<16x64xf32>
    %646 = arith.mulf %645, %640 : vector<16x64xf32>
    %647 = arith.addf %640, %646 : vector<16x64xf32>
    %cst_221 = arith.constant 0.797884583 : f32
    %648 = vector.broadcast %cst_221 : f32 to vector<16x64xf32>
    %649 = arith.mulf %648, %647 : vector<16x64xf32>
    %650 = math.tanh %649 : vector<16x64xf32>
    %cst_222 = arith.constant 1.000000e+00 : f32
    %651 = vector.broadcast %cst_222 : f32 to vector<16x64xf32>
    %652 = arith.addf %651, %650 : vector<16x64xf32>
    %653 = arith.mulf %642, %652 : vector<16x64xf32>
    %c3_223 = arith.constant 3 : index
    %c0_224 = arith.constant 0 : index
    %c0_225 = arith.constant 0 : index
    %654 = vector.load %arg6[%c3_223, %c0_224, %c0_225] : memref<6x64x32xf32, #tpu.memory_space<vmem>>, vector<1x64x32xf32>
    %655 = vector.shape_cast %654 : vector<1x64x32xf32> to vector<64x32xf32>
    %cst_226 = arith.constant dense<0.000000e+00> : vector<16x32xf32>
    %656 = tpu.matmul %653, %655, %cst_226 {dimension_numbers = #tpu.dot_dimension_numbers<[1], [0], [0], [1], [0, 0, 1, 1], [], []>} : vector<16x64xf32>, vector<64x32xf32>, vector<16x32xf32> -> vector<16x32xf32>
    %c23 = arith.constant 23 : index
    %c0_227 = arith.constant 0 : index
    %657 = vector.load %arg10[%c23, %c0_227] : memref<64x128xf32, #tpu.memory_space<vmem>>, vector<1x32xf32>
    %658 = vector.broadcast %657 : vector<1x32xf32> to vector<16x32xf32>
    %659 = arith.addf %656, %658 : vector<16x32xf32>
    %660 = arith.addf %634, %659 : vector<16x32xf32>
    %c26 = arith.constant 26 : index
    %c0_228 = arith.constant 0 : index
    %661 = vector.load %arg10[%c26, %c0_228] : memref<64x128xf32, #tpu.memory_space<vmem>>, vector<1x32xf32>
    %c27 = arith.constant 27 : index
    %c0_229 = arith.constant 0 : index
    %662 = vector.load %arg10[%c27, %c0_229] : memref<64x128xf32, #tpu.memory_space<vmem>>, vector<1x32xf32>
    %cst_230 = arith.constant dense<0.000000e+00> : vector<16xf32>
    %663 = vector.multi_reduction <add>, %660, %cst_230 [1] : vector<16x32xf32> to vector<16xf32>
    %664 = vector.shape_cast %663 : vector<16xf32> to vector<16x1xf32>
    %cst_231 = arith.constant 3.200000e+01 : f32
    %665 = vector.broadcast %cst_231 : f32 to vector<16x1xf32>
    %666 = arith.divf %664, %665 : vector<16x1xf32>
    %667 = vector.broadcast %666 : vector<16x1xf32> to vector<16x32xf32>
    %668 = arith.subf %660, %667 : vector<16x32xf32>
    %669 = arith.mulf %668, %668 : vector<16x32xf32>
    %cst_232 = arith.constant dense<0.000000e+00> : vector<16xf32>
    %670 = vector.multi_reduction <add>, %669, %cst_232 [1] : vector<16x32xf32> to vector<16xf32>
    %671 = vector.shape_cast %670 : vector<16xf32> to vector<16x1xf32>
    %cst_233 = arith.constant 3.200000e+01 : f32
    %672 = vector.broadcast %cst_233 : f32 to vector<16x1xf32>
    %673 = arith.divf %671, %672 : vector<16x1xf32>
    %674 = vector.broadcast %666 : vector<16x1xf32> to vector<16x32xf32>
    %675 = arith.subf %660, %674 : vector<16x32xf32>
    %cst_234 = arith.constant 9.99999996E-13 : f32
    %676 = vector.broadcast %cst_234 : f32 to vector<16x1xf32>
    %677 = arith.addf %673, %676 : vector<16x1xf32>
    %678 = math.rsqrt %677 : vector<16x1xf32>
    %679 = vector.broadcast %678 : vector<16x1xf32> to vector<16x32xf32>
    %680 = arith.mulf %675, %679 : vector<16x32xf32>
    %681 = vector.broadcast %661 : vector<1x32xf32> to vector<16x32xf32>
    %682 = arith.mulf %680, %681 : vector<16x32xf32>
    %683 = vector.broadcast %662 : vector<1x32xf32> to vector<16x32xf32>
    %684 = arith.addf %682, %683 : vector<16x32xf32>
    %c0_235 = arith.constant 0 : index
    %c0_236 = arith.constant 0 : index
    %c0_237 = arith.constant 0 : index
    %c0_238 = arith.constant 0 : index
    %685 = vector.load %arg2[%c0_235, %c0_236, %c0_237, %c0_238] : memref<2x7x16x16xf32, #tpu.memory_space<vmem>>, vector<1x7x16x16xf32>
    %686 = vector.shape_cast %685 : vector<1x7x16x16xf32> to vector<7x16x16xf32>
    %c0_239 = arith.constant 0 : index
    %c0_240 = arith.constant 0 : index
    %c0_241 = arith.constant 0 : index
    %c0_242 = arith.constant 0 : index
    %687 = vector.load %arg3[%c0_239, %c0_240, %c0_241, %c0_242] : memref<2x8x16x1xf32, #tpu.memory_space<vmem>>, vector<1x8x16x1xf32>
    %688 = vector.shape_cast %687 : vector<1x8x16x1xf32> to vector<8x16x1xf32>
    %c0_243 = arith.constant 0 : index
    %c0_244 = arith.constant 0 : index
    %c0_245 = arith.constant 0 : index
    %c0_246 = arith.constant 0 : index
    %689 = vector.load %arg7[%c0_243, %c0_244, %c0_245, %c0_246] : memref<2x2x32x16xf32, #tpu.memory_space<vmem>>, vector<1x1x32x16xf32>
    %690 = vector.shape_cast %689 : vector<1x1x32x16xf32> to vector<32x16xf32>
    %c0_247 = arith.constant 0 : index
    %c1_248 = arith.constant 1 : index
    %c0_249 = arith.constant 0 : index
    %c0_250 = arith.constant 0 : index
    %691 = vector.load %arg7[%c0_247, %c1_248, %c0_249, %c0_250] : memref<2x2x32x16xf32, #tpu.memory_space<vmem>>, vector<1x1x32x16xf32>
    %692 = vector.shape_cast %691 : vector<1x1x32x16xf32> to vector<32x16xf32>
    %c42 = arith.constant 42 : index
    %c0_251 = arith.constant 0 : index
    %693 = vector.load %arg10[%c42, %c0_251] : memref<64x128xf32, #tpu.memory_space<vmem>>, vector<1x16xf32>
    %cst_252 = arith.constant dense<0.000000e+00> : vector<16x32xf32>
    %694 = tpu.matmul %3, %684, %cst_252 {dimension_numbers = #tpu.dot_dimension_numbers<[1], [0], [0], [1], [0, 0, 1, 1], [], []>} : vector<16x16xf32>, vector<16x32xf32>, vector<16x32xf32> -> vector<16x32xf32>
    %cst_253 = arith.constant dense<0.000000e+00> : vector<16x16xf32>
    %695 = tpu.matmul %694, %692, %cst_253 {dimension_numbers = #tpu.dot_dimension_numbers<[1], [0], [0], [1], [0, 0, 1, 1], [], []>} : vector<16x32xf32>, vector<32x16xf32>, vector<16x16xf32> -> vector<16x16xf32>
    %696 = vector.broadcast %693 : vector<1x16xf32> to vector<16x16xf32>
    %697 = arith.addf %695, %696 : vector<16x16xf32>
    %cst_254 = arith.constant dense<0.000000e+00> : vector<16x16xf32>
    %698 = tpu.matmul %684, %690, %cst_254 {dimension_numbers = #tpu.dot_dimension_numbers<[1], [0], [0], [1], [0, 0, 1, 1], [], []>} : vector<16x32xf32>, vector<32x16xf32>, vector<16x16xf32> -> vector<16x16xf32>
    %699 = vector.shape_cast %697 : vector<16x16xf32> to vector<1x16x16xf32>
    %700 = tpu.concatenate %686, %699 in 0 : vector<7x16x16xf32>, vector<1x16x16xf32> -> vector<8x16x16xf32>
    %701 = vector.shape_cast %698 : vector<16x16xf32> to vector<1x16x16xf32>
    %702 = vector.broadcast %701 : vector<1x16x16xf32> to vector<8x16x16xf32>
    %703 = arith.mulf %700, %702 : vector<8x16x16xf32>
    %cst_255 = arith.constant dense<0.000000e+00> : vector<8x16xf32>
    %704 = vector.multi_reduction <add>, %703, %cst_255 [2] : vector<8x16x16xf32> to vector<8x16xf32>
    %705 = vector.shape_cast %704 : vector<8x16xf32> to vector<8x16x1xf32>
    %cst_256 = arith.constant 1.000000e+00 : f32
    %706 = vector.broadcast %cst_256 : f32 to vector<8x16x1xf32>
    %707 = arith.subf %706, %688 : vector<8x16x1xf32>
    %cst_257 = arith.constant -1.000000e+04 : f32
    %708 = vector.broadcast %cst_257 : f32 to vector<8x16x1xf32>
    %709 = arith.mulf %707, %708 : vector<8x16x1xf32>
    %710 = arith.addf %705, %709 : vector<8x16x1xf32>
    %cst_258 = arith.constant dense<0xFF800000> : vector<16x1xf32>
    %711 = vector.multi_reduction <maximumf>, %710, %cst_258 [0] : vector<8x16x1xf32> to vector<16x1xf32>
    %712 = vector.shape_cast %711 : vector<16x1xf32> to vector<1x16x1xf32>
    %713 = vector.broadcast %712 : vector<1x16x1xf32> to vector<8x16x1xf32>
    %714 = arith.subf %710, %713 : vector<8x16x1xf32>
    %715 = math.exp %714 : vector<8x16x1xf32>
    %cst_259 = arith.constant dense<0.000000e+00> : vector<16x1xf32>
    %716 = vector.multi_reduction <add>, %715, %cst_259 [0] : vector<8x16x1xf32> to vector<16x1xf32>
    %717 = vector.shape_cast %716 : vector<16x1xf32> to vector<1x16x1xf32>
    %718 = tpu.reciprocal %717 {approx = true} : vector<1x16x1xf32> -> vector<1x16x1xf32>
    %719 = vector.broadcast %718 : vector<1x16x1xf32> to vector<8x16x1xf32>
    %720 = arith.mulf %715, %719 : vector<8x16x1xf32>
    %721 = arith.mulf %720, %688 : vector<8x16x1xf32>
    %722 = vector.broadcast %721 : vector<8x16x1xf32> to vector<8x16x16xf32>
    %723 = arith.mulf %722, %700 : vector<8x16x16xf32>
    %cst_260 = arith.constant dense<0.000000e+00> : vector<16x16xf32>
    %724 = vector.multi_reduction <add>, %723, %cst_260 [0] : vector<8x16x16xf32> to vector<16x16xf32>
    %725 = tpu.concatenate %684, %724 in 1 : vector<16x32xf32>, vector<16x16xf32> -> vector<16x48xf32>
    %c43 = arith.constant 43 : index
    %c0_261 = arith.constant 0 : index
    %726 = vector.load %arg10[%c43, %c0_261] : memref<64x128xf32, #tpu.memory_space<vmem>>, vector<1x48xf32>
    %c44 = arith.constant 44 : index
    %c0_262 = arith.constant 0 : index
    %727 = vector.load %arg10[%c44, %c0_262] : memref<64x128xf32, #tpu.memory_space<vmem>>, vector<1x48xf32>
    %c45 = arith.constant 45 : index
    %c0_263 = arith.constant 0 : index
    %728 = vector.load %arg10[%c45, %c0_263] : memref<64x128xf32, #tpu.memory_space<vmem>>, vector<1x48xf32>
    %c46 = arith.constant 46 : index
    %c0_264 = arith.constant 0 : index
    %729 = vector.load %arg10[%c46, %c0_264] : memref<64x128xf32, #tpu.memory_space<vmem>>, vector<1x1xf32>
    %730 = vector.broadcast %726 : vector<1x48xf32> to vector<16x48xf32>
    %731 = arith.mulf %725, %730 : vector<16x48xf32>
    %cst_265 = arith.constant dense<0.000000e+00> : vector<16xf32>
    %732 = vector.multi_reduction <add>, %731, %cst_265 [1] : vector<16x48xf32> to vector<16xf32>
    %733 = vector.shape_cast %732 : vector<16xf32> to vector<16x1xf32>
    %734 = vector.broadcast %728 : vector<1x48xf32> to vector<16x48xf32>
    %735 = arith.mulf %725, %734 : vector<16x48xf32>
    %736 = vector.broadcast %727 : vector<1x48xf32> to vector<16x48xf32>
    %737 = arith.addf %735, %736 : vector<16x48xf32>
    %cst_266 = arith.constant dense<0.000000e+00> : vector<16x16xf32>
    %738 = tpu.matmul %737, %725, %cst_266 {dimension_numbers = #tpu.dot_dimension_numbers<[1], [1], [0], [0], [0, 0, 1, 0], [], []>} : vector<16x48xf32>, vector<16x48xf32>, vector<16x16xf32> -> vector<16x16xf32>
    %739 = vector.broadcast %733 : vector<16x1xf32> to vector<16x16xf32>
    %740 = arith.addf %738, %739 : vector<16x16xf32>
    %741 = vector.broadcast %729 : vector<1x1xf32> to vector<16x16xf32>
    %742 = arith.addf %740, %741 : vector<16x16xf32>
    %743 = arith.addf %742, %1 : vector<16x16xf32>
    %cst_267 = arith.constant dense<0xFF800000> : vector<16xf32>
    %744 = vector.multi_reduction <maximumf>, %743, %cst_267 [1] : vector<16x16xf32> to vector<16xf32>
    %745 = vector.shape_cast %744 : vector<16xf32> to vector<16x1xf32>
    %746 = vector.broadcast %745 : vector<16x1xf32> to vector<16x16xf32>
    %747 = arith.subf %743, %746 : vector<16x16xf32>
    %748 = math.exp %747 : vector<16x16xf32>
    %cst_268 = arith.constant dense<0.000000e+00> : vector<16xf32>
    %749 = vector.multi_reduction <add>, %748, %cst_268 [1] : vector<16x16xf32> to vector<16xf32>
    %750 = vector.shape_cast %749 : vector<16xf32> to vector<16x1xf32>
    %751 = tpu.reciprocal %750 {approx = true} : vector<16x1xf32> -> vector<16x1xf32>
    %752 = vector.broadcast %751 : vector<16x1xf32> to vector<16x16xf32>
    %753 = arith.mulf %748, %752 : vector<16x16xf32>
    %cst_269 = arith.constant dense<0.000000e+00> : vector<16x48xf32>
    %754 = tpu.matmul %753, %725, %cst_269 {dimension_numbers = #tpu.dot_dimension_numbers<[1], [0], [0], [1], [0, 0, 1, 1], [], []>} : vector<16x16xf32>, vector<16x48xf32>, vector<16x48xf32> -> vector<16x48xf32>
    %cst_270 = arith.constant dense<0.000000e+00> : vector<16x48xf32>
    %755 = tpu.matmul %753, %754, %cst_270 {dimension_numbers = #tpu.dot_dimension_numbers<[1], [0], [0], [1], [0, 0, 1, 1], [], []>} : vector<16x16xf32>, vector<16x48xf32>, vector<16x48xf32> -> vector<16x48xf32>
    %c0_271 = arith.constant 0 : index
    %c0_272 = arith.constant 0 : index
    %c0_273 = arith.constant 0 : index
    %c0_274 = arith.constant 0 : index
    %756 = vector.load %arg8[%c0_271, %c0_272, %c0_273, %c0_274] : memref<2x4x48x32xf32, #tpu.memory_space<vmem>>, vector<1x1x48x32xf32>
    %757 = vector.shape_cast %756 : vector<1x1x48x32xf32> to vector<48x32xf32>
    %cst_275 = arith.constant dense<0.000000e+00> : vector<16x32xf32>
    %758 = tpu.matmul %725, %757, %cst_275 {dimension_numbers = #tpu.dot_dimension_numbers<[1], [0], [0], [1], [0, 0, 1, 1], [], []>} : vector<16x48xf32>, vector<48x32xf32>, vector<16x32xf32> -> vector<16x32xf32>
    %c0_276 = arith.constant 0 : index
    %c1_277 = arith.constant 1 : index
    %c0_278 = arith.constant 0 : index
    %c0_279 = arith.constant 0 : index
    %759 = vector.load %arg8[%c0_276, %c1_277, %c0_278, %c0_279] : memref<2x4x48x32xf32, #tpu.memory_space<vmem>>, vector<1x1x48x32xf32>
    %760 = vector.shape_cast %759 : vector<1x1x48x32xf32> to vector<48x32xf32>
    %cst_280 = arith.constant dense<0.000000e+00> : vector<16x32xf32>
    %761 = tpu.matmul %754, %760, %cst_280 {dimension_numbers = #tpu.dot_dimension_numbers<[1], [0], [0], [1], [0, 0, 1, 1], [], []>} : vector<16x48xf32>, vector<48x32xf32>, vector<16x32xf32> -> vector<16x32xf32>
    %762 = arith.addf %758, %761 : vector<16x32xf32>
    %c0_281 = arith.constant 0 : index
    %c2_282 = arith.constant 2 : index
    %c0_283 = arith.constant 0 : index
    %c0_284 = arith.constant 0 : index
    %763 = vector.load %arg8[%c0_281, %c2_282, %c0_283, %c0_284] : memref<2x4x48x32xf32, #tpu.memory_space<vmem>>, vector<1x1x48x32xf32>
    %764 = vector.shape_cast %763 : vector<1x1x48x32xf32> to vector<48x32xf32>
    %cst_285 = arith.constant dense<0.000000e+00> : vector<16x32xf32>
    %765 = tpu.matmul %755, %764, %cst_285 {dimension_numbers = #tpu.dot_dimension_numbers<[1], [0], [0], [1], [0, 0, 1, 1], [], []>} : vector<16x48xf32>, vector<48x32xf32>, vector<16x32xf32> -> vector<16x32xf32>
    %766 = arith.addf %762, %765 : vector<16x32xf32>
    %767 = arith.mulf %725, %754 : vector<16x48xf32>
    %c0_286 = arith.constant 0 : index
    %c3_287 = arith.constant 3 : index
    %c0_288 = arith.constant 0 : index
    %c0_289 = arith.constant 0 : index
    %768 = vector.load %arg8[%c0_286, %c3_287, %c0_288, %c0_289] : memref<2x4x48x32xf32, #tpu.memory_space<vmem>>, vector<1x1x48x32xf32>
    %769 = vector.shape_cast %768 : vector<1x1x48x32xf32> to vector<48x32xf32>
    %cst_290 = arith.constant dense<0.000000e+00> : vector<16x32xf32>
    %770 = tpu.matmul %767, %769, %cst_290 {dimension_numbers = #tpu.dot_dimension_numbers<[1], [0], [0], [1], [0, 0, 1, 1], [], []>} : vector<16x48xf32>, vector<48x32xf32>, vector<16x32xf32> -> vector<16x32xf32>
    %771 = arith.addf %766, %770 : vector<16x32xf32>
    %c47 = arith.constant 47 : index
    %c0_291 = arith.constant 0 : index
    %772 = vector.load %arg10[%c47, %c0_291] : memref<64x128xf32, #tpu.memory_space<vmem>>, vector<1x32xf32>
    %773 = vector.broadcast %772 : vector<1x32xf32> to vector<16x32xf32>
    %774 = arith.addf %771, %773 : vector<16x32xf32>
    %c0_292 = arith.constant 0 : index
    %c0_293 = arith.constant 0 : index
    %c0_294 = arith.constant 0 : index
    %775 = vector.load %arg9[%c0_292, %c0_293, %c0_294] : memref<2x32x128xf32, #tpu.memory_space<vmem>>, vector<1x32x128xf32>
    %776 = vector.shape_cast %775 : vector<1x32x128xf32> to vector<32x128xf32>
    %c48 = arith.constant 48 : index
    %c0_295 = arith.constant 0 : index
    %777 = vector.load %arg10[%c48, %c0_295] : memref<64x128xf32, #tpu.memory_space<vmem>>, vector<1x128xf32>
    %778 = vector.extract_strided_slice %776 {offsets = [0, 0], sizes = [32, 32], strides = [1, 1]} : vector<32x128xf32> to vector<32x32xf32>
    %cst_296 = arith.constant dense<0.000000e+00> : vector<16x32xf32>
    %779 = tpu.matmul %684, %778, %cst_296 {dimension_numbers = #tpu.dot_dimension_numbers<[1], [0], [0], [1], [0, 0, 1, 1], [], []>} : vector<16x32xf32>, vector<32x32xf32>, vector<16x32xf32> -> vector<16x32xf32>
    %780 = vector.extract_strided_slice %777 {offsets = [0, 0], sizes = [1, 32], strides = [1, 1]} : vector<1x128xf32> to vector<1x32xf32>
    %781 = vector.broadcast %780 : vector<1x32xf32> to vector<16x32xf32>
    %782 = arith.addf %779, %781 : vector<16x32xf32>
    %783 = vector.extract_strided_slice %776 {offsets = [0, 32], sizes = [32, 64], strides = [1, 1]} : vector<32x128xf32> to vector<32x64xf32>
    %cst_297 = arith.constant dense<0.000000e+00> : vector<16x64xf32>
    %784 = tpu.matmul %774, %783, %cst_297 {dimension_numbers = #tpu.dot_dimension_numbers<[1], [0], [0], [1], [0, 0, 1, 1], [], []>} : vector<16x32xf32>, vector<32x64xf32>, vector<16x64xf32> -> vector<16x64xf32>
    %785 = vector.extract_strided_slice %777 {offsets = [0, 32], sizes = [1, 64], strides = [1, 1]} : vector<1x128xf32> to vector<1x64xf32>
    %786 = vector.broadcast %785 : vector<1x64xf32> to vector<16x64xf32>
    %787 = arith.addf %784, %786 : vector<16x64xf32>
    %788 = vector.extract_strided_slice %776 {offsets = [0, 96], sizes = [32, 32], strides = [1, 1]} : vector<32x128xf32> to vector<32x32xf32>
    %789 = vector.extract_strided_slice %782 {offsets = [0, 0], sizes = [16, 8], strides = [1, 1]} : vector<16x32xf32> to vector<16x8xf32>
    %790 = vector.extract_strided_slice %787 {offsets = [0, 0], sizes = [16, 8], strides = [1, 1]} : vector<16x64xf32> to vector<16x8xf32>
    %791 = vector.extract_strided_slice %787 {offsets = [0, 32], sizes = [16, 8], strides = [1, 1]} : vector<16x64xf32> to vector<16x8xf32>
    %cst_298 = arith.constant dense<0.000000e+00> : vector<16x16xf32>
    %792 = tpu.matmul %789, %790, %cst_298 {dimension_numbers = #tpu.dot_dimension_numbers<[1], [1], [0], [0], [0, 0, 1, 0], [], []>} : vector<16x8xf32>, vector<16x8xf32>, vector<16x16xf32> -> vector<16x16xf32>
    %cst_299 = arith.constant 0.353553385 : f32
    %793 = vector.broadcast %cst_299 : f32 to vector<16x16xf32>
    %794 = arith.mulf %792, %793 : vector<16x16xf32>
    %795 = arith.addf %794, %1 : vector<16x16xf32>
    %cst_300 = arith.constant dense<0xFF800000> : vector<16xf32>
    %796 = vector.multi_reduction <maximumf>, %795, %cst_300 [1] : vector<16x16xf32> to vector<16xf32>
    %797 = vector.shape_cast %796 : vector<16xf32> to vector<16x1xf32>
    %798 = vector.broadcast %797 : vector<16x1xf32> to vector<16x16xf32>
    %799 = arith.subf %795, %798 : vector<16x16xf32>
    %800 = math.exp %799 : vector<16x16xf32>
    %cst_301 = arith.constant dense<0.000000e+00> : vector<16xf32>
    %801 = vector.multi_reduction <add>, %800, %cst_301 [1] : vector<16x16xf32> to vector<16xf32>
    %802 = vector.shape_cast %801 : vector<16xf32> to vector<16x1xf32>
    %803 = tpu.reciprocal %802 {approx = true} : vector<16x1xf32> -> vector<16x1xf32>
    %804 = vector.broadcast %803 : vector<16x1xf32> to vector<16x16xf32>
    %805 = arith.mulf %800, %804 : vector<16x16xf32>
    %cst_302 = arith.constant dense<0.000000e+00> : vector<16x8xf32>
    %806 = tpu.matmul %805, %791, %cst_302 {dimension_numbers = #tpu.dot_dimension_numbers<[1], [0], [0], [1], [0, 0, 1, 1], [], []>} : vector<16x16xf32>, vector<16x8xf32>, vector<16x8xf32> -> vector<16x8xf32>
    %807 = vector.extract_strided_slice %788 {offsets = [0, 0], sizes = [8, 32], strides = [1, 1]} : vector<32x32xf32> to vector<8x32xf32>
    %cst_303 = arith.constant dense<0.000000e+00> : vector<16x32xf32>
    %808 = tpu.matmul %806, %807, %cst_303 {dimension_numbers = #tpu.dot_dimension_numbers<[1], [0], [0], [1], [0, 0, 1, 1], [], []>} : vector<16x8xf32>, vector<8x32xf32>, vector<16x32xf32> -> vector<16x32xf32>
    %809 = vector.extract_strided_slice %782 {offsets = [0, 8], sizes = [16, 8], strides = [1, 1]} : vector<16x32xf32> to vector<16x8xf32>
    %810 = vector.extract_strided_slice %787 {offsets = [0, 8], sizes = [16, 8], strides = [1, 1]} : vector<16x64xf32> to vector<16x8xf32>
    %811 = vector.extract_strided_slice %787 {offsets = [0, 40], sizes = [16, 8], strides = [1, 1]} : vector<16x64xf32> to vector<16x8xf32>
    %cst_304 = arith.constant dense<0.000000e+00> : vector<16x16xf32>
    %812 = tpu.matmul %809, %810, %cst_304 {dimension_numbers = #tpu.dot_dimension_numbers<[1], [1], [0], [0], [0, 0, 1, 0], [], []>} : vector<16x8xf32>, vector<16x8xf32>, vector<16x16xf32> -> vector<16x16xf32>
    %cst_305 = arith.constant 0.353553385 : f32
    %813 = vector.broadcast %cst_305 : f32 to vector<16x16xf32>
    %814 = arith.mulf %812, %813 : vector<16x16xf32>
    %815 = arith.addf %814, %1 : vector<16x16xf32>
    %cst_306 = arith.constant dense<0xFF800000> : vector<16xf32>
    %816 = vector.multi_reduction <maximumf>, %815, %cst_306 [1] : vector<16x16xf32> to vector<16xf32>
    %817 = vector.shape_cast %816 : vector<16xf32> to vector<16x1xf32>
    %818 = vector.broadcast %817 : vector<16x1xf32> to vector<16x16xf32>
    %819 = arith.subf %815, %818 : vector<16x16xf32>
    %820 = math.exp %819 : vector<16x16xf32>
    %cst_307 = arith.constant dense<0.000000e+00> : vector<16xf32>
    %821 = vector.multi_reduction <add>, %820, %cst_307 [1] : vector<16x16xf32> to vector<16xf32>
    %822 = vector.shape_cast %821 : vector<16xf32> to vector<16x1xf32>
    %823 = tpu.reciprocal %822 {approx = true} : vector<16x1xf32> -> vector<16x1xf32>
    %824 = vector.broadcast %823 : vector<16x1xf32> to vector<16x16xf32>
    %825 = arith.mulf %820, %824 : vector<16x16xf32>
    %cst_308 = arith.constant dense<0.000000e+00> : vector<16x8xf32>
    %826 = tpu.matmul %825, %811, %cst_308 {dimension_numbers = #tpu.dot_dimension_numbers<[1], [0], [0], [1], [0, 0, 1, 1], [], []>} : vector<16x16xf32>, vector<16x8xf32>, vector<16x8xf32> -> vector<16x8xf32>
    %827 = vector.extract_strided_slice %788 {offsets = [8, 0], sizes = [8, 32], strides = [1, 1]} : vector<32x32xf32> to vector<8x32xf32>
    %cst_309 = arith.constant dense<0.000000e+00> : vector<16x32xf32>
    %828 = tpu.matmul %826, %827, %cst_309 {dimension_numbers = #tpu.dot_dimension_numbers<[1], [0], [0], [1], [0, 0, 1, 1], [], []>} : vector<16x8xf32>, vector<8x32xf32>, vector<16x32xf32> -> vector<16x32xf32>
    %829 = arith.addf %808, %828 : vector<16x32xf32>
    %830 = vector.extract_strided_slice %782 {offsets = [0, 16], sizes = [16, 8], strides = [1, 1]} : vector<16x32xf32> to vector<16x8xf32>
    %831 = vector.extract_strided_slice %787 {offsets = [0, 16], sizes = [16, 8], strides = [1, 1]} : vector<16x64xf32> to vector<16x8xf32>
    %832 = vector.extract_strided_slice %787 {offsets = [0, 48], sizes = [16, 8], strides = [1, 1]} : vector<16x64xf32> to vector<16x8xf32>
    %cst_310 = arith.constant dense<0.000000e+00> : vector<16x16xf32>
    %833 = tpu.matmul %830, %831, %cst_310 {dimension_numbers = #tpu.dot_dimension_numbers<[1], [1], [0], [0], [0, 0, 1, 0], [], []>} : vector<16x8xf32>, vector<16x8xf32>, vector<16x16xf32> -> vector<16x16xf32>
    %cst_311 = arith.constant 0.353553385 : f32
    %834 = vector.broadcast %cst_311 : f32 to vector<16x16xf32>
    %835 = arith.mulf %833, %834 : vector<16x16xf32>
    %836 = arith.addf %835, %1 : vector<16x16xf32>
    %cst_312 = arith.constant dense<0xFF800000> : vector<16xf32>
    %837 = vector.multi_reduction <maximumf>, %836, %cst_312 [1] : vector<16x16xf32> to vector<16xf32>
    %838 = vector.shape_cast %837 : vector<16xf32> to vector<16x1xf32>
    %839 = vector.broadcast %838 : vector<16x1xf32> to vector<16x16xf32>
    %840 = arith.subf %836, %839 : vector<16x16xf32>
    %841 = math.exp %840 : vector<16x16xf32>
    %cst_313 = arith.constant dense<0.000000e+00> : vector<16xf32>
    %842 = vector.multi_reduction <add>, %841, %cst_313 [1] : vector<16x16xf32> to vector<16xf32>
    %843 = vector.shape_cast %842 : vector<16xf32> to vector<16x1xf32>
    %844 = tpu.reciprocal %843 {approx = true} : vector<16x1xf32> -> vector<16x1xf32>
    %845 = vector.broadcast %844 : vector<16x1xf32> to vector<16x16xf32>
    %846 = arith.mulf %841, %845 : vector<16x16xf32>
    %cst_314 = arith.constant dense<0.000000e+00> : vector<16x8xf32>
    %847 = tpu.matmul %846, %832, %cst_314 {dimension_numbers = #tpu.dot_dimension_numbers<[1], [0], [0], [1], [0, 0, 1, 1], [], []>} : vector<16x16xf32>, vector<16x8xf32>, vector<16x8xf32> -> vector<16x8xf32>
    %848 = vector.extract_strided_slice %788 {offsets = [16, 0], sizes = [8, 32], strides = [1, 1]} : vector<32x32xf32> to vector<8x32xf32>
    %cst_315 = arith.constant dense<0.000000e+00> : vector<16x32xf32>
    %849 = tpu.matmul %847, %848, %cst_315 {dimension_numbers = #tpu.dot_dimension_numbers<[1], [0], [0], [1], [0, 0, 1, 1], [], []>} : vector<16x8xf32>, vector<8x32xf32>, vector<16x32xf32> -> vector<16x32xf32>
    %850 = arith.addf %829, %849 : vector<16x32xf32>
    %851 = vector.extract_strided_slice %782 {offsets = [0, 24], sizes = [16, 8], strides = [1, 1]} : vector<16x32xf32> to vector<16x8xf32>
    %852 = vector.extract_strided_slice %787 {offsets = [0, 24], sizes = [16, 8], strides = [1, 1]} : vector<16x64xf32> to vector<16x8xf32>
    %853 = vector.extract_strided_slice %787 {offsets = [0, 56], sizes = [16, 8], strides = [1, 1]} : vector<16x64xf32> to vector<16x8xf32>
    %cst_316 = arith.constant dense<0.000000e+00> : vector<16x16xf32>
    %854 = tpu.matmul %851, %852, %cst_316 {dimension_numbers = #tpu.dot_dimension_numbers<[1], [1], [0], [0], [0, 0, 1, 0], [], []>} : vector<16x8xf32>, vector<16x8xf32>, vector<16x16xf32> -> vector<16x16xf32>
    %cst_317 = arith.constant 0.353553385 : f32
    %855 = vector.broadcast %cst_317 : f32 to vector<16x16xf32>
    %856 = arith.mulf %854, %855 : vector<16x16xf32>
    %857 = arith.addf %856, %1 : vector<16x16xf32>
    %cst_318 = arith.constant dense<0xFF800000> : vector<16xf32>
    %858 = vector.multi_reduction <maximumf>, %857, %cst_318 [1] : vector<16x16xf32> to vector<16xf32>
    %859 = vector.shape_cast %858 : vector<16xf32> to vector<16x1xf32>
    %860 = vector.broadcast %859 : vector<16x1xf32> to vector<16x16xf32>
    %861 = arith.subf %857, %860 : vector<16x16xf32>
    %862 = math.exp %861 : vector<16x16xf32>
    %cst_319 = arith.constant dense<0.000000e+00> : vector<16xf32>
    %863 = vector.multi_reduction <add>, %862, %cst_319 [1] : vector<16x16xf32> to vector<16xf32>
    %864 = vector.shape_cast %863 : vector<16xf32> to vector<16x1xf32>
    %865 = tpu.reciprocal %864 {approx = true} : vector<16x1xf32> -> vector<16x1xf32>
    %866 = vector.broadcast %865 : vector<16x1xf32> to vector<16x16xf32>
    %867 = arith.mulf %862, %866 : vector<16x16xf32>
    %cst_320 = arith.constant dense<0.000000e+00> : vector<16x8xf32>
    %868 = tpu.matmul %867, %853, %cst_320 {dimension_numbers = #tpu.dot_dimension_numbers<[1], [0], [0], [1], [0, 0, 1, 1], [], []>} : vector<16x16xf32>, vector<16x8xf32>, vector<16x8xf32> -> vector<16x8xf32>
    %869 = vector.extract_strided_slice %788 {offsets = [24, 0], sizes = [8, 32], strides = [1, 1]} : vector<32x32xf32> to vector<8x32xf32>
    %cst_321 = arith.constant dense<0.000000e+00> : vector<16x32xf32>
    %870 = tpu.matmul %868, %869, %cst_321 {dimension_numbers = #tpu.dot_dimension_numbers<[1], [0], [0], [1], [0, 0, 1, 1], [], []>} : vector<16x8xf32>, vector<8x32xf32>, vector<16x32xf32> -> vector<16x32xf32>
    %871 = arith.addf %850, %870 : vector<16x32xf32>
    %872 = vector.extract_strided_slice %777 {offsets = [0, 96], sizes = [1, 32], strides = [1, 1]} : vector<1x128xf32> to vector<1x32xf32>
    %873 = vector.broadcast %872 : vector<1x32xf32> to vector<16x32xf32>
    %874 = arith.addf %871, %873 : vector<16x32xf32>
    %875 = arith.addf %684, %874 : vector<16x32xf32>
    %c49 = arith.constant 49 : index
    %c0_322 = arith.constant 0 : index
    %876 = vector.load %arg10[%c49, %c0_322] : memref<64x128xf32, #tpu.memory_space<vmem>>, vector<1x32xf32>
    %c50 = arith.constant 50 : index
    %c0_323 = arith.constant 0 : index
    %877 = vector.load %arg10[%c50, %c0_323] : memref<64x128xf32, #tpu.memory_space<vmem>>, vector<1x32xf32>
    %cst_324 = arith.constant dense<0.000000e+00> : vector<16xf32>
    %878 = vector.multi_reduction <add>, %875, %cst_324 [1] : vector<16x32xf32> to vector<16xf32>
    %879 = vector.shape_cast %878 : vector<16xf32> to vector<16x1xf32>
    %cst_325 = arith.constant 3.200000e+01 : f32
    %880 = vector.broadcast %cst_325 : f32 to vector<16x1xf32>
    %881 = arith.divf %879, %880 : vector<16x1xf32>
    %882 = vector.broadcast %881 : vector<16x1xf32> to vector<16x32xf32>
    %883 = arith.subf %875, %882 : vector<16x32xf32>
    %884 = arith.mulf %883, %883 : vector<16x32xf32>
    %cst_326 = arith.constant dense<0.000000e+00> : vector<16xf32>
    %885 = vector.multi_reduction <add>, %884, %cst_326 [1] : vector<16x32xf32> to vector<16xf32>
    %886 = vector.shape_cast %885 : vector<16xf32> to vector<16x1xf32>
    %cst_327 = arith.constant 3.200000e+01 : f32
    %887 = vector.broadcast %cst_327 : f32 to vector<16x1xf32>
    %888 = arith.divf %886, %887 : vector<16x1xf32>
    %889 = vector.broadcast %881 : vector<16x1xf32> to vector<16x32xf32>
    %890 = arith.subf %875, %889 : vector<16x32xf32>
    %cst_328 = arith.constant 9.99999996E-13 : f32
    %891 = vector.broadcast %cst_328 : f32 to vector<16x1xf32>
    %892 = arith.addf %888, %891 : vector<16x1xf32>
    %893 = math.rsqrt %892 : vector<16x1xf32>
    %894 = vector.broadcast %893 : vector<16x1xf32> to vector<16x32xf32>
    %895 = arith.mulf %890, %894 : vector<16x32xf32>
    %896 = vector.broadcast %876 : vector<1x32xf32> to vector<16x32xf32>
    %897 = arith.mulf %895, %896 : vector<16x32xf32>
    %898 = vector.broadcast %877 : vector<1x32xf32> to vector<16x32xf32>
    %899 = arith.addf %897, %898 : vector<16x32xf32>
    %c4_329 = arith.constant 4 : index
    %c0_330 = arith.constant 0 : index
    %c0_331 = arith.constant 0 : index
    %900 = vector.load %arg4[%c4_329, %c0_330, %c0_331] : memref<6x32x128xf32, #tpu.memory_space<vmem>>, vector<1x32x128xf32>
    %901 = vector.shape_cast %900 : vector<1x32x128xf32> to vector<32x128xf32>
    %c28 = arith.constant 28 : index
    %c0_332 = arith.constant 0 : index
    %902 = vector.load %arg10[%c28, %c0_332] : memref<64x128xf32, #tpu.memory_space<vmem>>, vector<1x128xf32>
    %903 = vector.extract_strided_slice %901 {offsets = [0, 0], sizes = [32, 96], strides = [1, 1]} : vector<32x128xf32> to vector<32x96xf32>
    %cst_333 = arith.constant dense<0.000000e+00> : vector<16x96xf32>
    %904 = tpu.matmul %899, %903, %cst_333 {dimension_numbers = #tpu.dot_dimension_numbers<[1], [0], [0], [1], [0, 0, 1, 1], [], []>} : vector<16x32xf32>, vector<32x96xf32>, vector<16x96xf32> -> vector<16x96xf32>
    %905 = vector.extract_strided_slice %902 {offsets = [0, 0], sizes = [1, 96], strides = [1, 1]} : vector<1x128xf32> to vector<1x96xf32>
    %906 = vector.broadcast %905 : vector<1x96xf32> to vector<16x96xf32>
    %907 = arith.addf %904, %906 : vector<16x96xf32>
    %908 = vector.extract_strided_slice %901 {offsets = [0, 96], sizes = [32, 32], strides = [1, 1]} : vector<32x128xf32> to vector<32x32xf32>
    %909 = vector.extract_strided_slice %907 {offsets = [0, 0], sizes = [16, 8], strides = [1, 1]} : vector<16x96xf32> to vector<16x8xf32>
    %910 = vector.extract_strided_slice %907 {offsets = [0, 32], sizes = [16, 8], strides = [1, 1]} : vector<16x96xf32> to vector<16x8xf32>
    %911 = vector.extract_strided_slice %907 {offsets = [0, 64], sizes = [16, 8], strides = [1, 1]} : vector<16x96xf32> to vector<16x8xf32>
    %cst_334 = arith.constant dense<0.000000e+00> : vector<16x16xf32>
    %912 = tpu.matmul %909, %910, %cst_334 {dimension_numbers = #tpu.dot_dimension_numbers<[1], [1], [0], [0], [0, 0, 1, 0], [], []>} : vector<16x8xf32>, vector<16x8xf32>, vector<16x16xf32> -> vector<16x16xf32>
    %cst_335 = arith.constant 0.353553385 : f32
    %913 = vector.broadcast %cst_335 : f32 to vector<16x16xf32>
    %914 = arith.mulf %912, %913 : vector<16x16xf32>
    %915 = arith.addf %914, %1 : vector<16x16xf32>
    %cst_336 = arith.constant dense<0xFF800000> : vector<16xf32>
    %916 = vector.multi_reduction <maximumf>, %915, %cst_336 [1] : vector<16x16xf32> to vector<16xf32>
    %917 = vector.shape_cast %916 : vector<16xf32> to vector<16x1xf32>
    %918 = vector.broadcast %917 : vector<16x1xf32> to vector<16x16xf32>
    %919 = arith.subf %915, %918 : vector<16x16xf32>
    %920 = math.exp %919 : vector<16x16xf32>
    %cst_337 = arith.constant dense<0.000000e+00> : vector<16xf32>
    %921 = vector.multi_reduction <add>, %920, %cst_337 [1] : vector<16x16xf32> to vector<16xf32>
    %922 = vector.shape_cast %921 : vector<16xf32> to vector<16x1xf32>
    %923 = tpu.reciprocal %922 {approx = true} : vector<16x1xf32> -> vector<16x1xf32>
    %924 = vector.broadcast %923 : vector<16x1xf32> to vector<16x16xf32>
    %925 = arith.mulf %920, %924 : vector<16x16xf32>
    %cst_338 = arith.constant dense<0.000000e+00> : vector<16x8xf32>
    %926 = tpu.matmul %925, %911, %cst_338 {dimension_numbers = #tpu.dot_dimension_numbers<[1], [0], [0], [1], [0, 0, 1, 1], [], []>} : vector<16x16xf32>, vector<16x8xf32>, vector<16x8xf32> -> vector<16x8xf32>
    %927 = vector.extract_strided_slice %908 {offsets = [0, 0], sizes = [8, 32], strides = [1, 1]} : vector<32x32xf32> to vector<8x32xf32>
    %cst_339 = arith.constant dense<0.000000e+00> : vector<16x32xf32>
    %928 = tpu.matmul %926, %927, %cst_339 {dimension_numbers = #tpu.dot_dimension_numbers<[1], [0], [0], [1], [0, 0, 1, 1], [], []>} : vector<16x8xf32>, vector<8x32xf32>, vector<16x32xf32> -> vector<16x32xf32>
    %929 = vector.extract_strided_slice %907 {offsets = [0, 8], sizes = [16, 8], strides = [1, 1]} : vector<16x96xf32> to vector<16x8xf32>
    %930 = vector.extract_strided_slice %907 {offsets = [0, 40], sizes = [16, 8], strides = [1, 1]} : vector<16x96xf32> to vector<16x8xf32>
    %931 = vector.extract_strided_slice %907 {offsets = [0, 72], sizes = [16, 8], strides = [1, 1]} : vector<16x96xf32> to vector<16x8xf32>
    %cst_340 = arith.constant dense<0.000000e+00> : vector<16x16xf32>
    %932 = tpu.matmul %929, %930, %cst_340 {dimension_numbers = #tpu.dot_dimension_numbers<[1], [1], [0], [0], [0, 0, 1, 0], [], []>} : vector<16x8xf32>, vector<16x8xf32>, vector<16x16xf32> -> vector<16x16xf32>
    %cst_341 = arith.constant 0.353553385 : f32
    %933 = vector.broadcast %cst_341 : f32 to vector<16x16xf32>
    %934 = arith.mulf %932, %933 : vector<16x16xf32>
    %935 = arith.addf %934, %1 : vector<16x16xf32>
    %cst_342 = arith.constant dense<0xFF800000> : vector<16xf32>
    %936 = vector.multi_reduction <maximumf>, %935, %cst_342 [1] : vector<16x16xf32> to vector<16xf32>
    %937 = vector.shape_cast %936 : vector<16xf32> to vector<16x1xf32>
    %938 = vector.broadcast %937 : vector<16x1xf32> to vector<16x16xf32>
    %939 = arith.subf %935, %938 : vector<16x16xf32>
    %940 = math.exp %939 : vector<16x16xf32>
    %cst_343 = arith.constant dense<0.000000e+00> : vector<16xf32>
    %941 = vector.multi_reduction <add>, %940, %cst_343 [1] : vector<16x16xf32> to vector<16xf32>
    %942 = vector.shape_cast %941 : vector<16xf32> to vector<16x1xf32>
    %943 = tpu.reciprocal %942 {approx = true} : vector<16x1xf32> -> vector<16x1xf32>
    %944 = vector.broadcast %943 : vector<16x1xf32> to vector<16x16xf32>
    %945 = arith.mulf %940, %944 : vector<16x16xf32>
    %cst_344 = arith.constant dense<0.000000e+00> : vector<16x8xf32>
    %946 = tpu.matmul %945, %931, %cst_344 {dimension_numbers = #tpu.dot_dimension_numbers<[1], [0], [0], [1], [0, 0, 1, 1], [], []>} : vector<16x16xf32>, vector<16x8xf32>, vector<16x8xf32> -> vector<16x8xf32>
    %947 = vector.extract_strided_slice %908 {offsets = [8, 0], sizes = [8, 32], strides = [1, 1]} : vector<32x32xf32> to vector<8x32xf32>
    %cst_345 = arith.constant dense<0.000000e+00> : vector<16x32xf32>
    %948 = tpu.matmul %946, %947, %cst_345 {dimension_numbers = #tpu.dot_dimension_numbers<[1], [0], [0], [1], [0, 0, 1, 1], [], []>} : vector<16x8xf32>, vector<8x32xf32>, vector<16x32xf32> -> vector<16x32xf32>
    %949 = arith.addf %928, %948 : vector<16x32xf32>
    %950 = vector.extract_strided_slice %907 {offsets = [0, 16], sizes = [16, 8], strides = [1, 1]} : vector<16x96xf32> to vector<16x8xf32>
    %951 = vector.extract_strided_slice %907 {offsets = [0, 48], sizes = [16, 8], strides = [1, 1]} : vector<16x96xf32> to vector<16x8xf32>
    %952 = vector.extract_strided_slice %907 {offsets = [0, 80], sizes = [16, 8], strides = [1, 1]} : vector<16x96xf32> to vector<16x8xf32>
    %cst_346 = arith.constant dense<0.000000e+00> : vector<16x16xf32>
    %953 = tpu.matmul %950, %951, %cst_346 {dimension_numbers = #tpu.dot_dimension_numbers<[1], [1], [0], [0], [0, 0, 1, 0], [], []>} : vector<16x8xf32>, vector<16x8xf32>, vector<16x16xf32> -> vector<16x16xf32>
    %cst_347 = arith.constant 0.353553385 : f32
    %954 = vector.broadcast %cst_347 : f32 to vector<16x16xf32>
    %955 = arith.mulf %953, %954 : vector<16x16xf32>
    %956 = arith.addf %955, %1 : vector<16x16xf32>
    %cst_348 = arith.constant dense<0xFF800000> : vector<16xf32>
    %957 = vector.multi_reduction <maximumf>, %956, %cst_348 [1] : vector<16x16xf32> to vector<16xf32>
    %958 = vector.shape_cast %957 : vector<16xf32> to vector<16x1xf32>
    %959 = vector.broadcast %958 : vector<16x1xf32> to vector<16x16xf32>
    %960 = arith.subf %956, %959 : vector<16x16xf32>
    %961 = math.exp %960 : vector<16x16xf32>
    %cst_349 = arith.constant dense<0.000000e+00> : vector<16xf32>
    %962 = vector.multi_reduction <add>, %961, %cst_349 [1] : vector<16x16xf32> to vector<16xf32>
    %963 = vector.shape_cast %962 : vector<16xf32> to vector<16x1xf32>
    %964 = tpu.reciprocal %963 {approx = true} : vector<16x1xf32> -> vector<16x1xf32>
    %965 = vector.broadcast %964 : vector<16x1xf32> to vector<16x16xf32>
    %966 = arith.mulf %961, %965 : vector<16x16xf32>
    %cst_350 = arith.constant dense<0.000000e+00> : vector<16x8xf32>
    %967 = tpu.matmul %966, %952, %cst_350 {dimension_numbers = #tpu.dot_dimension_numbers<[1], [0], [0], [1], [0, 0, 1, 1], [], []>} : vector<16x16xf32>, vector<16x8xf32>, vector<16x8xf32> -> vector<16x8xf32>
    %968 = vector.extract_strided_slice %908 {offsets = [16, 0], sizes = [8, 32], strides = [1, 1]} : vector<32x32xf32> to vector<8x32xf32>
    %cst_351 = arith.constant dense<0.000000e+00> : vector<16x32xf32>
    %969 = tpu.matmul %967, %968, %cst_351 {dimension_numbers = #tpu.dot_dimension_numbers<[1], [0], [0], [1], [0, 0, 1, 1], [], []>} : vector<16x8xf32>, vector<8x32xf32>, vector<16x32xf32> -> vector<16x32xf32>
    %970 = arith.addf %949, %969 : vector<16x32xf32>
    %971 = vector.extract_strided_slice %907 {offsets = [0, 24], sizes = [16, 8], strides = [1, 1]} : vector<16x96xf32> to vector<16x8xf32>
    %972 = vector.extract_strided_slice %907 {offsets = [0, 56], sizes = [16, 8], strides = [1, 1]} : vector<16x96xf32> to vector<16x8xf32>
    %973 = vector.extract_strided_slice %907 {offsets = [0, 88], sizes = [16, 8], strides = [1, 1]} : vector<16x96xf32> to vector<16x8xf32>
    %cst_352 = arith.constant dense<0.000000e+00> : vector<16x16xf32>
    %974 = tpu.matmul %971, %972, %cst_352 {dimension_numbers = #tpu.dot_dimension_numbers<[1], [1], [0], [0], [0, 0, 1, 0], [], []>} : vector<16x8xf32>, vector<16x8xf32>, vector<16x16xf32> -> vector<16x16xf32>
    %cst_353 = arith.constant 0.353553385 : f32
    %975 = vector.broadcast %cst_353 : f32 to vector<16x16xf32>
    %976 = arith.mulf %974, %975 : vector<16x16xf32>
    %977 = arith.addf %976, %1 : vector<16x16xf32>
    %cst_354 = arith.constant dense<0xFF800000> : vector<16xf32>
    %978 = vector.multi_reduction <maximumf>, %977, %cst_354 [1] : vector<16x16xf32> to vector<16xf32>
    %979 = vector.shape_cast %978 : vector<16xf32> to vector<16x1xf32>
    %980 = vector.broadcast %979 : vector<16x1xf32> to vector<16x16xf32>
    %981 = arith.subf %977, %980 : vector<16x16xf32>
    %982 = math.exp %981 : vector<16x16xf32>
    %cst_355 = arith.constant dense<0.000000e+00> : vector<16xf32>
    %983 = vector.multi_reduction <add>, %982, %cst_355 [1] : vector<16x16xf32> to vector<16xf32>
    %984 = vector.shape_cast %983 : vector<16xf32> to vector<16x1xf32>
    %985 = tpu.reciprocal %984 {approx = true} : vector<16x1xf32> -> vector<16x1xf32>
    %986 = vector.broadcast %985 : vector<16x1xf32> to vector<16x16xf32>
    %987 = arith.mulf %982, %986 : vector<16x16xf32>
    %cst_356 = arith.constant dense<0.000000e+00> : vector<16x8xf32>
    %988 = tpu.matmul %987, %973, %cst_356 {dimension_numbers = #tpu.dot_dimension_numbers<[1], [0], [0], [1], [0, 0, 1, 1], [], []>} : vector<16x16xf32>, vector<16x8xf32>, vector<16x8xf32> -> vector<16x8xf32>
    %989 = vector.extract_strided_slice %908 {offsets = [24, 0], sizes = [8, 32], strides = [1, 1]} : vector<32x32xf32> to vector<8x32xf32>
    %cst_357 = arith.constant dense<0.000000e+00> : vector<16x32xf32>
    %990 = tpu.matmul %988, %989, %cst_357 {dimension_numbers = #tpu.dot_dimension_numbers<[1], [0], [0], [1], [0, 0, 1, 1], [], []>} : vector<16x8xf32>, vector<8x32xf32>, vector<16x32xf32> -> vector<16x32xf32>
    %991 = arith.addf %970, %990 : vector<16x32xf32>
    %992 = vector.extract_strided_slice %902 {offsets = [0, 96], sizes = [1, 32], strides = [1, 1]} : vector<1x128xf32> to vector<1x32xf32>
    %993 = vector.broadcast %992 : vector<1x32xf32> to vector<16x32xf32>
    %994 = arith.addf %991, %993 : vector<16x32xf32>
    %995 = arith.addf %899, %994 : vector<16x32xf32>
    %c31 = arith.constant 31 : index
    %c0_358 = arith.constant 0 : index
    %996 = vector.load %arg10[%c31, %c0_358] : memref<64x128xf32, #tpu.memory_space<vmem>>, vector<1x32xf32>
    %c32 = arith.constant 32 : index
    %c0_359 = arith.constant 0 : index
    %997 = vector.load %arg10[%c32, %c0_359] : memref<64x128xf32, #tpu.memory_space<vmem>>, vector<1x32xf32>
    %cst_360 = arith.constant dense<0.000000e+00> : vector<16xf32>
    %998 = vector.multi_reduction <add>, %995, %cst_360 [1] : vector<16x32xf32> to vector<16xf32>
    %999 = vector.shape_cast %998 : vector<16xf32> to vector<16x1xf32>
    %cst_361 = arith.constant 3.200000e+01 : f32
    %1000 = vector.broadcast %cst_361 : f32 to vector<16x1xf32>
    %1001 = arith.divf %999, %1000 : vector<16x1xf32>
    %1002 = vector.broadcast %1001 : vector<16x1xf32> to vector<16x32xf32>
    %1003 = arith.subf %995, %1002 : vector<16x32xf32>
    %1004 = arith.mulf %1003, %1003 : vector<16x32xf32>
    %cst_362 = arith.constant dense<0.000000e+00> : vector<16xf32>
    %1005 = vector.multi_reduction <add>, %1004, %cst_362 [1] : vector<16x32xf32> to vector<16xf32>
    %1006 = vector.shape_cast %1005 : vector<16xf32> to vector<16x1xf32>
    %cst_363 = arith.constant 3.200000e+01 : f32
    %1007 = vector.broadcast %cst_363 : f32 to vector<16x1xf32>
    %1008 = arith.divf %1006, %1007 : vector<16x1xf32>
    %1009 = vector.broadcast %1001 : vector<16x1xf32> to vector<16x32xf32>
    %1010 = arith.subf %995, %1009 : vector<16x32xf32>
    %cst_364 = arith.constant 9.99999996E-13 : f32
    %1011 = vector.broadcast %cst_364 : f32 to vector<16x1xf32>
    %1012 = arith.addf %1008, %1011 : vector<16x1xf32>
    %1013 = math.rsqrt %1012 : vector<16x1xf32>
    %1014 = vector.broadcast %1013 : vector<16x1xf32> to vector<16x32xf32>
    %1015 = arith.mulf %1010, %1014 : vector<16x32xf32>
    %1016 = vector.broadcast %996 : vector<1x32xf32> to vector<16x32xf32>
    %1017 = arith.mulf %1015, %1016 : vector<16x32xf32>
    %1018 = vector.broadcast %997 : vector<1x32xf32> to vector<16x32xf32>
    %1019 = arith.addf %1017, %1018 : vector<16x32xf32>
    %c4_365 = arith.constant 4 : index
    %c0_366 = arith.constant 0 : index
    %c0_367 = arith.constant 0 : index
    %1020 = vector.load %arg5[%c4_365, %c0_366, %c0_367] : memref<6x32x64xf32, #tpu.memory_space<vmem>>, vector<1x32x64xf32>
    %1021 = vector.shape_cast %1020 : vector<1x32x64xf32> to vector<32x64xf32>
    %cst_368 = arith.constant dense<0.000000e+00> : vector<16x64xf32>
    %1022 = tpu.matmul %1019, %1021, %cst_368 {dimension_numbers = #tpu.dot_dimension_numbers<[1], [0], [0], [1], [0, 0, 1, 1], [], []>} : vector<16x32xf32>, vector<32x64xf32>, vector<16x64xf32> -> vector<16x64xf32>
    %c29 = arith.constant 29 : index
    %c0_369 = arith.constant 0 : index
    %1023 = vector.load %arg10[%c29, %c0_369] : memref<64x128xf32, #tpu.memory_space<vmem>>, vector<1x64xf32>
    %1024 = vector.broadcast %1023 : vector<1x64xf32> to vector<16x64xf32>
    %1025 = arith.addf %1022, %1024 : vector<16x64xf32>
    %cst_370 = arith.constant 5.000000e-01 : f32
    %1026 = vector.broadcast %cst_370 : f32 to vector<16x64xf32>
    %1027 = arith.mulf %1026, %1025 : vector<16x64xf32>
    %cst_371 = arith.constant 4.471500e-02 : f32
    %1028 = vector.broadcast %cst_371 : f32 to vector<16x64xf32>
    %1029 = arith.mulf %1028, %1025 : vector<16x64xf32>
    %1030 = arith.mulf %1029, %1025 : vector<16x64xf32>
    %1031 = arith.mulf %1030, %1025 : vector<16x64xf32>
    %1032 = arith.addf %1025, %1031 : vector<16x64xf32>
    %cst_372 = arith.constant 0.797884583 : f32
    %1033 = vector.broadcast %cst_372 : f32 to vector<16x64xf32>
    %1034 = arith.mulf %1033, %1032 : vector<16x64xf32>
    %1035 = math.tanh %1034 : vector<16x64xf32>
    %cst_373 = arith.constant 1.000000e+00 : f32
    %1036 = vector.broadcast %cst_373 : f32 to vector<16x64xf32>
    %1037 = arith.addf %1036, %1035 : vector<16x64xf32>
    %1038 = arith.mulf %1027, %1037 : vector<16x64xf32>
    %c4_374 = arith.constant 4 : index
    %c0_375 = arith.constant 0 : index
    %c0_376 = arith.constant 0 : index
    %1039 = vector.load %arg6[%c4_374, %c0_375, %c0_376] : memref<6x64x32xf32, #tpu.memory_space<vmem>>, vector<1x64x32xf32>
    %1040 = vector.shape_cast %1039 : vector<1x64x32xf32> to vector<64x32xf32>
    %cst_377 = arith.constant dense<0.000000e+00> : vector<16x32xf32>
    %1041 = tpu.matmul %1038, %1040, %cst_377 {dimension_numbers = #tpu.dot_dimension_numbers<[1], [0], [0], [1], [0, 0, 1, 1], [], []>} : vector<16x64xf32>, vector<64x32xf32>, vector<16x32xf32> -> vector<16x32xf32>
    %c30 = arith.constant 30 : index
    %c0_378 = arith.constant 0 : index
    %1042 = vector.load %arg10[%c30, %c0_378] : memref<64x128xf32, #tpu.memory_space<vmem>>, vector<1x32xf32>
    %1043 = vector.broadcast %1042 : vector<1x32xf32> to vector<16x32xf32>
    %1044 = arith.addf %1041, %1043 : vector<16x32xf32>
    %1045 = arith.addf %1019, %1044 : vector<16x32xf32>
    %c33 = arith.constant 33 : index
    %c0_379 = arith.constant 0 : index
    %1046 = vector.load %arg10[%c33, %c0_379] : memref<64x128xf32, #tpu.memory_space<vmem>>, vector<1x32xf32>
    %c34 = arith.constant 34 : index
    %c0_380 = arith.constant 0 : index
    %1047 = vector.load %arg10[%c34, %c0_380] : memref<64x128xf32, #tpu.memory_space<vmem>>, vector<1x32xf32>
    %cst_381 = arith.constant dense<0.000000e+00> : vector<16xf32>
    %1048 = vector.multi_reduction <add>, %1045, %cst_381 [1] : vector<16x32xf32> to vector<16xf32>
    %1049 = vector.shape_cast %1048 : vector<16xf32> to vector<16x1xf32>
    %cst_382 = arith.constant 3.200000e+01 : f32
    %1050 = vector.broadcast %cst_382 : f32 to vector<16x1xf32>
    %1051 = arith.divf %1049, %1050 : vector<16x1xf32>
    %1052 = vector.broadcast %1051 : vector<16x1xf32> to vector<16x32xf32>
    %1053 = arith.subf %1045, %1052 : vector<16x32xf32>
    %1054 = arith.mulf %1053, %1053 : vector<16x32xf32>
    %cst_383 = arith.constant dense<0.000000e+00> : vector<16xf32>
    %1055 = vector.multi_reduction <add>, %1054, %cst_383 [1] : vector<16x32xf32> to vector<16xf32>
    %1056 = vector.shape_cast %1055 : vector<16xf32> to vector<16x1xf32>
    %cst_384 = arith.constant 3.200000e+01 : f32
    %1057 = vector.broadcast %cst_384 : f32 to vector<16x1xf32>
    %1058 = arith.divf %1056, %1057 : vector<16x1xf32>
    %1059 = vector.broadcast %1051 : vector<16x1xf32> to vector<16x32xf32>
    %1060 = arith.subf %1045, %1059 : vector<16x32xf32>
    %cst_385 = arith.constant 9.99999996E-13 : f32
    %1061 = vector.broadcast %cst_385 : f32 to vector<16x1xf32>
    %1062 = arith.addf %1058, %1061 : vector<16x1xf32>
    %1063 = math.rsqrt %1062 : vector<16x1xf32>
    %1064 = vector.broadcast %1063 : vector<16x1xf32> to vector<16x32xf32>
    %1065 = arith.mulf %1060, %1064 : vector<16x32xf32>
    %1066 = vector.broadcast %1046 : vector<1x32xf32> to vector<16x32xf32>
    %1067 = arith.mulf %1065, %1066 : vector<16x32xf32>
    %1068 = vector.broadcast %1047 : vector<1x32xf32> to vector<16x32xf32>
    %1069 = arith.addf %1067, %1068 : vector<16x32xf32>
    %c5_386 = arith.constant 5 : index
    %c0_387 = arith.constant 0 : index
    %c0_388 = arith.constant 0 : index
    %1070 = vector.load %arg4[%c5_386, %c0_387, %c0_388] : memref<6x32x128xf32, #tpu.memory_space<vmem>>, vector<1x32x128xf32>
    %1071 = vector.shape_cast %1070 : vector<1x32x128xf32> to vector<32x128xf32>
    %c35 = arith.constant 35 : index
    %c0_389 = arith.constant 0 : index
    %1072 = vector.load %arg10[%c35, %c0_389] : memref<64x128xf32, #tpu.memory_space<vmem>>, vector<1x128xf32>
    %1073 = vector.extract_strided_slice %1071 {offsets = [0, 0], sizes = [32, 96], strides = [1, 1]} : vector<32x128xf32> to vector<32x96xf32>
    %cst_390 = arith.constant dense<0.000000e+00> : vector<16x96xf32>
    %1074 = tpu.matmul %1069, %1073, %cst_390 {dimension_numbers = #tpu.dot_dimension_numbers<[1], [0], [0], [1], [0, 0, 1, 1], [], []>} : vector<16x32xf32>, vector<32x96xf32>, vector<16x96xf32> -> vector<16x96xf32>
    %1075 = vector.extract_strided_slice %1072 {offsets = [0, 0], sizes = [1, 96], strides = [1, 1]} : vector<1x128xf32> to vector<1x96xf32>
    %1076 = vector.broadcast %1075 : vector<1x96xf32> to vector<16x96xf32>
    %1077 = arith.addf %1074, %1076 : vector<16x96xf32>
    %1078 = vector.extract_strided_slice %1071 {offsets = [0, 96], sizes = [32, 32], strides = [1, 1]} : vector<32x128xf32> to vector<32x32xf32>
    %1079 = vector.extract_strided_slice %1077 {offsets = [0, 0], sizes = [16, 8], strides = [1, 1]} : vector<16x96xf32> to vector<16x8xf32>
    %1080 = vector.extract_strided_slice %1077 {offsets = [0, 32], sizes = [16, 8], strides = [1, 1]} : vector<16x96xf32> to vector<16x8xf32>
    %1081 = vector.extract_strided_slice %1077 {offsets = [0, 64], sizes = [16, 8], strides = [1, 1]} : vector<16x96xf32> to vector<16x8xf32>
    %cst_391 = arith.constant dense<0.000000e+00> : vector<16x16xf32>
    %1082 = tpu.matmul %1079, %1080, %cst_391 {dimension_numbers = #tpu.dot_dimension_numbers<[1], [1], [0], [0], [0, 0, 1, 0], [], []>} : vector<16x8xf32>, vector<16x8xf32>, vector<16x16xf32> -> vector<16x16xf32>
    %cst_392 = arith.constant 0.353553385 : f32
    %1083 = vector.broadcast %cst_392 : f32 to vector<16x16xf32>
    %1084 = arith.mulf %1082, %1083 : vector<16x16xf32>
    %1085 = arith.addf %1084, %1 : vector<16x16xf32>
    %cst_393 = arith.constant dense<0xFF800000> : vector<16xf32>
    %1086 = vector.multi_reduction <maximumf>, %1085, %cst_393 [1] : vector<16x16xf32> to vector<16xf32>
    %1087 = vector.shape_cast %1086 : vector<16xf32> to vector<16x1xf32>
    %1088 = vector.broadcast %1087 : vector<16x1xf32> to vector<16x16xf32>
    %1089 = arith.subf %1085, %1088 : vector<16x16xf32>
    %1090 = math.exp %1089 : vector<16x16xf32>
    %cst_394 = arith.constant dense<0.000000e+00> : vector<16xf32>
    %1091 = vector.multi_reduction <add>, %1090, %cst_394 [1] : vector<16x16xf32> to vector<16xf32>
    %1092 = vector.shape_cast %1091 : vector<16xf32> to vector<16x1xf32>
    %1093 = tpu.reciprocal %1092 {approx = true} : vector<16x1xf32> -> vector<16x1xf32>
    %1094 = vector.broadcast %1093 : vector<16x1xf32> to vector<16x16xf32>
    %1095 = arith.mulf %1090, %1094 : vector<16x16xf32>
    %cst_395 = arith.constant dense<0.000000e+00> : vector<16x8xf32>
    %1096 = tpu.matmul %1095, %1081, %cst_395 {dimension_numbers = #tpu.dot_dimension_numbers<[1], [0], [0], [1], [0, 0, 1, 1], [], []>} : vector<16x16xf32>, vector<16x8xf32>, vector<16x8xf32> -> vector<16x8xf32>
    %1097 = vector.extract_strided_slice %1078 {offsets = [0, 0], sizes = [8, 32], strides = [1, 1]} : vector<32x32xf32> to vector<8x32xf32>
    %cst_396 = arith.constant dense<0.000000e+00> : vector<16x32xf32>
    %1098 = tpu.matmul %1096, %1097, %cst_396 {dimension_numbers = #tpu.dot_dimension_numbers<[1], [0], [0], [1], [0, 0, 1, 1], [], []>} : vector<16x8xf32>, vector<8x32xf32>, vector<16x32xf32> -> vector<16x32xf32>
    %1099 = vector.extract_strided_slice %1077 {offsets = [0, 8], sizes = [16, 8], strides = [1, 1]} : vector<16x96xf32> to vector<16x8xf32>
    %1100 = vector.extract_strided_slice %1077 {offsets = [0, 40], sizes = [16, 8], strides = [1, 1]} : vector<16x96xf32> to vector<16x8xf32>
    %1101 = vector.extract_strided_slice %1077 {offsets = [0, 72], sizes = [16, 8], strides = [1, 1]} : vector<16x96xf32> to vector<16x8xf32>
    %cst_397 = arith.constant dense<0.000000e+00> : vector<16x16xf32>
    %1102 = tpu.matmul %1099, %1100, %cst_397 {dimension_numbers = #tpu.dot_dimension_numbers<[1], [1], [0], [0], [0, 0, 1, 0], [], []>} : vector<16x8xf32>, vector<16x8xf32>, vector<16x16xf32> -> vector<16x16xf32>
    %cst_398 = arith.constant 0.353553385 : f32
    %1103 = vector.broadcast %cst_398 : f32 to vector<16x16xf32>
    %1104 = arith.mulf %1102, %1103 : vector<16x16xf32>
    %1105 = arith.addf %1104, %1 : vector<16x16xf32>
    %cst_399 = arith.constant dense<0xFF800000> : vector<16xf32>
    %1106 = vector.multi_reduction <maximumf>, %1105, %cst_399 [1] : vector<16x16xf32> to vector<16xf32>
    %1107 = vector.shape_cast %1106 : vector<16xf32> to vector<16x1xf32>
    %1108 = vector.broadcast %1107 : vector<16x1xf32> to vector<16x16xf32>
    %1109 = arith.subf %1105, %1108 : vector<16x16xf32>
    %1110 = math.exp %1109 : vector<16x16xf32>
    %cst_400 = arith.constant dense<0.000000e+00> : vector<16xf32>
    %1111 = vector.multi_reduction <add>, %1110, %cst_400 [1] : vector<16x16xf32> to vector<16xf32>
    %1112 = vector.shape_cast %1111 : vector<16xf32> to vector<16x1xf32>
    %1113 = tpu.reciprocal %1112 {approx = true} : vector<16x1xf32> -> vector<16x1xf32>
    %1114 = vector.broadcast %1113 : vector<16x1xf32> to vector<16x16xf32>
    %1115 = arith.mulf %1110, %1114 : vector<16x16xf32>
    %cst_401 = arith.constant dense<0.000000e+00> : vector<16x8xf32>
    %1116 = tpu.matmul %1115, %1101, %cst_401 {dimension_numbers = #tpu.dot_dimension_numbers<[1], [0], [0], [1], [0, 0, 1, 1], [], []>} : vector<16x16xf32>, vector<16x8xf32>, vector<16x8xf32> -> vector<16x8xf32>
    %1117 = vector.extract_strided_slice %1078 {offsets = [8, 0], sizes = [8, 32], strides = [1, 1]} : vector<32x32xf32> to vector<8x32xf32>
    %cst_402 = arith.constant dense<0.000000e+00> : vector<16x32xf32>
    %1118 = tpu.matmul %1116, %1117, %cst_402 {dimension_numbers = #tpu.dot_dimension_numbers<[1], [0], [0], [1], [0, 0, 1, 1], [], []>} : vector<16x8xf32>, vector<8x32xf32>, vector<16x32xf32> -> vector<16x32xf32>
    %1119 = arith.addf %1098, %1118 : vector<16x32xf32>
    %1120 = vector.extract_strided_slice %1077 {offsets = [0, 16], sizes = [16, 8], strides = [1, 1]} : vector<16x96xf32> to vector<16x8xf32>
    %1121 = vector.extract_strided_slice %1077 {offsets = [0, 48], sizes = [16, 8], strides = [1, 1]} : vector<16x96xf32> to vector<16x8xf32>
    %1122 = vector.extract_strided_slice %1077 {offsets = [0, 80], sizes = [16, 8], strides = [1, 1]} : vector<16x96xf32> to vector<16x8xf32>
    %cst_403 = arith.constant dense<0.000000e+00> : vector<16x16xf32>
    %1123 = tpu.matmul %1120, %1121, %cst_403 {dimension_numbers = #tpu.dot_dimension_numbers<[1], [1], [0], [0], [0, 0, 1, 0], [], []>} : vector<16x8xf32>, vector<16x8xf32>, vector<16x16xf32> -> vector<16x16xf32>
    %cst_404 = arith.constant 0.353553385 : f32
    %1124 = vector.broadcast %cst_404 : f32 to vector<16x16xf32>
    %1125 = arith.mulf %1123, %1124 : vector<16x16xf32>
    %1126 = arith.addf %1125, %1 : vector<16x16xf32>
    %cst_405 = arith.constant dense<0xFF800000> : vector<16xf32>
    %1127 = vector.multi_reduction <maximumf>, %1126, %cst_405 [1] : vector<16x16xf32> to vector<16xf32>
    %1128 = vector.shape_cast %1127 : vector<16xf32> to vector<16x1xf32>
    %1129 = vector.broadcast %1128 : vector<16x1xf32> to vector<16x16xf32>
    %1130 = arith.subf %1126, %1129 : vector<16x16xf32>
    %1131 = math.exp %1130 : vector<16x16xf32>
    %cst_406 = arith.constant dense<0.000000e+00> : vector<16xf32>
    %1132 = vector.multi_reduction <add>, %1131, %cst_406 [1] : vector<16x16xf32> to vector<16xf32>
    %1133 = vector.shape_cast %1132 : vector<16xf32> to vector<16x1xf32>
    %1134 = tpu.reciprocal %1133 {approx = true} : vector<16x1xf32> -> vector<16x1xf32>
    %1135 = vector.broadcast %1134 : vector<16x1xf32> to vector<16x16xf32>
    %1136 = arith.mulf %1131, %1135 : vector<16x16xf32>
    %cst_407 = arith.constant dense<0.000000e+00> : vector<16x8xf32>
    %1137 = tpu.matmul %1136, %1122, %cst_407 {dimension_numbers = #tpu.dot_dimension_numbers<[1], [0], [0], [1], [0, 0, 1, 1], [], []>} : vector<16x16xf32>, vector<16x8xf32>, vector<16x8xf32> -> vector<16x8xf32>
    %1138 = vector.extract_strided_slice %1078 {offsets = [16, 0], sizes = [8, 32], strides = [1, 1]} : vector<32x32xf32> to vector<8x32xf32>
    %cst_408 = arith.constant dense<0.000000e+00> : vector<16x32xf32>
    %1139 = tpu.matmul %1137, %1138, %cst_408 {dimension_numbers = #tpu.dot_dimension_numbers<[1], [0], [0], [1], [0, 0, 1, 1], [], []>} : vector<16x8xf32>, vector<8x32xf32>, vector<16x32xf32> -> vector<16x32xf32>
    %1140 = arith.addf %1119, %1139 : vector<16x32xf32>
    %1141 = vector.extract_strided_slice %1077 {offsets = [0, 24], sizes = [16, 8], strides = [1, 1]} : vector<16x96xf32> to vector<16x8xf32>
    %1142 = vector.extract_strided_slice %1077 {offsets = [0, 56], sizes = [16, 8], strides = [1, 1]} : vector<16x96xf32> to vector<16x8xf32>
    %1143 = vector.extract_strided_slice %1077 {offsets = [0, 88], sizes = [16, 8], strides = [1, 1]} : vector<16x96xf32> to vector<16x8xf32>
    %cst_409 = arith.constant dense<0.000000e+00> : vector<16x16xf32>
    %1144 = tpu.matmul %1141, %1142, %cst_409 {dimension_numbers = #tpu.dot_dimension_numbers<[1], [1], [0], [0], [0, 0, 1, 0], [], []>} : vector<16x8xf32>, vector<16x8xf32>, vector<16x16xf32> -> vector<16x16xf32>
    %cst_410 = arith.constant 0.353553385 : f32
    %1145 = vector.broadcast %cst_410 : f32 to vector<16x16xf32>
    %1146 = arith.mulf %1144, %1145 : vector<16x16xf32>
    %1147 = arith.addf %1146, %1 : vector<16x16xf32>
    %cst_411 = arith.constant dense<0xFF800000> : vector<16xf32>
    %1148 = vector.multi_reduction <maximumf>, %1147, %cst_411 [1] : vector<16x16xf32> to vector<16xf32>
    %1149 = vector.shape_cast %1148 : vector<16xf32> to vector<16x1xf32>
    %1150 = vector.broadcast %1149 : vector<16x1xf32> to vector<16x16xf32>
    %1151 = arith.subf %1147, %1150 : vector<16x16xf32>
    %1152 = math.exp %1151 : vector<16x16xf32>
    %cst_412 = arith.constant dense<0.000000e+00> : vector<16xf32>
    %1153 = vector.multi_reduction <add>, %1152, %cst_412 [1] : vector<16x16xf32> to vector<16xf32>
    %1154 = vector.shape_cast %1153 : vector<16xf32> to vector<16x1xf32>
    %1155 = tpu.reciprocal %1154 {approx = true} : vector<16x1xf32> -> vector<16x1xf32>
    %1156 = vector.broadcast %1155 : vector<16x1xf32> to vector<16x16xf32>
    %1157 = arith.mulf %1152, %1156 : vector<16x16xf32>
    %cst_413 = arith.constant dense<0.000000e+00> : vector<16x8xf32>
    %1158 = tpu.matmul %1157, %1143, %cst_413 {dimension_numbers = #tpu.dot_dimension_numbers<[1], [0], [0], [1], [0, 0, 1, 1], [], []>} : vector<16x16xf32>, vector<16x8xf32>, vector<16x8xf32> -> vector<16x8xf32>
    %1159 = vector.extract_strided_slice %1078 {offsets = [24, 0], sizes = [8, 32], strides = [1, 1]} : vector<32x32xf32> to vector<8x32xf32>
    %cst_414 = arith.constant dense<0.000000e+00> : vector<16x32xf32>
    %1160 = tpu.matmul %1158, %1159, %cst_414 {dimension_numbers = #tpu.dot_dimension_numbers<[1], [0], [0], [1], [0, 0, 1, 1], [], []>} : vector<16x8xf32>, vector<8x32xf32>, vector<16x32xf32> -> vector<16x32xf32>
    %1161 = arith.addf %1140, %1160 : vector<16x32xf32>
    %1162 = vector.extract_strided_slice %1072 {offsets = [0, 96], sizes = [1, 32], strides = [1, 1]} : vector<1x128xf32> to vector<1x32xf32>
    %1163 = vector.broadcast %1162 : vector<1x32xf32> to vector<16x32xf32>
    %1164 = arith.addf %1161, %1163 : vector<16x32xf32>
    %1165 = arith.addf %1069, %1164 : vector<16x32xf32>
    %c38 = arith.constant 38 : index
    %c0_415 = arith.constant 0 : index
    %1166 = vector.load %arg10[%c38, %c0_415] : memref<64x128xf32, #tpu.memory_space<vmem>>, vector<1x32xf32>
    %c39 = arith.constant 39 : index
    %c0_416 = arith.constant 0 : index
    %1167 = vector.load %arg10[%c39, %c0_416] : memref<64x128xf32, #tpu.memory_space<vmem>>, vector<1x32xf32>
    %cst_417 = arith.constant dense<0.000000e+00> : vector<16xf32>
    %1168 = vector.multi_reduction <add>, %1165, %cst_417 [1] : vector<16x32xf32> to vector<16xf32>
    %1169 = vector.shape_cast %1168 : vector<16xf32> to vector<16x1xf32>
    %cst_418 = arith.constant 3.200000e+01 : f32
    %1170 = vector.broadcast %cst_418 : f32 to vector<16x1xf32>
    %1171 = arith.divf %1169, %1170 : vector<16x1xf32>
    %1172 = vector.broadcast %1171 : vector<16x1xf32> to vector<16x32xf32>
    %1173 = arith.subf %1165, %1172 : vector<16x32xf32>
    %1174 = arith.mulf %1173, %1173 : vector<16x32xf32>
    %cst_419 = arith.constant dense<0.000000e+00> : vector<16xf32>
    %1175 = vector.multi_reduction <add>, %1174, %cst_419 [1] : vector<16x32xf32> to vector<16xf32>
    %1176 = vector.shape_cast %1175 : vector<16xf32> to vector<16x1xf32>
    %cst_420 = arith.constant 3.200000e+01 : f32
    %1177 = vector.broadcast %cst_420 : f32 to vector<16x1xf32>
    %1178 = arith.divf %1176, %1177 : vector<16x1xf32>
    %1179 = vector.broadcast %1171 : vector<16x1xf32> to vector<16x32xf32>
    %1180 = arith.subf %1165, %1179 : vector<16x32xf32>
    %cst_421 = arith.constant 9.99999996E-13 : f32
    %1181 = vector.broadcast %cst_421 : f32 to vector<16x1xf32>
    %1182 = arith.addf %1178, %1181 : vector<16x1xf32>
    %1183 = math.rsqrt %1182 : vector<16x1xf32>
    %1184 = vector.broadcast %1183 : vector<16x1xf32> to vector<16x32xf32>
    %1185 = arith.mulf %1180, %1184 : vector<16x32xf32>
    %1186 = vector.broadcast %1166 : vector<1x32xf32> to vector<16x32xf32>
    %1187 = arith.mulf %1185, %1186 : vector<16x32xf32>
    %1188 = vector.broadcast %1167 : vector<1x32xf32> to vector<16x32xf32>
    %1189 = arith.addf %1187, %1188 : vector<16x32xf32>
    %c5_422 = arith.constant 5 : index
    %c0_423 = arith.constant 0 : index
    %c0_424 = arith.constant 0 : index
    %1190 = vector.load %arg5[%c5_422, %c0_423, %c0_424] : memref<6x32x64xf32, #tpu.memory_space<vmem>>, vector<1x32x64xf32>
    %1191 = vector.shape_cast %1190 : vector<1x32x64xf32> to vector<32x64xf32>
    %cst_425 = arith.constant dense<0.000000e+00> : vector<16x64xf32>
    %1192 = tpu.matmul %1189, %1191, %cst_425 {dimension_numbers = #tpu.dot_dimension_numbers<[1], [0], [0], [1], [0, 0, 1, 1], [], []>} : vector<16x32xf32>, vector<32x64xf32>, vector<16x64xf32> -> vector<16x64xf32>
    %c36 = arith.constant 36 : index
    %c0_426 = arith.constant 0 : index
    %1193 = vector.load %arg10[%c36, %c0_426] : memref<64x128xf32, #tpu.memory_space<vmem>>, vector<1x64xf32>
    %1194 = vector.broadcast %1193 : vector<1x64xf32> to vector<16x64xf32>
    %1195 = arith.addf %1192, %1194 : vector<16x64xf32>
    %cst_427 = arith.constant 5.000000e-01 : f32
    %1196 = vector.broadcast %cst_427 : f32 to vector<16x64xf32>
    %1197 = arith.mulf %1196, %1195 : vector<16x64xf32>
    %cst_428 = arith.constant 4.471500e-02 : f32
    %1198 = vector.broadcast %cst_428 : f32 to vector<16x64xf32>
    %1199 = arith.mulf %1198, %1195 : vector<16x64xf32>
    %1200 = arith.mulf %1199, %1195 : vector<16x64xf32>
    %1201 = arith.mulf %1200, %1195 : vector<16x64xf32>
    %1202 = arith.addf %1195, %1201 : vector<16x64xf32>
    %cst_429 = arith.constant 0.797884583 : f32
    %1203 = vector.broadcast %cst_429 : f32 to vector<16x64xf32>
    %1204 = arith.mulf %1203, %1202 : vector<16x64xf32>
    %1205 = math.tanh %1204 : vector<16x64xf32>
    %cst_430 = arith.constant 1.000000e+00 : f32
    %1206 = vector.broadcast %cst_430 : f32 to vector<16x64xf32>
    %1207 = arith.addf %1206, %1205 : vector<16x64xf32>
    %1208 = arith.mulf %1197, %1207 : vector<16x64xf32>
    %c5_431 = arith.constant 5 : index
    %c0_432 = arith.constant 0 : index
    %c0_433 = arith.constant 0 : index
    %1209 = vector.load %arg6[%c5_431, %c0_432, %c0_433] : memref<6x64x32xf32, #tpu.memory_space<vmem>>, vector<1x64x32xf32>
    %1210 = vector.shape_cast %1209 : vector<1x64x32xf32> to vector<64x32xf32>
    %cst_434 = arith.constant dense<0.000000e+00> : vector<16x32xf32>
    %1211 = tpu.matmul %1208, %1210, %cst_434 {dimension_numbers = #tpu.dot_dimension_numbers<[1], [0], [0], [1], [0, 0, 1, 1], [], []>} : vector<16x64xf32>, vector<64x32xf32>, vector<16x32xf32> -> vector<16x32xf32>
    %c37 = arith.constant 37 : index
    %c0_435 = arith.constant 0 : index
    %1212 = vector.load %arg10[%c37, %c0_435] : memref<64x128xf32, #tpu.memory_space<vmem>>, vector<1x32xf32>
    %1213 = vector.broadcast %1212 : vector<1x32xf32> to vector<16x32xf32>
    %1214 = arith.addf %1211, %1213 : vector<16x32xf32>
    %1215 = arith.addf %1189, %1214 : vector<16x32xf32>
    %c40 = arith.constant 40 : index
    %c0_436 = arith.constant 0 : index
    %1216 = vector.load %arg10[%c40, %c0_436] : memref<64x128xf32, #tpu.memory_space<vmem>>, vector<1x32xf32>
    %c41 = arith.constant 41 : index
    %c0_437 = arith.constant 0 : index
    %1217 = vector.load %arg10[%c41, %c0_437] : memref<64x128xf32, #tpu.memory_space<vmem>>, vector<1x32xf32>
    %cst_438 = arith.constant dense<0.000000e+00> : vector<16xf32>
    %1218 = vector.multi_reduction <add>, %1215, %cst_438 [1] : vector<16x32xf32> to vector<16xf32>
    %1219 = vector.shape_cast %1218 : vector<16xf32> to vector<16x1xf32>
    %cst_439 = arith.constant 3.200000e+01 : f32
    %1220 = vector.broadcast %cst_439 : f32 to vector<16x1xf32>
    %1221 = arith.divf %1219, %1220 : vector<16x1xf32>
    %1222 = vector.broadcast %1221 : vector<16x1xf32> to vector<16x32xf32>
    %1223 = arith.subf %1215, %1222 : vector<16x32xf32>
    %1224 = arith.mulf %1223, %1223 : vector<16x32xf32>
    %cst_440 = arith.constant dense<0.000000e+00> : vector<16xf32>
    %1225 = vector.multi_reduction <add>, %1224, %cst_440 [1] : vector<16x32xf32> to vector<16xf32>
    %1226 = vector.shape_cast %1225 : vector<16xf32> to vector<16x1xf32>
    %cst_441 = arith.constant 3.200000e+01 : f32
    %1227 = vector.broadcast %cst_441 : f32 to vector<16x1xf32>
    %1228 = arith.divf %1226, %1227 : vector<16x1xf32>
    %1229 = vector.broadcast %1221 : vector<16x1xf32> to vector<16x32xf32>
    %1230 = arith.subf %1215, %1229 : vector<16x32xf32>
    %cst_442 = arith.constant 9.99999996E-13 : f32
    %1231 = vector.broadcast %cst_442 : f32 to vector<16x1xf32>
    %1232 = arith.addf %1228, %1231 : vector<16x1xf32>
    %1233 = math.rsqrt %1232 : vector<16x1xf32>
    %1234 = vector.broadcast %1233 : vector<16x1xf32> to vector<16x32xf32>
    %1235 = arith.mulf %1230, %1234 : vector<16x32xf32>
    %1236 = vector.broadcast %1216 : vector<1x32xf32> to vector<16x32xf32>
    %1237 = arith.mulf %1235, %1236 : vector<16x32xf32>
    %1238 = vector.broadcast %1217 : vector<1x32xf32> to vector<16x32xf32>
    %1239 = arith.addf %1237, %1238 : vector<16x32xf32>
    %c1_443 = arith.constant 1 : index
    %c0_444 = arith.constant 0 : index
    %c0_445 = arith.constant 0 : index
    %c0_446 = arith.constant 0 : index
    %1240 = vector.load %arg2[%c1_443, %c0_444, %c0_445, %c0_446] : memref<2x7x16x16xf32, #tpu.memory_space<vmem>>, vector<1x7x16x16xf32>
    %1241 = vector.shape_cast %1240 : vector<1x7x16x16xf32> to vector<7x16x16xf32>
    %c1_447 = arith.constant 1 : index
    %c0_448 = arith.constant 0 : index
    %c0_449 = arith.constant 0 : index
    %c0_450 = arith.constant 0 : index
    %1242 = vector.load %arg3[%c1_447, %c0_448, %c0_449, %c0_450] : memref<2x8x16x1xf32, #tpu.memory_space<vmem>>, vector<1x8x16x1xf32>
    %1243 = vector.shape_cast %1242 : vector<1x8x16x1xf32> to vector<8x16x1xf32>
    %c1_451 = arith.constant 1 : index
    %c0_452 = arith.constant 0 : index
    %c0_453 = arith.constant 0 : index
    %c0_454 = arith.constant 0 : index
    %1244 = vector.load %arg7[%c1_451, %c0_452, %c0_453, %c0_454] : memref<2x2x32x16xf32, #tpu.memory_space<vmem>>, vector<1x1x32x16xf32>
    %1245 = vector.shape_cast %1244 : vector<1x1x32x16xf32> to vector<32x16xf32>
    %c1_455 = arith.constant 1 : index
    %c1_456 = arith.constant 1 : index
    %c0_457 = arith.constant 0 : index
    %c0_458 = arith.constant 0 : index
    %1246 = vector.load %arg7[%c1_455, %c1_456, %c0_457, %c0_458] : memref<2x2x32x16xf32, #tpu.memory_space<vmem>>, vector<1x1x32x16xf32>
    %1247 = vector.shape_cast %1246 : vector<1x1x32x16xf32> to vector<32x16xf32>
    %c51 = arith.constant 51 : index
    %c0_459 = arith.constant 0 : index
    %1248 = vector.load %arg10[%c51, %c0_459] : memref<64x128xf32, #tpu.memory_space<vmem>>, vector<1x16xf32>
    %cst_460 = arith.constant dense<0.000000e+00> : vector<16x32xf32>
    %1249 = tpu.matmul %3, %1239, %cst_460 {dimension_numbers = #tpu.dot_dimension_numbers<[1], [0], [0], [1], [0, 0, 1, 1], [], []>} : vector<16x16xf32>, vector<16x32xf32>, vector<16x32xf32> -> vector<16x32xf32>
    %cst_461 = arith.constant dense<0.000000e+00> : vector<16x16xf32>
    %1250 = tpu.matmul %1249, %1247, %cst_461 {dimension_numbers = #tpu.dot_dimension_numbers<[1], [0], [0], [1], [0, 0, 1, 1], [], []>} : vector<16x32xf32>, vector<32x16xf32>, vector<16x16xf32> -> vector<16x16xf32>
    %1251 = vector.broadcast %1248 : vector<1x16xf32> to vector<16x16xf32>
    %1252 = arith.addf %1250, %1251 : vector<16x16xf32>
    %cst_462 = arith.constant dense<0.000000e+00> : vector<16x16xf32>
    %1253 = tpu.matmul %1239, %1245, %cst_462 {dimension_numbers = #tpu.dot_dimension_numbers<[1], [0], [0], [1], [0, 0, 1, 1], [], []>} : vector<16x32xf32>, vector<32x16xf32>, vector<16x16xf32> -> vector<16x16xf32>
    %1254 = vector.shape_cast %1252 : vector<16x16xf32> to vector<1x16x16xf32>
    %1255 = tpu.concatenate %1241, %1254 in 0 : vector<7x16x16xf32>, vector<1x16x16xf32> -> vector<8x16x16xf32>
    %1256 = vector.shape_cast %1253 : vector<16x16xf32> to vector<1x16x16xf32>
    %1257 = vector.broadcast %1256 : vector<1x16x16xf32> to vector<8x16x16xf32>
    %1258 = arith.mulf %1255, %1257 : vector<8x16x16xf32>
    %cst_463 = arith.constant dense<0.000000e+00> : vector<8x16xf32>
    %1259 = vector.multi_reduction <add>, %1258, %cst_463 [2] : vector<8x16x16xf32> to vector<8x16xf32>
    %1260 = vector.shape_cast %1259 : vector<8x16xf32> to vector<8x16x1xf32>
    %cst_464 = arith.constant 1.000000e+00 : f32
    %1261 = vector.broadcast %cst_464 : f32 to vector<8x16x1xf32>
    %1262 = arith.subf %1261, %1243 : vector<8x16x1xf32>
    %cst_465 = arith.constant -1.000000e+04 : f32
    %1263 = vector.broadcast %cst_465 : f32 to vector<8x16x1xf32>
    %1264 = arith.mulf %1262, %1263 : vector<8x16x1xf32>
    %1265 = arith.addf %1260, %1264 : vector<8x16x1xf32>
    %cst_466 = arith.constant dense<0xFF800000> : vector<16x1xf32>
    %1266 = vector.multi_reduction <maximumf>, %1265, %cst_466 [0] : vector<8x16x1xf32> to vector<16x1xf32>
    %1267 = vector.shape_cast %1266 : vector<16x1xf32> to vector<1x16x1xf32>
    %1268 = vector.broadcast %1267 : vector<1x16x1xf32> to vector<8x16x1xf32>
    %1269 = arith.subf %1265, %1268 : vector<8x16x1xf32>
    %1270 = math.exp %1269 : vector<8x16x1xf32>
    %cst_467 = arith.constant dense<0.000000e+00> : vector<16x1xf32>
    %1271 = vector.multi_reduction <add>, %1270, %cst_467 [0] : vector<8x16x1xf32> to vector<16x1xf32>
    %1272 = vector.shape_cast %1271 : vector<16x1xf32> to vector<1x16x1xf32>
    %1273 = tpu.reciprocal %1272 {approx = true} : vector<1x16x1xf32> -> vector<1x16x1xf32>
    %1274 = vector.broadcast %1273 : vector<1x16x1xf32> to vector<8x16x1xf32>
    %1275 = arith.mulf %1270, %1274 : vector<8x16x1xf32>
    %1276 = arith.mulf %1275, %1243 : vector<8x16x1xf32>
    %1277 = vector.broadcast %1276 : vector<8x16x1xf32> to vector<8x16x16xf32>
    %1278 = arith.mulf %1277, %1255 : vector<8x16x16xf32>
    %cst_468 = arith.constant dense<0.000000e+00> : vector<16x16xf32>
    %1279 = vector.multi_reduction <add>, %1278, %cst_468 [0] : vector<8x16x16xf32> to vector<16x16xf32>
    %1280 = tpu.concatenate %1239, %1279 in 1 : vector<16x32xf32>, vector<16x16xf32> -> vector<16x48xf32>
    %c52 = arith.constant 52 : index
    %c0_469 = arith.constant 0 : index
    %1281 = vector.load %arg10[%c52, %c0_469] : memref<64x128xf32, #tpu.memory_space<vmem>>, vector<1x48xf32>
    %c53 = arith.constant 53 : index
    %c0_470 = arith.constant 0 : index
    %1282 = vector.load %arg10[%c53, %c0_470] : memref<64x128xf32, #tpu.memory_space<vmem>>, vector<1x48xf32>
    %c54 = arith.constant 54 : index
    %c0_471 = arith.constant 0 : index
    %1283 = vector.load %arg10[%c54, %c0_471] : memref<64x128xf32, #tpu.memory_space<vmem>>, vector<1x48xf32>
    %c55 = arith.constant 55 : index
    %c0_472 = arith.constant 0 : index
    %1284 = vector.load %arg10[%c55, %c0_472] : memref<64x128xf32, #tpu.memory_space<vmem>>, vector<1x1xf32>
    %1285 = vector.broadcast %1281 : vector<1x48xf32> to vector<16x48xf32>
    %1286 = arith.mulf %1280, %1285 : vector<16x48xf32>
    %cst_473 = arith.constant dense<0.000000e+00> : vector<16xf32>
    %1287 = vector.multi_reduction <add>, %1286, %cst_473 [1] : vector<16x48xf32> to vector<16xf32>
    %1288 = vector.shape_cast %1287 : vector<16xf32> to vector<16x1xf32>
    %1289 = vector.broadcast %1283 : vector<1x48xf32> to vector<16x48xf32>
    %1290 = arith.mulf %1280, %1289 : vector<16x48xf32>
    %1291 = vector.broadcast %1282 : vector<1x48xf32> to vector<16x48xf32>
    %1292 = arith.addf %1290, %1291 : vector<16x48xf32>
    %cst_474 = arith.constant dense<0.000000e+00> : vector<16x16xf32>
    %1293 = tpu.matmul %1292, %1280, %cst_474 {dimension_numbers = #tpu.dot_dimension_numbers<[1], [1], [0], [0], [0, 0, 1, 0], [], []>} : vector<16x48xf32>, vector<16x48xf32>, vector<16x16xf32> -> vector<16x16xf32>
    %1294 = vector.broadcast %1288 : vector<16x1xf32> to vector<16x16xf32>
    %1295 = arith.addf %1293, %1294 : vector<16x16xf32>
    %1296 = vector.broadcast %1284 : vector<1x1xf32> to vector<16x16xf32>
    %1297 = arith.addf %1295, %1296 : vector<16x16xf32>
    %1298 = arith.addf %1297, %1 : vector<16x16xf32>
    %cst_475 = arith.constant dense<0xFF800000> : vector<16xf32>
    %1299 = vector.multi_reduction <maximumf>, %1298, %cst_475 [1] : vector<16x16xf32> to vector<16xf32>
    %1300 = vector.shape_cast %1299 : vector<16xf32> to vector<16x1xf32>
    %1301 = vector.broadcast %1300 : vector<16x1xf32> to vector<16x16xf32>
    %1302 = arith.subf %1298, %1301 : vector<16x16xf32>
    %1303 = math.exp %1302 : vector<16x16xf32>
    %cst_476 = arith.constant dense<0.000000e+00> : vector<16xf32>
    %1304 = vector.multi_reduction <add>, %1303, %cst_476 [1] : vector<16x16xf32> to vector<16xf32>
    %1305 = vector.shape_cast %1304 : vector<16xf32> to vector<16x1xf32>
    %1306 = tpu.reciprocal %1305 {approx = true} : vector<16x1xf32> -> vector<16x1xf32>
    %1307 = vector.broadcast %1306 : vector<16x1xf32> to vector<16x16xf32>
    %1308 = arith.mulf %1303, %1307 : vector<16x16xf32>
    %cst_477 = arith.constant dense<0.000000e+00> : vector<16x48xf32>
    %1309 = tpu.matmul %1308, %1280, %cst_477 {dimension_numbers = #tpu.dot_dimension_numbers<[1], [0], [0], [1], [0, 0, 1, 1], [], []>} : vector<16x16xf32>, vector<16x48xf32>, vector<16x48xf32> -> vector<16x48xf32>
    %cst_478 = arith.constant dense<0.000000e+00> : vector<16x48xf32>
    %1310 = tpu.matmul %1308, %1309, %cst_478 {dimension_numbers = #tpu.dot_dimension_numbers<[1], [0], [0], [1], [0, 0, 1, 1], [], []>} : vector<16x16xf32>, vector<16x48xf32>, vector<16x48xf32> -> vector<16x48xf32>
    %c1_479 = arith.constant 1 : index
    %c0_480 = arith.constant 0 : index
    %c0_481 = arith.constant 0 : index
    %c0_482 = arith.constant 0 : index
    %1311 = vector.load %arg8[%c1_479, %c0_480, %c0_481, %c0_482] : memref<2x4x48x32xf32, #tpu.memory_space<vmem>>, vector<1x1x48x32xf32>
    %1312 = vector.shape_cast %1311 : vector<1x1x48x32xf32> to vector<48x32xf32>
    %cst_483 = arith.constant dense<0.000000e+00> : vector<16x32xf32>
    %1313 = tpu.matmul %1280, %1312, %cst_483 {dimension_numbers = #tpu.dot_dimension_numbers<[1], [0], [0], [1], [0, 0, 1, 1], [], []>} : vector<16x48xf32>, vector<48x32xf32>, vector<16x32xf32> -> vector<16x32xf32>
    %c1_484 = arith.constant 1 : index
    %c1_485 = arith.constant 1 : index
    %c0_486 = arith.constant 0 : index
    %c0_487 = arith.constant 0 : index
    %1314 = vector.load %arg8[%c1_484, %c1_485, %c0_486, %c0_487] : memref<2x4x48x32xf32, #tpu.memory_space<vmem>>, vector<1x1x48x32xf32>
    %1315 = vector.shape_cast %1314 : vector<1x1x48x32xf32> to vector<48x32xf32>
    %cst_488 = arith.constant dense<0.000000e+00> : vector<16x32xf32>
    %1316 = tpu.matmul %1309, %1315, %cst_488 {dimension_numbers = #tpu.dot_dimension_numbers<[1], [0], [0], [1], [0, 0, 1, 1], [], []>} : vector<16x48xf32>, vector<48x32xf32>, vector<16x32xf32> -> vector<16x32xf32>
    %1317 = arith.addf %1313, %1316 : vector<16x32xf32>
    %c1_489 = arith.constant 1 : index
    %c2_490 = arith.constant 2 : index
    %c0_491 = arith.constant 0 : index
    %c0_492 = arith.constant 0 : index
    %1318 = vector.load %arg8[%c1_489, %c2_490, %c0_491, %c0_492] : memref<2x4x48x32xf32, #tpu.memory_space<vmem>>, vector<1x1x48x32xf32>
    %1319 = vector.shape_cast %1318 : vector<1x1x48x32xf32> to vector<48x32xf32>
    %cst_493 = arith.constant dense<0.000000e+00> : vector<16x32xf32>
    %1320 = tpu.matmul %1310, %1319, %cst_493 {dimension_numbers = #tpu.dot_dimension_numbers<[1], [0], [0], [1], [0, 0, 1, 1], [], []>} : vector<16x48xf32>, vector<48x32xf32>, vector<16x32xf32> -> vector<16x32xf32>
    %1321 = arith.addf %1317, %1320 : vector<16x32xf32>
    %1322 = arith.mulf %1280, %1309 : vector<16x48xf32>
    %c1_494 = arith.constant 1 : index
    %c3_495 = arith.constant 3 : index
    %c0_496 = arith.constant 0 : index
    %c0_497 = arith.constant 0 : index
    %1323 = vector.load %arg8[%c1_494, %c3_495, %c0_496, %c0_497] : memref<2x4x48x32xf32, #tpu.memory_space<vmem>>, vector<1x1x48x32xf32>
    %1324 = vector.shape_cast %1323 : vector<1x1x48x32xf32> to vector<48x32xf32>
    %cst_498 = arith.constant dense<0.000000e+00> : vector<16x32xf32>
    %1325 = tpu.matmul %1322, %1324, %cst_498 {dimension_numbers = #tpu.dot_dimension_numbers<[1], [0], [0], [1], [0, 0, 1, 1], [], []>} : vector<16x48xf32>, vector<48x32xf32>, vector<16x32xf32> -> vector<16x32xf32>
    %1326 = arith.addf %1321, %1325 : vector<16x32xf32>
    %c56 = arith.constant 56 : index
    %c0_499 = arith.constant 0 : index
    %1327 = vector.load %arg10[%c56, %c0_499] : memref<64x128xf32, #tpu.memory_space<vmem>>, vector<1x32xf32>
    %1328 = vector.broadcast %1327 : vector<1x32xf32> to vector<16x32xf32>
    %1329 = arith.addf %1326, %1328 : vector<16x32xf32>
    %c1_500 = arith.constant 1 : index
    %c0_501 = arith.constant 0 : index
    %c0_502 = arith.constant 0 : index
    %1330 = vector.load %arg9[%c1_500, %c0_501, %c0_502] : memref<2x32x128xf32, #tpu.memory_space<vmem>>, vector<1x32x128xf32>
    %1331 = vector.shape_cast %1330 : vector<1x32x128xf32> to vector<32x128xf32>
    %c57 = arith.constant 57 : index
    %c0_503 = arith.constant 0 : index
    %1332 = vector.load %arg10[%c57, %c0_503] : memref<64x128xf32, #tpu.memory_space<vmem>>, vector<1x128xf32>
    %1333 = vector.extract_strided_slice %1331 {offsets = [0, 0], sizes = [32, 32], strides = [1, 1]} : vector<32x128xf32> to vector<32x32xf32>
    %cst_504 = arith.constant dense<0.000000e+00> : vector<16x32xf32>
    %1334 = tpu.matmul %1239, %1333, %cst_504 {dimension_numbers = #tpu.dot_dimension_numbers<[1], [0], [0], [1], [0, 0, 1, 1], [], []>} : vector<16x32xf32>, vector<32x32xf32>, vector<16x32xf32> -> vector<16x32xf32>
    %1335 = vector.extract_strided_slice %1332 {offsets = [0, 0], sizes = [1, 32], strides = [1, 1]} : vector<1x128xf32> to vector<1x32xf32>
    %1336 = vector.broadcast %1335 : vector<1x32xf32> to vector<16x32xf32>
    %1337 = arith.addf %1334, %1336 : vector<16x32xf32>
    %1338 = vector.extract_strided_slice %1331 {offsets = [0, 32], sizes = [32, 64], strides = [1, 1]} : vector<32x128xf32> to vector<32x64xf32>
    %cst_505 = arith.constant dense<0.000000e+00> : vector<16x64xf32>
    %1339 = tpu.matmul %1329, %1338, %cst_505 {dimension_numbers = #tpu.dot_dimension_numbers<[1], [0], [0], [1], [0, 0, 1, 1], [], []>} : vector<16x32xf32>, vector<32x64xf32>, vector<16x64xf32> -> vector<16x64xf32>
    %1340 = vector.extract_strided_slice %1332 {offsets = [0, 32], sizes = [1, 64], strides = [1, 1]} : vector<1x128xf32> to vector<1x64xf32>
    %1341 = vector.broadcast %1340 : vector<1x64xf32> to vector<16x64xf32>
    %1342 = arith.addf %1339, %1341 : vector<16x64xf32>
    %1343 = vector.extract_strided_slice %1331 {offsets = [0, 96], sizes = [32, 32], strides = [1, 1]} : vector<32x128xf32> to vector<32x32xf32>
    %1344 = vector.extract_strided_slice %1337 {offsets = [0, 0], sizes = [16, 8], strides = [1, 1]} : vector<16x32xf32> to vector<16x8xf32>
    %1345 = vector.extract_strided_slice %1342 {offsets = [0, 0], sizes = [16, 8], strides = [1, 1]} : vector<16x64xf32> to vector<16x8xf32>
    %1346 = vector.extract_strided_slice %1342 {offsets = [0, 32], sizes = [16, 8], strides = [1, 1]} : vector<16x64xf32> to vector<16x8xf32>
    %cst_506 = arith.constant dense<0.000000e+00> : vector<16x16xf32>
    %1347 = tpu.matmul %1344, %1345, %cst_506 {dimension_numbers = #tpu.dot_dimension_numbers<[1], [1], [0], [0], [0, 0, 1, 0], [], []>} : vector<16x8xf32>, vector<16x8xf32>, vector<16x16xf32> -> vector<16x16xf32>
    %cst_507 = arith.constant 0.353553385 : f32
    %1348 = vector.broadcast %cst_507 : f32 to vector<16x16xf32>
    %1349 = arith.mulf %1347, %1348 : vector<16x16xf32>
    %1350 = arith.addf %1349, %1 : vector<16x16xf32>
    %cst_508 = arith.constant dense<0xFF800000> : vector<16xf32>
    %1351 = vector.multi_reduction <maximumf>, %1350, %cst_508 [1] : vector<16x16xf32> to vector<16xf32>
    %1352 = vector.shape_cast %1351 : vector<16xf32> to vector<16x1xf32>
    %1353 = vector.broadcast %1352 : vector<16x1xf32> to vector<16x16xf32>
    %1354 = arith.subf %1350, %1353 : vector<16x16xf32>
    %1355 = math.exp %1354 : vector<16x16xf32>
    %cst_509 = arith.constant dense<0.000000e+00> : vector<16xf32>
    %1356 = vector.multi_reduction <add>, %1355, %cst_509 [1] : vector<16x16xf32> to vector<16xf32>
    %1357 = vector.shape_cast %1356 : vector<16xf32> to vector<16x1xf32>
    %1358 = tpu.reciprocal %1357 {approx = true} : vector<16x1xf32> -> vector<16x1xf32>
    %1359 = vector.broadcast %1358 : vector<16x1xf32> to vector<16x16xf32>
    %1360 = arith.mulf %1355, %1359 : vector<16x16xf32>
    %cst_510 = arith.constant dense<0.000000e+00> : vector<16x8xf32>
    %1361 = tpu.matmul %1360, %1346, %cst_510 {dimension_numbers = #tpu.dot_dimension_numbers<[1], [0], [0], [1], [0, 0, 1, 1], [], []>} : vector<16x16xf32>, vector<16x8xf32>, vector<16x8xf32> -> vector<16x8xf32>
    %1362 = vector.extract_strided_slice %1343 {offsets = [0, 0], sizes = [8, 32], strides = [1, 1]} : vector<32x32xf32> to vector<8x32xf32>
    %cst_511 = arith.constant dense<0.000000e+00> : vector<16x32xf32>
    %1363 = tpu.matmul %1361, %1362, %cst_511 {dimension_numbers = #tpu.dot_dimension_numbers<[1], [0], [0], [1], [0, 0, 1, 1], [], []>} : vector<16x8xf32>, vector<8x32xf32>, vector<16x32xf32> -> vector<16x32xf32>
    %1364 = vector.extract_strided_slice %1337 {offsets = [0, 8], sizes = [16, 8], strides = [1, 1]} : vector<16x32xf32> to vector<16x8xf32>
    %1365 = vector.extract_strided_slice %1342 {offsets = [0, 8], sizes = [16, 8], strides = [1, 1]} : vector<16x64xf32> to vector<16x8xf32>
    %1366 = vector.extract_strided_slice %1342 {offsets = [0, 40], sizes = [16, 8], strides = [1, 1]} : vector<16x64xf32> to vector<16x8xf32>
    %cst_512 = arith.constant dense<0.000000e+00> : vector<16x16xf32>
    %1367 = tpu.matmul %1364, %1365, %cst_512 {dimension_numbers = #tpu.dot_dimension_numbers<[1], [1], [0], [0], [0, 0, 1, 0], [], []>} : vector<16x8xf32>, vector<16x8xf32>, vector<16x16xf32> -> vector<16x16xf32>
    %cst_513 = arith.constant 0.353553385 : f32
    %1368 = vector.broadcast %cst_513 : f32 to vector<16x16xf32>
    %1369 = arith.mulf %1367, %1368 : vector<16x16xf32>
    %1370 = arith.addf %1369, %1 : vector<16x16xf32>
    %cst_514 = arith.constant dense<0xFF800000> : vector<16xf32>
    %1371 = vector.multi_reduction <maximumf>, %1370, %cst_514 [1] : vector<16x16xf32> to vector<16xf32>
    %1372 = vector.shape_cast %1371 : vector<16xf32> to vector<16x1xf32>
    %1373 = vector.broadcast %1372 : vector<16x1xf32> to vector<16x16xf32>
    %1374 = arith.subf %1370, %1373 : vector<16x16xf32>
    %1375 = math.exp %1374 : vector<16x16xf32>
    %cst_515 = arith.constant dense<0.000000e+00> : vector<16xf32>
    %1376 = vector.multi_reduction <add>, %1375, %cst_515 [1] : vector<16x16xf32> to vector<16xf32>
    %1377 = vector.shape_cast %1376 : vector<16xf32> to vector<16x1xf32>
    %1378 = tpu.reciprocal %1377 {approx = true} : vector<16x1xf32> -> vector<16x1xf32>
    %1379 = vector.broadcast %1378 : vector<16x1xf32> to vector<16x16xf32>
    %1380 = arith.mulf %1375, %1379 : vector<16x16xf32>
    %cst_516 = arith.constant dense<0.000000e+00> : vector<16x8xf32>
    %1381 = tpu.matmul %1380, %1366, %cst_516 {dimension_numbers = #tpu.dot_dimension_numbers<[1], [0], [0], [1], [0, 0, 1, 1], [], []>} : vector<16x16xf32>, vector<16x8xf32>, vector<16x8xf32> -> vector<16x8xf32>
    %1382 = vector.extract_strided_slice %1343 {offsets = [8, 0], sizes = [8, 32], strides = [1, 1]} : vector<32x32xf32> to vector<8x32xf32>
    %cst_517 = arith.constant dense<0.000000e+00> : vector<16x32xf32>
    %1383 = tpu.matmul %1381, %1382, %cst_517 {dimension_numbers = #tpu.dot_dimension_numbers<[1], [0], [0], [1], [0, 0, 1, 1], [], []>} : vector<16x8xf32>, vector<8x32xf32>, vector<16x32xf32> -> vector<16x32xf32>
    %1384 = arith.addf %1363, %1383 : vector<16x32xf32>
    %1385 = vector.extract_strided_slice %1337 {offsets = [0, 16], sizes = [16, 8], strides = [1, 1]} : vector<16x32xf32> to vector<16x8xf32>
    %1386 = vector.extract_strided_slice %1342 {offsets = [0, 16], sizes = [16, 8], strides = [1, 1]} : vector<16x64xf32> to vector<16x8xf32>
    %1387 = vector.extract_strided_slice %1342 {offsets = [0, 48], sizes = [16, 8], strides = [1, 1]} : vector<16x64xf32> to vector<16x8xf32>
    %cst_518 = arith.constant dense<0.000000e+00> : vector<16x16xf32>
    %1388 = tpu.matmul %1385, %1386, %cst_518 {dimension_numbers = #tpu.dot_dimension_numbers<[1], [1], [0], [0], [0, 0, 1, 0], [], []>} : vector<16x8xf32>, vector<16x8xf32>, vector<16x16xf32> -> vector<16x16xf32>
    %cst_519 = arith.constant 0.353553385 : f32
    %1389 = vector.broadcast %cst_519 : f32 to vector<16x16xf32>
    %1390 = arith.mulf %1388, %1389 : vector<16x16xf32>
    %1391 = arith.addf %1390, %1 : vector<16x16xf32>
    %cst_520 = arith.constant dense<0xFF800000> : vector<16xf32>
    %1392 = vector.multi_reduction <maximumf>, %1391, %cst_520 [1] : vector<16x16xf32> to vector<16xf32>
    %1393 = vector.shape_cast %1392 : vector<16xf32> to vector<16x1xf32>
    %1394 = vector.broadcast %1393 : vector<16x1xf32> to vector<16x16xf32>
    %1395 = arith.subf %1391, %1394 : vector<16x16xf32>
    %1396 = math.exp %1395 : vector<16x16xf32>
    %cst_521 = arith.constant dense<0.000000e+00> : vector<16xf32>
    %1397 = vector.multi_reduction <add>, %1396, %cst_521 [1] : vector<16x16xf32> to vector<16xf32>
    %1398 = vector.shape_cast %1397 : vector<16xf32> to vector<16x1xf32>
    %1399 = tpu.reciprocal %1398 {approx = true} : vector<16x1xf32> -> vector<16x1xf32>
    %1400 = vector.broadcast %1399 : vector<16x1xf32> to vector<16x16xf32>
    %1401 = arith.mulf %1396, %1400 : vector<16x16xf32>
    %cst_522 = arith.constant dense<0.000000e+00> : vector<16x8xf32>
    %1402 = tpu.matmul %1401, %1387, %cst_522 {dimension_numbers = #tpu.dot_dimension_numbers<[1], [0], [0], [1], [0, 0, 1, 1], [], []>} : vector<16x16xf32>, vector<16x8xf32>, vector<16x8xf32> -> vector<16x8xf32>
    %1403 = vector.extract_strided_slice %1343 {offsets = [16, 0], sizes = [8, 32], strides = [1, 1]} : vector<32x32xf32> to vector<8x32xf32>
    %cst_523 = arith.constant dense<0.000000e+00> : vector<16x32xf32>
    %1404 = tpu.matmul %1402, %1403, %cst_523 {dimension_numbers = #tpu.dot_dimension_numbers<[1], [0], [0], [1], [0, 0, 1, 1], [], []>} : vector<16x8xf32>, vector<8x32xf32>, vector<16x32xf32> -> vector<16x32xf32>
    %1405 = arith.addf %1384, %1404 : vector<16x32xf32>
    %1406 = vector.extract_strided_slice %1337 {offsets = [0, 24], sizes = [16, 8], strides = [1, 1]} : vector<16x32xf32> to vector<16x8xf32>
    %1407 = vector.extract_strided_slice %1342 {offsets = [0, 24], sizes = [16, 8], strides = [1, 1]} : vector<16x64xf32> to vector<16x8xf32>
    %1408 = vector.extract_strided_slice %1342 {offsets = [0, 56], sizes = [16, 8], strides = [1, 1]} : vector<16x64xf32> to vector<16x8xf32>
    %cst_524 = arith.constant dense<0.000000e+00> : vector<16x16xf32>
    %1409 = tpu.matmul %1406, %1407, %cst_524 {dimension_numbers = #tpu.dot_dimension_numbers<[1], [1], [0], [0], [0, 0, 1, 0], [], []>} : vector<16x8xf32>, vector<16x8xf32>, vector<16x16xf32> -> vector<16x16xf32>
    %cst_525 = arith.constant 0.353553385 : f32
    %1410 = vector.broadcast %cst_525 : f32 to vector<16x16xf32>
    %1411 = arith.mulf %1409, %1410 : vector<16x16xf32>
    %1412 = arith.addf %1411, %1 : vector<16x16xf32>
    %cst_526 = arith.constant dense<0xFF800000> : vector<16xf32>
    %1413 = vector.multi_reduction <maximumf>, %1412, %cst_526 [1] : vector<16x16xf32> to vector<16xf32>
    %1414 = vector.shape_cast %1413 : vector<16xf32> to vector<16x1xf32>
    %1415 = vector.broadcast %1414 : vector<16x1xf32> to vector<16x16xf32>
    %1416 = arith.subf %1412, %1415 : vector<16x16xf32>
    %1417 = math.exp %1416 : vector<16x16xf32>
    %cst_527 = arith.constant dense<0.000000e+00> : vector<16xf32>
    %1418 = vector.multi_reduction <add>, %1417, %cst_527 [1] : vector<16x16xf32> to vector<16xf32>
    %1419 = vector.shape_cast %1418 : vector<16xf32> to vector<16x1xf32>
    %1420 = tpu.reciprocal %1419 {approx = true} : vector<16x1xf32> -> vector<16x1xf32>
    %1421 = vector.broadcast %1420 : vector<16x1xf32> to vector<16x16xf32>
    %1422 = arith.mulf %1417, %1421 : vector<16x16xf32>
    %cst_528 = arith.constant dense<0.000000e+00> : vector<16x8xf32>
    %1423 = tpu.matmul %1422, %1408, %cst_528 {dimension_numbers = #tpu.dot_dimension_numbers<[1], [0], [0], [1], [0, 0, 1, 1], [], []>} : vector<16x16xf32>, vector<16x8xf32>, vector<16x8xf32> -> vector<16x8xf32>
    %1424 = vector.extract_strided_slice %1343 {offsets = [24, 0], sizes = [8, 32], strides = [1, 1]} : vector<32x32xf32> to vector<8x32xf32>
    %cst_529 = arith.constant dense<0.000000e+00> : vector<16x32xf32>
    %1425 = tpu.matmul %1423, %1424, %cst_529 {dimension_numbers = #tpu.dot_dimension_numbers<[1], [0], [0], [1], [0, 0, 1, 1], [], []>} : vector<16x8xf32>, vector<8x32xf32>, vector<16x32xf32> -> vector<16x32xf32>
    %1426 = arith.addf %1405, %1425 : vector<16x32xf32>
    %1427 = vector.extract_strided_slice %1332 {offsets = [0, 96], sizes = [1, 32], strides = [1, 1]} : vector<1x128xf32> to vector<1x32xf32>
    %1428 = vector.broadcast %1427 : vector<1x32xf32> to vector<16x32xf32>
    %1429 = arith.addf %1426, %1428 : vector<16x32xf32>
    %1430 = arith.addf %1239, %1429 : vector<16x32xf32>
    %c58 = arith.constant 58 : index
    %c0_530 = arith.constant 0 : index
    %1431 = vector.load %arg10[%c58, %c0_530] : memref<64x128xf32, #tpu.memory_space<vmem>>, vector<1x32xf32>
    %c59 = arith.constant 59 : index
    %c0_531 = arith.constant 0 : index
    %1432 = vector.load %arg10[%c59, %c0_531] : memref<64x128xf32, #tpu.memory_space<vmem>>, vector<1x32xf32>
    %cst_532 = arith.constant dense<0.000000e+00> : vector<16xf32>
    %1433 = vector.multi_reduction <add>, %1430, %cst_532 [1] : vector<16x32xf32> to vector<16xf32>
    %1434 = vector.shape_cast %1433 : vector<16xf32> to vector<16x1xf32>
    %cst_533 = arith.constant 3.200000e+01 : f32
    %1435 = vector.broadcast %cst_533 : f32 to vector<16x1xf32>
    %1436 = arith.divf %1434, %1435 : vector<16x1xf32>
    %1437 = vector.broadcast %1436 : vector<16x1xf32> to vector<16x32xf32>
    %1438 = arith.subf %1430, %1437 : vector<16x32xf32>
    %1439 = arith.mulf %1438, %1438 : vector<16x32xf32>
    %cst_534 = arith.constant dense<0.000000e+00> : vector<16xf32>
    %1440 = vector.multi_reduction <add>, %1439, %cst_534 [1] : vector<16x32xf32> to vector<16xf32>
    %1441 = vector.shape_cast %1440 : vector<16xf32> to vector<16x1xf32>
    %cst_535 = arith.constant 3.200000e+01 : f32
    %1442 = vector.broadcast %cst_535 : f32 to vector<16x1xf32>
    %1443 = arith.divf %1441, %1442 : vector<16x1xf32>
    %1444 = vector.broadcast %1436 : vector<16x1xf32> to vector<16x32xf32>
    %1445 = arith.subf %1430, %1444 : vector<16x32xf32>
    %cst_536 = arith.constant 9.99999996E-13 : f32
    %1446 = vector.broadcast %cst_536 : f32 to vector<16x1xf32>
    %1447 = arith.addf %1443, %1446 : vector<16x1xf32>
    %1448 = math.rsqrt %1447 : vector<16x1xf32>
    %1449 = vector.broadcast %1448 : vector<16x1xf32> to vector<16x32xf32>
    %1450 = arith.mulf %1445, %1449 : vector<16x32xf32>
    %1451 = vector.broadcast %1431 : vector<1x32xf32> to vector<16x32xf32>
    %1452 = arith.mulf %1450, %1451 : vector<16x32xf32>
    %1453 = vector.broadcast %1432 : vector<1x32xf32> to vector<16x32xf32>
    %1454 = arith.addf %1452, %1453 : vector<16x32xf32>
    %c0_537 = arith.constant 0 : index
    %c0_538 = arith.constant 0 : index
    %1455 = vector.load %arg11[%c0_537, %c0_538] : memref<16x32xf32, #tpu.memory_space<vmem>>, vector<16x32xf32>
    tpu.vector_store %arg11[%c0_537, %c0_538], %1454 {strides = array<i32>} : memref<16x32xf32, #tpu.memory_space<vmem>>, vector<16x32xf32>,
    return
  }
}

</mosaic_0001>

<llo_original>
// kernel: double_base_mix_encoder_forward.1
$region0: #{double_base_mix_encoder_forward.1}
  #allocation0 [shape = 'u32[]', space=smem, size = 0x4, offset = 0x4, fixed_abs, tag = 'smem constant byte address 0x4 - core index']
  #allocation1 [shape = 'u32[72,128]{1,0:T(1,128)}', space=vmem, size = 0x9000, scoped, tag = 'internal scratch']
  %s0 = inlined_call_operand.vmem [shape: f32[2,16,16], index: 0, kind: input, shape index: {}]
  %s1 = inlined_call_operand.vmem [shape: f32[16,32], index: 1, kind: input, shape index: {}]
  %s2 = inlined_call_operand.vmem [shape: f32[2,7,16,16], index: 2, kind: input, shape index: {}]
  %s3 = inlined_call_operand.vmem [shape: f32[2,8,16,1], index: 3, kind: input, shape index: {}]
  %s4 = inlined_call_operand.vmem [shape: f32[6,32,128], index: 4, kind: input, shape index: {}]
  %s5 = inlined_call_operand.vmem [shape: f32[6,32,64], index: 5, kind: input, shape index: {}]
  %s6 = inlined_call_operand.vmem [shape: f32[6,64,32], index: 6, kind: input, shape index: {}]
  %s7 = inlined_call_operand.vmem [shape: f32[2,2,32,16], index: 7, kind: input, shape index: {}]
  %s8 = inlined_call_operand.vmem [shape: f32[2,4,48,32], index: 8, kind: input, shape index: {}]
  %s9 = inlined_call_operand.vmem [shape: f32[2,32,128], index: 9, kind: input, shape index: {}]
  %s10 = inlined_call_operand.vmem [shape: f32[64,128], index: 10, kind: input, shape index: {}]
  %s11 = inlined_call_operand.hbm [shape: f32[16,32], index: 11, kind: output, shape index: {}]
  %s12 = sld [smem:[#allocation0]]
  $region54: #{double_base_mix_encoder_forward.1} parent=0
    _
  %s14 = ssub.s32 1, %s12
  %s15 = scalar_select 0, %s14, %s12
  $region1: #{double_base_mix_encoder_forward.1} parent=0
    #allocation2 [shape = 'u8[8192]{0}', space=vmem, size = 0x2000, scoped, tag = 'output window, operand 0, single buffered']
    #allocation3 [shape = 's32[1]{0}', space=sflag, size = 0x4, scoped, tag = 'scoped memory for double_base_mix_encoder_forward.1']
    %16 = vsyncpa [#allocation3], 0
    // Predicated region
    $region2: #{double_base_mix_encoder_forward.1} parent=1 // pred_check
      _
    $region3: #{double_base_mix_encoder_forward.1} parent=1 // pred_check_branch
      %18 = sbr.rel (0) target = $region5
    $region4: #{double_base_mix_encoder_forward.1} parent=1 // pred_region
      _
    $region5: #{double_base_mix_encoder_forward.1} parent=1 // pred_fallthru
      _
    // Predicated region
    $region6: #{double_base_mix_encoder_forward.1} parent=1 // pred_check
      _
    $region7: #{double_base_mix_encoder_forward.1} parent=1 // pred_check_branch
      %20 = sbr.rel (0) target = $region9
    $region8: #{double_base_mix_encoder_forward.1} parent=1 // pred_region
      _
    $region9: #{double_base_mix_encoder_forward.1} parent=1 // pred_fallthru
      _
    // Predicated region
    $region10: #{double_base_mix_encoder_forward.1} parent=1 // pred_check
      _
    $region11: #{double_base_mix_encoder_forward.1} parent=1 // pred_check_branch
      %22 = sbr.rel (0) target = $region13
    $region12: #{double_base_mix_encoder_forward.1} parent=1 // pred_region
      _
    $region13: #{double_base_mix_encoder_forward.1} parent=1 // pred_fallthru
      _
    // Predicated region
    $region14: #{double_base_mix_encoder_forward.1} parent=1 // pred_check
      _
    $region15: #{double_base_mix_encoder_forward.1} parent=1 // pred_check_branch
      %24 = sbr.rel (0) target = $region17
    $region16: #{double_base_mix_encoder_forward.1} parent=1 // pred_region
      _
    $region17: #{double_base_mix_encoder_forward.1} parent=1 // pred_fallthru
      _
    // Predicated region
    $region18: #{double_base_mix_encoder_forward.1} parent=1 // pred_check
      _
    $region19: #{double_base_mix_encoder_forward.1} parent=1 // pred_check_branch
      %26 = sbr.rel (0) target = $region21
    $region20: #{double_base_mix_encoder_forward.1} parent=1 // pred_region
      _
    $region21: #{double_base_mix_encoder_forward.1} parent=1 // pred_fallthru
      _
    // Predicated region
    $region22: #{double_base_mix_encoder_forward.1} parent=1 // pred_check
      _
    $region23: #{double_base_mix_encoder_forward.1} parent=1 // pred_check_branch
      %28 = sbr.rel (0) target = $region25
    $region24: #{double_base_mix_encoder_forward.1} parent=1 // pred_region
      _
    $region25: #{double_base_mix_encoder_forward.1} parent=1 // pred_fallthru
      _
    // Predicated region
    $region26: #{double_base_mix_encoder_forward.1} parent=1 // pred_check
      _
    $region27: #{double_base_mix_encoder_forward.1} parent=1 // pred_check_branch
      %30 = sbr.rel (0) target = $region29
    $region28: #{double_base_mix_encoder_forward.1} parent=1 // pred_region
      _
    $region29: #{double_base_mix_encoder_forward.1} parent=1 // pred_fallthru
      _
    // Predicated region
    $region30: #{double_base_mix_encoder_forward.1} parent=1 // pred_check
      _
    $region31: #{double_base_mix_encoder_forward.1} parent=1 // pred_check_branch
      %32 = sbr.rel (0) target = $region33
    $region32: #{double_base_mix_encoder_forward.1} parent=1 // pred_region
      _
    $region33: #{double_base_mix_encoder_forward.1} parent=1 // pred_fallthru
      _
    // Predicated region
    $region34: #{double_base_mix_encoder_forward.1} parent=1 // pred_check
      _
    $region35: #{double_base_mix_encoder_forward.1} parent=1 // pred_check_branch
      %34 = sbr.rel (0) target = $region37
    $region36: #{double_base_mix_encoder_forward.1} parent=1 // pred_region
      _
    $region37: #{double_base_mix_encoder_forward.1} parent=1 // pred_fallthru
      _
    // Predicated region
    $region38: #{double_base_mix_encoder_forward.1} parent=1 // pred_check
      _
    $region39: #{double_base_mix_encoder_forward.1} parent=1 // pred_check_branch
      %36 = sbr.rel (0) target = $region41
    $region40: #{double_base_mix_encoder_forward.1} parent=1 // pred_region
      _
    $region41: #{double_base_mix_encoder_forward.1} parent=1 // pred_fallthru
      _
    // Predicated region
    $region42: #{double_base_mix_encoder_forward.1} parent=1 // pred_check
      _
    $region43: #{double_base_mix_encoder_forward.1} parent=1 // pred_check_branch
      %38 = sbr.rel (0) target = $region45
    $region44: #{double_base_mix_encoder_forward.1} parent=1 // pred_region
      _
    $region45: #{double_base_mix_encoder_forward.1} parent=1 // pred_fallthru
      _
    %v39 = vld [vmem:[%s0] sm:$0xff]
    %v40 = vld [vmem:[%s0 + $0x8] sm:$0xff]
    %s41 = scalar_lea.vmem %s0, 16
    %v42 = vld [vmem:[%s41] sm:$0xff]
    %v43 = vld [vmem:[%s41 + $0x8] sm:$0xff]
    %v44 = vld [vmem:[%s1] sm:$0xff]
    %v45 = vld [vmem:[%s1 + $0x8] sm:$0xff]
    %v46 = vld [vmem:[%s4] sm:$0xff]
    %v47 = vld [vmem:[%s4 + $0x8] sm:$0xff]
    %v48 = vld [vmem:[%s4 + $0x10] sm:$0xff]
    %v49 = vld [vmem:[%s4 + $0x18] sm:$0xff]
    %v50 = vld [vmem:[%s10] sm:$0x1]
    %v51 = vperm.slane %v50, 0
    %vm52 = vcmask 261120
    %v54 = vsel %vm52, %v44, 0
    %v57 = vsel %vm52, %v45, 0
    %59 = vmatpush.msra.mxu0 0.0
    %60 = vmatpush.msra.mxu0 0.0
    %61 = vmatpush.msra.mxu0 0.0
    %62 = vmatpush.msra.mxu0 0.0
    %63 = vmatpush.msra.mxu0 0.0
    %64 = vmatpush.msra.mxu0 0.0
    %65 = vmatpush.msra.mxu0 0.0
    %66 = vmatpush.msra.mxu0 0.0
    %67 = vmatpush.msra.mxu0 0.0
    %68 = vmatpush.msra.mxu0 0.0
    %69 = vmatpush.msra.mxu0 0.0
    %70 = vmatpush.msra.mxu0 0.0
    %71 = vmatpush.msra.mxu0 %v49
    %72 = vmatpush.msra.mxu0 %v48
    %73 = vmatpush.msra.mxu0 %v47
    %74 = vmatpush.msra.mxu0 %v46
    %75 = vmatmul.f32.gmra.mxu0 %v54
    %v76 = vpop.f32.mrf.mxu0
    %v77 = vadd.f32 %v51, %v76
    %78 = vmatmul.f32.gmra.mxu0 %v57
    %v79 = vpop.f32.mrf.mxu0
    %v80 = vadd.f32 %v51, %v79
    %81 = vdwg.mxu0
    %84 = vrot.lane.b32.xlu0 %v77, 96
    %v85 = vpop.permute.xlu0 %84
    %86 = vrot.lane.b32.xlu0 %v80, 96
    %v87 = vpop.permute.xlu0 %86
    %vm88 = vcmask 64512
    %v89 = vsel %vm88, %v77, 0
    %v91 = vsel %vm88, %v80, 0
    %v93 = vsel %vm88, %v85, 0
    %v95 = vsel %vm88, %v87, 0
    %97 = vmatpush.xpose.msra.mxu0 0.0
    %98 = vmatpush.xpose.msra.mxu0 0.0
    %99 = vmatpush.xpose.msra.mxu0 0.0
    %100 = vmatpush.xpose.msra.mxu0 0.0
    %101 = vmatpush.xpose.msra.mxu0 0.0
    %102 = vmatpush.xpose.msra.mxu0 0.0
    %103 = vmatpush.xpose.msra.mxu0 0.0
    %104 = vmatpush.xpose.msra.mxu0 0.0
    %105 = vmatpush.xpose.msra.mxu0 0.0
    %106 = vmatpush.xpose.msra.mxu0 0.0
    %107 = vmatpush.xpose.msra.mxu0 0.0
    %108 = vmatpush.xpose.msra.mxu0 0.0
    %109 = vmatpush.xpose.msra.mxu0 0.0
    %110 = vmatpush.xpose.msra.mxu0 0.0
    %111 = vmatpush.xpose.msra.mxu0 %v95
    %112 = vmatpush.xpose.msra.mxu0 %v93
    %113 = vmatmul.f32.gmra.mxu0 %v89
    %v114 = vpop.f32.mrf.mxu0
    %v115 = vadd.f32 0.0, %v114
    %116 = vmatmul.f32.gmra.mxu0 %v91
    %v117 = vpop.f32.mrf.mxu0
    %v118 = vadd.f32 0.0, %v117
    %119 = vdwg.mxu0
    %v120 = vmul.f32 %v115, 0.35355338
    %v121 = vmul.f32 %v118, 0.35355338
    %v122 = vadd.f32 %v120, %v39
    %v123 = vadd.f32 %v121, %v40
    %vm124 = vcmask 130048
    %v125 = vsel %vm124, %v122, -inf
    %126 = vmax.xlane.f32.xlu0 %v125
    %v127 = vpop.xlane.xlu0 %126
    %v128 = vsel %vm124, %v123, -inf
    %129 = vmax.xlane.f32.xlu0 %v128
    %v130 = vpop.xlane.xlu0 %129
    %v131 = vsub.f32 %v122, %v127
    %v132 = vsub.f32 %v123, %v130
    %v133 = vmul.f32 %v131, 1.442695
    %v134 = vpow.pop %v133
    %v135 = vmul.f32 %v132, 1.442695
    %v136 = vpow.pop %v135
    %v137 = vsel %vm124, %v134, 0.0
    %138 = vadd.xlane.f32.xlu0 %v137
    %v139 = vpop.xlane.xlu0 %138
    %v140 = vsel %vm124, %v136, 0.0
    %141 = vadd.xlane.f32.xlu0 %v140
    %v142 = vpop.xlane.xlu0 %141
    %v143 = vrcp.pop %v139
    %v144 = vrcp.pop %v142
    %v145 = vmul.f32 %v134, %v143
    %v146 = vmul.f32 %v136, %v144
    %147 = vrot.lane.b32.xlu0 %v77, 64
    %v148 = vpop.permute.xlu0 %147
    %149 = vrot.lane.b32.xlu0 %v80, 64
    %v150 = vpop.permute.xlu0 %149
    %v154 = vsel %vm124, %v145, 0
    %v157 = vsel %vm124, %v146, 0
    %159 = vmatpush.msra.mxu0 0.0
    %160 = vmatpush.msra.mxu0 0.0
    %161 = vmatpush.msra.mxu0 0.0
    %162 = vmatpush.msra.mxu0 0.0
    %163 = vmatpush.msra.mxu0 0.0
    %164 = vmatpush.msra.mxu0 0.0
    %165 = vmatpush.msra.mxu0 0.0
    %166 = vmatpush.msra.mxu0 0.0
    %167 = vmatpush.msra.mxu0 0.0
    %168 = vmatpush.msra.mxu0 0.0
    %169 = vmatpush.msra.mxu0 0.0
    %170 = vmatpush.msra.mxu0 0.0
    %171 = vmatpush.msra.mxu0 0.0
    %172 = vmatpush.msra.mxu0 0.0
    %173 = vmatpush.msra.mxu0 %v150
    %174 = vmatpush.msra.mxu0 %v148
    %175 = vmatmul.f32.gmra.mxu0 %v154
    %v176 = vpop.f32.mrf.mxu0
    %v177 = vadd.f32 0.0, %v176
    %178 = vmatmul.f32.gmra.mxu0 %v157
    %v179 = vpop.f32.mrf.mxu0
    %v180 = vadd.f32 0.0, %v179
    %181 = vdwg.mxu0
    %182 = vrot.lane.b32.xlu0 %v77, 120
    %v183 = vpop.permute.xlu0 %182
    %184 = vrot.lane.b32.xlu0 %v80, 120
    %v185 = vpop.permute.xlu0 %184
    %186 = vrot.lane.b32.xlu0 %v77, 88
    %v187 = vpop.permute.xlu0 %186
    %188 = vrot.lane.b32.xlu0 %v80, 88
    %v189 = vpop.permute.xlu0 %188
    %v190 = vsel %vm88, %v183, 0
    %v192 = vsel %vm88, %v185, 0
    %v194 = vsel %vm88, %v187, 0
    %v196 = vsel %vm88, %v189, 0
    %198 = vmatpush.xpose.msra.mxu0 0.0
    %199 = vmatpush.xpose.msra.mxu0 0.0
    %200 = vmatpush.xpose.msra.mxu0 0.0
    %201 = vmatpush.xpose.msra.mxu0 0.0
    %202 = vmatpush.xpose.msra.mxu0 0.0
    %203 = vmatpush.xpose.msra.mxu0 0.0
    %204 = vmatpush.xpose.msra.mxu0 0.0
    %205 = vmatpush.xpose.msra.mxu0 0.0
    %206 = vmatpush.xpose.msra.mxu0 0.0
    %207 = vmatpush.xpose.msra.mxu0 0.0
    %208 = vmatpush.xpose.msra.mxu0 0.0
    %209 = vmatpush.xpose.msra.mxu0 0.0
    %210 = vmatpush.xpose.msra.mxu0 0.0
    %211 = vmatpush.xpose.msra.mxu0 0.0
    %212 = vmatpush.xpose.msra.mxu0 %v196
    %213 = vmatpush.xpose.msra.mxu0 %v194
    %214 = vmatmul.f32.gmra.mxu0 %v190
    %v215 = vpop.f32.mrf.mxu0
    %v216 = vadd.f32 0.0, %v215
    %217 = vmatmul.f32.gmra.mxu0 %v192
    %v218 = vpop.f32.mrf.mxu0
    %v219 = vadd.f32 0.0, %v218
    %220 = vdwg.mxu0
    %v221 = vmul.f32 %v216, 0.35355338
    %v222 = vmul.f32 %v219, 0.35355338
    %v223 = vadd.f32 %v221, %v39
    %v224 = vadd.f32 %v222, %v40
    %v225 = vsel %vm124, %v223, -inf
    %226 = vmax.xlane.f32.xlu0 %v225
    %v227 = vpop.xlane.xlu0 %226
    %v228 = vsel %vm124, %v224, -inf
    %229 = vmax.xlane.f32.xlu0 %v228
    %v230 = vpop.xlane.xlu0 %229
    %v231 = vsub.f32 %v223, %v227
    %v232 = vsub.f32 %v224, %v230
    %v233 = vmul.f32 %v231, 1.442695
    %v234 = vpow.pop %v233
    %v235 = vmul.f32 %v232, 1.442695
    %v236 = vpow.pop %v235
    %v237 = vsel %vm124, %v234, 0.0
    %238 = vadd.xlane.f32.xlu0 %v237
    %v239 = vpop.xlane.xlu0 %238
    %v240 = vsel %vm124, %v236, 0.0
    %241 = vadd.xlane.f32.xlu0 %v240
    %v242 = vpop.xlane.xlu0 %241
    %v243 = vrcp.pop %v239
    %v244 = vrcp.pop %v242
    %v245 = vmul.f32 %v234, %v243
    %v246 = vmul.f32 %v236, %v244
    %247 = vrot.lane.b32.xlu0 %v77, 56
    %v248 = vpop.permute.xlu0 %247
    %249 = vrot.lane.b32.xlu0 %v80, 56
    %v250 = vpop.permute.xlu0 %249
    %v254 = vsel %vm124, %v245, 0
    %v257 = vsel %vm124, %v246, 0
    %259 = vmatpush.msra.mxu0 0.0
    %260 = vmatpush.msra.mxu0 0.0
    %261 = vmatpush.msra.mxu0 0.0
    %262 = vmatpush.msra.mxu0 0.0
    %263 = vmatpush.msra.mxu0 0.0
    %264 = vmatpush.msra.mxu0 0.0
    %265 = vmatpush.msra.mxu0 0.0
    %266 = vmatpush.msra.mxu0 0.0
    %267 = vmatpush.msra.mxu0 0.0
    %268 = vmatpush.msra.mxu0 0.0
    %269 = vmatpush.msra.mxu0 0.0
    %270 = vmatpush.msra.mxu0 0.0
    %271 = vmatpush.msra.mxu0 0.0
    %272 = vmatpush.msra.mxu0 0.0
    %273 = vmatpush.msra.mxu0 %v250
    %274 = vmatpush.msra.mxu0 %v248
    %275 = vmatmul.f32.gmra.mxu0 %v254
    %v276 = vpop.f32.mrf.mxu0
    %v277 = vadd.f32 0.0, %v276
    %278 = vmatmul.f32.gmra.mxu0 %v257
    %v279 = vpop.f32.mrf.mxu0
    %v280 = vadd.f32 0.0, %v279
    %281 = vdwg.mxu0
    %283 = vrot.lane.b32.xlu0 %v47, 32
    %v284 = vpop.permute.xlu0 %283
    %v287 = vsel %vm88, %v277, 0
    %v290 = vsel %vm88, %v280, 0
    %292 = vmatpush.msra.mxu0 0.0
    %293 = vmatpush.msra.mxu0 0.0
    %294 = vmatpush.msra.mxu0 0.0
    %295 = vmatpush.msra.mxu0 0.0
    %296 = vmatpush.msra.mxu0 0.0
    %297 = vmatpush.msra.mxu0 0.0
    %298 = vmatpush.msra.mxu0 0.0
    %299 = vmatpush.msra.mxu0 0.0
    %300 = vmatpush.msra.mxu0 0.0
    %301 = vmatpush.msra.mxu0 0.0
    %302 = vmatpush.msra.mxu0 0.0
    %303 = vmatpush.msra.mxu0 0.0
    %304 = vmatpush.msra.mxu0 0.0
    %305 = vmatpush.msra.mxu0 0.0
    %306 = vmatpush.msra.mxu0 0.0
    %307 = vmatpush.msra.mxu0 %v284
    %308 = vmatmul.f32.gmra.mxu0 %v287
    %v309 = vpop.f32.mrf.mxu0
    %v310 = vadd.f32 0.0, %v309
    %311 = vmatmul.f32.gmra.mxu0 %v290
    %v312 = vpop.f32.mrf.mxu0
    %v313 = vadd.f32 0.0, %v312
    %314 = vdwg.mxu0
    %316 = vrot.lane.b32.xlu0 %v46, 32
    %v317 = vpop.permute.xlu0 %316
    %v320 = vsel %vm88, %v177, 0
    %v323 = vsel %vm88, %v180, 0
    %325 = vmatpush.msra.mxu0 0.0
    %326 = vmatpush.msra.mxu0 0.0
    %327 = vmatpush.msra.mxu0 0.0
    %328 = vmatpush.msra.mxu0 0.0
    %329 = vmatpush.msra.mxu0 0.0
    %330 = vmatpush.msra.mxu0 0.0
    %331 = vmatpush.msra.mxu0 0.0
    %332 = vmatpush.msra.mxu0 0.0
    %333 = vmatpush.msra.mxu0 0.0
    %334 = vmatpush.msra.mxu0 0.0
    %335 = vmatpush.msra.mxu0 0.0
    %336 = vmatpush.msra.mxu0 0.0
    %337 = vmatpush.msra.mxu0 0.0
    %338 = vmatpush.msra.mxu0 0.0
    %339 = vmatpush.msra.mxu0 0.0
    %340 = vmatpush.msra.mxu0 %v317
    %341 = vmatmul.f32.gmra.mxu0 %v320
    %v342 = vpop.f32.mrf.mxu0
    %v343 = vadd.f32 %v310, %v342
    %344 = vmatmul.f32.gmra.mxu0 %v323
    %v345 = vpop.f32.mrf.mxu0
    %v346 = vadd.f32 %v313, %v345
    %347 = vdwg.mxu0
    %348 = vrot.lane.b32.xlu0 %v77, 112
    %v349 = vpop.permute.xlu0 %348
    %350 = vrot.lane.b32.xlu0 %v80, 112
    %v351 = vpop.permute.xlu0 %350
    %352 = vrot.lane.b32.xlu0 %v77, 80
    %v353 = vpop.permute.xlu0 %352
    %354 = vrot.lane.b32.xlu0 %v80, 80
    %v355 = vpop.permute.xlu0 %354
    %v356 = vsel %vm88, %v349, 0
    %v358 = vsel %vm88, %v351, 0
    %v360 = vsel %vm88, %v353, 0
    %v362 = vsel %vm88, %v355, 0
    %364 = vmatpush.xpose.msra.mxu0 0.0
    %365 = vmatpush.xpose.msra.mxu0 0.0
    %366 = vmatpush.xpose.msra.mxu0 0.0
    %367 = vmatpush.xpose.msra.mxu0 0.0
    %368 = vmatpush.xpose.msra.mxu0 0.0
    %369 = vmatpush.xpose.msra.mxu0 0.0
    %370 = vmatpush.xpose.msra.mxu0 0.0
    %371 = vmatpush.xpose.msra.mxu0 0.0
    %372 = vmatpush.xpose.msra.mxu0 0.0
    %373 = vmatpush.xpose.msra.mxu0 0.0
    %374 = vmatpush.xpose.msra.mxu0 0.0
    %375 = vmatpush.xpose.msra.mxu0 0.0
    %376 = vmatpush.xpose.msra.mxu0 0.0
    %377 = vmatpush.xpose.msra.mxu0 0.0
    %378 = vmatpush.xpose.msra.mxu0 %v362
    %379 = vmatpush.xpose.msra.mxu0 %v360
    %380 = vmatmul.f32.gmra.mxu0 %v356
    %v381 = vpop.f32.mrf.mxu0
    %v382 = vadd.f32 0.0, %v381
    %383 = vmatmul.f32.gmra.mxu0 %v358
    %v384 = vpop.f32.mrf.mxu0
    %v385 = vadd.f32 0.0, %v384
    %386 = vdwg.mxu0
    %v387 = vmul.f32 %v382, 0.35355338
    %v388 = vmul.f32 %v385, 0.35355338
    %v389 = vadd.f32 %v387, %v39
    %v390 = vadd.f32 %v388, %v40
    %v391 = vsel %vm124, %v389, -inf
    %392 = vmax.xlane.f32.xlu0 %v391
    %v393 = vpop.xlane.xlu0 %392
    %v394 = vsel %vm124, %v390, -inf
    %395 = vmax.xlane.f32.xlu0 %v394
    %v396 = vpop.xlane.xlu0 %395
    %v397 = vsub.f32 %v389, %v393
    %v398 = vsub.f32 %v390, %v396
    %v399 = vmul.f32 %v397, 1.442695
    %v400 = vpow.pop %v399
    %v401 = vmul.f32 %v398, 1.442695
    %v402 = vpow.pop %v401
    %v403 = vsel %vm124, %v400, 0.0
    %404 = vadd.xlane.f32.xlu0 %v403
    %v405 = vpop.xlane.xlu0 %404
    %v406 = vsel %vm124, %v402, 0.0
    %407 = vadd.xlane.f32.xlu0 %v406
    %v408 = vpop.xlane.xlu0 %407
    %v409 = vrcp.pop %v405
    %v410 = vrcp.pop %v408
    %v411 = vmul.f32 %v400, %v409
    %v412 = vmul.f32 %v402, %v410
    %413 = vrot.lane.b32.xlu0 %v77, 48
    %v414 = vpop.permute.xlu0 %413
    %415 = vrot.lane.b32.xlu0 %v80, 48
    %v416 = vpop.permute.xlu0 %415
    %v420 = vsel %vm124, %v411, 0
    %v423 = vsel %vm124, %v412, 0
    %425 = vmatpush.msra.mxu0 0.0
    %426 = vmatpush.msra.mxu0 0.0
    %427 = vmatpush.msra.mxu0 0.0
    %428 = vmatpush.msra.mxu0 0.0
    %429 = vmatpush.msra.mxu0 0.0
    %430 = vmatpush.msra.mxu0 0.0
    %431 = vmatpush.msra.mxu0 0.0
    %432 = vmatpush.msra.mxu0 0.0
    %433 = vmatpush.msra.mxu0 0.0
    %434 = vmatpush.msra.mxu0 0.0
    %435 = vmatpush.msra.mxu0 0.0
    %436 = vmatpush.msra.mxu0 0.0
    %437 = vmatpush.msra.mxu0 0.0
    %438 = vmatpush.msra.mxu0 0.0
    %439 = vmatpush.msra.mxu0 %v416
    %440 = vmatpush.msra.mxu0 %v414
    %441 = vmatmul.f32.gmra.mxu0 %v420
    %v442 = vpop.f32.mrf.mxu0
    %v443 = vadd.f32 0.0, %v442
    %444 = vmatmul.f32.gmra.mxu0 %v423
    %v445 = vpop.f32.mrf.mxu0
    %v446 = vadd.f32 0.0, %v445
    %447 = vdwg.mxu0
    %449 = vrot.lane.b32.xlu0 %v48, 32
    %v450 = vpop.permute.xlu0 %449
    %v453 = vsel %vm88, %v443, 0
    %v456 = vsel %vm88, %v446, 0
    %458 = vmatpush.msra.mxu0 0.0
    %459 = vmatpush.msra.mxu0 0.0
    %460 = vmatpush.msra.mxu0 0.0
    %461 = vmatpush.msra.mxu0 0.0
    %462 = vmatpush.msra.mxu0 0.0
    %463 = vmatpush.msra.mxu0 0.0
    %464 = vmatpush.msra.mxu0 0.0
    %465 = vmatpush.msra.mxu0 0.0
    %466 = vmatpush.msra.mxu0 0.0
    %467 = vmatpush.msra.mxu0 0.0
    %468 = vmatpush.msra.mxu0 0.0
    %469 = vmatpush.msra.mxu0 0.0
    %470 = vmatpush.msra.mxu0 0.0
    %471 = vmatpush.msra.mxu0 0.0
    %472 = vmatpush.msra.mxu0 0.0
    %473 = vmatpush.msra.mxu0 %v450
    %474 = vmatmul.f32.gmra.mxu0 %v453
    %v475 = vpop.f32.mrf.mxu0
    %v476 = vadd.f32 0.0, %v475
    %477 = vmatmul.f32.gmra.mxu0 %v456
    %v478 = vpop.f32.mrf.mxu0
    %v479 = vadd.f32 0.0, %v478
    %480 = vdwg.mxu0
    %v481 = vadd.f32 %v343, %v476
    %v482 = vadd.f32 %v346, %v479
    %483 = vrot.lane.b32.xlu0 %v77, 104
    %v484 = vpop.permute.xlu0 %483
    %485 = vrot.lane.b32.xlu0 %v80, 104
    %v486 = vpop.permute.xlu0 %485
    %487 = vrot.lane.b32.xlu0 %v77, 72
    %v488 = vpop.permute.xlu0 %487
    %489 = vrot.lane.b32.xlu0 %v80, 72
    %v490 = vpop.permute.xlu0 %489
    %v491 = vsel %vm88, %v484, 0
    %v493 = vsel %vm88, %v486, 0
    %v495 = vsel %vm88, %v488, 0
    %v497 = vsel %vm88, %v490, 0
    %499 = vmatpush.xpose.msra.mxu0 0.0
    %500 = vmatpush.xpose.msra.mxu0 0.0
    %501 = vmatpush.xpose.msra.mxu0 0.0
    %502 = vmatpush.xpose.msra.mxu0 0.0
    %503 = vmatpush.xpose.msra.mxu0 0.0
    %504 = vmatpush.xpose.msra.mxu0 0.0
    %505 = vmatpush.xpose.msra.mxu0 0.0
    %506 = vmatpush.xpose.msra.mxu0 0.0
    %507 = vmatpush.xpose.msra.mxu0 0.0
    %508 = vmatpush.xpose.msra.mxu0 0.0
    %509 = vmatpush.xpose.msra.mxu0 0.0
    %510 = vmatpush.xpose.msra.mxu0 0.0
    %511 = vmatpush.xpose.msra.mxu0 0.0
    %512 = vmatpush.xpose.msra.mxu0 0.0
    %513 = vmatpush.xpose.msra.mxu0 %v497
    %514 = vmatpush.xpose.msra.mxu0 %v495
    %515 = vmatmul.f32.gmra.mxu0 %v491
    %v516 = vpop.f32.mrf.mxu0
    %v517 = vadd.f32 0.0, %v516
    %518 = vmatmul.f32.gmra.mxu0 %v493
    %v519 = vpop.f32.mrf.mxu0
    %v520 = vadd.f32 0.0, %v519
    %521 = vdwg.mxu0
    %v522 = vmul.f32 %v517, 0.35355338
    %v523 = vmul.f32 %v520, 0.35355338
    %v524 = vadd.f32 %v522, %v39
    %v525 = vadd.f32 %v523, %v40
    %v526 = vsel %vm124, %v524, -inf
    %527 = vmax.xlane.f32.xlu0 %v526
    %v528 = vpop.xlane.xlu0 %527
    %v529 = vsel %vm124, %v525, -inf
    %530 = vmax.xlane.f32.xlu0 %v529
    %v531 = vpop.xlane.xlu0 %530
    %v532 = vsub.f32 %v524, %v528
    %v533 = vsub.f32 %v525, %v531
    %v534 = vmul.f32 %v532, 1.442695
    %v535 = vpow.pop %v534
    %v536 = vmul.f32 %v533, 1.442695
    %v537 = vpow.pop %v536
    %v538 = vsel %vm124, %v535, 0.0
    %539 = vadd.xlane.f32.xlu0 %v538
    %v540 = vpop.xlane.xlu0 %539
    %v541 = vsel %vm124, %v537, 0.0
    %542 = vadd.xlane.f32.xlu0 %v541
    %v543 = vpop.xlane.xlu0 %542
    %v544 = vrcp.pop %v540
    %v545 = vrcp.pop %v543
    %v546 = vmul.f32 %v535, %v544
    %v547 = vmul.f32 %v537, %v545
    %548 = vrot.lane.b32.xlu0 %v77, 40
    %v549 = vpop.permute.xlu0 %548
    %550 = vrot.lane.b32.xlu0 %v80, 40
    %v551 = vpop.permute.xlu0 %550
    %v555 = vsel %vm124, %v546, 0
    %v558 = vsel %vm124, %v547, 0
    %560 = vmatpush.msra.mxu0 0.0
    %561 = vmatpush.msra.mxu0 0.0
    %562 = vmatpush.msra.mxu0 0.0
    %563 = vmatpush.msra.mxu0 0.0
    %564 = vmatpush.msra.mxu0 0.0
    %565 = vmatpush.msra.mxu0 0.0
    %566 = vmatpush.msra.mxu0 0.0
    %567 = vmatpush.msra.mxu0 0.0
    %568 = vmatpush.msra.mxu0 0.0
    %569 = vmatpush.msra.mxu0 0.0
    %570 = vmatpush.msra.mxu0 0.0
    %571 = vmatpush.msra.mxu0 0.0
    %572 = vmatpush.msra.mxu0 0.0
    %573 = vmatpush.msra.mxu0 0.0
    %574 = vmatpush.msra.mxu0 %v551
    %575 = vmatpush.msra.mxu0 %v549
    %576 = vmatmul.f32.gmra.mxu0 %v555
    %v577 = vpop.f32.mrf.mxu0
    %v578 = vadd.f32 0.0, %v577
    %579 = vmatmul.f32.gmra.mxu0 %v558
    %v580 = vpop.f32.mrf.mxu0
    %v581 = vadd.f32 0.0, %v580
    %582 = vdwg.mxu0
    %584 = vrot.lane.b32.xlu0 %v49, 32
    %v585 = vpop.permute.xlu0 %584
    %v588 = vsel %vm88, %v578, 0
    %v591 = vsel %vm88, %v581, 0
    %593 = vmatpush.msra.mxu0 0.0
    %594 = vmatpush.msra.mxu0 0.0
    %595 = vmatpush.msra.mxu0 0.0
    %596 = vmatpush.msra.mxu0 0.0
    %597 = vmatpush.msra.mxu0 0.0
    %598 = vmatpush.msra.mxu0 0.0
    %599 = vmatpush.msra.mxu0 0.0
    %600 = vmatpush.msra.mxu0 0.0
    %601 = vmatpush.msra.mxu0 0.0
    %602 = vmatpush.msra.mxu0 0.0
    %603 = vmatpush.msra.mxu0 0.0
    %604 = vmatpush.msra.mxu0 0.0
    %605 = vmatpush.msra.mxu0 0.0
    %606 = vmatpush.msra.mxu0 0.0
    %607 = vmatpush.msra.mxu0 0.0
    %608 = vmatpush.msra.mxu0 %v585
    %609 = vmatmul.f32.gmra.mxu0 %v588
    %v610 = vpop.f32.mrf.mxu0
    %v611 = vadd.f32 0.0, %v610
    %612 = vmatmul.f32.gmra.mxu0 %v591
    %v613 = vpop.f32.mrf.mxu0
    %v614 = vadd.f32 0.0, %v613
    %615 = vdwg.mxu0
    %v616 = vadd.f32 %v481, %v611
    %v617 = vadd.f32 %v482, %v614
    %619 = vrot.lane.b32.xlu0 %v51, 32
    %v620 = vpop.permute.xlu0 %619
    %v622 = vadd.f32 %v616, %v620
    %v623 = vadd.f32 %v617, %v620
    %v624 = vadd.f32 %v44, %v622
    %v625 = vadd.f32 %v45, %v623
    %v626 = vld [vmem:[%s10 + $0x3] sm:$0x1]
    %v627 = vld [vmem:[%s10 + $0x4] sm:$0x1]
    %v628 = vsel %vm52, %v624, 0.0
    %629 = vadd.xlane.f32.xlu0 %v628
    %v630 = vpop.xlane.xlu0 %629
    %v631 = vsel %vm52, %v625, 0.0
    %632 = vadd.xlane.f32.xlu0 %v631
    %v633 = vpop.xlane.xlu0 %632
    %v634 = vrcp.pop 32.0
    %v635 = vmul.f32 32.0, %v634
    %v636 = vsub.f32 1.0, %v635
    %v637 = vmul.f32 %v634, %v636
    %v638 = vadd.f32 %v634, %v637
    %vm639 = vweird.f32 %v634
    %v640 = vsel %vm639, %v634, %v638
    %v641 = vmul.f32 %v630, %v640
    %v642 = vmul.f32 %v633, %v640
    %v643 = vsub.f32 %v624, %v641
    %v644 = vsub.f32 %v625, %v642
    %v645 = vmul.f32 %v643, %v643
    %v646 = vmul.f32 %v644, %v644
    %v647 = vsel %vm52, %v645, 0.0
    %648 = vadd.xlane.f32.xlu0 %v647
    %v649 = vpop.xlane.xlu0 %648
    %v650 = vsel %vm52, %v646, 0.0
    %651 = vadd.xlane.f32.xlu0 %v650
    %v652 = vpop.xlane.xlu0 %651
    %v653 = vmul.f32 %v649, %v640
    %v654 = vmul.f32 %v652, %v640
    %v655 = vadd.f32 %v653, 1e-12
    %v656 = vadd.f32 %v654, 1e-12
    %v657 = vrsqrt.pop %v655
    %v658 = vmul.f32 %v657, %v655
    %v659 = vmul.f32 %v658, %v657
    %v660 = vmul.f32 0.5, %v659
    %v661 = vsub.f32 1.5, %v660
    %v662 = vmul.f32 %v657, %v661
    %vm663 = vweird.f32 %v655
    %vm664 = vweird.f32 %v657
    %vm665 = vmor %vm663, %vm664
    %v666 = vsel %vm665, %v657, %v662
    %v667 = vrsqrt.pop %v656
    %v668 = vmul.f32 %v667, %v656
    %v669 = vmul.f32 %v668, %v667
    %v670 = vmul.f32 0.5, %v669
    %v671 = vsub.f32 1.5, %v670
    %v672 = vmul.f32 %v667, %v671
    %vm673 = vweird.f32 %v656
    %vm674 = vweird.f32 %v667
    %vm675 = vmor %vm673, %vm674
    %v676 = vsel %vm675, %v667, %v672
    %v677 = vmul.f32 %v643, %v666
    %v678 = vmul.f32 %v644, %v676
    %v679 = vperm.slane %v626, 0
    %v680 = vmul.f32 %v677, %v679
    %v681 = vmul.f32 %v678, %v679
    %v682 = vperm.slane %v627, 0
    %v683 = vadd.f32 %v680, %v682
    %v684 = vadd.f32 %v681, %v682
    %v685 = vld [vmem:[%s5] sm:$0xff]
    %v686 = vld [vmem:[%s5 + $0x8] sm:$0xff]
    %v687 = vld [vmem:[%s5 + $0x10] sm:$0xff]
    %v688 = vld [vmem:[%s5 + $0x18] sm:$0xff]
    %v689 = vld [vmem:[%s10 + $0x1] sm:$0x1]
    %v690 = vperm.slane %v689, 0
    %v692 = vsel %vm52, %v683, 0
    %v695 = vsel %vm52, %v684, 0
    %697 = vmatpush.msra.mxu0 0.0
    %698 = vmatpush.msra.mxu0 0.0
    %699 = vmatpush.msra.mxu0 0.0
    %700 = vmatpush.msra.mxu0 0.0
    %701 = vmatpush.msra.mxu0 0.0
    %702 = vmatpush.msra.mxu0 0.0
    %703 = vmatpush.msra.mxu0 0.0
    %704 = vmatpush.msra.mxu0 0.0
    %705 = vmatpush.msra.mxu0 0.0
    %706 = vmatpush.msra.mxu0 0.0
    %707 = vmatpush.msra.mxu0 0.0
    %708 = vmatpush.msra.mxu0 0.0
    %709 = vmatpush.msra.mxu0 %v688
    %710 = vmatpush.msra.mxu0 %v687
    %711 = vmatpush.msra.mxu0 %v686
    %712 = vmatpush.msra.mxu0 %v685
    %713 = vmatmul.f32.gmra.mxu0 %v692
    %v714 = vpop.f32.mrf.mxu0
    %v715 = vadd.f32 %v690, %v714
    %716 = vmatmul.f32.gmra.mxu0 %v695
    %v717 = vpop.f32.mrf.mxu0
    %v718 = vadd.f32 %v690, %v717
    %719 = vdwg.mxu0
    %v720 = vmul.f32 %v715, 0.5
    %v721 = vmul.f32 %v718, 0.5
    %v722 = vmul.f32 %v715, 0.044715
    %v723 = vmul.f32 %v718, 0.044715
    %v724 = vmul.f32 %v722, %v715
    %v725 = vmul.f32 %v723, %v718
    %v726 = vmul.f32 %v724, %v715
    %v727 = vmul.f32 %v725, %v718
    %v728 = vadd.f32 %v715, %v726
    %v729 = vadd.f32 %v718, %v727
    %v730 = vmul.f32 %v728, 0.7978846
    %v731 = vmul.f32 %v729, 0.7978846
    %v732 = vtanh.pop %v730
    %v733 = vtanh.pop %v731
    %v734 = vadd.f32 %v732, 1.0
    %v735 = vadd.f32 %v733, 1.0
    %v736 = vmul.f32 %v720, %v734
    %v737 = vmul.f32 %v721, %v735
    %v738 = vld [vmem:[%s6] sm:$0xff]
    %v739 = vld [vmem:[%s6 + $0x8] sm:$0xff]
    %v740 = vld [vmem:[%s6 + $0x10] sm:$0xff]
    %v741 = vld [vmem:[%s6 + $0x18] sm:$0xff]
    %v742 = vld [vmem:[%s6 + $0x20] sm:$0xff]
    %v743 = vld [vmem:[%s6 + $0x28] sm:$0xff]
    %v744 = vld [vmem:[%s6 + $0x30] sm:$0xff]
    %v745 = vld [vmem:[%s6 + $0x38] sm:$0xff]
    %v746 = vld [vmem:[%s10 + $0x2] sm:$0x1]
    %v747 = vperm.slane %v746, 0
    %vm748 = vcmask 523264
    %v750 = vsel %vm748, %v736, 0
    %v753 = vsel %vm748, %v737, 0
    %755 = vmatpush.msra.mxu0 0.0
    %756 = vmatpush.msra.mxu0 0.0
    %757 = vmatpush.msra.mxu0 0.0
    %758 = vmatpush.msra.mxu0 0.0
    %759 = vmatpush.msra.mxu0 0.0
    %760 = vmatpush.msra.mxu0 0.0
    %761 = vmatpush.msra.mxu0 0.0
    %762 = vmatpush.msra.mxu0 0.0
    %763 = vmatpush.msra.mxu0 %v745
    %764 = vmatpush.msra.mxu0 %v744
    %765 = vmatpush.msra.mxu0 %v743
    %766 = vmatpush.msra.mxu0 %v742
    %767 = vmatpush.msra.mxu0 %v741
    %768 = vmatpush.msra.mxu0 %v740
    %769 = vmatpush.msra.mxu0 %v739
    %770 = vmatpush.msra.mxu0 %v738
    %771 = vmatmul.f32.gmra.mxu0 %v750
    %v772 = vpop.f32.mrf.mxu0
    %v773 = vadd.f32 %v747, %v772
    %774 = vmatmul.f32.gmra.mxu0 %v753
    %v775 = vpop.f32.mrf.mxu0
    %v776 = vadd.f32 %v747, %v775
    %777 = vdwg.mxu0
    %v778 = vadd.f32 %v683, %v773
    %v779 = vadd.f32 %v684, %v776
    %v780 = vld [vmem:[%s10 + $0x5] sm:$0x1]
    %v781 = vld [vmem:[%s10 + $0x6] sm:$0x1]
    %v782 = vsel %vm52, %v778, 0.0
    %783 = vadd.xlane.f32.xlu0 %v782
    %v784 = vpop.xlane.xlu0 %783
    %v785 = vsel %vm52, %v779, 0.0
    %786 = vadd.xlane.f32.xlu0 %v785
    %v787 = vpop.xlane.xlu0 %786
    %v788 = vmul.f32 %v784, %v640
    %v789 = vmul.f32 %v787, %v640
    %v790 = vsub.f32 %v778, %v788
    %v791 = vsub.f32 %v779, %v789
    %v792 = vmul.f32 %v790, %v790
    %v793 = vmul.f32 %v791, %v791
    %v794 = vsel %vm52, %v792, 0.0
    %795 = vadd.xlane.f32.xlu0 %v794
    %v796 = vpop.xlane.xlu0 %795
    %v797 = vsel %vm52, %v793, 0.0
    %798 = vadd.xlane.f32.xlu0 %v797
    %v799 = vpop.xlane.xlu0 %798
    %v800 = vmul.f32 %v796, %v640
    %v801 = vmul.f32 %v799, %v640
    %v802 = vadd.f32 %v800, 1e-12
    %v803 = vadd.f32 %v801, 1e-12
    %v804 = vrsqrt.pop %v802
    %v805 = vmul.f32 %v804, %v802
    %v806 = vmul.f32 %v805, %v804
    %v807 = vmul.f32 0.5, %v806
    %v808 = vsub.f32 1.5, %v807
    %v809 = vmul.f32 %v804, %v808
    %vm810 = vweird.f32 %v802
    %vm811 = vweird.f32 %v804
    %vm812 = vmor %vm810, %vm811
    %v813 = vsel %vm812, %v804, %v809
    %v814 = vrsqrt.pop %v803
    %v815 = vmul.f32 %v814, %v803
    %v816 = vmul.f32 %v815, %v814
    %v817 = vmul.f32 0.5, %v816
    %v818 = vsub.f32 1.5, %v817
    %v819 = vmul.f32 %v814, %v818
    %vm820 = vweird.f32 %v803
    %vm821 = vweird.f32 %v814
    %vm822 = vmor %vm820, %vm821
    %v823 = vsel %vm822, %v814, %v819
    %v824 = vmul.f32 %v790, %v813
    %v825 = vmul.f32 %v791, %v823
    %v826 = vperm.slane %v780, 0
    %v827 = vmul.f32 %v824, %v826
    %v828 = vmul.f32 %v825, %v826
    %v829 = vperm.slane %v781, 0
    %v830 = vadd.f32 %v827, %v829
    %v831 = vadd.f32 %v828, %v829
    %s832 = scalar_lea.vmem %s4, 32
    %v833 = vld [vmem:[%s832] sm:$0xff]
    %v834 = vld [vmem:[%s832 + $0x8] sm:$0xff]
    %v835 = vld [vmem:[%s832 + $0x10] sm:$0xff]
    %v836 = vld [vmem:[%s832 + $0x18] sm:$0xff]
    %v837 = vld [vmem:[%s10 + $0x7] sm:$0x1]
    %v838 = vperm.slane %v837, 0
    %v840 = vsel %vm52, %v830, 0
    %v843 = vsel %vm52, %v831, 0
    %845 = vmatpush.msra.mxu0 0.0
    %846 = vmatpush.msra.mxu0 0.0
    %847 = vmatpush.msra.mxu0 0.0
    %848 = vmatpush.msra.mxu0 0.0
    %849 = vmatpush.msra.mxu0 0.0
    %850 = vmatpush.msra.mxu0 0.0
    %851 = vmatpush.msra.mxu0 0.0
    %852 = vmatpush.msra.mxu0 0.0
    %853 = vmatpush.msra.mxu0 0.0
    %854 = vmatpush.msra.mxu0 0.0
    %855 = vmatpush.msra.mxu0 0.0
    %856 = vmatpush.msra.mxu0 0.0
    %857 = vmatpush.msra.mxu0 %v836
    %858 = vmatpush.msra.mxu0 %v835
    %859 = vmatpush.msra.mxu0 %v834
    %860 = vmatpush.msra.mxu0 %v833
    %861 = vmatmul.f32.gmra.mxu0 %v840
    %v862 = vpop.f32.mrf.mxu0
    %v863 = vadd.f32 %v838, %v862
    %864 = vmatmul.f32.gmra.mxu0 %v843
    %v865 = vpop.f32.mrf.mxu0
    %v866 = vadd.f32 %v838, %v865
    %867 = vdwg.mxu0
    %870 = vrot.lane.b32.xlu0 %v863, 96
    %v871 = vpop.permute.xlu0 %870
    %872 = vrot.lane.b32.xlu0 %v866, 96
    %v873 = vpop.permute.xlu0 %872
    %v874 = vsel %vm88, %v863, 0
    %v876 = vsel %vm88, %v866, 0
    %v878 = vsel %vm88, %v871, 0
    %v880 = vsel %vm88, %v873, 0
    %882 = vmatpush.xpose.msra.mxu0 0.0
    %883 = vmatpush.xpose.msra.mxu0 0.0
    %884 = vmatpush.xpose.msra.mxu0 0.0
    %885 = vmatpush.xpose.msra.mxu0 0.0
    %886 = vmatpush.xpose.msra.mxu0 0.0
    %887 = vmatpush.xpose.msra.mxu0 0.0
    %888 = vmatpush.xpose.msra.mxu0 0.0
    %889 = vmatpush.xpose.msra.mxu0 0.0
    %890 = vmatpush.xpose.msra.mxu0 0.0
    %891 = vmatpush.xpose.msra.mxu0 0.0
    %892 = vmatpush.xpose.msra.mxu0 0.0
    %893 = vmatpush.xpose.msra.mxu0 0.0
    %894 = vmatpush.xpose.msra.mxu0 0.0
    %895 = vmatpush.xpose.msra.mxu0 0.0
    %896 = vmatpush.xpose.msra.mxu0 %v880
    %897 = vmatpush.xpose.msra.mxu0 %v878
    %898 = vmatmul.f32.gmra.mxu0 %v874
    %v899 = vpop.f32.mrf.mxu0
    %v900 = vadd.f32 0.0, %v899
    %901 = vmatmul.f32.gmra.mxu0 %v876
    %v902 = vpop.f32.mrf.mxu0
    %v903 = vadd.f32 0.0, %v902
    %904 = vdwg.mxu0
    %v905 = vmul.f32 %v900, 0.35355338
    %v906 = vmul.f32 %v903, 0.35355338
    %v907 = vadd.f32 %v905, %v39
    %v908 = vadd.f32 %v906, %v40
    %v909 = vsel %vm124, %v907, -inf
    %910 = vmax.xlane.f32.xlu0 %v909
    %v911 = vpop.xlane.xlu0 %910
    %v912 = vsel %vm124, %v908, -inf
    %913 = vmax.xlane.f32.xlu0 %v912
    %v914 = vpop.xlane.xlu0 %913
    %v915 = vsub.f32 %v907, %v911
    %v916 = vsub.f32 %v908, %v914
    %v917 = vmul.f32 %v915, 1.442695
    %v918 = vpow.pop %v917
    %v919 = vmul.f32 %v916, 1.442695
    %v920 = vpow.pop %v919
    %v921 = vsel %vm124, %v918, 0.0
    %922 = vadd.xlane.f32.xlu0 %v921
    %v923 = vpop.xlane.xlu0 %922
    %v924 = vsel %vm124, %v920, 0.0
    %925 = vadd.xlane.f32.xlu0 %v924
    %v926 = vpop.xlane.xlu0 %925
    %v927 = vrcp.pop %v923
    %v928 = vrcp.pop %v926
    %v929 = vmul.f32 %v918, %v927
    %v930 = vmul.f32 %v920, %v928
    %931 = vrot.lane.b32.xlu0 %v863, 64
    %v932 = vpop.permute.xlu0 %931
    %933 = vrot.lane.b32.xlu0 %v866, 64
    %v934 = vpop.permute.xlu0 %933
    %v938 = vsel %vm124, %v929, 0
    %v941 = vsel %vm124, %v930, 0
    %943 = vmatpush.msra.mxu0 0.0
    %944 = vmatpush.msra.mxu0 0.0
    %945 = vmatpush.msra.mxu0 0.0
    %946 = vmatpush.msra.mxu0 0.0
    %947 = vmatpush.msra.mxu0 0.0
    %948 = vmatpush.msra.mxu0 0.0
    %949 = vmatpush.msra.mxu0 0.0
    %950 = vmatpush.msra.mxu0 0.0
    %951 = vmatpush.msra.mxu0 0.0
    %952 = vmatpush.msra.mxu0 0.0
    %953 = vmatpush.msra.mxu0 0.0
    %954 = vmatpush.msra.mxu0 0.0
    %955 = vmatpush.msra.mxu0 0.0
    %956 = vmatpush.msra.mxu0 0.0
    %957 = vmatpush.msra.mxu0 %v934
    %958 = vmatpush.msra.mxu0 %v932
    %959 = vmatmul.f32.gmra.mxu0 %v938
    %v960 = vpop.f32.mrf.mxu0
    %v961 = vadd.f32 0.0, %v960
    %962 = vmatmul.f32.gmra.mxu0 %v941
    %v963 = vpop.f32.mrf.mxu0
    %v964 = vadd.f32 0.0, %v963
    %965 = vdwg.mxu0
    %966 = vrot.lane.b32.xlu0 %v863, 120
    %v967 = vpop.permute.xlu0 %966
    %968 = vrot.lane.b32.xlu0 %v866, 120
    %v969 = vpop.permute.xlu0 %968
    %970 = vrot.lane.b32.xlu0 %v863, 88
    %v971 = vpop.permute.xlu0 %970
    %972 = vrot.lane.b32.xlu0 %v866, 88
    %v973 = vpop.permute.xlu0 %972
    %v974 = vsel %vm88, %v967, 0
    %v976 = vsel %vm88, %v969, 0
    %v978 = vsel %vm88, %v971, 0
    %v980 = vsel %vm88, %v973, 0
    %982 = vmatpush.xpose.msra.mxu0 0.0
    %983 = vmatpush.xpose.msra.mxu0 0.0
    %984 = vmatpush.xpose.msra.mxu0 0.0
    %985 = vmatpush.xpose.msra.mxu0 0.0
    %986 = vmatpush.xpose.msra.mxu0 0.0
    %987 = vmatpush.xpose.msra.mxu0 0.0
    %988 = vmatpush.xpose.msra.mxu0 0.0
    %989 = vmatpush.xpose.msra.mxu0 0.0
    %990 = vmatpush.xpose.msra.mxu0 0.0
    %991 = vmatpush.xpose.msra.mxu0 0.0
    %992 = vmatpush.xpose.msra.mxu0 0.0
    %993 = vmatpush.xpose.msra.mxu0 0.0
    %994 = vmatpush.xpose.msra.mxu0 0.0
    %995 = vmatpush.xpose.msra.mxu0 0.0
    %996 = vmatpush.xpose.msra.mxu0 %v980
    %997 = vmatpush.xpose.msra.mxu0 %v978
    %998 = vmatmul.f32.gmra.mxu0 %v974
    %v999 = vpop.f32.mrf.mxu0
    %v1000 = vadd.f32 0.0, %v999
    %1001 = vmatmul.f32.gmra.mxu0 %v976
    %v1002 = vpop.f32.mrf.mxu0
    %v1003 = vadd.f32 0.0, %v1002
    %1004 = vdwg.mxu0
    %v1005 = vmul.f32 %v1000, 0.35355338
    %v1006 = vmul.f32 %v1003, 0.35355338
    %v1007 = vadd.f32 %v1005, %v39
    %v1008 = vadd.f32 %v1006, %v40
    %v1009 = vsel %vm124, %v1007, -inf
    %1010 = vmax.xlane.f32.xlu0 %v1009
    %v1011 = vpop.xlane.xlu0 %1010
    %v1012 = vsel %vm124, %v1008, -inf
    %1013 = vmax.xlane.f32.xlu0 %v1012
    %v1014 = vpop.xlane.xlu0 %1013
    %v1015 = vsub.f32 %v1007, %v1011
    %v1016 = vsub.f32 %v1008, %v1014
    %v1017 = vmul.f32 %v1015, 1.442695
    %v1018 = vpow.pop %v1017
    %v1019 = vmul.f32 %v1016, 1.442695
    %v1020 = vpow.pop %v1019
    %v1021 = vsel %vm124, %v1018, 0.0
    %1022 = vadd.xlane.f32.xlu0 %v1021
    %v1023 = vpop.xlane.xlu0 %1022
    %v1024 = vsel %vm124, %v1020, 0.0
    %1025 = vadd.xlane.f32.xlu0 %v1024
    %v1026 = vpop.xlane.xlu0 %1025
    %v1027 = vrcp.pop %v1023
    %v1028 = vrcp.pop %v1026
    %v1029 = vmul.f32 %v1018, %v1027
    %v1030 = vmul.f32 %v1020, %v1028
    %1031 = vrot.lane.b32.xlu0 %v863, 56
    %v1032 = vpop.permute.xlu0 %1031
    %1033 = vrot.lane.b32.xlu0 %v866, 56
    %v1034 = vpop.permute.xlu0 %1033
    %v1038 = vsel %vm124, %v1029, 0
    %v1041 = vsel %vm124, %v1030, 0
    %1043 = vmatpush.msra.mxu0 0.0
    %1044 = vmatpush.msra.mxu0 0.0
    %1045 = vmatpush.msra.mxu0 0.0
    %1046 = vmatpush.msra.mxu0 0.0
    %1047 = vmatpush.msra.mxu0 0.0
    %1048 = vmatpush.msra.mxu0 0.0
    %1049 = vmatpush.msra.mxu0 0.0
    %1050 = vmatpush.msra.mxu0 0.0
    %1051 = vmatpush.msra.mxu0 0.0
    %1052 = vmatpush.msra.mxu0 0.0
    %1053 = vmatpush.msra.mxu0 0.0
    %1054 = vmatpush.msra.mxu0 0.0
    %1055 = vmatpush.msra.mxu0 0.0
    %1056 = vmatpush.msra.mxu0 0.0
    %1057 = vmatpush.msra.mxu0 %v1034
    %1058 = vmatpush.msra.mxu0 %v1032
    %1059 = vmatmul.f32.gmra.mxu0 %v1038
    %v1060 = vpop.f32.mrf.mxu0
    %v1061 = vadd.f32 0.0, %v1060
    %1062 = vmatmul.f32.gmra.mxu0 %v1041
    %v1063 = vpop.f32.mrf.mxu0
    %v1064 = vadd.f32 0.0, %v1063
    %1065 = vdwg.mxu0
    %1067 = vrot.lane.b32.xlu0 %v834, 32
    %v1068 = vpop.permute.xlu0 %1067
    %v1071 = vsel %vm88, %v1061, 0
    %v1074 = vsel %vm88, %v1064, 0
    %1076 = vmatpush.msra.mxu0 0.0
    %1077 = vmatpush.msra.mxu0 0.0
    %1078 = vmatpush.msra.mxu0 0.0
    %1079 = vmatpush.msra.mxu0 0.0
    %1080 = vmatpush.msra.mxu0 0.0
    %1081 = vmatpush.msra.mxu0 0.0
    %1082 = vmatpush.msra.mxu0 0.0
    %1083 = vmatpush.msra.mxu0 0.0
    %1084 = vmatpush.msra.mxu0 0.0
    %1085 = vmatpush.msra.mxu0 0.0
    %1086 = vmatpush.msra.mxu0 0.0
    %1087 = vmatpush.msra.mxu0 0.0
    %1088 = vmatpush.msra.mxu0 0.0
    %1089 = vmatpush.msra.mxu0 0.0
    %1090 = vmatpush.msra.mxu0 0.0
    %1091 = vmatpush.msra.mxu0 %v1068
    %1092 = vmatmul.f32.gmra.mxu0 %v1071
    %v1093 = vpop.f32.mrf.mxu0
    %v1094 = vadd.f32 0.0, %v1093
    %1095 = vmatmul.f32.gmra.mxu0 %v1074
    %v1096 = vpop.f32.mrf.mxu0
    %v1097 = vadd.f32 0.0, %v1096
    %1098 = vdwg.mxu0
    %1100 = vrot.lane.b32.xlu0 %v833, 32
    %v1101 = vpop.permute.xlu0 %1100
    %v1104 = vsel %vm88, %v961, 0
    %v1107 = vsel %vm88, %v964, 0
    %1109 = vmatpush.msra.mxu0 0.0
    %1110 = vmatpush.msra.mxu0 0.0
    %1111 = vmatpush.msra.mxu0 0.0
    %1112 = vmatpush.msra.mxu0 0.0
    %1113 = vmatpush.msra.mxu0 0.0
    %1114 = vmatpush.msra.mxu0 0.0
    %1115 = vmatpush.msra.mxu0 0.0
    %1116 = vmatpush.msra.mxu0 0.0
    %1117 = vmatpush.msra.mxu0 0.0
    %1118 = vmatpush.msra.mxu0 0.0
    %1119 = vmatpush.msra.mxu0 0.0
    %1120 = vmatpush.msra.mxu0 0.0
    %1121 = vmatpush.msra.mxu0 0.0
    %1122 = vmatpush.msra.mxu0 0.0
    %1123 = vmatpush.msra.mxu0 0.0
    %1124 = vmatpush.msra.mxu0 %v1101
    %1125 = vmatmul.f32.gmra.mxu0 %v1104
    %v1126 = vpop.f32.mrf.mxu0
    %v1127 = vadd.f32 %v1094, %v1126
    %1128 = vmatmul.f32.gmra.mxu0 %v1107
    %v1129 = vpop.f32.mrf.mxu0
    %v1130 = vadd.f32 %v1097, %v1129
    %1131 = vdwg.mxu0
    %1132 = vrot.lane.b32.xlu0 %v863, 112
    %v1133 = vpop.permute.xlu0 %1132
    %1134 = vrot.lane.b32.xlu0 %v866, 112
    %v1135 = vpop.permute.xlu0 %1134
    %1136 = vrot.lane.b32.xlu0 %v863, 80
    %v1137 = vpop.permute.xlu0 %1136
    %1138 = vrot.lane.b32.xlu0 %v866, 80
    %v1139 = vpop.permute.xlu0 %1138
    %v1140 = vsel %vm88, %v1133, 0
    %v1142 = vsel %vm88, %v1135, 0
    %v1144 = vsel %vm88, %v1137, 0
    %v1146 = vsel %vm88, %v1139, 0
    %1148 = vmatpush.xpose.msra.mxu0 0.0
    %1149 = vmatpush.xpose.msra.mxu0 0.0
    %1150 = vmatpush.xpose.msra.mxu0 0.0
    %1151 = vmatpush.xpose.msra.mxu0 0.0
    %1152 = vmatpush.xpose.msra.mxu0 0.0
    %1153 = vmatpush.xpose.msra.mxu0 0.0
    %1154 = vmatpush.xpose.msra.mxu0 0.0
    %1155 = vmatpush.xpose.msra.mxu0 0.0
    %1156 = vmatpush.xpose.msra.mxu0 0.0
    %1157 = vmatpush.xpose.msra.mxu0 0.0
    %1158 = vmatpush.xpose.msra.mxu0 0.0
    %1159 = vmatpush.xpose.msra.mxu0 0.0
    %1160 = vmatpush.xpose.msra.mxu0 0.0
    %1161 = vmatpush.xpose.msra.mxu0 0.0
    %1162 = vmatpush.xpose.msra.mxu0 %v1146
    %1163 = vmatpush.xpose.msra.mxu0 %v1144
    %1164 = vmatmul.f32.gmra.mxu0 %v1140
    %v1165 = vpop.f32.mrf.mxu0
    %v1166 = vadd.f32 0.0, %v1165
    %1167 = vmatmul.f32.gmra.mxu0 %v1142
    %v1168 = vpop.f32.mrf.mxu0
    %v1169 = vadd.f32 0.0, %v1168
    %1170 = vdwg.mxu0
    %v1171 = vmul.f32 %v1166, 0.35355338
    %v1172 = vmul.f32 %v1169, 0.35355338
    %v1173 = vadd.f32 %v1171, %v39
    %v1174 = vadd.f32 %v1172, %v40
    %v1175 = vsel %vm124, %v1173, -inf
    %1176 = vmax.xlane.f32.xlu0 %v1175
    %v1177 = vpop.xlane.xlu0 %1176
    %v1178 = vsel %vm124, %v1174, -inf
    %1179 = vmax.xlane.f32.xlu0 %v1178
    %v1180 = vpop.xlane.xlu0 %1179
    %v1181 = vsub.f32 %v1173, %v1177
    %v1182 = vsub.f32 %v1174, %v1180
    %v1183 = vmul.f32 %v1181, 1.442695
    %v1184 = vpow.pop %v1183
    %v1185 = vmul.f32 %v1182, 1.442695
    %v1186 = vpow.pop %v1185
    %v1187 = vsel %vm124, %v1184, 0.0
    %1188 = vadd.xlane.f32.xlu0 %v1187
    %v1189 = vpop.xlane.xlu0 %1188
    %v1190 = vsel %vm124, %v1186, 0.0
    %1191 = vadd.xlane.f32.xlu0 %v1190
    %v1192 = vpop.xlane.xlu0 %1191
    %v1193 = vrcp.pop %v1189
    %v1194 = vrcp.pop %v1192
    %v1195 = vmul.f32 %v1184, %v1193
    %v1196 = vmul.f32 %v1186, %v1194
    %1197 = vrot.lane.b32.xlu0 %v863, 48
    %v1198 = vpop.permute.xlu0 %1197
    %1199 = vrot.lane.b32.xlu0 %v866, 48
    %v1200 = vpop.permute.xlu0 %1199
    %v1204 = vsel %vm124, %v1195, 0
    %v1207 = vsel %vm124, %v1196, 0
    %1209 = vmatpush.msra.mxu0 0.0
    %1210 = vmatpush.msra.mxu0 0.0
    %1211 = vmatpush.msra.mxu0 0.0
    %1212 = vmatpush.msra.mxu0 0.0
    %1213 = vmatpush.msra.mxu0 0.0
    %1214 = vmatpush.msra.mxu0 0.0
    %1215 = vmatpush.msra.mxu0 0.0
    %1216 = vmatpush.msra.mxu0 0.0
    %1217 = vmatpush.msra.mxu0 0.0
    %1218 = vmatpush.msra.mxu0 0.0
    %1219 = vmatpush.msra.mxu0 0.0
    %1220 = vmatpush.msra.mxu0 0.0
    %1221 = vmatpush.msra.mxu0 0.0
    %1222 = vmatpush.msra.mxu0 0.0
    %1223 = vmatpush.msra.mxu0 %v1200
    %1224 = vmatpush.msra.mxu0 %v1198
    %1225 = vmatmul.f32.gmra.mxu0 %v1204
    %v1226 = vpop.f32.mrf.mxu0
    %v1227 = vadd.f32 0.0, %v1226
    %1228 = vmatmul.f32.gmra.mxu0 %v1207
    %v1229 = vpop.f32.mrf.mxu0
    %v1230 = vadd.f32 0.0, %v1229
    %1231 = vdwg.mxu0
    %1233 = vrot.lane.b32.xlu0 %v835, 32
    %v1234 = vpop.permute.xlu0 %1233
    %v1237 = vsel %vm88, %v1227, 0
    %v1240 = vsel %vm88, %v1230, 0
    %1242 = vmatpush.msra.mxu0 0.0
    %1243 = vmatpush.msra.mxu0 0.0
    %1244 = vmatpush.msra.mxu0 0.0
    %1245 = vmatpush.msra.mxu0 0.0
    %1246 = vmatpush.msra.mxu0 0.0
    %1247 = vmatpush.msra.mxu0 0.0
    %1248 = vmatpush.msra.mxu0 0.0
    %1249 = vmatpush.msra.mxu0 0.0
    %1250 = vmatpush.msra.mxu0 0.0
    %1251 = vmatpush.msra.mxu0 0.0
    %1252 = vmatpush.msra.mxu0 0.0
    %1253 = vmatpush.msra.mxu0 0.0
    %1254 = vmatpush.msra.mxu0 0.0
    %1255 = vmatpush.msra.mxu0 0.0
    %1256 = vmatpush.msra.mxu0 0.0
    %1257 = vmatpush.msra.mxu0 %v1234
    %1258 = vmatmul.f32.gmra.mxu0 %v1237
    %v1259 = vpop.f32.mrf.mxu0
    %v1260 = vadd.f32 0.0, %v1259
    %1261 = vmatmul.f32.gmra.mxu0 %v1240
    %v1262 = vpop.f32.mrf.mxu0
    %v1263 = vadd.f32 0.0, %v1262
    %1264 = vdwg.mxu0
    %v1265 = vadd.f32 %v1127, %v1260
    %v1266 = vadd.f32 %v1130, %v1263
    %1267 = vrot.lane.b32.xlu0 %v863, 104
    %v1268 = vpop.permute.xlu0 %1267
    %1269 = vrot.lane.b32.xlu0 %v866, 104
    %v1270 = vpop.permute.xlu0 %1269
    %1271 = vrot.lane.b32.xlu0 %v863, 72
    %v1272 = vpop.permute.xlu0 %1271
    %1273 = vrot.lane.b32.xlu0 %v866, 72
    %v1274 = vpop.permute.xlu0 %1273
    %v1275 = vsel %vm88, %v1268, 0
    %v1277 = vsel %vm88, %v1270, 0
    %v1279 = vsel %vm88, %v1272, 0
    %v1281 = vsel %vm88, %v1274, 0
    %1283 = vmatpush.xpose.msra.mxu0 0.0
    %1284 = vmatpush.xpose.msra.mxu0 0.0
    %1285 = vmatpush.xpose.msra.mxu0 0.0
    %1286 = vmatpush.xpose.msra.mxu0 0.0
    %1287 = vmatpush.xpose.msra.mxu0 0.0
    %1288 = vmatpush.xpose.msra.mxu0 0.0
    %1289 = vmatpush.xpose.msra.mxu0 0.0
    %1290 = vmatpush.xpose.msra.mxu0 0.0
    %1291 = vmatpush.xpose.msra.mxu0 0.0
    %1292 = vmatpush.xpose.msra.mxu0 0.0
    %1293 = vmatpush.xpose.msra.mxu0 0.0
    %1294 = vmatpush.xpose.msra.mxu0 0.0
    %1295 = vmatpush.xpose.msra.mxu0 0.0
    %1296 = vmatpush.xpose.msra.mxu0 0.0
    %1297 = vmatpush.xpose.msra.mxu0 %v1281
    %1298 = vmatpush.xpose.msra.mxu0 %v1279
    %1299 = vmatmul.f32.gmra.mxu0 %v1275
    %v1300 = vpop.f32.mrf.mxu0
    %v1301 = vadd.f32 0.0, %v1300
    %1302 = vmatmul.f32.gmra.mxu0 %v1277
    %v1303 = vpop.f32.mrf.mxu0
    %v1304 = vadd.f32 0.0, %v1303
    %1305 = vdwg.mxu0
    %v1306 = vmul.f32 %v1301, 0.35355338
    %v1307 = vmul.f32 %v1304, 0.35355338
    %v1308 = vadd.f32 %v1306, %v39
    %v1309 = vadd.f32 %v1307, %v40
    %v1310 = vsel %vm124, %v1308, -inf
    %1311 = vmax.xlane.f32.xlu0 %v1310
    %v1312 = vpop.xlane.xlu0 %1311
    %v1313 = vsel %vm124, %v1309, -inf
    %1314 = vmax.xlane.f32.xlu0 %v1313
    %v1315 = vpop.xlane.xlu0 %1314
    %v1316 = vsub.f32 %v1308, %v1312
    %v1317 = vsub.f32 %v1309, %v1315
    %v1318 = vmul.f32 %v1316, 1.442695
    %v1319 = vpow.pop %v1318
    %v1320 = vmul.f32 %v1317, 1.442695
    %v1321 = vpow.pop %v1320
    %v1322 = vsel %vm124, %v1319, 0.0
    %1323 = vadd.xlane.f32.xlu0 %v1322
    %v1324 = vpop.xlane.xlu0 %1323
    %v1325 = vsel %vm124, %v1321, 0.0
    %1326 = vadd.xlane.f32.xlu0 %v1325
    %v1327 = vpop.xlane.xlu0 %1326
    %v1328 = vrcp.pop %v1324
    %v1329 = vrcp.pop %v1327
    %v1330 = vmul.f32 %v1319, %v1328
    %v1331 = vmul.f32 %v1321, %v1329
    %1332 = vrot.lane.b32.xlu0 %v863, 40
    %v1333 = vpop.permute.xlu0 %1332
    %1334 = vrot.lane.b32.xlu0 %v866, 40
    %v1335 = vpop.permute.xlu0 %1334
    %v1339 = vsel %vm124, %v1330, 0
    %v1342 = vsel %vm124, %v1331, 0
    %1344 = vmatpush.msra.mxu0 0.0
    %1345 = vmatpush.msra.mxu0 0.0
    %1346 = vmatpush.msra.mxu0 0.0
    %1347 = vmatpush.msra.mxu0 0.0
    %1348 = vmatpush.msra.mxu0 0.0
    %1349 = vmatpush.msra.mxu0 0.0
    %1350 = vmatpush.msra.mxu0 0.0
    %1351 = vmatpush.msra.mxu0 0.0
    %1352 = vmatpush.msra.mxu0 0.0
    %1353 = vmatpush.msra.mxu0 0.0
    %1354 = vmatpush.msra.mxu0 0.0
    %1355 = vmatpush.msra.mxu0 0.0
    %1356 = vmatpush.msra.mxu0 0.0
    %1357 = vmatpush.msra.mxu0 0.0
    %1358 = vmatpush.msra.mxu0 %v1335
    %1359 = vmatpush.msra.mxu0 %v1333
    %1360 = vmatmul.f32.gmra.mxu0 %v1339
    %v1361 = vpop.f32.mrf.mxu0
    %v1362 = vadd.f32 0.0, %v1361
    %1363 = vmatmul.f32.gmra.mxu0 %v1342
    %v1364 = vpop.f32.mrf.mxu0
    %v1365 = vadd.f32 0.0, %v1364
    %1366 = vdwg.mxu0
    %1368 = vrot.lane.b32.xlu0 %v836, 32
    %v1369 = vpop.permute.xlu0 %1368
    %v1372 = vsel %vm88, %v1362, 0
    %v1375 = vsel %vm88, %v1365, 0
    %1377 = vmatpush.msra.mxu0 0.0
    %1378 = vmatpush.msra.mxu0 0.0
    %1379 = vmatpush.msra.mxu0 0.0
    %1380 = vmatpush.msra.mxu0 0.0
    %1381 = vmatpush.msra.mxu0 0.0
    %1382 = vmatpush.msra.mxu0 0.0
    %1383 = vmatpush.msra.mxu0 0.0
    %1384 = vmatpush.msra.mxu0 0.0
    %1385 = vmatpush.msra.mxu0 0.0
    %1386 = vmatpush.msra.mxu0 0.0
    %1387 = vmatpush.msra.mxu0 0.0
    %1388 = vmatpush.msra.mxu0 0.0
    %1389 = vmatpush.msra.mxu0 0.0
    %1390 = vmatpush.msra.mxu0 0.0
    %1391 = vmatpush.msra.mxu0 0.0
    %1392 = vmatpush.msra.mxu0 %v1369
    %1393 = vmatmul.f32.gmra.mxu0 %v1372
    %v1394 = vpop.f32.mrf.mxu0
    %v1395 = vadd.f32 0.0, %v1394
    %1396 = vmatmul.f32.gmra.mxu0 %v1375
    %v1397 = vpop.f32.mrf.mxu0
    %v1398 = vadd.f32 0.0, %v1397
    %1399 = vdwg.mxu0
    %v1400 = vadd.f32 %v1265, %v1395
    %v1401 = vadd.f32 %v1266, %v1398
    %1403 = vrot.lane.b32.xlu0 %v838, 32
    %v1404 = vpop.permute.xlu0 %1403
    %v1406 = vadd.f32 %v1400, %v1404
    %v1407 = vadd.f32 %v1401, %v1404
    %v1408 = vadd.f32 %v830, %v1406
    %v1409 = vadd.f32 %v831, %v1407
    %v1410 = vld [vmem:[%s10 + $0xa] sm:$0x1]
    %v1411 = vld [vmem:[%s10 + $0xb] sm:$0x1]
    %v1412 = vsel %vm52, %v1408, 0.0
    %1413 = vadd.xlane.f32.xlu0 %v1412
    %v1414 = vpop.xlane.xlu0 %1413
    %v1415 = vsel %vm52, %v1409, 0.0
    %1416 = vadd.xlane.f32.xlu0 %v1415
    %v1417 = vpop.xlane.xlu0 %1416
    %v1418 = vmul.f32 %v1414, %v640
    %v1419 = vmul.f32 %v1417, %v640
    %v1420 = vsub.f32 %v1408, %v1418
    %v1421 = vsub.f32 %v1409, %v1419
    %v1422 = vmul.f32 %v1420, %v1420
    %v1423 = vmul.f32 %v1421, %v1421
    %v1424 = vsel %vm52, %v1422, 0.0
    %1425 = vadd.xlane.f32.xlu0 %v1424
    %v1426 = vpop.xlane.xlu0 %1425
    %v1427 = vsel %vm52, %v1423, 0.0
    %1428 = vadd.xlane.f32.xlu0 %v1427
    %v1429 = vpop.xlane.xlu0 %1428
    %v1430 = vmul.f32 %v1426, %v640
    %v1431 = vmul.f32 %v1429, %v640
    %v1432 = vadd.f32 %v1430, 1e-12
    %v1433 = vadd.f32 %v1431, 1e-12
    %v1434 = vrsqrt.pop %v1432
    %v1435 = vmul.f32 %v1434, %v1432
    %v1436 = vmul.f32 %v1435, %v1434
    %v1437 = vmul.f32 0.5, %v1436
    %v1438 = vsub.f32 1.5, %v1437
    %v1439 = vmul.f32 %v1434, %v1438
    %vm1440 = vweird.f32 %v1432
    %vm1441 = vweird.f32 %v1434
    %vm1442 = vmor %vm1440, %vm1441
    %v1443 = vsel %vm1442, %v1434, %v1439
    %v1444 = vrsqrt.pop %v1433
    %v1445 = vmul.f32 %v1444, %v1433
    %v1446 = vmul.f32 %v1445, %v1444
    %v1447 = vmul.f32 0.5, %v1446
    %v1448 = vsub.f32 1.5, %v1447
    %v1449 = vmul.f32 %v1444, %v1448
    %vm1450 = vweird.f32 %v1433
    %vm1451 = vweird.f32 %v1444
    %vm1452 = vmor %vm1450, %vm1451
    %v1453 = vsel %vm1452, %v1444, %v1449
    %v1454 = vmul.f32 %v1420, %v1443
    %v1455 = vmul.f32 %v1421, %v1453
    %v1456 = vperm.slane %v1410, 0
    %v1457 = vmul.f32 %v1454, %v1456
    %v1458 = vmul.f32 %v1455, %v1456
    %v1459 = vperm.slane %v1411, 0
    %v1460 = vadd.f32 %v1457, %v1459
    %v1461 = vadd.f32 %v1458, %v1459
    %s1462 = scalar_lea.vmem %s5, 32
    %v1463 = vld [vmem:[%s1462] sm:$0xff]
    %v1464 = vld [vmem:[%s1462 + $0x8] sm:$0xff]
    %v1465 = vld [vmem:[%s1462 + $0x10] sm:$0xff]
    %v1466 = vld [vmem:[%s1462 + $0x18] sm:$0xff]
    %v1467 = vld [vmem:[%s10 + $0x8] sm:$0x1]
    %v1468 = vperm.slane %v1467, 0
    %v1470 = vsel %vm52, %v1460, 0
    %v1473 = vsel %vm52, %v1461, 0
    %1475 = vmatpush.msra.mxu0 0.0
    %1476 = vmatpush.msra.mxu0 0.0
    %1477 = vmatpush.msra.mxu0 0.0
    %1478 = vmatpush.msra.mxu0 0.0
    %1479 = vmatpush.msra.mxu0 0.0
    %1480 = vmatpush.msra.mxu0 0.0
    %1481 = vmatpush.msra.mxu0 0.0
    %1482 = vmatpush.msra.mxu0 0.0
    %1483 = vmatpush.msra.mxu0 0.0
    %1484 = vmatpush.msra.mxu0 0.0
    %1485 = vmatpush.msra.mxu0 0.0
    %1486 = vmatpush.msra.mxu0 0.0
    %1487 = vmatpush.msra.mxu0 %v1466
    %1488 = vmatpush.msra.mxu0 %v1465
    %1489 = vmatpush.msra.mxu0 %v1464
    %1490 = vmatpush.msra.mxu0 %v1463
    %1491 = vmatmul.f32.gmra.mxu0 %v1470
    %v1492 = vpop.f32.mrf.mxu0
    %v1493 = vadd.f32 %v1468, %v1492
    %1494 = vmatmul.f32.gmra.mxu0 %v1473
    %v1495 = vpop.f32.mrf.mxu0
    %v1496 = vadd.f32 %v1468, %v1495
    %1497 = vdwg.mxu0
    %v1498 = vmul.f32 %v1493, 0.5
    %v1499 = vmul.f32 %v1496, 0.5
    %v1500 = vmul.f32 %v1493, 0.044715
    %v1501 = vmul.f32 %v1496, 0.044715
    %v1502 = vmul.f32 %v1500, %v1493
    %v1503 = vmul.f32 %v1501, %v1496
    %v1504 = vmul.f32 %v1502, %v1493
    %v1505 = vmul.f32 %v1503, %v1496
    %v1506 = vadd.f32 %v1493, %v1504
    %v1507 = vadd.f32 %v1496, %v1505
    %v1508 = vmul.f32 %v1506, 0.7978846
    %v1509 = vmul.f32 %v1507, 0.7978846
    %v1510 = vtanh.pop %v1508
    %v1511 = vtanh.pop %v1509
    %v1512 = vadd.f32 %v1510, 1.0
    %v1513 = vadd.f32 %v1511, 1.0
    %v1514 = vmul.f32 %v1498, %v1512
    %v1515 = vmul.f32 %v1499, %v1513
    %s1516 = scalar_lea.vmem %s6, 64
    %v1517 = vld [vmem:[%s1516] sm:$0xff]
    %v1518 = vld [vmem:[%s1516 + $0x8] sm:$0xff]
    %v1519 = vld [vmem:[%s1516 + $0x10] sm:$0xff]
    %v1520 = vld [vmem:[%s1516 + $0x18] sm:$0xff]
    %v1521 = vld [vmem:[%s1516 + $0x20] sm:$0xff]
    %v1522 = vld [vmem:[%s1516 + $0x28] sm:$0xff]
    %v1523 = vld [vmem:[%s1516 + $0x30] sm:$0xff]
    %v1524 = vld [vmem:[%s1516 + $0x38] sm:$0xff]
    %v1525 = vld [vmem:[%s10 + $0x9] sm:$0x1]
    %v1526 = vperm.slane %v1525, 0
    %v1528 = vsel %vm748, %v1514, 0
    %v1531 = vsel %vm748, %v1515, 0
    %1533 = vmatpush.msra.mxu0 0.0
    %1534 = vmatpush.msra.mxu0 0.0
    %1535 = vmatpush.msra.mxu0 0.0
    %1536 = vmatpush.msra.mxu0 0.0
    %1537 = vmatpush.msra.mxu0 0.0
    %1538 = vmatpush.msra.mxu0 0.0
    %1539 = vmatpush.msra.mxu0 0.0
    %1540 = vmatpush.msra.mxu0 0.0
    %1541 = vmatpush.msra.mxu0 %v1524
    %1542 = vmatpush.msra.mxu0 %v1523
    %1543 = vmatpush.msra.mxu0 %v1522
    %1544 = vmatpush.msra.mxu0 %v1521
    %1545 = vmatpush.msra.mxu0 %v1520
    %1546 = vmatpush.msra.mxu0 %v1519
    %1547 = vmatpush.msra.mxu0 %v1518
    %1548 = vmatpush.msra.mxu0 %v1517
    %1549 = vmatmul.f32.gmra.mxu0 %v1528
    %v1550 = vpop.f32.mrf.mxu0
    %v1551 = vadd.f32 %v1526, %v1550
    %1552 = vmatmul.f32.gmra.mxu0 %v1531
    %v1553 = vpop.f32.mrf.mxu0
    %v1554 = vadd.f32 %v1526, %v1553
    %1555 = vdwg.mxu0
    %v1556 = vadd.f32 %v1460, %v1551
    %v1557 = vadd.f32 %v1461, %v1554
    %v1558 = vld [vmem:[%s10 + $0xc] sm:$0x1]
    %v1559 = vld [vmem:[%s10 + $0xd] sm:$0x1]
    %v1560 = vsel %vm52, %v1556, 0.0
    %1561 = vadd.xlane.f32.xlu0 %v1560
    %v1562 = vpop.xlane.xlu0 %1561
    %v1563 = vsel %vm52, %v1557, 0.0
    %1564 = vadd.xlane.f32.xlu0 %v1563
    %v1565 = vpop.xlane.xlu0 %1564
    %v1566 = vmul.f32 %v1562, %v640
    %v1567 = vmul.f32 %v1565, %v640
    %v1568 = vsub.f32 %v1556, %v1566
    %v1569 = vsub.f32 %v1557, %v1567
    %v1570 = vmul.f32 %v1568, %v1568
    %v1571 = vmul.f32 %v1569, %v1569
    %v1572 = vsel %vm52, %v1570, 0.0
    %1573 = vadd.xlane.f32.xlu0 %v1572
    %v1574 = vpop.xlane.xlu0 %1573
    %v1575 = vsel %vm52, %v1571, 0.0
    %1576 = vadd.xlane.f32.xlu0 %v1575
    %v1577 = vpop.xlane.xlu0 %1576
    %v1578 = vmul.f32 %v1574, %v640
    %v1579 = vmul.f32 %v1577, %v640
    %v1580 = vadd.f32 %v1578, 1e-12
    %v1581 = vadd.f32 %v1579, 1e-12
    %v1582 = vrsqrt.pop %v1580
    %v1583 = vmul.f32 %v1582, %v1580
    %v1584 = vmul.f32 %v1583, %v1582
    %v1585 = vmul.f32 0.5, %v1584
    %v1586 = vsub.f32 1.5, %v1585
    %v1587 = vmul.f32 %v1582, %v1586
    %vm1588 = vweird.f32 %v1580
    %vm1589 = vweird.f32 %v1582
    %vm1590 = vmor %vm1588, %vm1589
    %v1591 = vsel %vm1590, %v1582, %v1587
    %v1592 = vrsqrt.pop %v1581
    %v1593 = vmul.f32 %v1592, %v1581
    %v1594 = vmul.f32 %v1593, %v1592
    %v1595 = vmul.f32 0.5, %v1594
    %v1596 = vsub.f32 1.5, %v1595
    %v1597 = vmul.f32 %v1592, %v1596
    %vm1598 = vweird.f32 %v1581
    %vm1599 = vweird.f32 %v1592
    %vm1600 = vmor %vm1598, %vm1599
    %v1601 = vsel %vm1600, %v1592, %v1597
    %v1602 = vmul.f32 %v1568, %v1591
    %v1603 = vmul.f32 %v1569, %v1601
    %v1604 = vperm.slane %v1558, 0
    %v1605 = vmul.f32 %v1602, %v1604
    %v1606 = vmul.f32 %v1603, %v1604
    %v1607 = vperm.slane %v1559, 0
    %v1608 = vadd.f32 %v1605, %v1607
    %v1609 = vadd.f32 %v1606, %v1607
    %s1610 = scalar_lea.vmem %s4, 64
    %v1611 = vld [vmem:[%s1610] sm:$0xff]
    %v1612 = vld [vmem:[%s1610 + $0x8] sm:$0xff]
    %v1613 = vld [vmem:[%s1610 + $0x10] sm:$0xff]
    %v1614 = vld [vmem:[%s1610 + $0x18] sm:$0xff]
    %v1615 = vld [vmem:[%s10 + $0xe] sm:$0x1]
    %v1616 = vperm.slane %v1615, 0
    %v1618 = vsel %vm52, %v1608, 0
    %v1621 = vsel %vm52, %v1609, 0
    %1623 = vmatpush.msra.mxu0 0.0
    %1624 = vmatpush.msra.mxu0 0.0
    %1625 = vmatpush.msra.mxu0 0.0
    %1626 = vmatpush.msra.mxu0 0.0
    %1627 = vmatpush.msra.mxu0 0.0
    %1628 = vmatpush.msra.mxu0 0.0
    %1629 = vmatpush.msra.mxu0 0.0
    %1630 = vmatpush.msra.mxu0 0.0
    %1631 = vmatpush.msra.mxu0 0.0
    %1632 = vmatpush.msra.mxu0 0.0
    %1633 = vmatpush.msra.mxu0 0.0
    %1634 = vmatpush.msra.mxu0 0.0
    %1635 = vmatpush.msra.mxu0 %v1614
    %1636 = vmatpush.msra.mxu0 %v1613
    %1637 = vmatpush.msra.mxu0 %v1612
    %1638 = vmatpush.msra.mxu0 %v1611
    %1639 = vmatmul.f32.gmra.mxu0 %v1618
    %v1640 = vpop.f32.mrf.mxu0
    %v1641 = vadd.f32 %v1616, %v1640
    %1642 = vmatmul.f32.gmra.mxu0 %v1621
    %v1643 = vpop.f32.mrf.mxu0
    %v1644 = vadd.f32 %v1616, %v1643
    %1645 = vdwg.mxu0
    %1648 = vrot.lane.b32.xlu0 %v1641, 96
    %v1649 = vpop.permute.xlu0 %1648
    %1650 = vrot.lane.b32.xlu0 %v1644, 96
    %v1651 = vpop.permute.xlu0 %1650
    %v1652 = vsel %vm88, %v1641, 0
    %v1654 = vsel %vm88, %v1644, 0
    %v1656 = vsel %vm88, %v1649, 0
    %v1658 = vsel %vm88, %v1651, 0
    %1660 = vmatpush.xpose.msra.mxu0 0.0
    %1661 = vmatpush.xpose.msra.mxu0 0.0
    %1662 = vmatpush.xpose.msra.mxu0 0.0
    %1663 = vmatpush.xpose.msra.mxu0 0.0
    %1664 = vmatpush.xpose.msra.mxu0 0.0
    %1665 = vmatpush.xpose.msra.mxu0 0.0
    %1666 = vmatpush.xpose.msra.mxu0 0.0
    %1667 = vmatpush.xpose.msra.mxu0 0.0
    %1668 = vmatpush.xpose.msra.mxu0 0.0
    %1669 = vmatpush.xpose.msra.mxu0 0.0
    %1670 = vmatpush.xpose.msra.mxu0 0.0
    %1671 = vmatpush.xpose.msra.mxu0 0.0
    %1672 = vmatpush.xpose.msra.mxu0 0.0
    %1673 = vmatpush.xpose.msra.mxu0 0.0
    %1674 = vmatpush.xpose.msra.mxu0 %v1658
    %1675 = vmatpush.xpose.msra.mxu0 %v1656
    %1676 = vmatmul.f32.gmra.mxu0 %v1652
    %v1677 = vpop.f32.mrf.mxu0
    %v1678 = vadd.f32 0.0, %v1677
    %1679 = vmatmul.f32.gmra.mxu0 %v1654
    %v1680 = vpop.f32.mrf.mxu0
    %v1681 = vadd.f32 0.0, %v1680
    %1682 = vdwg.mxu0
    %v1683 = vmul.f32 %v1678, 0.35355338
    %v1684 = vmul.f32 %v1681, 0.35355338
    %v1685 = vadd.f32 %v1683, %v39
    %v1686 = vadd.f32 %v1684, %v40
    %v1687 = vsel %vm124, %v1685, -inf
    %1688 = vmax.xlane.f32.xlu0 %v1687
    %v1689 = vpop.xlane.xlu0 %1688
    %v1690 = vsel %vm124, %v1686, -inf
    %1691 = vmax.xlane.f32.xlu0 %v1690
    %v1692 = vpop.xlane.xlu0 %1691
    %v1693 = vsub.f32 %v1685, %v1689
    %v1694 = vsub.f32 %v1686, %v1692
    %v1695 = vmul.f32 %v1693, 1.442695
    %v1696 = vpow.pop %v1695
    %v1697 = vmul.f32 %v1694, 1.442695
    %v1698 = vpow.pop %v1697
    %v1699 = vsel %vm124, %v1696, 0.0
    %1700 = vadd.xlane.f32.xlu0 %v1699
    %v1701 = vpop.xlane.xlu0 %1700
    %v1702 = vsel %vm124, %v1698, 0.0
    %1703 = vadd.xlane.f32.xlu0 %v1702
    %v1704 = vpop.xlane.xlu0 %1703
    %v1705 = vrcp.pop %v1701
    %v1706 = vrcp.pop %v1704
    %v1707 = vmul.f32 %v1696, %v1705
    %v1708 = vmul.f32 %v1698, %v1706
    %1709 = vrot.lane.b32.xlu0 %v1641, 64
    %v1710 = vpop.permute.xlu0 %1709
    %1711 = vrot.lane.b32.xlu0 %v1644, 64
    %v1712 = vpop.permute.xlu0 %1711
    %v1716 = vsel %vm124, %v1707, 0
    %v1719 = vsel %vm124, %v1708, 0
    %1721 = vmatpush.msra.mxu0 0.0
    %1722 = vmatpush.msra.mxu0 0.0
    %1723 = vmatpush.msra.mxu0 0.0
    %1724 = vmatpush.msra.mxu0 0.0
    %1725 = vmatpush.msra.mxu0 0.0
    %1726 = vmatpush.msra.mxu0 0.0
    %1727 = vmatpush.msra.mxu0 0.0
    %1728 = vmatpush.msra.mxu0 0.0
    %1729 = vmatpush.msra.mxu0 0.0
    %1730 = vmatpush.msra.mxu0 0.0
    %1731 = vmatpush.msra.mxu0 0.0
    %1732 = vmatpush.msra.mxu0 0.0
    %1733 = vmatpush.msra.mxu0 0.0
    %1734 = vmatpush.msra.mxu0 0.0
    %1735 = vmatpush.msra.mxu0 %v1712
    %1736 = vmatpush.msra.mxu0 %v1710
    %1737 = vmatmul.f32.gmra.mxu0 %v1716
    %v1738 = vpop.f32.mrf.mxu0
    %v1739 = vadd.f32 0.0, %v1738
    %1740 = vmatmul.f32.gmra.mxu0 %v1719
    %v1741 = vpop.f32.mrf.mxu0
    %v1742 = vadd.f32 0.0, %v1741
    %1743 = vdwg.mxu0
    %1744 = vrot.lane.b32.xlu0 %v1641, 120
    %v1745 = vpop.permute.xlu0 %1744
    %1746 = vrot.lane.b32.xlu0 %v1644, 120
    %v1747 = vpop.permute.xlu0 %1746
    %1748 = vrot.lane.b32.xlu0 %v1641, 88
    %v1749 = vpop.permute.xlu0 %1748
    %1750 = vrot.lane.b32.xlu0 %v1644, 88
    %v1751 = vpop.permute.xlu0 %1750
    %v1752 = vsel %vm88, %v1745, 0
    %v1754 = vsel %vm88, %v1747, 0
    %v1756 = vsel %vm88, %v1749, 0
    %v1758 = vsel %vm88, %v1751, 0
    %1760 = vmatpush.xpose.msra.mxu0 0.0
    %1761 = vmatpush.xpose.msra.mxu0 0.0
    %1762 = vmatpush.xpose.msra.mxu0 0.0
    %1763 = vmatpush.xpose.msra.mxu0 0.0
    %1764 = vmatpush.xpose.msra.mxu0 0.0
    %1765 = vmatpush.xpose.msra.mxu0 0.0
    %1766 = vmatpush.xpose.msra.mxu0 0.0
    %1767 = vmatpush.xpose.msra.mxu0 0.0
    %1768 = vmatpush.xpose.msra.mxu0 0.0
    %1769 = vmatpush.xpose.msra.mxu0 0.0
    %1770 = vmatpush.xpose.msra.mxu0 0.0
    %1771 = vmatpush.xpose.msra.mxu0 0.0
    %1772 = vmatpush.xpose.msra.mxu0 0.0
    %1773 = vmatpush.xpose.msra.mxu0 0.0
    %1774 = vmatpush.xpose.msra.mxu0 %v1758
    %1775 = vmatpush.xpose.msra.mxu0 %v1756
    %1776 = vmatmul.f32.gmra.mxu0 %v1752
    %v1777 = vpop.f32.mrf.mxu0
    %v1778 = vadd.f32 0.0, %v1777
    %1779 = vmatmul.f32.gmra.mxu0 %v1754
    %v1780 = vpop.f32.mrf.mxu0
    %v1781 = vadd.f32 0.0, %v1780
    %1782 = vdwg.mxu0
    %v1783 = vmul.f32 %v1778, 0.35355338
    %v1784 = vmul.f32 %v1781, 0.35355338
    %v1785 = vadd.f32 %v1783, %v39
    %v1786 = vadd.f32 %v1784, %v40
    %v1787 = vsel %vm124, %v1785, -inf
    %1788 = vmax.xlane.f32.xlu0 %v1787
    %v1789 = vpop.xlane.xlu0 %1788
    %v1790 = vsel %vm124, %v1786, -inf
    %1791 = vmax.xlane.f32.xlu0 %v1790
    %v1792 = vpop.xlane.xlu0 %1791
    %v1793 = vsub.f32 %v1785, %v1789
    %v1794 = vsub.f32 %v1786, %v1792
    %v1795 = vmul.f32 %v1793, 1.442695
    %v1796 = vpow.pop %v1795
    %v1797 = vmul.f32 %v1794, 1.442695
    %v1798 = vpow.pop %v1797
    %v1799 = vsel %vm124, %v1796, 0.0
    %1800 = vadd.xlane.f32.xlu0 %v1799
    %v1801 = vpop.xlane.xlu0 %1800
    %v1802 = vsel %vm124, %v1798, 0.0
    %1803 = vadd.xlane.f32.xlu0 %v1802
    %v1804 = vpop.xlane.xlu0 %1803
    %v1805 = vrcp.pop %v1801
    %v1806 = vrcp.pop %v1804
    %v1807 = vmul.f32 %v1796, %v1805
    %v1808 = vmul.f32 %v1798, %v1806
    %1809 = vrot.lane.b32.xlu0 %v1641, 56
    %v1810 = vpop.permute.xlu0 %1809
    %1811 = vrot.lane.b32.xlu0 %v1644, 56
    %v1812 = vpop.permute.xlu0 %1811
    %v1816 = vsel %vm124, %v1807, 0
    %v1819 = vsel %vm124, %v1808, 0
    %1821 = vmatpush.msra.mxu0 0.0
    %1822 = vmatpush.msra.mxu0 0.0
    %1823 = vmatpush.msra.mxu0 0.0
    %1824 = vmatpush.msra.mxu0 0.0
    %1825 = vmatpush.msra.mxu0 0.0
    %1826 = vmatpush.msra.mxu0 0.0
    %1827 = vmatpush.msra.mxu0 0.0
    %1828 = vmatpush.msra.mxu0 0.0
    %1829 = vmatpush.msra.mxu0 0.0
    %1830 = vmatpush.msra.mxu0 0.0
    %1831 = vmatpush.msra.mxu0 0.0
    %1832 = vmatpush.msra.mxu0 0.0
    %1833 = vmatpush.msra.mxu0 0.0
    %1834 = vmatpush.msra.mxu0 0.0
    %1835 = vmatpush.msra.mxu0 %v1812
    %1836 = vmatpush.msra.mxu0 %v1810
    %1837 = vmatmul.f32.gmra.mxu0 %v1816
    %v1838 = vpop.f32.mrf.mxu0
    %v1839 = vadd.f32 0.0, %v1838
    %1840 = vmatmul.f32.gmra.mxu0 %v1819
    %v1841 = vpop.f32.mrf.mxu0
    %v1842 = vadd.f32 0.0, %v1841
    %1843 = vdwg.mxu0
    %1845 = vrot.lane.b32.xlu0 %v1612, 32
    %v1846 = vpop.permute.xlu0 %1845
    %v1849 = vsel %vm88, %v1839, 0
    %v1852 = vsel %vm88, %v1842, 0
    %1854 = vmatpush.msra.mxu0 0.0
    %1855 = vmatpush.msra.mxu0 0.0
    %1856 = vmatpush.msra.mxu0 0.0
    %1857 = vmatpush.msra.mxu0 0.0
    %1858 = vmatpush.msra.mxu0 0.0
    %1859 = vmatpush.msra.mxu0 0.0
    %1860 = vmatpush.msra.mxu0 0.0
    %1861 = vmatpush.msra.mxu0 0.0
    %1862 = vmatpush.msra.mxu0 0.0
    %1863 = vmatpush.msra.mxu0 0.0
    %1864 = vmatpush.msra.mxu0 0.0
    %1865 = vmatpush.msra.mxu0 0.0
    %1866 = vmatpush.msra.mxu0 0.0
    %1867 = vmatpush.msra.mxu0 0.0
    %1868 = vmatpush.msra.mxu0 0.0
    %1869 = vmatpush.msra.mxu0 %v1846
    %1870 = vmatmul.f32.gmra.mxu0 %v1849
    %v1871 = vpop.f32.mrf.mxu0
    %v1872 = vadd.f32 0.0, %v1871
    %1873 = vmatmul.f32.gmra.mxu0 %v1852
    %v1874 = vpop.f32.mrf.mxu0
    %v1875 = vadd.f32 0.0, %v1874
    %1876 = vdwg.mxu0
    %1878 = vrot.lane.b32.xlu0 %v1611, 32
    %v1879 = vpop.permute.xlu0 %1878
    %v1882 = vsel %vm88, %v1739, 0
    %v1885 = vsel %vm88, %v1742, 0
    %1887 = vmatpush.msra.mxu0 0.0
    %1888 = vmatpush.msra.mxu0 0.0
    %1889 = vmatpush.msra.mxu0 0.0
    %1890 = vmatpush.msra.mxu0 0.0
    %1891 = vmatpush.msra.mxu0 0.0
    %1892 = vmatpush.msra.mxu0 0.0
    %1893 = vmatpush.msra.mxu0 0.0
    %1894 = vmatpush.msra.mxu0 0.0
    %1895 = vmatpush.msra.mxu0 0.0
    %1896 = vmatpush.msra.mxu0 0.0
    %1897 = vmatpush.msra.mxu0 0.0
    %1898 = vmatpush.msra.mxu0 0.0
    %1899 = vmatpush.msra.mxu0 0.0
    %1900 = vmatpush.msra.mxu0 0.0
    %1901 = vmatpush.msra.mxu0 0.0
    %1902 = vmatpush.msra.mxu0 %v1879
    %1903 = vmatmul.f32.gmra.mxu0 %v1882
    %v1904 = vpop.f32.mrf.mxu0
    %v1905 = vadd.f32 %v1872, %v1904
    %1906 = vmatmul.f32.gmra.mxu0 %v1885
    %v1907 = vpop.f32.mrf.mxu0
    %v1908 = vadd.f32 %v1875, %v1907
    %1909 = vdwg.mxu0
    %1910 = vrot.lane.b32.xlu0 %v1641, 112
    %v1911 = vpop.permute.xlu0 %1910
    %1912 = vrot.lane.b32.xlu0 %v1644, 112
    %v1913 = vpop.permute.xlu0 %1912
    %1914 = vrot.lane.b32.xlu0 %v1641, 80
    %v1915 = vpop.permute.xlu0 %1914
    %1916 = vrot.lane.b32.xlu0 %v1644, 80
    %v1917 = vpop.permute.xlu0 %1916
    %v1918 = vsel %vm88, %v1911, 0
    %v1920 = vsel %vm88, %v1913, 0
    %v1922 = vsel %vm88, %v1915, 0
    %v1924 = vsel %vm88, %v1917, 0
    %1926 = vmatpush.xpose.msra.mxu0 0.0
    %1927 = vmatpush.xpose.msra.mxu0 0.0
    %1928 = vmatpush.xpose.msra.mxu0 0.0
    %1929 = vmatpush.xpose.msra.mxu0 0.0
    %1930 = vmatpush.xpose.msra.mxu0 0.0
    %1931 = vmatpush.xpose.msra.mxu0 0.0
    %1932 = vmatpush.xpose.msra.mxu0 0.0
    %1933 = vmatpush.xpose.msra.mxu0 0.0
    %1934 = vmatpush.xpose.msra.mxu0 0.0
    %1935 = vmatpush.xpose.msra.mxu0 0.0
    %1936 = vmatpush.xpose.msra.mxu0 0.0
    %1937 = vmatpush.xpose.msra.mxu0 0.0
    %1938 = vmatpush.xpose.msra.mxu0 0.0
    %1939 = vmatpush.xpose.msra.mxu0 0.0
    %1940 = vmatpush.xpose.msra.mxu0 %v1924
    %1941 = vmatpush.xpose.msra.mxu0 %v1922
    %1942 = vmatmul.f32.gmra.mxu0 %v1918
    %v1943 = vpop.f32.mrf.mxu0
    %v1944 = vadd.f32 0.0, %v1943
    %1945 = vmatmul.f32.gmra.mxu0 %v1920
    %v1946 = vpop.f32.mrf.mxu0
    %v1947 = vadd.f32 0.0, %v1946
    %1948 = vdwg.mxu0
    %v1949 = vmul.f32 %v1944, 0.35355338
    %v1950 = vmul.f32 %v1947, 0.35355338
    %v1951 = vadd.f32 %v1949, %v39
    %v1952 = vadd.f32 %v1950, %v40
    %v1953 = vsel %vm124, %v1951, -inf
    %1954 = vmax.xlane.f32.xlu0 %v1953
    %v1955 = vpop.xlane.xlu0 %1954
    %v1956 = vsel %vm124, %v1952, -inf
    %1957 = vmax.xlane.f32.xlu0 %v1956
    %v1958 = vpop.xlane.xlu0 %1957
    %v1959 = vsub.f32 %v1951, %v1955
    %v1960 = vsub.f32 %v1952, %v1958
    %v1961 = vmul.f32 %v1959, 1.442695
    %v1962 = vpow.pop %v1961
    %v1963 = vmul.f32 %v1960, 1.442695
    %v1964 = vpow.pop %v1963
    %v1965 = vsel %vm124, %v1962, 0.0
    %1966 = vadd.xlane.f32.xlu0 %v1965
    %v1967 = vpop.xlane.xlu0 %1966
    %v1968 = vsel %vm124, %v1964, 0.0
    %1969 = vadd.xlane.f32.xlu0 %v1968
    %v1970 = vpop.xlane.xlu0 %1969
    %v1971 = vrcp.pop %v1967
    %v1972 = vrcp.pop %v1970
    %v1973 = vmul.f32 %v1962, %v1971
    %v1974 = vmul.f32 %v1964, %v1972
    %1975 = vrot.lane.b32.xlu0 %v1641, 48
    %v1976 = vpop.permute.xlu0 %1975
    %1977 = vrot.lane.b32.xlu0 %v1644, 48
    %v1978 = vpop.permute.xlu0 %1977
    %v1982 = vsel %vm124, %v1973, 0
    %v1985 = vsel %vm124, %v1974, 0
    %1987 = vmatpush.msra.mxu0 0.0
    %1988 = vmatpush.msra.mxu0 0.0
    %1989 = vmatpush.msra.mxu0 0.0
    %1990 = vmatpush.msra.mxu0 0.0
    %1991 = vmatpush.msra.mxu0 0.0
    %1992 = vmatpush.msra.mxu0 0.0
    %1993 = vmatpush.msra.mxu0 0.0
    %1994 = vmatpush.msra.mxu0 0.0
    %1995 = vmatpush.msra.mxu0 0.0
    %1996 = vmatpush.msra.mxu0 0.0
    %1997 = vmatpush.msra.mxu0 0.0
    %1998 = vmatpush.msra.mxu0 0.0
    %1999 = vmatpush.msra.mxu0 0.0
    %2000 = vmatpush.msra.mxu0 0.0
    %2001 = vmatpush.msra.mxu0 %v1978
    %2002 = vmatpush.msra.mxu0 %v1976
    %2003 = vmatmul.f32.gmra.mxu0 %v1982
    %v2004 = vpop.f32.mrf.mxu0
    %v2005 = vadd.f32 0.0, %v2004
    %2006 = vmatmul.f32.gmra.mxu0 %v1985
    %v2007 = vpop.f32.mrf.mxu0
    %v2008 = vadd.f32 0.0, %v2007
    %2009 = vdwg.mxu0
    %2011 = vrot.lane.b32.xlu0 %v1613, 32
    %v2012 = vpop.permute.xlu0 %2011
    %v2015 = vsel %vm88, %v2005, 0
    %v2018 = vsel %vm88, %v2008, 0
    %2020 = vmatpush.msra.mxu0 0.0
    %2021 = vmatpush.msra.mxu0 0.0
    %2022 = vmatpush.msra.mxu0 0.0
    %2023 = vmatpush.msra.mxu0 0.0
    %2024 = vmatpush.msra.mxu0 0.0
    %2025 = vmatpush.msra.mxu0 0.0
    %2026 = vmatpush.msra.mxu0 0.0
    %2027 = vmatpush.msra.mxu0 0.0
    %2028 = vmatpush.msra.mxu0 0.0
    %2029 = vmatpush.msra.mxu0 0.0
    %2030 = vmatpush.msra.mxu0 0.0
    %2031 = vmatpush.msra.mxu0 0.0
    %2032 = vmatpush.msra.mxu0 0.0
    %2033 = vmatpush.msra.mxu0 0.0
    %2034 = vmatpush.msra.mxu0 0.0
    %2035 = vmatpush.msra.mxu0 %v2012
    %2036 = vmatmul.f32.gmra.mxu0 %v2015
    %v2037 = vpop.f32.mrf.mxu0
    %v2038 = vadd.f32 0.0, %v2037
    %2039 = vmatmul.f32.gmra.mxu0 %v2018
    %v2040 = vpop.f32.mrf.mxu0
    %v2041 = vadd.f32 0.0, %v2040
    %2042 = vdwg.mxu0
    %v2043 = vadd.f32 %v1905, %v2038
    %v2044 = vadd.f32 %v1908, %v2041
    %2045 = vrot.lane.b32.xlu0 %v1641, 104
    %v2046 = vpop.permute.xlu0 %2045
    %2047 = vrot.lane.b32.xlu0 %v1644, 104
    %v2048 = vpop.permute.xlu0 %2047
    %2049 = vrot.lane.b32.xlu0 %v1641, 72
    %v2050 = vpop.permute.xlu0 %2049
    %2051 = vrot.lane.b32.xlu0 %v1644, 72
    %v2052 = vpop.permute.xlu0 %2051
    %v2053 = vsel %vm88, %v2046, 0
    %v2055 = vsel %vm88, %v2048, 0
    %v2057 = vsel %vm88, %v2050, 0
    %v2059 = vsel %vm88, %v2052, 0
    %2061 = vmatpush.xpose.msra.mxu0 0.0
    %2062 = vmatpush.xpose.msra.mxu0 0.0
    %2063 = vmatpush.xpose.msra.mxu0 0.0
    %2064 = vmatpush.xpose.msra.mxu0 0.0
    %2065 = vmatpush.xpose.msra.mxu0 0.0
    %2066 = vmatpush.xpose.msra.mxu0 0.0
    %2067 = vmatpush.xpose.msra.mxu0 0.0
    %2068 = vmatpush.xpose.msra.mxu0 0.0
    %2069 = vmatpush.xpose.msra.mxu0 0.0
    %2070 = vmatpush.xpose.msra.mxu0 0.0
    %2071 = vmatpush.xpose.msra.mxu0 0.0
    %2072 = vmatpush.xpose.msra.mxu0 0.0
    %2073 = vmatpush.xpose.msra.mxu0 0.0
    %2074 = vmatpush.xpose.msra.mxu0 0.0
    %2075 = vmatpush.xpose.msra.mxu0 %v2059
    %2076 = vmatpush.xpose.msra.mxu0 %v2057
    %2077 = vmatmul.f32.gmra.mxu0 %v2053
    %v2078 = vpop.f32.mrf.mxu0
    %v2079 = vadd.f32 0.0, %v2078
    %2080 = vmatmul.f32.gmra.mxu0 %v2055
    %v2081 = vpop.f32.mrf.mxu0
    %v2082 = vadd.f32 0.0, %v2081
    %2083 = vdwg.mxu0
    %v2084 = vmul.f32 %v2079, 0.35355338
    %v2085 = vmul.f32 %v2082, 0.35355338
    %v2086 = vadd.f32 %v2084, %v39
    %v2087 = vadd.f32 %v2085, %v40
    %v2088 = vsel %vm124, %v2086, -inf
    %2089 = vmax.xlane.f32.xlu0 %v2088
    %v2090 = vpop.xlane.xlu0 %2089
    %v2091 = vsel %vm124, %v2087, -inf
    %2092 = vmax.xlane.f32.xlu0 %v2091
    %v2093 = vpop.xlane.xlu0 %2092
    %v2094 = vsub.f32 %v2086, %v2090
    %v2095 = vsub.f32 %v2087, %v2093
    %v2096 = vmul.f32 %v2094, 1.442695
    %v2097 = vpow.pop %v2096
    %v2098 = vmul.f32 %v2095, 1.442695
    %v2099 = vpow.pop %v2098
    %v2100 = vsel %vm124, %v2097, 0.0
    %2101 = vadd.xlane.f32.xlu0 %v2100
    %v2102 = vpop.xlane.xlu0 %2101
    %v2103 = vsel %vm124, %v2099, 0.0
    %2104 = vadd.xlane.f32.xlu0 %v2103
    %v2105 = vpop.xlane.xlu0 %2104
    %v2106 = vrcp.pop %v2102
    %v2107 = vrcp.pop %v2105
    %v2108 = vmul.f32 %v2097, %v2106
    %v2109 = vmul.f32 %v2099, %v2107
    %2110 = vrot.lane.b32.xlu0 %v1641, 40
    %v2111 = vpop.permute.xlu0 %2110
    %2112 = vrot.lane.b32.xlu0 %v1644, 40
    %v2113 = vpop.permute.xlu0 %2112
    %v2117 = vsel %vm124, %v2108, 0
    %v2120 = vsel %vm124, %v2109, 0
    %2122 = vmatpush.msra.mxu0 0.0
    %2123 = vmatpush.msra.mxu0 0.0
    %2124 = vmatpush.msra.mxu0 0.0
    %2125 = vmatpush.msra.mxu0 0.0
    %2126 = vmatpush.msra.mxu0 0.0
    %2127 = vmatpush.msra.mxu0 0.0
    %2128 = vmatpush.msra.mxu0 0.0
    %2129 = vmatpush.msra.mxu0 0.0
    %2130 = vmatpush.msra.mxu0 0.0
    %2131 = vmatpush.msra.mxu0 0.0
    %2132 = vmatpush.msra.mxu0 0.0
    %2133 = vmatpush.msra.mxu0 0.0
    %2134 = vmatpush.msra.mxu0 0.0
    %2135 = vmatpush.msra.mxu0 0.0
    %2136 = vmatpush.msra.mxu0 %v2113
    %2137 = vmatpush.msra.mxu0 %v2111
    %2138 = vmatmul.f32.gmra.mxu0 %v2117
    %v2139 = vpop.f32.mrf.mxu0
    %v2140 = vadd.f32 0.0, %v2139
    %2141 = vmatmul.f32.gmra.mxu0 %v2120
    %v2142 = vpop.f32.mrf.mxu0
    %v2143 = vadd.f32 0.0, %v2142
    %2144 = vdwg.mxu0
    %2146 = vrot.lane.b32.xlu0 %v1614, 32
    %v2147 = vpop.permute.xlu0 %2146
    %v2150 = vsel %vm88, %v2140, 0
    %v2153 = vsel %vm88, %v2143, 0
    %2155 = vmatpush.msra.mxu0 0.0
    %2156 = vmatpush.msra.mxu0 0.0
    %2157 = vmatpush.msra.mxu0 0.0
    %2158 = vmatpush.msra.mxu0 0.0
    %2159 = vmatpush.msra.mxu0 0.0
    %2160 = vmatpush.msra.mxu0 0.0
    %2161 = vmatpush.msra.mxu0 0.0
    %2162 = vmatpush.msra.mxu0 0.0
    %2163 = vmatpush.msra.mxu0 0.0
    %2164 = vmatpush.msra.mxu0 0.0
    %2165 = vmatpush.msra.mxu0 0.0
    %2166 = vmatpush.msra.mxu0 0.0
    %2167 = vmatpush.msra.mxu0 0.0
    %2168 = vmatpush.msra.mxu0 0.0
    %2169 = vmatpush.msra.mxu0 0.0
    %2170 = vmatpush.msra.mxu0 %v2147
    %2171 = vmatmul.f32.gmra.mxu0 %v2150
    %v2172 = vpop.f32.mrf.mxu0
    %v2173 = vadd.f32 0.0, %v2172
    %2174 = vmatmul.f32.gmra.mxu0 %v2153
    %v2175 = vpop.f32.mrf.mxu0
    %v2176 = vadd.f32 0.0, %v2175
    %2177 = vdwg.mxu0
    %v2178 = vadd.f32 %v2043, %v2173
    %v2179 = vadd.f32 %v2044, %v2176
    %2181 = vrot.lane.b32.xlu0 %v1616, 32
    %v2182 = vpop.permute.xlu0 %2181
    %v2184 = vadd.f32 %v2178, %v2182
    %v2185 = vadd.f32 %v2179, %v2182
    %v2186 = vadd.f32 %v1608, %v2184
    %v2187 = vadd.f32 %v1609, %v2185
    %v2188 = vld [vmem:[%s10 + $0x11] sm:$0x1]
    %v2189 = vld [vmem:[%s10 + $0x12] sm:$0x1]
    %v2190 = vsel %vm52, %v2186, 0.0
    %2191 = vadd.xlane.f32.xlu0 %v2190
    %v2192 = vpop.xlane.xlu0 %2191
    %v2193 = vsel %vm52, %v2187, 0.0
    %2194 = vadd.xlane.f32.xlu0 %v2193
    %v2195 = vpop.xlane.xlu0 %2194
    %v2196 = vmul.f32 %v2192, %v640
    %v2197 = vmul.f32 %v2195, %v640
    %v2198 = vsub.f32 %v2186, %v2196
    %v2199 = vsub.f32 %v2187, %v2197
    %v2200 = vmul.f32 %v2198, %v2198
    %v2201 = vmul.f32 %v2199, %v2199
    %v2202 = vsel %vm52, %v2200, 0.0
    %2203 = vadd.xlane.f32.xlu0 %v2202
    %v2204 = vpop.xlane.xlu0 %2203
    %v2205 = vsel %vm52, %v2201, 0.0
    %2206 = vadd.xlane.f32.xlu0 %v2205
    %v2207 = vpop.xlane.xlu0 %2206
    %v2208 = vmul.f32 %v2204, %v640
    %v2209 = vmul.f32 %v2207, %v640
    %v2210 = vadd.f32 %v2208, 1e-12
    %v2211 = vadd.f32 %v2209, 1e-12
    %v2212 = vrsqrt.pop %v2210
    %v2213 = vmul.f32 %v2212, %v2210
    %v2214 = vmul.f32 %v2213, %v2212
    %v2215 = vmul.f32 0.5, %v2214
    %v2216 = vsub.f32 1.5, %v2215
    %v2217 = vmul.f32 %v2212, %v2216
    %vm2218 = vweird.f32 %v2210
    %vm2219 = vweird.f32 %v2212
    %vm2220 = vmor %vm2218, %vm2219
    %v2221 = vsel %vm2220, %v2212, %v2217
    %v2222 = vrsqrt.pop %v2211
    %v2223 = vmul.f32 %v2222, %v2211
    %v2224 = vmul.f32 %v2223, %v2222
    %v2225 = vmul.f32 0.5, %v2224
    %v2226 = vsub.f32 1.5, %v2225
    %v2227 = vmul.f32 %v2222, %v2226
    %vm2228 = vweird.f32 %v2211
    %vm2229 = vweird.f32 %v2222
    %vm2230 = vmor %vm2228, %vm2229
    %v2231 = vsel %vm2230, %v2222, %v2227
    %v2232 = vmul.f32 %v2198, %v2221
    %v2233 = vmul.f32 %v2199, %v2231
    %v2234 = vperm.slane %v2188, 0
    %v2235 = vmul.f32 %v2232, %v2234
    %v2236 = vmul.f32 %v2233, %v2234
    %v2237 = vperm.slane %v2189, 0
    %v2238 = vadd.f32 %v2235, %v2237
    %v2239 = vadd.f32 %v2236, %v2237
    %s2240 = scalar_lea.vmem %s5, 64
    %v2241 = vld [vmem:[%s2240] sm:$0xff]
    %v2242 = vld [vmem:[%s2240 + $0x8] sm:$0xff]
    %v2243 = vld [vmem:[%s2240 + $0x10] sm:$0xff]
    %v2244 = vld [vmem:[%s2240 + $0x18] sm:$0xff]
    %v2245 = vld [vmem:[%s10 + $0xf] sm:$0x1]
    %v2246 = vperm.slane %v2245, 0
    %v2248 = vsel %vm52, %v2238, 0
    %v2251 = vsel %vm52, %v2239, 0
    %2253 = vmatpush.msra.mxu0 0.0
    %2254 = vmatpush.msra.mxu0 0.0
    %2255 = vmatpush.msra.mxu0 0.0
    %2256 = vmatpush.msra.mxu0 0.0
    %2257 = vmatpush.msra.mxu0 0.0
    %2258 = vmatpush.msra.mxu0 0.0
    %2259 = vmatpush.msra.mxu0 0.0
    %2260 = vmatpush.msra.mxu0 0.0
    %2261 = vmatpush.msra.mxu0 0.0
    %2262 = vmatpush.msra.mxu0 0.0
    %2263 = vmatpush.msra.mxu0 0.0
    %2264 = vmatpush.msra.mxu0 0.0
    %2265 = vmatpush.msra.mxu0 %v2244
    %2266 = vmatpush.msra.mxu0 %v2243
    %2267 = vmatpush.msra.mxu0 %v2242
    %2268 = vmatpush.msra.mxu0 %v2241
    %2269 = vmatmul.f32.gmra.mxu0 %v2248
    %v2270 = vpop.f32.mrf.mxu0
    %v2271 = vadd.f32 %v2246, %v2270
    %2272 = vmatmul.f32.gmra.mxu0 %v2251
    %v2273 = vpop.f32.mrf.mxu0
    %v2274 = vadd.f32 %v2246, %v2273
    %2275 = vdwg.mxu0
    %v2276 = vmul.f32 %v2271, 0.5
    %v2277 = vmul.f32 %v2274, 0.5
    %v2278 = vmul.f32 %v2271, 0.044715
    %v2279 = vmul.f32 %v2274, 0.044715
    %v2280 = vmul.f32 %v2278, %v2271
    %v2281 = vmul.f32 %v2279, %v2274
    %v2282 = vmul.f32 %v2280, %v2271
    %v2283 = vmul.f32 %v2281, %v2274
    %v2284 = vadd.f32 %v2271, %v2282
    %v2285 = vadd.f32 %v2274, %v2283
    %v2286 = vmul.f32 %v2284, 0.7978846
    %v2287 = vmul.f32 %v2285, 0.7978846
    %v2288 = vtanh.pop %v2286
    %v2289 = vtanh.pop %v2287
    %v2290 = vadd.f32 %v2288, 1.0
    %v2291 = vadd.f32 %v2289, 1.0
    %v2292 = vmul.f32 %v2276, %v2290
    %v2293 = vmul.f32 %v2277, %v2291
    %s2294 = scalar_lea.vmem %s6, 128
    %v2295 = vld [vmem:[%s2294] sm:$0xff]
    %v2296 = vld [vmem:[%s2294 + $0x8] sm:$0xff]
    %v2297 = vld [vmem:[%s2294 + $0x10] sm:$0xff]
    %v2298 = vld [vmem:[%s2294 + $0x18] sm:$0xff]
    %v2299 = vld [vmem:[%s2294 + $0x20] sm:$0xff]
    %v2300 = vld [vmem:[%s2294 + $0x28] sm:$0xff]
    %v2301 = vld [vmem:[%s2294 + $0x30] sm:$0xff]
    %v2302 = vld [vmem:[%s2294 + $0x38] sm:$0xff]
    %v2303 = vld [vmem:[%s10 + $0x10] sm:$0x1]
    %v2304 = vperm.slane %v2303, 0
    %v2306 = vsel %vm748, %v2292, 0
    %v2309 = vsel %vm748, %v2293, 0
    %2311 = vmatpush.msra.mxu0 0.0
    %2312 = vmatpush.msra.mxu0 0.0
    %2313 = vmatpush.msra.mxu0 0.0
    %2314 = vmatpush.msra.mxu0 0.0
    %2315 = vmatpush.msra.mxu0 0.0
    %2316 = vmatpush.msra.mxu0 0.0
    %2317 = vmatpush.msra.mxu0 0.0
    %2318 = vmatpush.msra.mxu0 0.0
    %2319 = vmatpush.msra.mxu0 %v2302
    %2320 = vmatpush.msra.mxu0 %v2301
    %2321 = vmatpush.msra.mxu0 %v2300
    %2322 = vmatpush.msra.mxu0 %v2299
    %2323 = vmatpush.msra.mxu0 %v2298
    %2324 = vmatpush.msra.mxu0 %v2297
    %2325 = vmatpush.msra.mxu0 %v2296
    %2326 = vmatpush.msra.mxu0 %v2295
    %2327 = vmatmul.f32.gmra.mxu0 %v2306
    %v2328 = vpop.f32.mrf.mxu0
    %v2329 = vadd.f32 %v2304, %v2328
    %2330 = vmatmul.f32.gmra.mxu0 %v2309
    %v2331 = vpop.f32.mrf.mxu0
    %v2332 = vadd.f32 %v2304, %v2331
    %2333 = vdwg.mxu0
    %v2334 = vadd.f32 %v2238, %v2329
    %v2335 = vadd.f32 %v2239, %v2332
    %v2336 = vld [vmem:[%s10 + $0x13] sm:$0x1]
    %v2337 = vld [vmem:[%s10 + $0x14] sm:$0x1]
    %v2338 = vsel %vm52, %v2334, 0.0
    %2339 = vadd.xlane.f32.xlu0 %v2338
    %v2340 = vpop.xlane.xlu0 %2339
    %v2341 = vsel %vm52, %v2335, 0.0
    %2342 = vadd.xlane.f32.xlu0 %v2341
    %v2343 = vpop.xlane.xlu0 %2342
    %v2344 = vmul.f32 %v2340, %v640
    %v2345 = vmul.f32 %v2343, %v640
    %v2346 = vsub.f32 %v2334, %v2344
    %v2347 = vsub.f32 %v2335, %v2345
    %v2348 = vmul.f32 %v2346, %v2346
    %v2349 = vmul.f32 %v2347, %v2347
    %v2350 = vsel %vm52, %v2348, 0.0
    %2351 = vadd.xlane.f32.xlu0 %v2350
    %v2352 = vpop.xlane.xlu0 %2351
    %v2353 = vsel %vm52, %v2349, 0.0
    %2354 = vadd.xlane.f32.xlu0 %v2353
    %v2355 = vpop.xlane.xlu0 %2354
    %v2356 = vmul.f32 %v2352, %v640
    %v2357 = vmul.f32 %v2355, %v640
    %v2358 = vadd.f32 %v2356, 1e-12
    %v2359 = vadd.f32 %v2357, 1e-12
    %v2360 = vrsqrt.pop %v2358
    %v2361 = vmul.f32 %v2360, %v2358
    %v2362 = vmul.f32 %v2361, %v2360
    %v2363 = vmul.f32 0.5, %v2362
    %v2364 = vsub.f32 1.5, %v2363
    %v2365 = vmul.f32 %v2360, %v2364
    %vm2366 = vweird.f32 %v2358
    %vm2367 = vweird.f32 %v2360
    %vm2368 = vmor %vm2366, %vm2367
    %v2369 = vsel %vm2368, %v2360, %v2365
    %v2370 = vrsqrt.pop %v2359
    %v2371 = vmul.f32 %v2370, %v2359
    %v2372 = vmul.f32 %v2371, %v2370
    %v2373 = vmul.f32 0.5, %v2372
    %v2374 = vsub.f32 1.5, %v2373
    %v2375 = vmul.f32 %v2370, %v2374
    %vm2376 = vweird.f32 %v2359
    %vm2377 = vweird.f32 %v2370
    %vm2378 = vmor %vm2376, %vm2377
    %v2379 = vsel %vm2378, %v2370, %v2375
    %v2380 = vmul.f32 %v2346, %v2369
    %v2381 = vmul.f32 %v2347, %v2379
    %v2382 = vperm.slane %v2336, 0
    %v2383 = vmul.f32 %v2380, %v2382
    %v2384 = vmul.f32 %v2381, %v2382
    %v2385 = vperm.slane %v2337, 0
    %v2386 = vadd.f32 %v2383, %v2385
    %v2387 = vadd.f32 %v2384, %v2385
    %s2388 = scalar_lea.vmem %s4, 96
    %v2389 = vld [vmem:[%s2388] sm:$0xff]
    %v2390 = vld [vmem:[%s2388 + $0x8] sm:$0xff]
    %v2391 = vld [vmem:[%s2388 + $0x10] sm:$0xff]
    %v2392 = vld [vmem:[%s2388 + $0x18] sm:$0xff]
    %v2393 = vld [vmem:[%s10 + $0x15] sm:$0x1]
    %v2394 = vperm.slane %v2393, 0
    %v2396 = vsel %vm52, %v2386, 0
    %v2399 = vsel %vm52, %v2387, 0
    %2401 = vmatpush.msra.mxu0 0.0
    %2402 = vmatpush.msra.mxu0 0.0
    %2403 = vmatpush.msra.mxu0 0.0
    %2404 = vmatpush.msra.mxu0 0.0
    %2405 = vmatpush.msra.mxu0 0.0
    %2406 = vmatpush.msra.mxu0 0.0
    %2407 = vmatpush.msra.mxu0 0.0
    %2408 = vmatpush.msra.mxu0 0.0
    %2409 = vmatpush.msra.mxu0 0.0
    %2410 = vmatpush.msra.mxu0 0.0
    %2411 = vmatpush.msra.mxu0 0.0
    %2412 = vmatpush.msra.mxu0 0.0
    %2413 = vmatpush.msra.mxu0 %v2392
    %2414 = vmatpush.msra.mxu0 %v2391
    %2415 = vmatpush.msra.mxu0 %v2390
    %2416 = vmatpush.msra.mxu0 %v2389
    %2417 = vmatmul.f32.gmra.mxu0 %v2396
    %v2418 = vpop.f32.mrf.mxu0
    %v2419 = vadd.f32 %v2394, %v2418
    %2420 = vmatmul.f32.gmra.mxu0 %v2399
    %v2421 = vpop.f32.mrf.mxu0
    %v2422 = vadd.f32 %v2394, %v2421
    %2423 = vdwg.mxu0
    %2426 = vrot.lane.b32.xlu0 %v2419, 96
    %v2427 = vpop.permute.xlu0 %2426
    %2428 = vrot.lane.b32.xlu0 %v2422, 96
    %v2429 = vpop.permute.xlu0 %2428
    %v2430 = vsel %vm88, %v2419, 0
    %v2432 = vsel %vm88, %v2422, 0
    %v2434 = vsel %vm88, %v2427, 0
    %v2436 = vsel %vm88, %v2429, 0
    %2438 = vmatpush.xpose.msra.mxu0 0.0
    %2439 = vmatpush.xpose.msra.mxu0 0.0
    %2440 = vmatpush.xpose.msra.mxu0 0.0
    %2441 = vmatpush.xpose.msra.mxu0 0.0
    %2442 = vmatpush.xpose.msra.mxu0 0.0
    %2443 = vmatpush.xpose.msra.mxu0 0.0
    %2444 = vmatpush.xpose.msra.mxu0 0.0
    %2445 = vmatpush.xpose.msra.mxu0 0.0
    %2446 = vmatpush.xpose.msra.mxu0 0.0
    %2447 = vmatpush.xpose.msra.mxu0 0.0
    %2448 = vmatpush.xpose.msra.mxu0 0.0
    %2449 = vmatpush.xpose.msra.mxu0 0.0
    %2450 = vmatpush.xpose.msra.mxu0 0.0
    %2451 = vmatpush.xpose.msra.mxu0 0.0
    %2452 = vmatpush.xpose.msra.mxu0 %v2436
    %2453 = vmatpush.xpose.msra.mxu0 %v2434
    %2454 = vmatmul.f32.gmra.mxu0 %v2430
    %v2455 = vpop.f32.mrf.mxu0
    %v2456 = vadd.f32 0.0, %v2455
    %2457 = vmatmul.f32.gmra.mxu0 %v2432
    %v2458 = vpop.f32.mrf.mxu0
    %v2459 = vadd.f32 0.0, %v2458
    %2460 = vdwg.mxu0
    %v2461 = vmul.f32 %v2456, 0.35355338
    %v2462 = vmul.f32 %v2459, 0.35355338
    %v2463 = vadd.f32 %v2461, %v39
    %v2464 = vadd.f32 %v2462, %v40
    %v2465 = vsel %vm124, %v2463, -inf
    %2466 = vmax.xlane.f32.xlu0 %v2465
    %v2467 = vpop.xlane.xlu0 %2466
    %v2468 = vsel %vm124, %v2464, -inf
    %2469 = vmax.xlane.f32.xlu0 %v2468
    %v2470 = vpop.xlane.xlu0 %2469
    %v2471 = vsub.f32 %v2463, %v2467
    %v2472 = vsub.f32 %v2464, %v2470
    %v2473 = vmul.f32 %v2471, 1.442695
    %v2474 = vpow.pop %v2473
    %v2475 = vmul.f32 %v2472, 1.442695
    %v2476 = vpow.pop %v2475
    %v2477 = vsel %vm124, %v2474, 0.0
    %2478 = vadd.xlane.f32.xlu0 %v2477
    %v2479 = vpop.xlane.xlu0 %2478
    %v2480 = vsel %vm124, %v2476, 0.0
    %2481 = vadd.xlane.f32.xlu0 %v2480
    %v2482 = vpop.xlane.xlu0 %2481
    %v2483 = vrcp.pop %v2479
    %v2484 = vrcp.pop %v2482
    %v2485 = vmul.f32 %v2474, %v2483
    %v2486 = vmul.f32 %v2476, %v2484
    %2487 = vrot.lane.b32.xlu0 %v2419, 64
    %v2488 = vpop.permute.xlu0 %2487
    %2489 = vrot.lane.b32.xlu0 %v2422, 64
    %v2490 = vpop.permute.xlu0 %2489
    %v2494 = vsel %vm124, %v2485, 0
    %v2497 = vsel %vm124, %v2486, 0
    %2499 = vmatpush.msra.mxu0 0.0
    %2500 = vmatpush.msra.mxu0 0.0
    %2501 = vmatpush.msra.mxu0 0.0
    %2502 = vmatpush.msra.mxu0 0.0
    %2503 = vmatpush.msra.mxu0 0.0
    %2504 = vmatpush.msra.mxu0 0.0
    %2505 = vmatpush.msra.mxu0 0.0
    %2506 = vmatpush.msra.mxu0 0.0
    %2507 = vmatpush.msra.mxu0 0.0
    %2508 = vmatpush.msra.mxu0 0.0
    %2509 = vmatpush.msra.mxu0 0.0
    %2510 = vmatpush.msra.mxu0 0.0
    %2511 = vmatpush.msra.mxu0 0.0
    %2512 = vmatpush.msra.mxu0 0.0
    %2513 = vmatpush.msra.mxu0 %v2490
    %2514 = vmatpush.msra.mxu0 %v2488
    %2515 = vmatmul.f32.gmra.mxu0 %v2494
    %v2516 = vpop.f32.mrf.mxu0
    %v2517 = vadd.f32 0.0, %v2516
    %2518 = vmatmul.f32.gmra.mxu0 %v2497
    %v2519 = vpop.f32.mrf.mxu0
    %v2520 = vadd.f32 0.0, %v2519
    %2521 = vdwg.mxu0
    %2522 = vrot.lane.b32.xlu0 %v2419, 120
    %v2523 = vpop.permute.xlu0 %2522
    %2524 = vrot.lane.b32.xlu0 %v2422, 120
    %v2525 = vpop.permute.xlu0 %2524
    %2526 = vrot.lane.b32.xlu0 %v2419, 88
    %v2527 = vpop.permute.xlu0 %2526
    %2528 = vrot.lane.b32.xlu0 %v2422, 88
    %v2529 = vpop.permute.xlu0 %2528
    %v2530 = vsel %vm88, %v2523, 0
    %v2532 = vsel %vm88, %v2525, 0
    %v2534 = vsel %vm88, %v2527, 0
    %v2536 = vsel %vm88, %v2529, 0
    %2538 = vmatpush.xpose.msra.mxu0 0.0
    %2539 = vmatpush.xpose.msra.mxu0 0.0
    %2540 = vmatpush.xpose.msra.mxu0 0.0
    %2541 = vmatpush.xpose.msra.mxu0 0.0
    %2542 = vmatpush.xpose.msra.mxu0 0.0
    %2543 = vmatpush.xpose.msra.mxu0 0.0
    %2544 = vmatpush.xpose.msra.mxu0 0.0
    %2545 = vmatpush.xpose.msra.mxu0 0.0
    %2546 = vmatpush.xpose.msra.mxu0 0.0
    %2547 = vmatpush.xpose.msra.mxu0 0.0
    %2548 = vmatpush.xpose.msra.mxu0 0.0
    %2549 = vmatpush.xpose.msra.mxu0 0.0
    %2550 = vmatpush.xpose.msra.mxu0 0.0
    %2551 = vmatpush.xpose.msra.mxu0 0.0
    %2552 = vmatpush.xpose.msra.mxu0 %v2536
    %2553 = vmatpush.xpose.msra.mxu0 %v2534
    %2554 = vmatmul.f32.gmra.mxu0 %v2530
    %v2555 = vpop.f32.mrf.mxu0
    %v2556 = vadd.f32 0.0, %v2555
    %2557 = vmatmul.f32.gmra.mxu0 %v2532
    %v2558 = vpop.f32.mrf.mxu0
    %v2559 = vadd.f32 0.0, %v2558
    %2560 = vdwg.mxu0
    %v2561 = vmul.f32 %v2556, 0.35355338
    %v2562 = vmul.f32 %v2559, 0.35355338
    %v2563 = vadd.f32 %v2561, %v39
    %v2564 = vadd.f32 %v2562, %v40
    %v2565 = vsel %vm124, %v2563, -inf
    %2566 = vmax.xlane.f32.xlu0 %v2565
    %v2567 = vpop.xlane.xlu0 %2566
    %v2568 = vsel %vm124, %v2564, -inf
    %2569 = vmax.xlane.f32.xlu0 %v2568
    %v2570 = vpop.xlane.xlu0 %2569
    %v2571 = vsub.f32 %v2563, %v2567
    %v2572 = vsub.f32 %v2564, %v2570
    %v2573 = vmul.f32 %v2571, 1.442695
    %v2574 = vpow.pop %v2573
    %v2575 = vmul.f32 %v2572, 1.442695
    %v2576 = vpow.pop %v2575
    %v2577 = vsel %vm124, %v2574, 0.0
    %2578 = vadd.xlane.f32.xlu0 %v2577
    %v2579 = vpop.xlane.xlu0 %2578
    %v2580 = vsel %vm124, %v2576, 0.0
    %2581 = vadd.xlane.f32.xlu0 %v2580
    %v2582 = vpop.xlane.xlu0 %2581
    %v2583 = vrcp.pop %v2579
    %v2584 = vrcp.pop %v2582
    %v2585 = vmul.f32 %v2574, %v2583
    %v2586 = vmul.f32 %v2576, %v2584
    %2587 = vrot.lane.b32.xlu0 %v2419, 56
    %v2588 = vpop.permute.xlu0 %2587
    %2589 = vrot.lane.b32.xlu0 %v2422, 56
    %v2590 = vpop.permute.xlu0 %2589
    %v2594 = vsel %vm124, %v2585, 0
    %v2597 = vsel %vm124, %v2586, 0
    %2599 = vmatpush.msra.mxu0 0.0
    %2600 = vmatpush.msra.mxu0 0.0
    %2601 = vmatpush.msra.mxu0 0.0
    %2602 = vmatpush.msra.mxu0 0.0
    %2603 = vmatpush.msra.mxu0 0.0
    %2604 = vmatpush.msra.mxu0 0.0
    %2605 = vmatpush.msra.mxu0 0.0
    %2606 = vmatpush.msra.mxu0 0.0
    %2607 = vmatpush.msra.mxu0 0.0
    %2608 = vmatpush.msra.mxu0 0.0
    %2609 = vmatpush.msra.mxu0 0.0
    %2610 = vmatpush.msra.mxu0 0.0
    %2611 = vmatpush.msra.mxu0 0.0
    %2612 = vmatpush.msra.mxu0 0.0
    %2613 = vmatpush.msra.mxu0 %v2590
    %2614 = vmatpush.msra.mxu0 %v2588
    %2615 = vmatmul.f32.gmra.mxu0 %v2594
    %v2616 = vpop.f32.mrf.mxu0
    %v2617 = vadd.f32 0.0, %v2616
    %2618 = vmatmul.f32.gmra.mxu0 %v2597
    %v2619 = vpop.f32.mrf.mxu0
    %v2620 = vadd.f32 0.0, %v2619
    %2621 = vdwg.mxu0
    %2623 = vrot.lane.b32.xlu0 %v2390, 32
    %v2624 = vpop.permute.xlu0 %2623
    %v2627 = vsel %vm88, %v2617, 0
    %v2630 = vsel %vm88, %v2620, 0
    %2632 = vmatpush.msra.mxu0 0.0
    %2633 = vmatpush.msra.mxu0 0.0
    %2634 = vmatpush.msra.mxu0 0.0
    %2635 = vmatpush.msra.mxu0 0.0
    %2636 = vmatpush.msra.mxu0 0.0
    %2637 = vmatpush.msra.mxu0 0.0
    %2638 = vmatpush.msra.mxu0 0.0
    %2639 = vmatpush.msra.mxu0 0.0
    %2640 = vmatpush.msra.mxu0 0.0
    %2641 = vmatpush.msra.mxu0 0.0
    %2642 = vmatpush.msra.mxu0 0.0
    %2643 = vmatpush.msra.mxu0 0.0
    %2644 = vmatpush.msra.mxu0 0.0
    %2645 = vmatpush.msra.mxu0 0.0
    %2646 = vmatpush.msra.mxu0 0.0
    %2647 = vmatpush.msra.mxu0 %v2624
    %2648 = vmatmul.f32.gmra.mxu0 %v2627
    %v2649 = vpop.f32.mrf.mxu0
    %v2650 = vadd.f32 0.0, %v2649
    %2651 = vmatmul.f32.gmra.mxu0 %v2630
    %v2652 = vpop.f32.mrf.mxu0
    %v2653 = vadd.f32 0.0, %v2652
    %2654 = vdwg.mxu0
    %2656 = vrot.lane.b32.xlu0 %v2389, 32
    %v2657 = vpop.permute.xlu0 %2656
    %v2660 = vsel %vm88, %v2517, 0
    %v2663 = vsel %vm88, %v2520, 0
    %2665 = vmatpush.msra.mxu0 0.0
    %2666 = vmatpush.msra.mxu0 0.0
    %2667 = vmatpush.msra.mxu0 0.0
    %2668 = vmatpush.msra.mxu0 0.0
    %2669 = vmatpush.msra.mxu0 0.0
    %2670 = vmatpush.msra.mxu0 0.0
    %2671 = vmatpush.msra.mxu0 0.0
    %2672 = vmatpush.msra.mxu0 0.0
    %2673 = vmatpush.msra.mxu0 0.0
    %2674 = vmatpush.msra.mxu0 0.0
    %2675 = vmatpush.msra.mxu0 0.0
    %2676 = vmatpush.msra.mxu0 0.0
    %2677 = vmatpush.msra.mxu0 0.0
    %2678 = vmatpush.msra.mxu0 0.0
    %2679 = vmatpush.msra.mxu0 0.0
    %2680 = vmatpush.msra.mxu0 %v2657
    %2681 = vmatmul.f32.gmra.mxu0 %v2660
    %v2682 = vpop.f32.mrf.mxu0
    %v2683 = vadd.f32 %v2650, %v2682
    %2684 = vmatmul.f32.gmra.mxu0 %v2663
    %v2685 = vpop.f32.mrf.mxu0
    %v2686 = vadd.f32 %v2653, %v2685
    %2687 = vdwg.mxu0
    %2688 = vrot.lane.b32.xlu0 %v2419, 112
    %v2689 = vpop.permute.xlu0 %2688
    %2690 = vrot.lane.b32.xlu0 %v2422, 112
    %v2691 = vpop.permute.xlu0 %2690
    %2692 = vrot.lane.b32.xlu0 %v2419, 80
    %v2693 = vpop.permute.xlu0 %2692
    %2694 = vrot.lane.b32.xlu0 %v2422, 80
    %v2695 = vpop.permute.xlu0 %2694
    %v2696 = vsel %vm88, %v2689, 0
    %v2698 = vsel %vm88, %v2691, 0
    %v2700 = vsel %vm88, %v2693, 0
    %v2702 = vsel %vm88, %v2695, 0
    %2704 = vmatpush.xpose.msra.mxu0 0.0
    %2705 = vmatpush.xpose.msra.mxu0 0.0
    %2706 = vmatpush.xpose.msra.mxu0 0.0
    %2707 = vmatpush.xpose.msra.mxu0 0.0
    %2708 = vmatpush.xpose.msra.mxu0 0.0
    %2709 = vmatpush.xpose.msra.mxu0 0.0
    %2710 = vmatpush.xpose.msra.mxu0 0.0
    %2711 = vmatpush.xpose.msra.mxu0 0.0
    %2712 = vmatpush.xpose.msra.mxu0 0.0
    %2713 = vmatpush.xpose.msra.mxu0 0.0
    %2714 = vmatpush.xpose.msra.mxu0 0.0
    %2715 = vmatpush.xpose.msra.mxu0 0.0
    %2716 = vmatpush.xpose.msra.mxu0 0.0
    %2717 = vmatpush.xpose.msra.mxu0 0.0
    %2718 = vmatpush.xpose.msra.mxu0 %v2702
    %2719 = vmatpush.xpose.msra.mxu0 %v2700
    %2720 = vmatmul.f32.gmra.mxu0 %v2696
    %v2721 = vpop.f32.mrf.mxu0
    %v2722 = vadd.f32 0.0, %v2721
    %2723 = vmatmul.f32.gmra.mxu0 %v2698
    %v2724 = vpop.f32.mrf.mxu0
    %v2725 = vadd.f32 0.0, %v2724
    %2726 = vdwg.mxu0
    %v2727 = vmul.f32 %v2722, 0.35355338
    %v2728 = vmul.f32 %v2725, 0.35355338
    %v2729 = vadd.f32 %v2727, %v39
    %v2730 = vadd.f32 %v2728, %v40
    %v2731 = vsel %vm124, %v2729, -inf
    %2732 = vmax.xlane.f32.xlu0 %v2731
    %v2733 = vpop.xlane.xlu0 %2732
    %v2734 = vsel %vm124, %v2730, -inf
    %2735 = vmax.xlane.f32.xlu0 %v2734
    %v2736 = vpop.xlane.xlu0 %2735
    %v2737 = vsub.f32 %v2729, %v2733
    %v2738 = vsub.f32 %v2730, %v2736
    %v2739 = vmul.f32 %v2737, 1.442695
    %v2740 = vpow.pop %v2739
    %v2741 = vmul.f32 %v2738, 1.442695
    %v2742 = vpow.pop %v2741
    %v2743 = vsel %vm124, %v2740, 0.0
    %2744 = vadd.xlane.f32.xlu0 %v2743
    %v2745 = vpop.xlane.xlu0 %2744
    %v2746 = vsel %vm124, %v2742, 0.0
    %2747 = vadd.xlane.f32.xlu0 %v2746
    %v2748 = vpop.xlane.xlu0 %2747
    %v2749 = vrcp.pop %v2745
    %v2750 = vrcp.pop %v2748
    %v2751 = vmul.f32 %v2740, %v2749
    %v2752 = vmul.f32 %v2742, %v2750
    %2753 = vrot.lane.b32.xlu0 %v2419, 48
    %v2754 = vpop.permute.xlu0 %2753
    %2755 = vrot.lane.b32.xlu0 %v2422, 48
    %v2756 = vpop.permute.xlu0 %2755
    %v2760 = vsel %vm124, %v2751, 0
    %v2763 = vsel %vm124, %v2752, 0
    %2765 = vmatpush.msra.mxu0 0.0
    %2766 = vmatpush.msra.mxu0 0.0
    %2767 = vmatpush.msra.mxu0 0.0
    %2768 = vmatpush.msra.mxu0 0.0
    %2769 = vmatpush.msra.mxu0 0.0
    %2770 = vmatpush.msra.mxu0 0.0
    %2771 = vmatpush.msra.mxu0 0.0
    %2772 = vmatpush.msra.mxu0 0.0
    %2773 = vmatpush.msra.mxu0 0.0
    %2774 = vmatpush.msra.mxu0 0.0
    %2775 = vmatpush.msra.mxu0 0.0
    %2776 = vmatpush.msra.mxu0 0.0
    %2777 = vmatpush.msra.mxu0 0.0
    %2778 = vmatpush.msra.mxu0 0.0
    %2779 = vmatpush.msra.mxu0 %v2756
    %2780 = vmatpush.msra.mxu0 %v2754
    %2781 = vmatmul.f32.gmra.mxu0 %v2760
    %v2782 = vpop.f32.mrf.mxu0
    %v2783 = vadd.f32 0.0, %v2782
    %2784 = vmatmul.f32.gmra.mxu0 %v2763
    %v2785 = vpop.f32.mrf.mxu0
    %v2786 = vadd.f32 0.0, %v2785
    %2787 = vdwg.mxu0
    %2789 = vrot.lane.b32.xlu0 %v2391, 32
    %v2790 = vpop.permute.xlu0 %2789
    %v2793 = vsel %vm88, %v2783, 0
    %v2796 = vsel %vm88, %v2786, 0
    %2798 = vmatpush.msra.mxu0 0.0
    %2799 = vmatpush.msra.mxu0 0.0
    %2800 = vmatpush.msra.mxu0 0.0
    %2801 = vmatpush.msra.mxu0 0.0
    %2802 = vmatpush.msra.mxu0 0.0
    %2803 = vmatpush.msra.mxu0 0.0
    %2804 = vmatpush.msra.mxu0 0.0
    %2805 = vmatpush.msra.mxu0 0.0
    %2806 = vmatpush.msra.mxu0 0.0
    %2807 = vmatpush.msra.mxu0 0.0
    %2808 = vmatpush.msra.mxu0 0.0
    %2809 = vmatpush.msra.mxu0 0.0
    %2810 = vmatpush.msra.mxu0 0.0
    %2811 = vmatpush.msra.mxu0 0.0
    %2812 = vmatpush.msra.mxu0 0.0
    %2813 = vmatpush.msra.mxu0 %v2790
    %2814 = vmatmul.f32.gmra.mxu0 %v2793
    %v2815 = vpop.f32.mrf.mxu0
    %v2816 = vadd.f32 0.0, %v2815
    %2817 = vmatmul.f32.gmra.mxu0 %v2796
    %v2818 = vpop.f32.mrf.mxu0
    %v2819 = vadd.f32 0.0, %v2818
    %2820 = vdwg.mxu0
    %v2821 = vadd.f32 %v2683, %v2816
    %v2822 = vadd.f32 %v2686, %v2819
    %2823 = vrot.lane.b32.xlu0 %v2419, 104
    %v2824 = vpop.permute.xlu0 %2823
    %2825 = vrot.lane.b32.xlu0 %v2422, 104
    %v2826 = vpop.permute.xlu0 %2825
    %2827 = vrot.lane.b32.xlu0 %v2419, 72
    %v2828 = vpop.permute.xlu0 %2827
    %2829 = vrot.lane.b32.xlu0 %v2422, 72
    %v2830 = vpop.permute.xlu0 %2829
    %v2831 = vsel %vm88, %v2824, 0
    %v2833 = vsel %vm88, %v2826, 0
    %v2835 = vsel %vm88, %v2828, 0
    %v2837 = vsel %vm88, %v2830, 0
    %2839 = vmatpush.xpose.msra.mxu0 0.0
    %2840 = vmatpush.xpose.msra.mxu0 0.0
    %2841 = vmatpush.xpose.msra.mxu0 0.0
    %2842 = vmatpush.xpose.msra.mxu0 0.0
    %2843 = vmatpush.xpose.msra.mxu0 0.0
    %2844 = vmatpush.xpose.msra.mxu0 0.0
    %2845 = vmatpush.xpose.msra.mxu0 0.0
    %2846 = vmatpush.xpose.msra.mxu0 0.0
    %2847 = vmatpush.xpose.msra.mxu0 0.0
    %2848 = vmatpush.xpose.msra.mxu0 0.0
    %2849 = vmatpush.xpose.msra.mxu0 0.0
    %2850 = vmatpush.xpose.msra.mxu0 0.0
    %2851 = vmatpush.xpose.msra.mxu0 0.0
    %2852 = vmatpush.xpose.msra.mxu0 0.0
    %2853 = vmatpush.xpose.msra.mxu0 %v2837
    %2854 = vmatpush.xpose.msra.mxu0 %v2835
    %2855 = vmatmul.f32.gmra.mxu0 %v2831
    %v2856 = vpop.f32.mrf.mxu0
    %v2857 = vadd.f32 0.0, %v2856
    %2858 = vmatmul.f32.gmra.mxu0 %v2833
    %v2859 = vpop.f32.mrf.mxu0
    %v2860 = vadd.f32 0.0, %v2859
    %2861 = vdwg.mxu0
    %v2862 = vmul.f32 %v2857, 0.35355338
    %v2863 = vmul.f32 %v2860, 0.35355338
    %v2864 = vadd.f32 %v2862, %v39
    %v2865 = vadd.f32 %v2863, %v40
    %v2866 = vsel %vm124, %v2864, -inf
    %2867 = vmax.xlane.f32.xlu0 %v2866
    %v2868 = vpop.xlane.xlu0 %2867
    %v2869 = vsel %vm124, %v2865, -inf
    %2870 = vmax.xlane.f32.xlu0 %v2869
    %v2871 = vpop.xlane.xlu0 %2870
    %v2872 = vsub.f32 %v2864, %v2868
    %v2873 = vsub.f32 %v2865, %v2871
    %v2874 = vmul.f32 %v2872, 1.442695
    %v2875 = vpow.pop %v2874
    %v2876 = vmul.f32 %v2873, 1.442695
    %v2877 = vpow.pop %v2876
    %v2878 = vsel %vm124, %v2875, 0.0
    %2879 = vadd.xlane.f32.xlu0 %v2878
    %v2880 = vpop.xlane.xlu0 %2879
    %v2881 = vsel %vm124, %v2877, 0.0
    %2882 = vadd.xlane.f32.xlu0 %v2881
    %v2883 = vpop.xlane.xlu0 %2882
    %v2884 = vrcp.pop %v2880
    %v2885 = vrcp.pop %v2883
    %v2886 = vmul.f32 %v2875, %v2884
    %v2887 = vmul.f32 %v2877, %v2885
    %2888 = vrot.lane.b32.xlu0 %v2419, 40
    %v2889 = vpop.permute.xlu0 %2888
    %2890 = vrot.lane.b32.xlu0 %v2422, 40
    %v2891 = vpop.permute.xlu0 %2890
    %v2895 = vsel %vm124, %v2886, 0
    %v2898 = vsel %vm124, %v2887, 0
    %2900 = vmatpush.msra.mxu0 0.0
    %2901 = vmatpush.msra.mxu0 0.0
    %2902 = vmatpush.msra.mxu0 0.0
    %2903 = vmatpush.msra.mxu0 0.0
    %2904 = vmatpush.msra.mxu0 0.0
    %2905 = vmatpush.msra.mxu0 0.0
    %2906 = vmatpush.msra.mxu0 0.0
    %2907 = vmatpush.msra.mxu0 0.0
    %2908 = vmatpush.msra.mxu0 0.0
    %2909 = vmatpush.msra.mxu0 0.0
    %2910 = vmatpush.msra.mxu0 0.0
    %2911 = vmatpush.msra.mxu0 0.0
    %2912 = vmatpush.msra.mxu0 0.0
    %2913 = vmatpush.msra.mxu0 0.0
    %2914 = vmatpush.msra.mxu0 %v2891
    %2915 = vmatpush.msra.mxu0 %v2889
    %2916 = vmatmul.f32.gmra.mxu0 %v2895
    %v2917 = vpop.f32.mrf.mxu0
    %v2918 = vadd.f32 0.0, %v2917
    %2919 = vmatmul.f32.gmra.mxu0 %v2898
    %v2920 = vpop.f32.mrf.mxu0
    %v2921 = vadd.f32 0.0, %v2920
    %2922 = vdwg.mxu0
    %2924 = vrot.lane.b32.xlu0 %v2392, 32
    %v2925 = vpop.permute.xlu0 %2924
    %v2928 = vsel %vm88, %v2918, 0
    %v2931 = vsel %vm88, %v2921, 0
    %2933 = vmatpush.msra.mxu0 0.0
    %2934 = vmatpush.msra.mxu0 0.0
    %2935 = vmatpush.msra.mxu0 0.0
    %2936 = vmatpush.msra.mxu0 0.0
    %2937 = vmatpush.msra.mxu0 0.0
    %2938 = vmatpush.msra.mxu0 0.0
    %2939 = vmatpush.msra.mxu0 0.0
    %2940 = vmatpush.msra.mxu0 0.0
    %2941 = vmatpush.msra.mxu0 0.0
    %2942 = vmatpush.msra.mxu0 0.0
    %2943 = vmatpush.msra.mxu0 0.0
    %2944 = vmatpush.msra.mxu0 0.0
    %2945 = vmatpush.msra.mxu0 0.0
    %2946 = vmatpush.msra.mxu0 0.0
    %2947 = vmatpush.msra.mxu0 0.0
    %2948 = vmatpush.msra.mxu0 %v2925
    %2949 = vmatmul.f32.gmra.mxu0 %v2928
    %v2950 = vpop.f32.mrf.mxu0
    %v2951 = vadd.f32 0.0, %v2950
    %2952 = vmatmul.f32.gmra.mxu0 %v2931
    %v2953 = vpop.f32.mrf.mxu0
    %v2954 = vadd.f32 0.0, %v2953
    %2955 = vdwg.mxu0
    %v2956 = vadd.f32 %v2821, %v2951
    %v2957 = vadd.f32 %v2822, %v2954
    %2959 = vrot.lane.b32.xlu0 %v2394, 32
    %v2960 = vpop.permute.xlu0 %2959
    %v2962 = vadd.f32 %v2956, %v2960
    %v2963 = vadd.f32 %v2957, %v2960
    %v2964 = vadd.f32 %v2386, %v2962
    %v2965 = vadd.f32 %v2387, %v2963
    %v2966 = vld [vmem:[%s10 + $0x18] sm:$0x1]
    %v2967 = vld [vmem:[%s10 + $0x19] sm:$0x1]
    %v2968 = vsel %vm52, %v2964, 0.0
    %2969 = vadd.xlane.f32.xlu0 %v2968
    %v2970 = vpop.xlane.xlu0 %2969
    %v2971 = vsel %vm52, %v2965, 0.0
    %2972 = vadd.xlane.f32.xlu0 %v2971
    %v2973 = vpop.xlane.xlu0 %2972
    %v2974 = vmul.f32 %v2970, %v640
    %v2975 = vmul.f32 %v2973, %v640
    %v2976 = vsub.f32 %v2964, %v2974
    %v2977 = vsub.f32 %v2965, %v2975
    %v2978 = vmul.f32 %v2976, %v2976
    %v2979 = vmul.f32 %v2977, %v2977
    %v2980 = vsel %vm52, %v2978, 0.0
    %2981 = vadd.xlane.f32.xlu0 %v2980
    %v2982 = vpop.xlane.xlu0 %2981
    %v2983 = vsel %vm52, %v2979, 0.0
    %2984 = vadd.xlane.f32.xlu0 %v2983
    %v2985 = vpop.xlane.xlu0 %2984
    %v2986 = vmul.f32 %v2982, %v640
    %v2987 = vmul.f32 %v2985, %v640
    %v2988 = vadd.f32 %v2986, 1e-12
    %v2989 = vadd.f32 %v2987, 1e-12
    %v2990 = vrsqrt.pop %v2988
    %v2991 = vmul.f32 %v2990, %v2988
    %v2992 = vmul.f32 %v2991, %v2990
    %v2993 = vmul.f32 0.5, %v2992
    %v2994 = vsub.f32 1.5, %v2993
    %v2995 = vmul.f32 %v2990, %v2994
    %vm2996 = vweird.f32 %v2988
    %vm2997 = vweird.f32 %v2990
    %vm2998 = vmor %vm2996, %vm2997
    %v2999 = vsel %vm2998, %v2990, %v2995
    %v3000 = vrsqrt.pop %v2989
    %v3001 = vmul.f32 %v3000, %v2989
    %v3002 = vmul.f32 %v3001, %v3000
    %v3003 = vmul.f32 0.5, %v3002
    %v3004 = vsub.f32 1.5, %v3003
    %v3005 = vmul.f32 %v3000, %v3004
    %vm3006 = vweird.f32 %v2989
    %vm3007 = vweird.f32 %v3000
    %vm3008 = vmor %vm3006, %vm3007
    %v3009 = vsel %vm3008, %v3000, %v3005
    %v3010 = vmul.f32 %v2976, %v2999
    %v3011 = vmul.f32 %v2977, %v3009
    %v3012 = vperm.slane %v2966, 0
    %v3013 = vmul.f32 %v3010, %v3012
    %v3014 = vmul.f32 %v3011, %v3012
    %v3015 = vperm.slane %v2967, 0
    %v3016 = vadd.f32 %v3013, %v3015
    %v3017 = vadd.f32 %v3014, %v3015
    %s3018 = scalar_lea.vmem %s5, 96
    %v3019 = vld [vmem:[%s3018] sm:$0xff]
    %v3020 = vld [vmem:[%s3018 + $0x8] sm:$0xff]
    %v3021 = vld [vmem:[%s3018 + $0x10] sm:$0xff]
    %v3022 = vld [vmem:[%s3018 + $0x18] sm:$0xff]
    %v3023 = vld [vmem:[%s10 + $0x16] sm:$0x1]
    %v3024 = vperm.slane %v3023, 0
    %v3026 = vsel %vm52, %v3016, 0
    %v3029 = vsel %vm52, %v3017, 0
    %3031 = vmatpush.msra.mxu0 0.0
    %3032 = vmatpush.msra.mxu0 0.0
    %3033 = vmatpush.msra.mxu0 0.0
    %3034 = vmatpush.msra.mxu0 0.0
    %3035 = vmatpush.msra.mxu0 0.0
    %3036 = vmatpush.msra.mxu0 0.0
    %3037 = vmatpush.msra.mxu0 0.0
    %3038 = vmatpush.msra.mxu0 0.0
    %3039 = vmatpush.msra.mxu0 0.0
    %3040 = vmatpush.msra.mxu0 0.0
    %3041 = vmatpush.msra.mxu0 0.0
    %3042 = vmatpush.msra.mxu0 0.0
    %3043 = vmatpush.msra.mxu0 %v3022
    %3044 = vmatpush.msra.mxu0 %v3021
    %3045 = vmatpush.msra.mxu0 %v3020
    %3046 = vmatpush.msra.mxu0 %v3019
    %3047 = vmatmul.f32.gmra.mxu0 %v3026
    %v3048 = vpop.f32.mrf.mxu0
    %v3049 = vadd.f32 %v3024, %v3048
    %3050 = vmatmul.f32.gmra.mxu0 %v3029
    %v3051 = vpop.f32.mrf.mxu0
    %v3052 = vadd.f32 %v3024, %v3051
    %3053 = vdwg.mxu0
    %v3054 = vmul.f32 %v3049, 0.5
    %v3055 = vmul.f32 %v3052, 0.5
    %v3056 = vmul.f32 %v3049, 0.044715
    %v3057 = vmul.f32 %v3052, 0.044715
    %v3058 = vmul.f32 %v3056, %v3049
    %v3059 = vmul.f32 %v3057, %v3052
    %v3060 = vmul.f32 %v3058, %v3049
    %v3061 = vmul.f32 %v3059, %v3052
    %v3062 = vadd.f32 %v3049, %v3060
    %v3063 = vadd.f32 %v3052, %v3061
    %v3064 = vmul.f32 %v3062, 0.7978846
    %v3065 = vmul.f32 %v3063, 0.7978846
    %v3066 = vtanh.pop %v3064
    %v3067 = vtanh.pop %v3065
    %v3068 = vadd.f32 %v3066, 1.0
    %v3069 = vadd.f32 %v3067, 1.0
    %v3070 = vmul.f32 %v3054, %v3068
    %v3071 = vmul.f32 %v3055, %v3069
    %s3072 = scalar_lea.vmem %s6, 192
    %v3073 = vld [vmem:[%s3072] sm:$0xff]
    %v3074 = vld [vmem:[%s3072 + $0x8] sm:$0xff]
    %v3075 = vld [vmem:[%s3072 + $0x10] sm:$0xff]
    %v3076 = vld [vmem:[%s3072 + $0x18] sm:$0xff]
    %v3077 = vld [vmem:[%s3072 + $0x20] sm:$0xff]
    %v3078 = vld [vmem:[%s3072 + $0x28] sm:$0xff]
    %v3079 = vld [vmem:[%s3072 + $0x30] sm:$0xff]
    %v3080 = vld [vmem:[%s3072 + $0x38] sm:$0xff]
    %v3081 = vld [vmem:[%s10 + $0x17] sm:$0x1]
    %v3082 = vperm.slane %v3081, 0
    %v3084 = vsel %vm748, %v3070, 0
    %v3087 = vsel %vm748, %v3071, 0
    %3089 = vmatpush.msra.mxu0 0.0
    %3090 = vmatpush.msra.mxu0 0.0
    %3091 = vmatpush.msra.mxu0 0.0
    %3092 = vmatpush.msra.mxu0 0.0
    %3093 = vmatpush.msra.mxu0 0.0
    %3094 = vmatpush.msra.mxu0 0.0
    %3095 = vmatpush.msra.mxu0 0.0
    %3096 = vmatpush.msra.mxu0 0.0
    %3097 = vmatpush.msra.mxu0 %v3080
    %3098 = vmatpush.msra.mxu0 %v3079
    %3099 = vmatpush.msra.mxu0 %v3078
    %3100 = vmatpush.msra.mxu0 %v3077
    %3101 = vmatpush.msra.mxu0 %v3076
    %3102 = vmatpush.msra.mxu0 %v3075
    %3103 = vmatpush.msra.mxu0 %v3074
    %3104 = vmatpush.msra.mxu0 %v3073
    %3105 = vmatmul.f32.gmra.mxu0 %v3084
    %v3106 = vpop.f32.mrf.mxu0
    %v3107 = vadd.f32 %v3082, %v3106
    %3108 = vmatmul.f32.gmra.mxu0 %v3087
    %v3109 = vpop.f32.mrf.mxu0
    %v3110 = vadd.f32 %v3082, %v3109
    %3111 = vdwg.mxu0
    %v3112 = vadd.f32 %v3016, %v3107
    %v3113 = vadd.f32 %v3017, %v3110
    %v3114 = vld [vmem:[%s10 + $0x1a] sm:$0x1]
    %v3115 = vld [vmem:[%s10 + $0x1b] sm:$0x1]
    %v3116 = vsel %vm52, %v3112, 0.0
    %3117 = vadd.xlane.f32.xlu0 %v3116
    %v3118 = vpop.xlane.xlu0 %3117
    %v3119 = vsel %vm52, %v3113, 0.0
    %3120 = vadd.xlane.f32.xlu0 %v3119
    %v3121 = vpop.xlane.xlu0 %3120
    %v3122 = vmul.f32 %v3118, %v640
    %v3123 = vmul.f32 %v3121, %v640
    %v3124 = vsub.f32 %v3112, %v3122
    %v3125 = vsub.f32 %v3113, %v3123
    %v3126 = vmul.f32 %v3124, %v3124
    %v3127 = vmul.f32 %v3125, %v3125
    %v3128 = vsel %vm52, %v3126, 0.0
    %3129 = vadd.xlane.f32.xlu0 %v3128
    %v3130 = vpop.xlane.xlu0 %3129
    %v3131 = vsel %vm52, %v3127, 0.0
    %3132 = vadd.xlane.f32.xlu0 %v3131
    %v3133 = vpop.xlane.xlu0 %3132
    %v3134 = vmul.f32 %v3130, %v640
    %v3135 = vmul.f32 %v3133, %v640
    %v3136 = vadd.f32 %v3134, 1e-12
    %v3137 = vadd.f32 %v3135, 1e-12
    %v3138 = vrsqrt.pop %v3136
    %v3139 = vmul.f32 %v3138, %v3136
    %v3140 = vmul.f32 %v3139, %v3138
    %v3141 = vmul.f32 0.5, %v3140
    %v3142 = vsub.f32 1.5, %v3141
    %v3143 = vmul.f32 %v3138, %v3142
    %vm3144 = vweird.f32 %v3136
    %vm3145 = vweird.f32 %v3138
    %vm3146 = vmor %vm3144, %vm3145
    %v3147 = vsel %vm3146, %v3138, %v3143
    %v3148 = vrsqrt.pop %v3137
    %v3149 = vmul.f32 %v3148, %v3137
    %v3150 = vmul.f32 %v3149, %v3148
    %v3151 = vmul.f32 0.5, %v3150
    %v3152 = vsub.f32 1.5, %v3151
    %v3153 = vmul.f32 %v3148, %v3152
    %vm3154 = vweird.f32 %v3137
    %vm3155 = vweird.f32 %v3148
    %vm3156 = vmor %vm3154, %vm3155
    %v3157 = vsel %vm3156, %v3148, %v3153
    %v3158 = vmul.f32 %v3124, %v3147
    %v3159 = vmul.f32 %v3125, %v3157
    %v3160 = vperm.slane %v3114, 0
    %v3161 = vmul.f32 %v3158, %v3160
    %v3162 = vmul.f32 %v3159, %v3160
    %v3163 = vperm.slane %v3115, 0
    %v3164 = vadd.f32 %v3161, %v3163
    %v3165 = vadd.f32 %v3162, %v3163
    %v3166 = vld [vmem:[%s2] sm:$0xff]
    %v3167 = vld [vmem:[%s2 + $0x8] sm:$0xff]
    %v3168 = vld [vmem:[%s2 + $0x10] sm:$0xff]
    %v3169 = vld [vmem:[%s2 + $0x18] sm:$0xff]
    %v3170 = vld [vmem:[%s2 + $0x20] sm:$0xff]
    %v3171 = vld [vmem:[%s2 + $0x28] sm:$0xff]
    %v3172 = vld [vmem:[%s2 + $0x30] sm:$0xff]
    %v3173 = vld [vmem:[%s2 + $0x38] sm:$0xff]
    %v3174 = vld [vmem:[%s2 + $0x40] sm:$0xff]
    %v3175 = vld [vmem:[%s2 + $0x48] sm:$0xff]
    %v3176 = vld [vmem:[%s2 + $0x50] sm:$0xff]
    %v3177 = vld [vmem:[%s2 + $0x58] sm:$0xff]
    %v3178 = vld [vmem:[%s2 + $0x60] sm:$0xff]
    %v3179 = vld [vmem:[%s2 + $0x68] sm:$0xff]
    %v3180 = vld [vmem:[%s3] sm:$0xff]
    %v3181 = vld [vmem:[%s3 + $0x8] sm:$0xff]
    %v3182 = vld [vmem:[%s3 + $0x10] sm:$0xff]
    %v3183 = vld [vmem:[%s3 + $0x18] sm:$0xff]
    %v3184 = vld [vmem:[%s3 + $0x20] sm:$0xff]
    %v3185 = vld [vmem:[%s3 + $0x28] sm:$0xff]
    %v3186 = vld [vmem:[%s3 + $0x30] sm:$0xff]
    %v3187 = vld [vmem:[%s3 + $0x38] sm:$0xff]
    %v3188 = vld [vmem:[%s3 + $0x40] sm:$0xff]
    %v3189 = vld [vmem:[%s3 + $0x48] sm:$0xff]
    %v3190 = vld [vmem:[%s3 + $0x50] sm:$0xff]
    %v3191 = vld [vmem:[%s3 + $0x58] sm:$0xff]
    %v3192 = vld [vmem:[%s3 + $0x60] sm:$0xff]
    %v3193 = vld [vmem:[%s3 + $0x68] sm:$0xff]
    %v3194 = vld [vmem:[%s3 + $0x70] sm:$0xff]
    %v3195 = vld [vmem:[%s3 + $0x78] sm:$0xff]
    %v3196 = vld [vmem:[%s7] sm:$0xff]
    %v3197 = vld [vmem:[%s7 + $0x8] sm:$0xff]
    %v3198 = vld [vmem:[%s7 + $0x10] sm:$0xff]
    %v3199 = vld [vmem:[%s7 + $0x18] sm:$0xff]
    %s3200 = scalar_lea.vmem %s7, 32
    %v3201 = vld [vmem:[%s3200] sm:$0xff]
    %v3202 = vld [vmem:[%s3200 + $0x8] sm:$0xff]
    %v3203 = vld [vmem:[%s3200 + $0x10] sm:$0xff]
    %v3204 = vld [vmem:[%s3200 + $0x18] sm:$0xff]
    %v3205 = vld [vmem:[%s10 + $0x2a] sm:$0x1]
    %v3207 = vsel %vm124, %v42, 0
    %v3210 = vsel %vm124, %v43, 0
    %3212 = vmatpush.msra.mxu0 0.0
    %3213 = vmatpush.msra.mxu0 0.0
    %3214 = vmatpush.msra.mxu0 0.0
    %3215 = vmatpush.msra.mxu0 0.0
    %3216 = vmatpush.msra.mxu0 0.0
    %3217 = vmatpush.msra.mxu0 0.0
    %3218 = vmatpush.msra.mxu0 0.0
    %3219 = vmatpush.msra.mxu0 0.0
    %3220 = vmatpush.msra.mxu0 0.0
    %3221 = vmatpush.msra.mxu0 0.0
    %3222 = vmatpush.msra.mxu0 0.0
    %3223 = vmatpush.msra.mxu0 0.0
    %3224 = vmatpush.msra.mxu0 0.0
    %3225 = vmatpush.msra.mxu0 0.0
    %3226 = vmatpush.msra.mxu0 %v3165
    %3227 = vmatpush.msra.mxu0 %v3164
    %3228 = vmatmul.f32.gmra.mxu0 %v3207
    %v3229 = vpop.f32.mrf.mxu0
    %v3230 = vadd.f32 0.0, %v3229
    %3231 = vmatmul.f32.gmra.mxu0 %v3210
    %v3232 = vpop.f32.mrf.mxu0
    %v3233 = vadd.f32 0.0, %v3232
    %3234 = vdwg.mxu0
    %v3235 = vperm.slane %v3205, 0
    %v3237 = vsel %vm52, %v3230, 0
    %v3240 = vsel %vm52, %v3233, 0
    %3242 = vmatpush.msra.mxu0 0.0
    %3243 = vmatpush.msra.mxu0 0.0
    %3244 = vmatpush.msra.mxu0 0.0
    %3245 = vmatpush.msra.mxu0 0.0
    %3246 = vmatpush.msra.mxu0 0.0
    %3247 = vmatpush.msra.mxu0 0.0
    %3248 = vmatpush.msra.mxu0 0.0
    %3249 = vmatpush.msra.mxu0 0.0
    %3250 = vmatpush.msra.mxu0 0.0
    %3251 = vmatpush.msra.mxu0 0.0
    %3252 = vmatpush.msra.mxu0 0.0
    %3253 = vmatpush.msra.mxu0 0.0
    %3254 = vmatpush.msra.mxu0 %v3204
    %3255 = vmatpush.msra.mxu0 %v3203
    %3256 = vmatpush.msra.mxu0 %v3202
    %3257 = vmatpush.msra.mxu0 %v3201
    %3258 = vmatmul.f32.gmra.mxu0 %v3237
    %v3259 = vpop.f32.mrf.mxu0
    %v3260 = vadd.f32 %v3235, %v3259
    %3261 = vmatmul.f32.gmra.mxu0 %v3240
    %v3262 = vpop.f32.mrf.mxu0
    %v3263 = vadd.f32 %v3235, %v3262
    %3264 = vdwg.mxu0
    %v3266 = vsel %vm52, %v3164, 0
    %v3269 = vsel %vm52, %v3165, 0
    %3271 = vmatpush.msra.mxu0 0.0
    %3272 = vmatpush.msra.mxu0 0.0
    %3273 = vmatpush.msra.mxu0 0.0
    %3274 = vmatpush.msra.mxu0 0.0
    %3275 = vmatpush.msra.mxu0 0.0
    %3276 = vmatpush.msra.mxu0 0.0
    %3277 = vmatpush.msra.mxu0 0.0
    %3278 = vmatpush.msra.mxu0 0.0
    %3279 = vmatpush.msra.mxu0 0.0
    %3280 = vmatpush.msra.mxu0 0.0
    %3281 = vmatpush.msra.mxu0 0.0
    %3282 = vmatpush.msra.mxu0 0.0
    %3283 = vmatpush.msra.mxu0 %v3199
    %3284 = vmatpush.msra.mxu0 %v3198
    %3285 = vmatpush.msra.mxu0 %v3197
    %3286 = vmatpush.msra.mxu0 %v3196
    %3287 = vmatmul.f32.gmra.mxu0 %v3266
    %v3288 = vpop.f32.mrf.mxu0
    %v3289 = vadd.f32 0.0, %v3288
    %3290 = vmatmul.f32.gmra.mxu0 %v3269
    %v3291 = vpop.f32.mrf.mxu0
    %v3292 = vadd.f32 0.0, %v3291
    %3293 = vdwg.mxu0
    %v3294 = vmul.f32 %v3166, %v3289
    %v3295 = vmul.f32 %v3167, %v3292
    %v3296 = vmul.f32 %v3168, %v3289
    %v3297 = vmul.f32 %v3169, %v3292
    %v3298 = vmul.f32 %v3170, %v3289
    %v3299 = vmul.f32 %v3171, %v3292
    %v3300 = vmul.f32 %v3172, %v3289
    %v3301 = vmul.f32 %v3173, %v3292
    %v3302 = vmul.f32 %v3174, %v3289
    %v3303 = vmul.f32 %v3175, %v3292
    %v3304 = vmul.f32 %v3176, %v3289
    %v3305 = vmul.f32 %v3177, %v3292
    %v3306 = vmul.f32 %v3178, %v3289
    %v3307 = vmul.f32 %v3179, %v3292
    %v3308 = vmul.f32 %v3260, %v3289
    %v3309 = vmul.f32 %v3263, %v3292
    %v3310 = vsel %vm124, %v3294, 0.0
    %3311 = vadd.xlane.f32.xlu0 %v3310
    %v3312 = vpop.xlane.xlu0 %3311
    %v3313 = vsel %vm124, %v3295, 0.0
    %3314 = vadd.xlane.f32.xlu0 %v3313
    %v3315 = vpop.xlane.xlu0 %3314
    %v3316 = vsel %vm124, %v3296, 0.0
    %3317 = vadd.xlane.f32.xlu0 %v3316
    %v3318 = vpop.xlane.xlu0 %3317
    %v3319 = vsel %vm124, %v3297, 0.0
    %3320 = vadd.xlane.f32.xlu0 %v3319
    %v3321 = vpop.xlane.xlu0 %3320
    %v3322 = vsel %vm124, %v3298, 0.0
    %3323 = vadd.xlane.f32.xlu0 %v3322
    %v3324 = vpop.xlane.xlu0 %3323
    %v3325 = vsel %vm124, %v3299, 0.0
    %3326 = vadd.xlane.f32.xlu0 %v3325
    %v3327 = vpop.xlane.xlu0 %3326
    %v3328 = vsel %vm124, %v3300, 0.0
    %3329 = vadd.xlane.f32.xlu0 %v3328
    %v3330 = vpop.xlane.xlu0 %3329
    %v3331 = vsel %vm124, %v3301, 0.0
    %3332 = vadd.xlane.f32.xlu0 %v3331
    %v3333 = vpop.xlane.xlu0 %3332
    %v3334 = vsel %vm124, %v3302, 0.0
    %3335 = vadd.xlane.f32.xlu0 %v3334
    %v3336 = vpop.xlane.xlu0 %3335
    %v3337 = vsel %vm124, %v3303, 0.0
    %3338 = vadd.xlane.f32.xlu0 %v3337
    %v3339 = vpop.xlane.xlu0 %3338
    %v3340 = vsel %vm124, %v3304, 0.0
    %3341 = vadd.xlane.f32.xlu0 %v3340
    %v3342 = vpop.xlane.xlu0 %3341
    %v3343 = vsel %vm124, %v3305, 0.0
    %3344 = vadd.xlane.f32.xlu0 %v3343
    %v3345 = vpop.xlane.xlu0 %3344
    %v3346 = vsel %vm124, %v3306, 0.0
    %3347 = vadd.xlane.f32.xlu0 %v3346
    %v3348 = vpop.xlane.xlu0 %3347
    %v3349 = vsel %vm124, %v3307, 0.0
    %3350 = vadd.xlane.f32.xlu0 %v3349
    %v3351 = vpop.xlane.xlu0 %3350
    %v3352 = vsel %vm124, %v3308, 0.0
    %3353 = vadd.xlane.f32.xlu0 %v3352
    %v3354 = vpop.xlane.xlu0 %3353
    %v3355 = vsel %vm124, %v3309, 0.0
    %3356 = vadd.xlane.f32.xlu0 %v3355
    %v3357 = vpop.xlane.xlu0 %3356
    %v3358 = vsub.f32 1.0, %v3180
    %v3359 = vsub.f32 1.0, %v3181
    %v3360 = vsub.f32 1.0, %v3182
    %v3361 = vsub.f32 1.0, %v3183
    %v3362 = vsub.f32 1.0, %v3184
    %v3363 = vsub.f32 1.0, %v3185
    %v3364 = vsub.f32 1.0, %v3186
    %v3365 = vsub.f32 1.0, %v3187
    %v3366 = vsub.f32 1.0, %v3188
    %v3367 = vsub.f32 1.0, %v3189
    %v3368 = vsub.f32 1.0, %v3190
    %v3369 = vsub.f32 1.0, %v3191
    %v3370 = vsub.f32 1.0, %v3192
    %v3371 = vsub.f32 1.0, %v3193
    %v3372 = vsub.f32 1.0, %v3194
    %v3373 = vsub.f32 1.0, %v3195
    %v3374 = vmul.f32 %v3358, -10000.0
    %v3375 = vmul.f32 %v3359, -10000.0
    %v3376 = vmul.f32 %v3360, -10000.0
    %v3377 = vmul.f32 %v3361, -10000.0
    %v3378 = vmul.f32 %v3362, -10000.0
    %v3379 = vmul.f32 %v3363, -10000.0
    %v3380 = vmul.f32 %v3364, -10000.0
    %v3381 = vmul.f32 %v3365, -10000.0
    %v3382 = vmul.f32 %v3366, -10000.0
    %v3383 = vmul.f32 %v3367, -10000.0
    %v3384 = vmul.f32 %v3368, -10000.0
    %v3385 = vmul.f32 %v3369, -10000.0
    %v3386 = vmul.f32 %v3370, -10000.0
    %v3387 = vmul.f32 %v3371, -10000.0
    %v3388 = vmul.f32 %v3372, -10000.0
    %v3389 = vmul.f32 %v3373, -10000.0
    %v3390 = vadd.f32 %v3312, %v3374
    %v3391 = vadd.f32 %v3315, %v3375
    %v3392 = vadd.f32 %v3318, %v3376
    %v3393 = vadd.f32 %v3321, %v3377
    %v3394 = vadd.f32 %v3324, %v3378
    %v3395 = vadd.f32 %v3327, %v3379
    %v3396 = vadd.f32 %v3330, %v3380
    %v3397 = vadd.f32 %v3333, %v3381
    %v3398 = vadd.f32 %v3336, %v3382
    %v3399 = vadd.f32 %v3339, %v3383
    %v3400 = vadd.f32 %v3342, %v3384
    %v3401 = vadd.f32 %v3345, %v3385
    %v3402 = vadd.f32 %v3348, %v3386
    %v3403 = vadd.f32 %v3351, %v3387
    %v3404 = vadd.f32 %v3354, %v3388
    %v3405 = vadd.f32 %v3357, %v3389
    %vm3406 = vcmask 7168
    %v3407 = vsel %vm3406, %v3390, -inf
    %v3408 = vsel %vm3406, %v3392, -inf
    %v3409 = vsel %vm3406, %v3394, -inf
    %v3410 = vmax.f32 %v3407, %v3409
    %v3411 = vsel %vm3406, %v3396, -inf
    %v3412 = vmax.f32 %v3408, %v3411
    %v3413 = vsel %vm3406, %v3398, -inf
    %v3414 = vmax.f32 %v3410, %v3413
    %v3415 = vsel %vm3406, %v3400, -inf
    %v3416 = vmax.f32 %v3412, %v3415
    %v3417 = vsel %vm3406, %v3402, -inf
    %v3418 = vmax.f32 %v3414, %v3417
    %v3419 = vsel %vm3406, %v3404, -inf
    %v3420 = vmax.f32 %v3416, %v3419
    %v3421 = vmax.f32 %v3418, %v3420
    %v3422 = vsel %vm3406, %v3391, -inf
    %v3423 = vsel %vm3406, %v3393, -inf
    %v3424 = vsel %vm3406, %v3395, -inf
    %v3425 = vmax.f32 %v3422, %v3424
    %v3426 = vsel %vm3406, %v3397, -inf
    %v3427 = vmax.f32 %v3423, %v3426
    %v3428 = vsel %vm3406, %v3399, -inf
    %v3429 = vmax.f32 %v3425, %v3428
    %v3430 = vsel %vm3406, %v3401, -inf
    %v3431 = vmax.f32 %v3427, %v3430
    %v3432 = vsel %vm3406, %v3403, -inf
    %v3433 = vmax.f32 %v3429, %v3432
    %v3434 = vsel %vm3406, %v3405, -inf
    %v3435 = vmax.f32 %v3431, %v3434
    %v3436 = vmax.f32 %v3433, %v3435
    %v3437 = vsub.f32 %v3390, %v3421
    %v3438 = vsub.f32 %v3391, %v3436
    %v3439 = vsub.f32 %v3392, %v3421
    %v3440 = vsub.f32 %v3393, %v3436
    %v3441 = vsub.f32 %v3394, %v3421
    %v3442 = vsub.f32 %v3395, %v3436
    %v3443 = vsub.f32 %v3396, %v3421
    %v3444 = vsub.f32 %v3397, %v3436
    %v3445 = vsub.f32 %v3398, %v3421
    %v3446 = vsub.f32 %v3399, %v3436
    %v3447 = vsub.f32 %v3400, %v3421
    %v3448 = vsub.f32 %v3401, %v3436
    %v3449 = vsub.f32 %v3402, %v3421
    %v3450 = vsub.f32 %v3403, %v3436
    %v3451 = vsub.f32 %v3404, %v3421
    %v3452 = vsub.f32 %v3405, %v3436
    %v3453 = vmul.f32 %v3437, 1.442695
    %v3454 = vpow.pop %v3453
    %v3455 = vmul.f32 %v3438, 1.442695
    %v3456 = vpow.pop %v3455
    %v3457 = vmul.f32 %v3439, 1.442695
    %v3458 = vpow.pop %v3457
    %v3459 = vmul.f32 %v3440, 1.442695
    %v3460 = vpow.pop %v3459
    %v3461 = vmul.f32 %v3441, 1.442695
    %v3462 = vpow.pop %v3461
    %v3463 = vmul.f32 %v3442, 1.442695
    %v3464 = vpow.pop %v3463
    %v3465 = vmul.f32 %v3443, 1.442695
    %v3466 = vpow.pop %v3465
    %v3467 = vmul.f32 %v3444, 1.442695
    %v3468 = vpow.pop %v3467
    %v3469 = vmul.f32 %v3445, 1.442695
    %v3470 = vpow.pop %v3469
    %v3471 = vmul.f32 %v3446, 1.442695
    %v3472 = vpow.pop %v3471
    %v3473 = vmul.f32 %v3447, 1.442695
    %v3474 = vpow.pop %v3473
    %v3475 = vmul.f32 %v3448, 1.442695
    %v3476 = vpow.pop %v3475
    %v3477 = vmul.f32 %v3449, 1.442695
    %v3478 = vpow.pop %v3477
    %v3479 = vmul.f32 %v3450, 1.442695
    %v3480 = vpow.pop %v3479
    %v3481 = vmul.f32 %v3451, 1.442695
    %v3482 = vpow.pop %v3481
    %v3483 = vmul.f32 %v3452, 1.442695
    %v3484 = vpow.pop %v3483
    %v3485 = vsel %vm3406, %v3454, 0.0
    %v3486 = vsel %vm3406, %v3458, 0.0
    %v3487 = vadd.f32 %v3485, %v3486
    %v3488 = vsel %vm3406, %v3462, 0.0
    %v3489 = vadd.f32 %v3487, %v3488
    %v3490 = vsel %vm3406, %v3466, 0.0
    %v3491 = vadd.f32 %v3489, %v3490
    %v3492 = vsel %vm3406, %v3470, 0.0
    %v3493 = vadd.f32 %v3491, %v3492
    %v3494 = vsel %vm3406, %v3474, 0.0
    %v3495 = vadd.f32 %v3493, %v3494
    %v3496 = vsel %vm3406, %v3478, 0.0
    %v3497 = vadd.f32 %v3495, %v3496
    %v3498 = vsel %vm3406, %v3482, 0.0
    %v3499 = vadd.f32 %v3497, %v3498
    %v3500 = vsel %vm3406, %v3456, 0.0
    %v3501 = vsel %vm3406, %v3460, 0.0
    %v3502 = vadd.f32 %v3500, %v3501
    %v3503 = vsel %vm3406, %v3464, 0.0
    %v3504 = vadd.f32 %v3502, %v3503
    %v3505 = vsel %vm3406, %v3468, 0.0
    %v3506 = vadd.f32 %v3504, %v3505
    %v3507 = vsel %vm3406, %v3472, 0.0
    %v3508 = vadd.f32 %v3506, %v3507
    %v3509 = vsel %vm3406, %v3476, 0.0
    %v3510 = vadd.f32 %v3508, %v3509
    %v3511 = vsel %vm3406, %v3480, 0.0
    %v3512 = vadd.f32 %v3510, %v3511
    %v3513 = vsel %vm3406, %v3484, 0.0
    %v3514 = vadd.f32 %v3512, %v3513
    %v3515 = vrcp.pop %v3499
    %v3516 = vrcp.pop %v3514
    %v3517 = vmul.f32 %v3454, %v3515
    %v3518 = vmul.f32 %v3456, %v3516
    %v3519 = vmul.f32 %v3458, %v3515
    %v3520 = vmul.f32 %v3460, %v3516
    %v3521 = vmul.f32 %v3462, %v3515
    %v3522 = vmul.f32 %v3464, %v3516
    %v3523 = vmul.f32 %v3466, %v3515
    %v3524 = vmul.f32 %v3468, %v3516
    %v3525 = vmul.f32 %v3470, %v3515
    %v3526 = vmul.f32 %v3472, %v3516
    %v3527 = vmul.f32 %v3474, %v3515
    %v3528 = vmul.f32 %v3476, %v3516
    %v3529 = vmul.f32 %v3478, %v3515
    %v3530 = vmul.f32 %v3480, %v3516
    %v3531 = vmul.f32 %v3482, %v3515
    %v3532 = vmul.f32 %v3484, %v3516
    %v3533 = vmul.f32 %v3517, %v3180
    %v3534 = vmul.f32 %v3518, %v3181
    %v3535 = vmul.f32 %v3519, %v3182
    %v3536 = vmul.f32 %v3520, %v3183
    %v3537 = vmul.f32 %v3521, %v3184
    %v3538 = vmul.f32 %v3522, %v3185
    %v3539 = vmul.f32 %v3523, %v3186
    %v3540 = vmul.f32 %v3524, %v3187
    %v3541 = vmul.f32 %v3525, %v3188
    %v3542 = vmul.f32 %v3526, %v3189
    %v3543 = vmul.f32 %v3527, %v3190
    %v3544 = vmul.f32 %v3528, %v3191
    %v3545 = vmul.f32 %v3529, %v3192
    %v3546 = vmul.f32 %v3530, %v3193
    %v3547 = vmul.f32 %v3531, %v3194
    %v3548 = vmul.f32 %v3532, %v3195
    %3550 = vset.pattern.permute.xlu0 0
    %3551 = vperm.xlu0 %3550, %v3533
    %v3552 = vpop.permute.xlu0 %3551
    %3555 = vset.pattern.permute.xlu0 0
    %3556 = vperm.xlu0 %3555, %v3534
    %v3557 = vpop.permute.xlu0 %3556
    %3560 = vset.pattern.permute.xlu0 0
    %3561 = vperm.xlu0 %3560, %v3535
    %v3562 = vpop.permute.xlu0 %3561
    %3565 = vset.pattern.permute.xlu0 0
    %3566 = vperm.xlu0 %3565, %v3536
    %v3567 = vpop.permute.xlu0 %3566
    %3570 = vset.pattern.permute.xlu0 0
    %3571 = vperm.xlu0 %3570, %v3537
    %v3572 = vpop.permute.xlu0 %3571
    %3575 = vset.pattern.permute.xlu0 0
    %3576 = vperm.xlu0 %3575, %v3538
    %v3577 = vpop.permute.xlu0 %3576
    %3580 = vset.pattern.permute.xlu0 0
    %3581 = vperm.xlu0 %3580, %v3539
    %v3582 = vpop.permute.xlu0 %3581
    %3585 = vset.pattern.permute.xlu0 0
    %3586 = vperm.xlu0 %3585, %v3540
    %v3587 = vpop.permute.xlu0 %3586
    %3590 = vset.pattern.permute.xlu0 0
    %3591 = vperm.xlu0 %3590, %v3541
    %v3592 = vpop.permute.xlu0 %3591
    %3595 = vset.pattern.permute.xlu0 0
    %3596 = vperm.xlu0 %3595, %v3542
    %v3597 = vpop.permute.xlu0 %3596
    %3600 = vset.pattern.permute.xlu0 0
    %3601 = vperm.xlu0 %3600, %v3543
    %v3602 = vpop.permute.xlu0 %3601
    %3605 = vset.pattern.permute.xlu0 0
    %3606 = vperm.xlu0 %3605, %v3544
    %v3607 = vpop.permute.xlu0 %3606
    %3610 = vset.pattern.permute.xlu0 0
    %3611 = vperm.xlu0 %3610, %v3545
    %v3612 = vpop.permute.xlu0 %3611
    %3615 = vset.pattern.permute.xlu0 0
    %3616 = vperm.xlu0 %3615, %v3546
    %v3617 = vpop.permute.xlu0 %3616
    %3620 = vset.pattern.permute.xlu0 0
    %3621 = vperm.xlu0 %3620, %v3547
    %v3622 = vpop.permute.xlu0 %3621
    %3625 = vset.pattern.permute.xlu0 0
    %3626 = vperm.xlu0 %3625, %v3548
    %v3627 = vpop.permute.xlu0 %3626
    %v3629 = vmul.f32 %v3552, %v3166
    %v3630 = vmul.f32 %v3557, %v3167
    %v3631 = vmul.f32 %v3562, %v3168
    %v3632 = vmul.f32 %v3567, %v3169
    %v3633 = vmul.f32 %v3572, %v3170
    %v3634 = vmul.f32 %v3577, %v3171
    %v3635 = vmul.f32 %v3582, %v3172
    %v3636 = vmul.f32 %v3587, %v3173
    %v3637 = vmul.f32 %v3592, %v3174
    %v3638 = vmul.f32 %v3597, %v3175
    %v3639 = vmul.f32 %v3602, %v3176
    %v3640 = vmul.f32 %v3607, %v3177
    %v3641 = vmul.f32 %v3612, %v3178
    %v3642 = vmul.f32 %v3617, %v3179
    %v3643 = vmul.f32 %v3622, %v3260
    %v3644 = vmul.f32 %v3627, %v3263
    %v3645 = vsel %vm124, %v3629, 0.0
    %v3646 = vsel %vm124, %v3631, 0.0
    %v3647 = vadd.f32 %v3645, %v3646
    %v3648 = vsel %vm124, %v3633, 0.0
    %v3649 = vadd.f32 %v3647, %v3648
    %v3650 = vsel %vm124, %v3635, 0.0
    %v3651 = vadd.f32 %v3649, %v3650
    %v3652 = vsel %vm124, %v3637, 0.0
    %v3653 = vadd.f32 %v3651, %v3652
    %v3654 = vsel %vm124, %v3639, 0.0
    %v3655 = vadd.f32 %v3653, %v3654
    %v3656 = vsel %vm124, %v3641, 0.0
    %v3657 = vadd.f32 %v3655, %v3656
    %v3658 = vsel %vm124, %v3643, 0.0
    %v3659 = vadd.f32 %v3657, %v3658
    %v3660 = vsel %vm124, %v3630, 0.0
    %v3661 = vsel %vm124, %v3632, 0.0
    %v3662 = vadd.f32 %v3660, %v3661
    %v3663 = vsel %vm124, %v3634, 0.0
    %v3664 = vadd.f32 %v3662, %v3663
    %v3665 = vsel %vm124, %v3636, 0.0
    %v3666 = vadd.f32 %v3664, %v3665
    %v3667 = vsel %vm124, %v3638, 0.0
    %v3668 = vadd.f32 %v3666, %v3667
    %v3669 = vsel %vm124, %v3640, 0.0
    %v3670 = vadd.f32 %v3668, %v3669
    %v3671 = vsel %vm124, %v3642, 0.0
    %v3672 = vadd.f32 %v3670, %v3671
    %v3673 = vsel %vm124, %v3644, 0.0
    %v3674 = vadd.f32 %v3672, %v3673
    %3677 = vrot.lane.b32.xlu0 %v3659, 32
    %v3678 = vpop.permute.xlu0 %3677
    %3679 = vrot.lane.b32.xlu0 %v3674, 32
    %v3680 = vpop.permute.xlu0 %3679
    %v3683 = vsel %vm52, %v3164, %v3678
    %v3684 = vsel %vm52, %v3165, %v3680
    %v3685 = vld [vmem:[%s10 + $0x2b] sm:$0x1]
    %v3686 = vld [vmem:[%s10 + $0x2c] sm:$0x1]
    %v3687 = vld [vmem:[%s10 + $0x2d] sm:$0x1]
    %v3688 = vld [vmem:[%s10 + $0x2e] sm:$0x1]
    %v3689 = vperm.slane %v3685, 0
    %v3690 = vmul.f32 %v3683, %v3689
    %v3691 = vmul.f32 %v3684, %v3689
    %vm3692 = vcmask 392192
    %v3693 = vsel %vm3692, %v3690, 0.0
    %3694 = vadd.xlane.f32.xlu0 %v3693
    %v3695 = vpop.xlane.xlu0 %3694
    %v3696 = vsel %vm3692, %v3691, 0.0
    %3697 = vadd.xlane.f32.xlu0 %v3696
    %v3698 = vpop.xlane.xlu0 %3697
    %v3699 = vperm.slane %v3687, 0
    %v3700 = vmul.f32 %v3683, %v3699
    %v3701 = vmul.f32 %v3684, %v3699
    %v3702 = vperm.slane %v3686, 0
    %v3703 = vadd.f32 %v3700, %v3702
    %v3704 = vadd.f32 %v3701, %v3702
    %v3706 = vsel %vm3692, %v3703, 0
    %v3709 = vsel %vm3692, %v3704, 0
    %v3712 = vsel %vm3692, %v3683, 0
    %v3715 = vsel %vm3692, %v3684, 0
    %3717 = vmatpush.xpose.msra.mxu0 0.0
    %3718 = vmatpush.xpose.msra.mxu0 0.0
    %3719 = vmatpush.xpose.msra.mxu0 0.0
    %3720 = vmatpush.xpose.msra.mxu0 0.0
    %3721 = vmatpush.xpose.msra.mxu0 0.0
    %3722 = vmatpush.xpose.msra.mxu0 0.0
    %3723 = vmatpush.xpose.msra.mxu0 0.0
    %3724 = vmatpush.xpose.msra.mxu0 0.0
    %3725 = vmatpush.xpose.msra.mxu0 0.0
    %3726 = vmatpush.xpose.msra.mxu0 0.0
    %3727 = vmatpush.xpose.msra.mxu0 0.0
    %3728 = vmatpush.xpose.msra.mxu0 0.0
    %3729 = vmatpush.xpose.msra.mxu0 0.0
    %3730 = vmatpush.xpose.msra.mxu0 0.0
    %3731 = vmatpush.xpose.msra.mxu0 %v3715
    %3732 = vmatpush.xpose.msra.mxu0 %v3712
    %3733 = vmatmul.f32.gmra.mxu0 %v3706
    %v3734 = vpop.f32.mrf.mxu0
    %v3735 = vadd.f32 %v3695, %v3734
    %3736 = vmatmul.f32.gmra.mxu0 %v3709
    %v3737 = vpop.f32.mrf.mxu0
    %v3738 = vadd.f32 %v3698, %v3737
    %3739 = vdwg.mxu0
    %s3741 = vtos %v3688
    %v3742 = vstv %s3741
    %v3744 = vadd.f32 %v3735, %v3742
    %v3745 = vadd.f32 %v3738, %v3742
    %v3746 = vadd.f32 %v3744, %v39
    %v3747 = vadd.f32 %v3745, %v40
    %v3748 = vsel %vm124, %v3746, -inf
    %3749 = vmax.xlane.f32.xlu0 %v3748
    %v3750 = vpop.xlane.xlu0 %3749
    %v3751 = vsel %vm124, %v3747, -inf
    %3752 = vmax.xlane.f32.xlu0 %v3751
    %v3753 = vpop.xlane.xlu0 %3752
    %v3754 = vsub.f32 %v3746, %v3750
    %v3755 = vsub.f32 %v3747, %v3753
    %v3756 = vmul.f32 %v3754, 1.442695
    %v3757 = vpow.pop %v3756
    %v3758 = vmul.f32 %v3755, 1.442695
    %v3759 = vpow.pop %v3758
    %v3760 = vsel %vm124, %v3757, 0.0
    %3761 = vadd.xlane.f32.xlu0 %v3760
    %v3762 = vpop.xlane.xlu0 %3761
    %v3763 = vsel %vm124, %v3759, 0.0
    %3764 = vadd.xlane.f32.xlu0 %v3763
    %v3765 = vpop.xlane.xlu0 %3764
    %v3766 = vrcp.pop %v3762
    %v3767 = vrcp.pop %v3765
    %v3768 = vmul.f32 %v3757, %v3766
    %v3769 = vmul.f32 %v3759, %v3767
    %v3771 = vsel %vm124, %v3768, 0
    %v3774 = vsel %vm124, %v3769, 0
    %3776 = vmatpush.msra.mxu0 0.0
    %3777 = vmatpush.msra.mxu0 0.0
    %3778 = vmatpush.msra.mxu0 0.0
    %3779 = vmatpush.msra.mxu0 0.0
    %3780 = vmatpush.msra.mxu0 0.0
    %3781 = vmatpush.msra.mxu0 0.0
    %3782 = vmatpush.msra.mxu0 0.0
    %3783 = vmatpush.msra.mxu0 0.0
    %3784 = vmatpush.msra.mxu0 0.0
    %3785 = vmatpush.msra.mxu0 0.0
    %3786 = vmatpush.msra.mxu0 0.0
    %3787 = vmatpush.msra.mxu0 0.0
    %3788 = vmatpush.msra.mxu0 0.0
    %3789 = vmatpush.msra.mxu0 0.0
    %3790 = vmatpush.msra.mxu0 %v3684
    %3791 = vmatpush.msra.mxu0 %v3683
    %3792 = vmatmul.f32.gmra.mxu0 %v3771
    %v3793 = vpop.f32.mrf.mxu0
    %v3794 = vadd.f32 0.0, %v3793
    %3795 = vmatmul.f32.gmra.mxu0 %v3774
    %v3796 = vpop.f32.mrf.mxu0
    %v3797 = vadd.f32 0.0, %v3796
    %3798 = vdwg.mxu0
    %3799 = vmatpush.msra.mxu0 0.0
    %3800 = vmatpush.msra.mxu0 0.0
    %3801 = vmatpush.msra.mxu0 0.0
    %3802 = vmatpush.msra.mxu0 0.0
    %3803 = vmatpush.msra.mxu0 0.0
    %3804 = vmatpush.msra.mxu0 0.0
    %3805 = vmatpush.msra.mxu0 0.0
    %3806 = vmatpush.msra.mxu0 0.0
    %3807 = vmatpush.msra.mxu0 0.0
    %3808 = vmatpush.msra.mxu0 0.0
    %3809 = vmatpush.msra.mxu0 0.0
    %3810 = vmatpush.msra.mxu0 0.0
    %3811 = vmatpush.msra.mxu0 0.0
    %3812 = vmatpush.msra.mxu0 0.0
    %3813 = vmatpush.msra.mxu0 %v3797
    %3814 = vmatpush.msra.mxu0 %v3794
    %3815 = vmatmul.f32.gmra.mxu0 %v3771
    %v3816 = vpop.f32.mrf.mxu0
    %v3817 = vadd.f32 0.0, %v3816
    %3818 = vmatmul.f32.gmra.mxu0 %v3774
    %v3819 = vpop.f32.mrf.mxu0
    %v3820 = vadd.f32 0.0, %v3819
    %3821 = vdwg.mxu0
    %v3822 = vld [vmem:[%s8] sm:$0xff]
    %v3823 = vld [vmem:[%s8 + $0x8] sm:$0xff]
    %v3824 = vld [vmem:[%s8 + $0x10] sm:$0xff]
    %v3825 = vld [vmem:[%s8 + $0x18] sm:$0xff]
    %v3826 = vld [vmem:[%s8 + $0x20] sm:$0xff]
    %v3827 = vld [vmem:[%s8 + $0x28] sm:$0xff]
    %s3828 = scalar_lea.vmem %s8, 48
    %v3829 = vld [vmem:[%s3828] sm:$0xff]
    %v3830 = vld [vmem:[%s3828 + $0x8] sm:$0xff]
    %v3831 = vld [vmem:[%s3828 + $0x10] sm:$0xff]
    %v3832 = vld [vmem:[%s3828 + $0x18] sm:$0xff]
    %v3833 = vld [vmem:[%s3828 + $0x20] sm:$0xff]
    %v3834 = vld [vmem:[%s3828 + $0x28] sm:$0xff]
    %v3836 = vsel %vm3692, %v3794, 0
    %v3839 = vsel %vm3692, %v3797, 0
    %3841 = vmatpush.msra.mxu0 0.0
    %3842 = vmatpush.msra.mxu0 0.0
    %3843 = vmatpush.msra.mxu0 0.0
    %3844 = vmatpush.msra.mxu0 0.0
    %3845 = vmatpush.msra.mxu0 0.0
    %3846 = vmatpush.msra.mxu0 0.0
    %3847 = vmatpush.msra.mxu0 0.0
    %3848 = vmatpush.msra.mxu0 0.0
    %3849 = vmatpush.msra.mxu0 0.0
    %3850 = vmatpush.msra.mxu0 0.0
    %3851 = vmatpush.msra.mxu0 %v3834
    %3852 = vmatpush.msra.mxu0 %v3833
    %3853 = vmatpush.msra.mxu0 %v3832
    %3854 = vmatpush.msra.mxu0 %v3831
    %3855 = vmatpush.msra.mxu0 %v3830
    %3856 = vmatpush.msra.mxu0 %v3829
    %3857 = vmatmul.f32.gmra.mxu0 %v3836
    %v3858 = vpop.f32.mrf.mxu0
    %v3859 = vadd.f32 0.0, %v3858
    %3860 = vmatmul.f32.gmra.mxu0 %v3839
    %v3861 = vpop.f32.mrf.mxu0
    %v3862 = vadd.f32 0.0, %v3861
    %3863 = vdwg.mxu0
    %3864 = vmatpush.msra.mxu0 0.0
    %3865 = vmatpush.msra.mxu0 0.0
    %3866 = vmatpush.msra.mxu0 0.0
    %3867 = vmatpush.msra.mxu0 0.0
    %3868 = vmatpush.msra.mxu0 0.0
    %3869 = vmatpush.msra.mxu0 0.0
    %3870 = vmatpush.msra.mxu0 0.0
    %3871 = vmatpush.msra.mxu0 0.0
    %3872 = vmatpush.msra.mxu0 0.0
    %3873 = vmatpush.msra.mxu0 0.0
    %3874 = vmatpush.msra.mxu0 %v3827
    %3875 = vmatpush.msra.mxu0 %v3826
    %3876 = vmatpush.msra.mxu0 %v3825
    %3877 = vmatpush.msra.mxu0 %v3824
    %3878 = vmatpush.msra.mxu0 %v3823
    %3879 = vmatpush.msra.mxu0 %v3822
    %3880 = vmatmul.f32.gmra.mxu0 %v3712
    %v3881 = vpop.f32.mrf.mxu0
    %v3882 = vadd.f32 %v3859, %v3881
    %3883 = vmatmul.f32.gmra.mxu0 %v3715
    %v3884 = vpop.f32.mrf.mxu0
    %v3885 = vadd.f32 %v3862, %v3884
    %3886 = vdwg.mxu0
    %s3887 = scalar_lea.vmem %s8, 96
    %v3888 = vld [vmem:[%s3887] sm:$0xff]
    %v3889 = vld [vmem:[%s3887 + $0x8] sm:$0xff]
    %v3890 = vld [vmem:[%s3887 + $0x10] sm:$0xff]
    %v3891 = vld [vmem:[%s3887 + $0x18] sm:$0xff]
    %v3892 = vld [vmem:[%s3887 + $0x20] sm:$0xff]
    %v3893 = vld [vmem:[%s3887 + $0x28] sm:$0xff]
    %v3895 = vsel %vm3692, %v3817, 0
    %v3898 = vsel %vm3692, %v3820, 0
    %3900 = vmatpush.msra.mxu0 0.0
    %3901 = vmatpush.msra.mxu0 0.0
    %3902 = vmatpush.msra.mxu0 0.0
    %3903 = vmatpush.msra.mxu0 0.0
    %3904 = vmatpush.msra.mxu0 0.0
    %3905 = vmatpush.msra.mxu0 0.0
    %3906 = vmatpush.msra.mxu0 0.0
    %3907 = vmatpush.msra.mxu0 0.0
    %3908 = vmatpush.msra.mxu0 0.0
    %3909 = vmatpush.msra.mxu0 0.0
    %3910 = vmatpush.msra.mxu0 %v3893
    %3911 = vmatpush.msra.mxu0 %v3892
    %3912 = vmatpush.msra.mxu0 %v3891
    %3913 = vmatpush.msra.mxu0 %v3890
    %3914 = vmatpush.msra.mxu0 %v3889
    %3915 = vmatpush.msra.mxu0 %v3888
    %3916 = vmatmul.f32.gmra.mxu0 %v3895
    %v3917 = vpop.f32.mrf.mxu0
    %v3918 = vadd.f32 0.0, %v3917
    %3919 = vmatmul.f32.gmra.mxu0 %v3898
    %v3920 = vpop.f32.mrf.mxu0
    %v3921 = vadd.f32 0.0, %v3920
    %3922 = vdwg.mxu0
    %v3923 = vadd.f32 %v3882, %v3918
    %v3924 = vadd.f32 %v3885, %v3921
    %v3925 = vmul.f32 %v3683, %v3794
    %v3926 = vmul.f32 %v3684, %v3797
    %s3927 = scalar_lea.vmem %s8, 144
    %v3928 = vld [vmem:[%s3927] sm:$0xff]
    %v3929 = vld [vmem:[%s3927 + $0x8] sm:$0xff]
    %v3930 = vld [vmem:[%s3927 + $0x10] sm:$0xff]
    %v3931 = vld [vmem:[%s3927 + $0x18] sm:$0xff]
    %v3932 = vld [vmem:[%s3927 + $0x20] sm:$0xff]
    %v3933 = vld [vmem:[%s3927 + $0x28] sm:$0xff]
    %v3935 = vsel %vm3692, %v3925, 0
    %v3938 = vsel %vm3692, %v3926, 0
    %3940 = vmatpush.msra.mxu0 0.0
    %3941 = vmatpush.msra.mxu0 0.0
    %3942 = vmatpush.msra.mxu0 0.0
    %3943 = vmatpush.msra.mxu0 0.0
    %3944 = vmatpush.msra.mxu0 0.0
    %3945 = vmatpush.msra.mxu0 0.0
    %3946 = vmatpush.msra.mxu0 0.0
    %3947 = vmatpush.msra.mxu0 0.0
    %3948 = vmatpush.msra.mxu0 0.0
    %3949 = vmatpush.msra.mxu0 0.0
    %3950 = vmatpush.msra.mxu0 %v3933
    %3951 = vmatpush.msra.mxu0 %v3932
    %3952 = vmatpush.msra.mxu0 %v3931
    %3953 = vmatpush.msra.mxu0 %v3930
    %3954 = vmatpush.msra.mxu0 %v3929
    %3955 = vmatpush.msra.mxu0 %v3928
    %3956 = vmatmul.f32.gmra.mxu0 %v3935
    %v3957 = vpop.f32.mrf.mxu0
    %v3958 = vadd.f32 0.0, %v3957
    %3959 = vmatmul.f32.gmra.mxu0 %v3938
    %v3960 = vpop.f32.mrf.mxu0
    %v3961 = vadd.f32 0.0, %v3960
    %3962 = vdwg.mxu0
    %v3963 = vadd.f32 %v3923, %v3958
    %v3964 = vadd.f32 %v3924, %v3961
    %v3965 = vld [vmem:[%s10 + $0x2f] sm:$0x1]
    %v3966 = vperm.slane %v3965, 0
    %v3967 = vadd.f32 %v3963, %v3966
    %v3968 = vadd.f32 %v3964, %v3966
    %v3969 = vld [vmem:[%s9] sm:$0xff]
    %v3970 = vld [vmem:[%s9 + $0x8] sm:$0xff]
    %v3971 = vld [vmem:[%s9 + $0x10] sm:$0xff]
    %v3972 = vld [vmem:[%s9 + $0x18] sm:$0xff]
    %v3973 = vld [vmem:[%s10 + $0x30] sm:$0x1]
    %v3974 = vperm.slane %v3973, 0
    %3975 = vmatpush.msra.mxu0 0.0
    %3976 = vmatpush.msra.mxu0 0.0
    %3977 = vmatpush.msra.mxu0 0.0
    %3978 = vmatpush.msra.mxu0 0.0
    %3979 = vmatpush.msra.mxu0 0.0
    %3980 = vmatpush.msra.mxu0 0.0
    %3981 = vmatpush.msra.mxu0 0.0
    %3982 = vmatpush.msra.mxu0 0.0
    %3983 = vmatpush.msra.mxu0 0.0
    %3984 = vmatpush.msra.mxu0 0.0
    %3985 = vmatpush.msra.mxu0 0.0
    %3986 = vmatpush.msra.mxu0 0.0
    %3987 = vmatpush.msra.mxu0 %v3972
    %3988 = vmatpush.msra.mxu0 %v3971
    %3989 = vmatpush.msra.mxu0 %v3970
    %3990 = vmatpush.msra.mxu0 %v3969
    %3991 = vmatmul.f32.gmra.mxu0 %v3266
    %v3992 = vpop.f32.mrf.mxu0
    %v3993 = vadd.f32 %v3974, %v3992
    %3994 = vmatmul.f32.gmra.mxu0 %v3269
    %v3995 = vpop.f32.mrf.mxu0
    %v3996 = vadd.f32 %v3974, %v3995
    %3997 = vdwg.mxu0
    %4002 = vrot.lane.b32.xlu0 %v3969, 96
    %v4003 = vpop.permute.xlu0 %4002
    %4004 = vrot.lane.b32.xlu0 %v3970, 96
    %v4005 = vpop.permute.xlu0 %4004
    %4006 = vrot.lane.b32.xlu0 %v3971, 96
    %v4007 = vpop.permute.xlu0 %4006
    %4008 = vrot.lane.b32.xlu0 %v3972, 96
    %v4009 = vpop.permute.xlu0 %4008
    %4015 = vrot.lane.b32.xlu0 %v3974, 96
    %v4016 = vpop.permute.xlu0 %4015
    %v4019 = vsel %vm52, %v3967, 0
    %v4022 = vsel %vm52, %v3968, 0
    %4024 = vmatpush.msra.mxu0 0.0
    %4025 = vmatpush.msra.mxu0 0.0
    %4026 = vmatpush.msra.mxu0 0.0
    %4027 = vmatpush.msra.mxu0 0.0
    %4028 = vmatpush.msra.mxu0 0.0
    %4029 = vmatpush.msra.mxu0 0.0
    %4030 = vmatpush.msra.mxu0 0.0
    %4031 = vmatpush.msra.mxu0 0.0
    %4032 = vmatpush.msra.mxu0 0.0
    %4033 = vmatpush.msra.mxu0 0.0
    %4034 = vmatpush.msra.mxu0 0.0
    %4035 = vmatpush.msra.mxu0 0.0
    %4036 = vmatpush.msra.mxu0 %v4009
    %4037 = vmatpush.msra.mxu0 %v4007
    %4038 = vmatpush.msra.mxu0 %v4005
    %4039 = vmatpush.msra.mxu0 %v4003
    %4040 = vmatmul.f32.gmra.mxu0 %v4019
    %v4041 = vpop.f32.mrf.mxu0
    %v4042 = vadd.f32 %v4016, %v4041
    %4043 = vmatmul.f32.gmra.mxu0 %v4022
    %v4044 = vpop.f32.mrf.mxu0
    %v4045 = vadd.f32 %v4016, %v4044
    %4046 = vdwg.mxu0
    %v4048 = vsel %vm88, %v3993, 0
    %v4051 = vsel %vm88, %v3996, 0
    %v4054 = vsel %vm88, %v4042, 0
    %v4057 = vsel %vm88, %v4045, 0
    %4059 = vmatpush.xpose.msra.mxu0 0.0
    %4060 = vmatpush.xpose.msra.mxu0 0.0
    %4061 = vmatpush.xpose.msra.mxu0 0.0
    %4062 = vmatpush.xpose.msra.mxu0 0.0
    %4063 = vmatpush.xpose.msra.mxu0 0.0
    %4064 = vmatpush.xpose.msra.mxu0 0.0
    %4065 = vmatpush.xpose.msra.mxu0 0.0
    %4066 = vmatpush.xpose.msra.mxu0 0.0
    %4067 = vmatpush.xpose.msra.mxu0 0.0
    %4068 = vmatpush.xpose.msra.mxu0 0.0
    %4069 = vmatpush.xpose.msra.mxu0 0.0
    %4070 = vmatpush.xpose.msra.mxu0 0.0
    %4071 = vmatpush.xpose.msra.mxu0 0.0
    %4072 = vmatpush.xpose.msra.mxu0 0.0
    %4073 = vmatpush.xpose.msra.mxu0 %v4057
    %4074 = vmatpush.xpose.msra.mxu0 %v4054
    %4075 = vmatmul.f32.gmra.mxu0 %v4048
    %v4076 = vpop.f32.mrf.mxu0
    %v4077 = vadd.f32 0.0, %v4076
    %4078 = vmatmul.f32.gmra.mxu0 %v4051
    %v4079 = vpop.f32.mrf.mxu0
    %v4080 = vadd.f32 0.0, %v4079
    %4081 = vdwg.mxu0
    %v4082 = vmul.f32 %v4077, 0.35355338
    %v4083 = vmul.f32 %v4080, 0.35355338
    %v4084 = vadd.f32 %v4082, %v39
    %v4085 = vadd.f32 %v4083, %v40
    %v4086 = vsel %vm124, %v4084, -inf
    %4087 = vmax.xlane.f32.xlu0 %v4086
    %v4088 = vpop.xlane.xlu0 %4087
    %v4089 = vsel %vm124, %v4085, -inf
    %4090 = vmax.xlane.f32.xlu0 %v4089
    %v4091 = vpop.xlane.xlu0 %4090
    %v4092 = vsub.f32 %v4084, %v4088
    %v4093 = vsub.f32 %v4085, %v4091
    %v4094 = vmul.f32 %v4092, 1.442695
    %v4095 = vpow.pop %v4094
    %v4096 = vmul.f32 %v4093, 1.442695
    %v4097 = vpow.pop %v4096
    %v4098 = vsel %vm124, %v4095, 0.0
    %4099 = vadd.xlane.f32.xlu0 %v4098
    %v4100 = vpop.xlane.xlu0 %4099
    %v4101 = vsel %vm124, %v4097, 0.0
    %4102 = vadd.xlane.f32.xlu0 %v4101
    %v4103 = vpop.xlane.xlu0 %4102
    %v4104 = vrcp.pop %v4100
    %v4105 = vrcp.pop %v4103
    %v4106 = vmul.f32 %v4095, %v4104
    %v4107 = vmul.f32 %v4097, %v4105
    %4108 = vrot.lane.b32.xlu0 %v4042, 96
    %v4109 = vpop.permute.xlu0 %4108
    %4110 = vrot.lane.b32.xlu0 %v4045, 96
    %v4111 = vpop.permute.xlu0 %4110
    %v4115 = vsel %vm124, %v4106, 0
    %v4118 = vsel %vm124, %v4107, 0
    %4120 = vmatpush.msra.mxu0 0.0
    %4121 = vmatpush.msra.mxu0 0.0
    %4122 = vmatpush.msra.mxu0 0.0
    %4123 = vmatpush.msra.mxu0 0.0
    %4124 = vmatpush.msra.mxu0 0.0
    %4125 = vmatpush.msra.mxu0 0.0
    %4126 = vmatpush.msra.mxu0 0.0
    %4127 = vmatpush.msra.mxu0 0.0
    %4128 = vmatpush.msra.mxu0 0.0
    %4129 = vmatpush.msra.mxu0 0.0
    %4130 = vmatpush.msra.mxu0 0.0
    %4131 = vmatpush.msra.mxu0 0.0
    %4132 = vmatpush.msra.mxu0 0.0
    %4133 = vmatpush.msra.mxu0 0.0
    %4134 = vmatpush.msra.mxu0 %v4111
    %4135 = vmatpush.msra.mxu0 %v4109
    %4136 = vmatmul.f32.gmra.mxu0 %v4115
    %v4137 = vpop.f32.mrf.mxu0
    %v4138 = vadd.f32 0.0, %v4137
    %4139 = vmatmul.f32.gmra.mxu0 %v4118
    %v4140 = vpop.f32.mrf.mxu0
    %v4141 = vadd.f32 0.0, %v4140
    %4142 = vdwg.mxu0
    %4143 = vrot.lane.b32.xlu0 %v3993, 120
    %v4144 = vpop.permute.xlu0 %4143
    %4145 = vrot.lane.b32.xlu0 %v3996, 120
    %v4146 = vpop.permute.xlu0 %4145
    %4147 = vrot.lane.b32.xlu0 %v4042, 120
    %v4148 = vpop.permute.xlu0 %4147
    %4149 = vrot.lane.b32.xlu0 %v4045, 120
    %v4150 = vpop.permute.xlu0 %4149
    %v4151 = vsel %vm88, %v4144, 0
    %v4153 = vsel %vm88, %v4146, 0
    %v4155 = vsel %vm88, %v4148, 0
    %v4157 = vsel %vm88, %v4150, 0
    %4159 = vmatpush.xpose.msra.mxu0 0.0
    %4160 = vmatpush.xpose.msra.mxu0 0.0
    %4161 = vmatpush.xpose.msra.mxu0 0.0
    %4162 = vmatpush.xpose.msra.mxu0 0.0
    %4163 = vmatpush.xpose.msra.mxu0 0.0
    %4164 = vmatpush.xpose.msra.mxu0 0.0
    %4165 = vmatpush.xpose.msra.mxu0 0.0
    %4166 = vmatpush.xpose.msra.mxu0 0.0
    %4167 = vmatpush.xpose.msra.mxu0 0.0
    %4168 = vmatpush.xpose.msra.mxu0 0.0
    %4169 = vmatpush.xpose.msra.mxu0 0.0
    %4170 = vmatpush.xpose.msra.mxu0 0.0
    %4171 = vmatpush.xpose.msra.mxu0 0.0
    %4172 = vmatpush.xpose.msra.mxu0 0.0
    %4173 = vmatpush.xpose.msra.mxu0 %v4157
    %4174 = vmatpush.xpose.msra.mxu0 %v4155
    %4175 = vmatmul.f32.gmra.mxu0 %v4151
    %v4176 = vpop.f32.mrf.mxu0
    %v4177 = vadd.f32 0.0, %v4176
    %4178 = vmatmul.f32.gmra.mxu0 %v4153
    %v4179 = vpop.f32.mrf.mxu0
    %v4180 = vadd.f32 0.0, %v4179
    %4181 = vdwg.mxu0
    %v4182 = vmul.f32 %v4177, 0.35355338
    %v4183 = vmul.f32 %v4180, 0.35355338
    %v4184 = vadd.f32 %v4182, %v39
    %v4185 = vadd.f32 %v4183, %v40
    %v4186 = vsel %vm124, %v4184, -inf
    %4187 = vmax.xlane.f32.xlu0 %v4186
    %v4188 = vpop.xlane.xlu0 %4187
    %v4189 = vsel %vm124, %v4185, -inf
    %4190 = vmax.xlane.f32.xlu0 %v4189
    %v4191 = vpop.xlane.xlu0 %4190
    %v4192 = vsub.f32 %v4184, %v4188
    %v4193 = vsub.f32 %v4185, %v4191
    %v4194 = vmul.f32 %v4192, 1.442695
    %v4195 = vpow.pop %v4194
    %v4196 = vmul.f32 %v4193, 1.442695
    %v4197 = vpow.pop %v4196
    %v4198 = vsel %vm124, %v4195, 0.0
    %4199 = vadd.xlane.f32.xlu0 %v4198
    %v4200 = vpop.xlane.xlu0 %4199
    %v4201 = vsel %vm124, %v4197, 0.0
    %4202 = vadd.xlane.f32.xlu0 %v4201
    %v4203 = vpop.xlane.xlu0 %4202
    %v4204 = vrcp.pop %v4200
    %v4205 = vrcp.pop %v4203
    %v4206 = vmul.f32 %v4195, %v4204
    %v4207 = vmul.f32 %v4197, %v4205
    %4208 = vrot.lane.b32.xlu0 %v4042, 88
    %v4209 = vpop.permute.xlu0 %4208
    %4210 = vrot.lane.b32.xlu0 %v4045, 88
    %v4211 = vpop.permute.xlu0 %4210
    %v4215 = vsel %vm124, %v4206, 0
    %v4218 = vsel %vm124, %v4207, 0
    %4220 = vmatpush.msra.mxu0 0.0
    %4221 = vmatpush.msra.mxu0 0.0
    %4222 = vmatpush.msra.mxu0 0.0
    %4223 = vmatpush.msra.mxu0 0.0
    %4224 = vmatpush.msra.mxu0 0.0
    %4225 = vmatpush.msra.mxu0 0.0
    %4226 = vmatpush.msra.mxu0 0.0
    %4227 = vmatpush.msra.mxu0 0.0
    %4228 = vmatpush.msra.mxu0 0.0
    %4229 = vmatpush.msra.mxu0 0.0
    %4230 = vmatpush.msra.mxu0 0.0
    %4231 = vmatpush.msra.mxu0 0.0
    %4232 = vmatpush.msra.mxu0 0.0
    %4233 = vmatpush.msra.mxu0 0.0
    %4234 = vmatpush.msra.mxu0 %v4211
    %4235 = vmatpush.msra.mxu0 %v4209
    %4236 = vmatmul.f32.gmra.mxu0 %v4215
    %v4237 = vpop.f32.mrf.mxu0
    %v4238 = vadd.f32 0.0, %v4237
    %4239 = vmatmul.f32.gmra.mxu0 %v4218
    %v4240 = vpop.f32.mrf.mxu0
    %v4241 = vadd.f32 0.0, %v4240
    %4242 = vdwg.mxu0
    %4243 = vrot.lane.b32.xlu0 %v3970, 32
    %v4244 = vpop.permute.xlu0 %4243
    %v4247 = vsel %vm88, %v4238, 0
    %v4250 = vsel %vm88, %v4241, 0
    %4252 = vmatpush.msra.mxu0 0.0
    %4253 = vmatpush.msra.mxu0 0.0
    %4254 = vmatpush.msra.mxu0 0.0
    %4255 = vmatpush.msra.mxu0 0.0
    %4256 = vmatpush.msra.mxu0 0.0
    %4257 = vmatpush.msra.mxu0 0.0
    %4258 = vmatpush.msra.mxu0 0.0
    %4259 = vmatpush.msra.mxu0 0.0
    %4260 = vmatpush.msra.mxu0 0.0
    %4261 = vmatpush.msra.mxu0 0.0
    %4262 = vmatpush.msra.mxu0 0.0
    %4263 = vmatpush.msra.mxu0 0.0
    %4264 = vmatpush.msra.mxu0 0.0
    %4265 = vmatpush.msra.mxu0 0.0
    %4266 = vmatpush.msra.mxu0 0.0
    %4267 = vmatpush.msra.mxu0 %v4244
    %4268 = vmatmul.f32.gmra.mxu0 %v4247
    %v4269 = vpop.f32.mrf.mxu0
    %v4270 = vadd.f32 0.0, %v4269
    %4271 = vmatmul.f32.gmra.mxu0 %v4250
    %v4272 = vpop.f32.mrf.mxu0
    %v4273 = vadd.f32 0.0, %v4272
    %4274 = vdwg.mxu0
    %4275 = vrot.lane.b32.xlu0 %v3969, 32
    %v4276 = vpop.permute.xlu0 %4275
    %v4279 = vsel %vm88, %v4138, 0
    %v4282 = vsel %vm88, %v4141, 0
    %4284 = vmatpush.msra.mxu0 0.0
    %4285 = vmatpush.msra.mxu0 0.0
    %4286 = vmatpush.msra.mxu0 0.0
    %4287 = vmatpush.msra.mxu0 0.0
    %4288 = vmatpush.msra.mxu0 0.0
    %4289 = vmatpush.msra.mxu0 0.0
    %4290 = vmatpush.msra.mxu0 0.0
    %4291 = vmatpush.msra.mxu0 0.0
    %4292 = vmatpush.msra.mxu0 0.0
    %4293 = vmatpush.msra.mxu0 0.0
    %4294 = vmatpush.msra.mxu0 0.0
    %4295 = vmatpush.msra.mxu0 0.0
    %4296 = vmatpush.msra.mxu0 0.0
    %4297 = vmatpush.msra.mxu0 0.0
    %4298 = vmatpush.msra.mxu0 0.0
    %4299 = vmatpush.msra.mxu0 %v4276
    %4300 = vmatmul.f32.gmra.mxu0 %v4279
    %v4301 = vpop.f32.mrf.mxu0
    %v4302 = vadd.f32 %v4270, %v4301
    %4303 = vmatmul.f32.gmra.mxu0 %v4282
    %v4304 = vpop.f32.mrf.mxu0
    %v4305 = vadd.f32 %v4273, %v4304
    %4306 = vdwg.mxu0
    %4307 = vrot.lane.b32.xlu0 %v3993, 112
    %v4308 = vpop.permute.xlu0 %4307
    %4309 = vrot.lane.b32.xlu0 %v3996, 112
    %v4310 = vpop.permute.xlu0 %4309
    %4311 = vrot.lane.b32.xlu0 %v4042, 112
    %v4312 = vpop.permute.xlu0 %4311
    %4313 = vrot.lane.b32.xlu0 %v4045, 112
    %v4314 = vpop.permute.xlu0 %4313
    %v4315 = vsel %vm88, %v4308, 0
    %v4317 = vsel %vm88, %v4310, 0
    %v4319 = vsel %vm88, %v4312, 0
    %v4321 = vsel %vm88, %v4314, 0
    %4323 = vmatpush.xpose.msra.mxu0 0.0
    %4324 = vmatpush.xpose.msra.mxu0 0.0
    %4325 = vmatpush.xpose.msra.mxu0 0.0
    %4326 = vmatpush.xpose.msra.mxu0 0.0
    %4327 = vmatpush.xpose.msra.mxu0 0.0
    %4328 = vmatpush.xpose.msra.mxu0 0.0
    %4329 = vmatpush.xpose.msra.mxu0 0.0
    %4330 = vmatpush.xpose.msra.mxu0 0.0
    %4331 = vmatpush.xpose.msra.mxu0 0.0
    %4332 = vmatpush.xpose.msra.mxu0 0.0
    %4333 = vmatpush.xpose.msra.mxu0 0.0
    %4334 = vmatpush.xpose.msra.mxu0 0.0
    %4335 = vmatpush.xpose.msra.mxu0 0.0
    %4336 = vmatpush.xpose.msra.mxu0 0.0
    %4337 = vmatpush.xpose.msra.mxu0 %v4321
    %4338 = vmatpush.xpose.msra.mxu0 %v4319
    %4339 = vmatmul.f32.gmra.mxu0 %v4315
    %v4340 = vpop.f32.mrf.mxu0
    %v4341 = vadd.f32 0.0, %v4340
    %4342 = vmatmul.f32.gmra.mxu0 %v4317
    %v4343 = vpop.f32.mrf.mxu0
    %v4344 = vadd.f32 0.0, %v4343
    %4345 = vdwg.mxu0
    %v4346 = vmul.f32 %v4341, 0.35355338
    %v4347 = vmul.f32 %v4344, 0.35355338
    %v4348 = vadd.f32 %v4346, %v39
    %v4349 = vadd.f32 %v4347, %v40
    %v4350 = vsel %vm124, %v4348, -inf
    %4351 = vmax.xlane.f32.xlu0 %v4350
    %v4352 = vpop.xlane.xlu0 %4351
    %v4353 = vsel %vm124, %v4349, -inf
    %4354 = vmax.xlane.f32.xlu0 %v4353
    %v4355 = vpop.xlane.xlu0 %4354
    %v4356 = vsub.f32 %v4348, %v4352
    %v4357 = vsub.f32 %v4349, %v4355
    %v4358 = vmul.f32 %v4356, 1.442695
    %v4359 = vpow.pop %v4358
    %v4360 = vmul.f32 %v4357, 1.442695
    %v4361 = vpow.pop %v4360
    %v4362 = vsel %vm124, %v4359, 0.0
    %4363 = vadd.xlane.f32.xlu0 %v4362
    %v4364 = vpop.xlane.xlu0 %4363
    %v4365 = vsel %vm124, %v4361, 0.0
    %4366 = vadd.xlane.f32.xlu0 %v4365
    %v4367 = vpop.xlane.xlu0 %4366
    %v4368 = vrcp.pop %v4364
    %v4369 = vrcp.pop %v4367
    %v4370 = vmul.f32 %v4359, %v4368
    %v4371 = vmul.f32 %v4361, %v4369
    %4372 = vrot.lane.b32.xlu0 %v4042, 80
    %v4373 = vpop.permute.xlu0 %4372
    %4374 = vrot.lane.b32.xlu0 %v4045, 80
    %v4375 = vpop.permute.xlu0 %4374
    %v4379 = vsel %vm124, %v4370, 0
    %v4382 = vsel %vm124, %v4371, 0
    %4384 = vmatpush.msra.mxu0 0.0
    %4385 = vmatpush.msra.mxu0 0.0
    %4386 = vmatpush.msra.mxu0 0.0
    %4387 = vmatpush.msra.mxu0 0.0
    %4388 = vmatpush.msra.mxu0 0.0
    %4389 = vmatpush.msra.mxu0 0.0
    %4390 = vmatpush.msra.mxu0 0.0
    %4391 = vmatpush.msra.mxu0 0.0
    %4392 = vmatpush.msra.mxu0 0.0
    %4393 = vmatpush.msra.mxu0 0.0
    %4394 = vmatpush.msra.mxu0 0.0
    %4395 = vmatpush.msra.mxu0 0.0
    %4396 = vmatpush.msra.mxu0 0.0
    %4397 = vmatpush.msra.mxu0 0.0
    %4398 = vmatpush.msra.mxu0 %v4375
    %4399 = vmatpush.msra.mxu0 %v4373
    %4400 = vmatmul.f32.gmra.mxu0 %v4379
    %v4401 = vpop.f32.mrf.mxu0
    %v4402 = vadd.f32 0.0, %v4401
    %4403 = vmatmul.f32.gmra.mxu0 %v4382
    %v4404 = vpop.f32.mrf.mxu0
    %v4405 = vadd.f32 0.0, %v4404
    %4406 = vdwg.mxu0
    %4407 = vrot.lane.b32.xlu0 %v3971, 32
    %v4408 = vpop.permute.xlu0 %4407
    %v4411 = vsel %vm88, %v4402, 0
    %v4414 = vsel %vm88, %v4405, 0
    %4416 = vmatpush.msra.mxu0 0.0
    %4417 = vmatpush.msra.mxu0 0.0
    %4418 = vmatpush.msra.mxu0 0.0
    %4419 = vmatpush.msra.mxu0 0.0
    %4420 = vmatpush.msra.mxu0 0.0
    %4421 = vmatpush.msra.mxu0 0.0
    %4422 = vmatpush.msra.mxu0 0.0
    %4423 = vmatpush.msra.mxu0 0.0
    %4424 = vmatpush.msra.mxu0 0.0
    %4425 = vmatpush.msra.mxu0 0.0
    %4426 = vmatpush.msra.mxu0 0.0
    %4427 = vmatpush.msra.mxu0 0.0
    %4428 = vmatpush.msra.mxu0 0.0
    %4429 = vmatpush.msra.mxu0 0.0
    %4430 = vmatpush.msra.mxu0 0.0
    %4431 = vmatpush.msra.mxu0 %v4408
    %4432 = vmatmul.f32.gmra.mxu0 %v4411
    %v4433 = vpop.f32.mrf.mxu0
    %v4434 = vadd.f32 0.0, %v4433
    %4435 = vmatmul.f32.gmra.mxu0 %v4414
    %v4436 = vpop.f32.mrf.mxu0
    %v4437 = vadd.f32 0.0, %v4436
    %4438 = vdwg.mxu0
    %v4439 = vadd.f32 %v4302, %v4434
    %v4440 = vadd.f32 %v4305, %v4437
    %4441 = vrot.lane.b32.xlu0 %v3993, 104
    %v4442 = vpop.permute.xlu0 %4441
    %4443 = vrot.lane.b32.xlu0 %v3996, 104
    %v4444 = vpop.permute.xlu0 %4443
    %4445 = vrot.lane.b32.xlu0 %v4042, 104
    %v4446 = vpop.permute.xlu0 %4445
    %4447 = vrot.lane.b32.xlu0 %v4045, 104
    %v4448 = vpop.permute.xlu0 %4447
    %v4449 = vsel %vm88, %v4442, 0
    %v4451 = vsel %vm88, %v4444, 0
    %v4453 = vsel %vm88, %v4446, 0
    %v4455 = vsel %vm88, %v4448, 0
    %4457 = vmatpush.xpose.msra.mxu0 0.0
    %4458 = vmatpush.xpose.msra.mxu0 0.0
    %4459 = vmatpush.xpose.msra.mxu0 0.0
    %4460 = vmatpush.xpose.msra.mxu0 0.0
    %4461 = vmatpush.xpose.msra.mxu0 0.0
    %4462 = vmatpush.xpose.msra.mxu0 0.0
    %4463 = vmatpush.xpose.msra.mxu0 0.0
    %4464 = vmatpush.xpose.msra.mxu0 0.0
    %4465 = vmatpush.xpose.msra.mxu0 0.0
    %4466 = vmatpush.xpose.msra.mxu0 0.0
    %4467 = vmatpush.xpose.msra.mxu0 0.0
    %4468 = vmatpush.xpose.msra.mxu0 0.0
    %4469 = vmatpush.xpose.msra.mxu0 0.0
    %4470 = vmatpush.xpose.msra.mxu0 0.0
    %4471 = vmatpush.xpose.msra.mxu0 %v4455
    %4472 = vmatpush.xpose.msra.mxu0 %v4453
    %4473 = vmatmul.f32.gmra.mxu0 %v4449
    %v4474 = vpop.f32.mrf.mxu0
    %v4475 = vadd.f32 0.0, %v4474
    %4476 = vmatmul.f32.gmra.mxu0 %v4451
    %v4477 = vpop.f32.mrf.mxu0
    %v4478 = vadd.f32 0.0, %v4477
    %4479 = vdwg.mxu0
    %v4480 = vmul.f32 %v4475, 0.35355338
    %v4481 = vmul.f32 %v4478, 0.35355338
    %v4482 = vadd.f32 %v4480, %v39
    %v4483 = vadd.f32 %v4481, %v40
    %v4484 = vsel %vm124, %v4482, -inf
    %4485 = vmax.xlane.f32.xlu0 %v4484
    %v4486 = vpop.xlane.xlu0 %4485
    %v4487 = vsel %vm124, %v4483, -inf
    %4488 = vmax.xlane.f32.xlu0 %v4487
    %v4489 = vpop.xlane.xlu0 %4488
    %v4490 = vsub.f32 %v4482, %v4486
    %v4491 = vsub.f32 %v4483, %v4489
    %v4492 = vmul.f32 %v4490, 1.442695
    %v4493 = vpow.pop %v4492
    %v4494 = vmul.f32 %v4491, 1.442695
    %v4495 = vpow.pop %v4494
    %v4496 = vsel %vm124, %v4493, 0.0
    %4497 = vadd.xlane.f32.xlu0 %v4496
    %v4498 = vpop.xlane.xlu0 %4497
    %v4499 = vsel %vm124, %v4495, 0.0
    %4500 = vadd.xlane.f32.xlu0 %v4499
    %v4501 = vpop.xlane.xlu0 %4500
    %v4502 = vrcp.pop %v4498
    %v4503 = vrcp.pop %v4501
    %v4504 = vmul.f32 %v4493, %v4502
    %v4505 = vmul.f32 %v4495, %v4503
    %4506 = vrot.lane.b32.xlu0 %v4042, 72
    %v4507 = vpop.permute.xlu0 %4506
    %4508 = vrot.lane.b32.xlu0 %v4045, 72
    %v4509 = vpop.permute.xlu0 %4508
    %v4513 = vsel %vm124, %v4504, 0
    %v4516 = vsel %vm124, %v4505, 0
    %4518 = vmatpush.msra.mxu0 0.0
    %4519 = vmatpush.msra.mxu0 0.0
    %4520 = vmatpush.msra.mxu0 0.0
    %4521 = vmatpush.msra.mxu0 0.0
    %4522 = vmatpush.msra.mxu0 0.0
    %4523 = vmatpush.msra.mxu0 0.0
    %4524 = vmatpush.msra.mxu0 0.0
    %4525 = vmatpush.msra.mxu0 0.0
    %4526 = vmatpush.msra.mxu0 0.0
    %4527 = vmatpush.msra.mxu0 0.0
    %4528 = vmatpush.msra.mxu0 0.0
    %4529 = vmatpush.msra.mxu0 0.0
    %4530 = vmatpush.msra.mxu0 0.0
    %4531 = vmatpush.msra.mxu0 0.0
    %4532 = vmatpush.msra.mxu0 %v4509
    %4533 = vmatpush.msra.mxu0 %v4507
    %4534 = vmatmul.f32.gmra.mxu0 %v4513
    %v4535 = vpop.f32.mrf.mxu0
    %v4536 = vadd.f32 0.0, %v4535
    %4537 = vmatmul.f32.gmra.mxu0 %v4516
    %v4538 = vpop.f32.mrf.mxu0
    %v4539 = vadd.f32 0.0, %v4538
    %4540 = vdwg.mxu0
    %4541 = vrot.lane.b32.xlu0 %v3972, 32
    %v4542 = vpop.permute.xlu0 %4541
    %v4545 = vsel %vm88, %v4536, 0
    %v4548 = vsel %vm88, %v4539, 0
    %4550 = vmatpush.msra.mxu0 0.0
    %4551 = vmatpush.msra.mxu0 0.0
    %4552 = vmatpush.msra.mxu0 0.0
    %4553 = vmatpush.msra.mxu0 0.0
    %4554 = vmatpush.msra.mxu0 0.0
    %4555 = vmatpush.msra.mxu0 0.0
    %4556 = vmatpush.msra.mxu0 0.0
    %4557 = vmatpush.msra.mxu0 0.0
    %4558 = vmatpush.msra.mxu0 0.0
    %4559 = vmatpush.msra.mxu0 0.0
    %4560 = vmatpush.msra.mxu0 0.0
    %4561 = vmatpush.msra.mxu0 0.0
    %4562 = vmatpush.msra.mxu0 0.0
    %4563 = vmatpush.msra.mxu0 0.0
    %4564 = vmatpush.msra.mxu0 0.0
    %4565 = vmatpush.msra.mxu0 %v4542
    %4566 = vmatmul.f32.gmra.mxu0 %v4545
    %v4567 = vpop.f32.mrf.mxu0
    %v4568 = vadd.f32 0.0, %v4567
    %4569 = vmatmul.f32.gmra.mxu0 %v4548
    %v4570 = vpop.f32.mrf.mxu0
    %v4571 = vadd.f32 0.0, %v4570
    %4572 = vdwg.mxu0
    %v4573 = vadd.f32 %v4439, %v4568
    %v4574 = vadd.f32 %v4440, %v4571
    %4575 = vrot.lane.b32.xlu0 %v3974, 32
    %v4576 = vpop.permute.xlu0 %4575
    %v4578 = vadd.f32 %v4573, %v4576
    %v4579 = vadd.f32 %v4574, %v4576
    %v4580 = vadd.f32 %v3164, %v4578
    %v4581 = vadd.f32 %v3165, %v4579
    %v4582 = vld [vmem:[%s10 + $0x31] sm:$0x1]
    %v4583 = vld [vmem:[%s10 + $0x32] sm:$0x1]
    %v4584 = vsel %vm52, %v4580, 0.0
    %4585 = vadd.xlane.f32.xlu0 %v4584
    %v4586 = vpop.xlane.xlu0 %4585
    %v4587 = vsel %vm52, %v4581, 0.0
    %4588 = vadd.xlane.f32.xlu0 %v4587
    %v4589 = vpop.xlane.xlu0 %4588
    %v4590 = vmul.f32 %v4586, %v640
    %v4591 = vmul.f32 %v4589, %v640
    %v4592 = vsub.f32 %v4580, %v4590
    %v4593 = vsub.f32 %v4581, %v4591
    %v4594 = vmul.f32 %v4592, %v4592
    %v4595 = vmul.f32 %v4593, %v4593
    %v4596 = vsel %vm52, %v4594, 0.0
    %4597 = vadd.xlane.f32.xlu0 %v4596
    %v4598 = vpop.xlane.xlu0 %4597
    %v4599 = vsel %vm52, %v4595, 0.0
    %4600 = vadd.xlane.f32.xlu0 %v4599
    %v4601 = vpop.xlane.xlu0 %4600
    %v4602 = vmul.f32 %v4598, %v640
    %v4603 = vmul.f32 %v4601, %v640
    %v4604 = vadd.f32 %v4602, 1e-12
    %v4605 = vadd.f32 %v4603, 1e-12
    %v4606 = vrsqrt.pop %v4604
    %v4607 = vmul.f32 %v4606, %v4604
    %v4608 = vmul.f32 %v4607, %v4606
    %v4609 = vmul.f32 0.5, %v4608
    %v4610 = vsub.f32 1.5, %v4609
    %v4611 = vmul.f32 %v4606, %v4610
    %vm4612 = vweird.f32 %v4604
    %vm4613 = vweird.f32 %v4606
    %vm4614 = vmor %vm4612, %vm4613
    %v4615 = vsel %vm4614, %v4606, %v4611
    %v4616 = vrsqrt.pop %v4605
    %v4617 = vmul.f32 %v4616, %v4605
    %v4618 = vmul.f32 %v4617, %v4616
    %v4619 = vmul.f32 0.5, %v4618
    %v4620 = vsub.f32 1.5, %v4619
    %v4621 = vmul.f32 %v4616, %v4620
    %vm4622 = vweird.f32 %v4605
    %vm4623 = vweird.f32 %v4616
    %vm4624 = vmor %vm4622, %vm4623
    %v4625 = vsel %vm4624, %v4616, %v4621
    %v4626 = vmul.f32 %v4592, %v4615
    %v4627 = vmul.f32 %v4593, %v4625
    %v4628 = vperm.slane %v4582, 0
    %v4629 = vmul.f32 %v4626, %v4628
    %v4630 = vmul.f32 %v4627, %v4628
    %v4631 = vperm.slane %v4583, 0
    %v4632 = vadd.f32 %v4629, %v4631
    %v4633 = vadd.f32 %v4630, %v4631
    %s4634 = scalar_lea.vmem %s4, 128
    %v4635 = vld [vmem:[%s4634] sm:$0xff]
    %v4636 = vld [vmem:[%s4634 + $0x8] sm:$0xff]
    %v4637 = vld [vmem:[%s4634 + $0x10] sm:$0xff]
    %v4638 = vld [vmem:[%s4634 + $0x18] sm:$0xff]
    %v4639 = vld [vmem:[%s10 + $0x1c] sm:$0x1]
    %v4640 = vperm.slane %v4639, 0
    %v4642 = vsel %vm52, %v4632, 0
    %v4645 = vsel %vm52, %v4633, 0
    %4647 = vmatpush.msra.mxu0 0.0
    %4648 = vmatpush.msra.mxu0 0.0
    %4649 = vmatpush.msra.mxu0 0.0
    %4650 = vmatpush.msra.mxu0 0.0
    %4651 = vmatpush.msra.mxu0 0.0
    %4652 = vmatpush.msra.mxu0 0.0
    %4653 = vmatpush.msra.mxu0 0.0
    %4654 = vmatpush.msra.mxu0 0.0
    %4655 = vmatpush.msra.mxu0 0.0
    %4656 = vmatpush.msra.mxu0 0.0
    %4657 = vmatpush.msra.mxu0 0.0
    %4658 = vmatpush.msra.mxu0 0.0
    %4659 = vmatpush.msra.mxu0 %v4638
    %4660 = vmatpush.msra.mxu0 %v4637
    %4661 = vmatpush.msra.mxu0 %v4636
    %4662 = vmatpush.msra.mxu0 %v4635
    %4663 = vmatmul.f32.gmra.mxu0 %v4642
    %v4664 = vpop.f32.mrf.mxu0
    %v4665 = vadd.f32 %v4640, %v4664
    %4666 = vmatmul.f32.gmra.mxu0 %v4645
    %v4667 = vpop.f32.mrf.mxu0
    %v4668 = vadd.f32 %v4640, %v4667
    %4669 = vdwg.mxu0
    %4672 = vrot.lane.b32.xlu0 %v4665, 96
    %v4673 = vpop.permute.xlu0 %4672
    %4674 = vrot.lane.b32.xlu0 %v4668, 96
    %v4675 = vpop.permute.xlu0 %4674
    %v4676 = vsel %vm88, %v4665, 0
    %v4678 = vsel %vm88, %v4668, 0
    %v4680 = vsel %vm88, %v4673, 0
    %v4682 = vsel %vm88, %v4675, 0
    %4684 = vmatpush.xpose.msra.mxu0 0.0
    %4685 = vmatpush.xpose.msra.mxu0 0.0
    %4686 = vmatpush.xpose.msra.mxu0 0.0
    %4687 = vmatpush.xpose.msra.mxu0 0.0
    %4688 = vmatpush.xpose.msra.mxu0 0.0
    %4689 = vmatpush.xpose.msra.mxu0 0.0
    %4690 = vmatpush.xpose.msra.mxu0 0.0
    %4691 = vmatpush.xpose.msra.mxu0 0.0
    %4692 = vmatpush.xpose.msra.mxu0 0.0
    %4693 = vmatpush.xpose.msra.mxu0 0.0
    %4694 = vmatpush.xpose.msra.mxu0 0.0
    %4695 = vmatpush.xpose.msra.mxu0 0.0
    %4696 = vmatpush.xpose.msra.mxu0 0.0
    %4697 = vmatpush.xpose.msra.mxu0 0.0
    %4698 = vmatpush.xpose.msra.mxu0 %v4682
    %4699 = vmatpush.xpose.msra.mxu0 %v4680
    %4700 = vmatmul.f32.gmra.mxu0 %v4676
    %v4701 = vpop.f32.mrf.mxu0
    %v4702 = vadd.f32 0.0, %v4701
    %4703 = vmatmul.f32.gmra.mxu0 %v4678
    %v4704 = vpop.f32.mrf.mxu0
    %v4705 = vadd.f32 0.0, %v4704
    %4706 = vdwg.mxu0
    %v4707 = vmul.f32 %v4702, 0.35355338
    %v4708 = vmul.f32 %v4705, 0.35355338
    %v4709 = vadd.f32 %v4707, %v39
    %v4710 = vadd.f32 %v4708, %v40
    %v4711 = vsel %vm124, %v4709, -inf
    %4712 = vmax.xlane.f32.xlu0 %v4711
    %v4713 = vpop.xlane.xlu0 %4712
    %v4714 = vsel %vm124, %v4710, -inf
    %4715 = vmax.xlane.f32.xlu0 %v4714
    %v4716 = vpop.xlane.xlu0 %4715
    %v4717 = vsub.f32 %v4709, %v4713
    %v4718 = vsub.f32 %v4710, %v4716
    %v4719 = vmul.f32 %v4717, 1.442695
    %v4720 = vpow.pop %v4719
    %v4721 = vmul.f32 %v4718, 1.442695
    %v4722 = vpow.pop %v4721
    %v4723 = vsel %vm124, %v4720, 0.0
    %4724 = vadd.xlane.f32.xlu0 %v4723
    %v4725 = vpop.xlane.xlu0 %4724
    %v4726 = vsel %vm124, %v4722, 0.0
    %4727 = vadd.xlane.f32.xlu0 %v4726
    %v4728 = vpop.xlane.xlu0 %4727
    %v4729 = vrcp.pop %v4725
    %v4730 = vrcp.pop %v4728
    %v4731 = vmul.f32 %v4720, %v4729
    %v4732 = vmul.f32 %v4722, %v4730
    %4733 = vrot.lane.b32.xlu0 %v4665, 64
    %v4734 = vpop.permute.xlu0 %4733
    %4735 = vrot.lane.b32.xlu0 %v4668, 64
    %v4736 = vpop.permute.xlu0 %4735
    %v4740 = vsel %vm124, %v4731, 0
    %v4743 = vsel %vm124, %v4732, 0
    %4745 = vmatpush.msra.mxu0 0.0
    %4746 = vmatpush.msra.mxu0 0.0
    %4747 = vmatpush.msra.mxu0 0.0
    %4748 = vmatpush.msra.mxu0 0.0
    %4749 = vmatpush.msra.mxu0 0.0
    %4750 = vmatpush.msra.mxu0 0.0
    %4751 = vmatpush.msra.mxu0 0.0
    %4752 = vmatpush.msra.mxu0 0.0
    %4753 = vmatpush.msra.mxu0 0.0
    %4754 = vmatpush.msra.mxu0 0.0
    %4755 = vmatpush.msra.mxu0 0.0
    %4756 = vmatpush.msra.mxu0 0.0
    %4757 = vmatpush.msra.mxu0 0.0
    %4758 = vmatpush.msra.mxu0 0.0
    %4759 = vmatpush.msra.mxu0 %v4736
    %4760 = vmatpush.msra.mxu0 %v4734
    %4761 = vmatmul.f32.gmra.mxu0 %v4740
    %v4762 = vpop.f32.mrf.mxu0
    %v4763 = vadd.f32 0.0, %v4762
    %4764 = vmatmul.f32.gmra.mxu0 %v4743
    %v4765 = vpop.f32.mrf.mxu0
    %v4766 = vadd.f32 0.0, %v4765
    %4767 = vdwg.mxu0
    %4768 = vrot.lane.b32.xlu0 %v4665, 120
    %v4769 = vpop.permute.xlu0 %4768
    %4770 = vrot.lane.b32.xlu0 %v4668, 120
    %v4771 = vpop.permute.xlu0 %4770
    %4772 = vrot.lane.b32.xlu0 %v4665, 88
    %v4773 = vpop.permute.xlu0 %4772
    %4774 = vrot.lane.b32.xlu0 %v4668, 88
    %v4775 = vpop.permute.xlu0 %4774
    %v4776 = vsel %vm88, %v4769, 0
    %v4778 = vsel %vm88, %v4771, 0
    %v4780 = vsel %vm88, %v4773, 0
    %v4782 = vsel %vm88, %v4775, 0
    %4784 = vmatpush.xpose.msra.mxu0 0.0
    %4785 = vmatpush.xpose.msra.mxu0 0.0
    %4786 = vmatpush.xpose.msra.mxu0 0.0
    %4787 = vmatpush.xpose.msra.mxu0 0.0
    %4788 = vmatpush.xpose.msra.mxu0 0.0
    %4789 = vmatpush.xpose.msra.mxu0 0.0
    %4790 = vmatpush.xpose.msra.mxu0 0.0
    %4791 = vmatpush.xpose.msra.mxu0 0.0
    %4792 = vmatpush.xpose.msra.mxu0 0.0
    %4793 = vmatpush.xpose.msra.mxu0 0.0
    %4794 = vmatpush.xpose.msra.mxu0 0.0
    %4795 = vmatpush.xpose.msra.mxu0 0.0
    %4796 = vmatpush.xpose.msra.mxu0 0.0
    %4797 = vmatpush.xpose.msra.mxu0 0.0
    %4798 = vmatpush.xpose.msra.mxu0 %v4782
    %4799 = vmatpush.xpose.msra.mxu0 %v4780
    %4800 = vmatmul.f32.gmra.mxu0 %v4776
    %v4801 = vpop.f32.mrf.mxu0
    %v4802 = vadd.f32 0.0, %v4801
    %4803 = vmatmul.f32.gmra.mxu0 %v4778
    %v4804 = vpop.f32.mrf.mxu0
    %v4805 = vadd.f32 0.0, %v4804
    %4806 = vdwg.mxu0
    %v4807 = vmul.f32 %v4802, 0.35355338
    %v4808 = vmul.f32 %v4805, 0.35355338
    %v4809 = vadd.f32 %v4807, %v39
    %v4810 = vadd.f32 %v4808, %v40
    %v4811 = vsel %vm124, %v4809, -inf
    %4812 = vmax.xlane.f32.xlu0 %v4811
    %v4813 = vpop.xlane.xlu0 %4812
    %v4814 = vsel %vm124, %v4810, -inf
    %4815 = vmax.xlane.f32.xlu0 %v4814
    %v4816 = vpop.xlane.xlu0 %4815
    %v4817 = vsub.f32 %v4809, %v4813
    %v4818 = vsub.f32 %v4810, %v4816
    %v4819 = vmul.f32 %v4817, 1.442695
    %v4820 = vpow.pop %v4819
    %v4821 = vmul.f32 %v4818, 1.442695
    %v4822 = vpow.pop %v4821
    %v4823 = vsel %vm124, %v4820, 0.0
    %4824 = vadd.xlane.f32.xlu0 %v4823
    %v4825 = vpop.xlane.xlu0 %4824
    %v4826 = vsel %vm124, %v4822, 0.0
    %4827 = vadd.xlane.f32.xlu0 %v4826
    %v4828 = vpop.xlane.xlu0 %4827
    %v4829 = vrcp.pop %v4825
    %v4830 = vrcp.pop %v4828
    %v4831 = vmul.f32 %v4820, %v4829
    %v4832 = vmul.f32 %v4822, %v4830
    %4833 = vrot.lane.b32.xlu0 %v4665, 56
    %v4834 = vpop.permute.xlu0 %4833
    %4835 = vrot.lane.b32.xlu0 %v4668, 56
    %v4836 = vpop.permute.xlu0 %4835
    %v4840 = vsel %vm124, %v4831, 0
    %v4843 = vsel %vm124, %v4832, 0
    %4845 = vmatpush.msra.mxu0 0.0
    %4846 = vmatpush.msra.mxu0 0.0
    %4847 = vmatpush.msra.mxu0 0.0
    %4848 = vmatpush.msra.mxu0 0.0
    %4849 = vmatpush.msra.mxu0 0.0
    %4850 = vmatpush.msra.mxu0 0.0
    %4851 = vmatpush.msra.mxu0 0.0
    %4852 = vmatpush.msra.mxu0 0.0
    %4853 = vmatpush.msra.mxu0 0.0
    %4854 = vmatpush.msra.mxu0 0.0
    %4855 = vmatpush.msra.mxu0 0.0
    %4856 = vmatpush.msra.mxu0 0.0
    %4857 = vmatpush.msra.mxu0 0.0
    %4858 = vmatpush.msra.mxu0 0.0
    %4859 = vmatpush.msra.mxu0 %v4836
    %4860 = vmatpush.msra.mxu0 %v4834
    %4861 = vmatmul.f32.gmra.mxu0 %v4840
    %v4862 = vpop.f32.mrf.mxu0
    %v4863 = vadd.f32 0.0, %v4862
    %4864 = vmatmul.f32.gmra.mxu0 %v4843
    %v4865 = vpop.f32.mrf.mxu0
    %v4866 = vadd.f32 0.0, %v4865
    %4867 = vdwg.mxu0
    %4869 = vrot.lane.b32.xlu0 %v4636, 32
    %v4870 = vpop.permute.xlu0 %4869
    %v4873 = vsel %vm88, %v4863, 0
    %v4876 = vsel %vm88, %v4866, 0
    %4878 = vmatpush.msra.mxu0 0.0
    %4879 = vmatpush.msra.mxu0 0.0
    %4880 = vmatpush.msra.mxu0 0.0
    %4881 = vmatpush.msra.mxu0 0.0
    %4882 = vmatpush.msra.mxu0 0.0
    %4883 = vmatpush.msra.mxu0 0.0
    %4884 = vmatpush.msra.mxu0 0.0
    %4885 = vmatpush.msra.mxu0 0.0
    %4886 = vmatpush.msra.mxu0 0.0
    %4887 = vmatpush.msra.mxu0 0.0
    %4888 = vmatpush.msra.mxu0 0.0
    %4889 = vmatpush.msra.mxu0 0.0
    %4890 = vmatpush.msra.mxu0 0.0
    %4891 = vmatpush.msra.mxu0 0.0
    %4892 = vmatpush.msra.mxu0 0.0
    %4893 = vmatpush.msra.mxu0 %v4870
    %4894 = vmatmul.f32.gmra.mxu0 %v4873
    %v4895 = vpop.f32.mrf.mxu0
    %v4896 = vadd.f32 0.0, %v4895
    %4897 = vmatmul.f32.gmra.mxu0 %v4876
    %v4898 = vpop.f32.mrf.mxu0
    %v4899 = vadd.f32 0.0, %v4898
    %4900 = vdwg.mxu0
    %4902 = vrot.lane.b32.xlu0 %v4635, 32
    %v4903 = vpop.permute.xlu0 %4902
    %v4906 = vsel %vm88, %v4763, 0
    %v4909 = vsel %vm88, %v4766, 0
    %4911 = vmatpush.msra.mxu0 0.0
    %4912 = vmatpush.msra.mxu0 0.0
    %4913 = vmatpush.msra.mxu0 0.0
    %4914 = vmatpush.msra.mxu0 0.0
    %4915 = vmatpush.msra.mxu0 0.0
    %4916 = vmatpush.msra.mxu0 0.0
    %4917 = vmatpush.msra.mxu0 0.0
    %4918 = vmatpush.msra.mxu0 0.0
    %4919 = vmatpush.msra.mxu0 0.0
    %4920 = vmatpush.msra.mxu0 0.0
    %4921 = vmatpush.msra.mxu0 0.0
    %4922 = vmatpush.msra.mxu0 0.0
    %4923 = vmatpush.msra.mxu0 0.0
    %4924 = vmatpush.msra.mxu0 0.0
    %4925 = vmatpush.msra.mxu0 0.0
    %4926 = vmatpush.msra.mxu0 %v4903
    %4927 = vmatmul.f32.gmra.mxu0 %v4906
    %v4928 = vpop.f32.mrf.mxu0
    %v4929 = vadd.f32 %v4896, %v4928
    %4930 = vmatmul.f32.gmra.mxu0 %v4909
    %v4931 = vpop.f32.mrf.mxu0
    %v4932 = vadd.f32 %v4899, %v4931
    %4933 = vdwg.mxu0
    %4934 = vrot.lane.b32.xlu0 %v4665, 112
    %v4935 = vpop.permute.xlu0 %4934
    %4936 = vrot.lane.b32.xlu0 %v4668, 112
    %v4937 = vpop.permute.xlu0 %4936
    %4938 = vrot.lane.b32.xlu0 %v4665, 80
    %v4939 = vpop.permute.xlu0 %4938
    %4940 = vrot.lane.b32.xlu0 %v4668, 80
    %v4941 = vpop.permute.xlu0 %4940
    %v4942 = vsel %vm88, %v4935, 0
    %v4944 = vsel %vm88, %v4937, 0
    %v4946 = vsel %vm88, %v4939, 0
    %v4948 = vsel %vm88, %v4941, 0
    %4950 = vmatpush.xpose.msra.mxu0 0.0
    %4951 = vmatpush.xpose.msra.mxu0 0.0
    %4952 = vmatpush.xpose.msra.mxu0 0.0
    %4953 = vmatpush.xpose.msra.mxu0 0.0
    %4954 = vmatpush.xpose.msra.mxu0 0.0
    %4955 = vmatpush.xpose.msra.mxu0 0.0
    %4956 = vmatpush.xpose.msra.mxu0 0.0
    %4957 = vmatpush.xpose.msra.mxu0 0.0
    %4958 = vmatpush.xpose.msra.mxu0 0.0
    %4959 = vmatpush.xpose.msra.mxu0 0.0
    %4960 = vmatpush.xpose.msra.mxu0 0.0
    %4961 = vmatpush.xpose.msra.mxu0 0.0
    %4962 = vmatpush.xpose.msra.mxu0 0.0
    %4963 = vmatpush.xpose.msra.mxu0 0.0
    %4964 = vmatpush.xpose.msra.mxu0 %v4948
    %4965 = vmatpush.xpose.msra.mxu0 %v4946
    %4966 = vmatmul.f32.gmra.mxu0 %v4942
    %v4967 = vpop.f32.mrf.mxu0
    %v4968 = vadd.f32 0.0, %v4967
    %4969 = vmatmul.f32.gmra.mxu0 %v4944
    %v4970 = vpop.f32.mrf.mxu0
    %v4971 = vadd.f32 0.0, %v4970
    %4972 = vdwg.mxu0
    %v4973 = vmul.f32 %v4968, 0.35355338
    %v4974 = vmul.f32 %v4971, 0.35355338
    %v4975 = vadd.f32 %v4973, %v39
    %v4976 = vadd.f32 %v4974, %v40
    %v4977 = vsel %vm124, %v4975, -inf
    %4978 = vmax.xlane.f32.xlu0 %v4977
    %v4979 = vpop.xlane.xlu0 %4978
    %v4980 = vsel %vm124, %v4976, -inf
    %4981 = vmax.xlane.f32.xlu0 %v4980
    %v4982 = vpop.xlane.xlu0 %4981
    %v4983 = vsub.f32 %v4975, %v4979
    %v4984 = vsub.f32 %v4976, %v4982
    %v4985 = vmul.f32 %v4983, 1.442695
    %v4986 = vpow.pop %v4985
    %v4987 = vmul.f32 %v4984, 1.442695
    %v4988 = vpow.pop %v4987
    %v4989 = vsel %vm124, %v4986, 0.0
    %4990 = vadd.xlane.f32.xlu0 %v4989
    %v4991 = vpop.xlane.xlu0 %4990
    %v4992 = vsel %vm124, %v4988, 0.0
    %4993 = vadd.xlane.f32.xlu0 %v4992
    %v4994 = vpop.xlane.xlu0 %4993
    %v4995 = vrcp.pop %v4991
    %v4996 = vrcp.pop %v4994
    %v4997 = vmul.f32 %v4986, %v4995
    %v4998 = vmul.f32 %v4988, %v4996
    %4999 = vrot.lane.b32.xlu0 %v4665, 48
    %v5000 = vpop.permute.xlu0 %4999
    %5001 = vrot.lane.b32.xlu0 %v4668, 48
    %v5002 = vpop.permute.xlu0 %5001
    %v5006 = vsel %vm124, %v4997, 0
    %v5009 = vsel %vm124, %v4998, 0
    %5011 = vmatpush.msra.mxu0 0.0
    %5012 = vmatpush.msra.mxu0 0.0
    %5013 = vmatpush.msra.mxu0 0.0
    %5014 = vmatpush.msra.mxu0 0.0
    %5015 = vmatpush.msra.mxu0 0.0
    %5016 = vmatpush.msra.mxu0 0.0
    %5017 = vmatpush.msra.mxu0 0.0
    %5018 = vmatpush.msra.mxu0 0.0
    %5019 = vmatpush.msra.mxu0 0.0
    %5020 = vmatpush.msra.mxu0 0.0
    %5021 = vmatpush.msra.mxu0 0.0
    %5022 = vmatpush.msra.mxu0 0.0
    %5023 = vmatpush.msra.mxu0 0.0
    %5024 = vmatpush.msra.mxu0 0.0
    %5025 = vmatpush.msra.mxu0 %v5002
    %5026 = vmatpush.msra.mxu0 %v5000
    %5027 = vmatmul.f32.gmra.mxu0 %v5006
    %v5028 = vpop.f32.mrf.mxu0
    %v5029 = vadd.f32 0.0, %v5028
    %5030 = vmatmul.f32.gmra.mxu0 %v5009
    %v5031 = vpop.f32.mrf.mxu0
    %v5032 = vadd.f32 0.0, %v5031
    %5033 = vdwg.mxu0
    %5035 = vrot.lane.b32.xlu0 %v4637, 32
    %v5036 = vpop.permute.xlu0 %5035
    %v5039 = vsel %vm88, %v5029, 0
    %v5042 = vsel %vm88, %v5032, 0
    %5044 = vmatpush.msra.mxu0 0.0
    %5045 = vmatpush.msra.mxu0 0.0
    %5046 = vmatpush.msra.mxu0 0.0
    %5047 = vmatpush.msra.mxu0 0.0
    %5048 = vmatpush.msra.mxu0 0.0
    %5049 = vmatpush.msra.mxu0 0.0
    %5050 = vmatpush.msra.mxu0 0.0
    %5051 = vmatpush.msra.mxu0 0.0
    %5052 = vmatpush.msra.mxu0 0.0
    %5053 = vmatpush.msra.mxu0 0.0
    %5054 = vmatpush.msra.mxu0 0.0
    %5055 = vmatpush.msra.mxu0 0.0
    %5056 = vmatpush.msra.mxu0 0.0
    %5057 = vmatpush.msra.mxu0 0.0
    %5058 = vmatpush.msra.mxu0 0.0
    %5059 = vmatpush.msra.mxu0 %v5036
    %5060 = vmatmul.f32.gmra.mxu0 %v5039
    %v5061 = vpop.f32.mrf.mxu0
    %v5062 = vadd.f32 0.0, %v5061
    %5063 = vmatmul.f32.gmra.mxu0 %v5042
    %v5064 = vpop.f32.mrf.mxu0
    %v5065 = vadd.f32 0.0, %v5064
    %5066 = vdwg.mxu0
    %v5067 = vadd.f32 %v4929, %v5062
    %v5068 = vadd.f32 %v4932, %v5065
    %5069 = vrot.lane.b32.xlu0 %v4665, 104
    %v5070 = vpop.permute.xlu0 %5069
    %5071 = vrot.lane.b32.xlu0 %v4668, 104
    %v5072 = vpop.permute.xlu0 %5071
    %5073 = vrot.lane.b32.xlu0 %v4665, 72
    %v5074 = vpop.permute.xlu0 %5073
    %5075 = vrot.lane.b32.xlu0 %v4668, 72
    %v5076 = vpop.permute.xlu0 %5075
    %v5077 = vsel %vm88, %v5070, 0
    %v5079 = vsel %vm88, %v5072, 0
    %v5081 = vsel %vm88, %v5074, 0
    %v5083 = vsel %vm88, %v5076, 0
    %5085 = vmatpush.xpose.msra.mxu0 0.0
    %5086 = vmatpush.xpose.msra.mxu0 0.0
    %5087 = vmatpush.xpose.msra.mxu0 0.0
    %5088 = vmatpush.xpose.msra.mxu0 0.0
    %5089 = vmatpush.xpose.msra.mxu0 0.0
    %5090 = vmatpush.xpose.msra.mxu0 0.0
    %5091 = vmatpush.xpose.msra.mxu0 0.0
    %5092 = vmatpush.xpose.msra.mxu0 0.0
    %5093 = vmatpush.xpose.msra.mxu0 0.0
    %5094 = vmatpush.xpose.msra.mxu0 0.0
    %5095 = vmatpush.xpose.msra.mxu0 0.0
    %5096 = vmatpush.xpose.msra.mxu0 0.0
    %5097 = vmatpush.xpose.msra.mxu0 0.0
    %5098 = vmatpush.xpose.msra.mxu0 0.0
    %5099 = vmatpush.xpose.msra.mxu0 %v5083
    %5100 = vmatpush.xpose.msra.mxu0 %v5081
    %5101 = vmatmul.f32.gmra.mxu0 %v5077
    %v5102 = vpop.f32.mrf.mxu0
    %v5103 = vadd.f32 0.0, %v5102
    %5104 = vmatmul.f32.gmra.mxu0 %v5079
    %v5105 = vpop.f32.mrf.mxu0
    %v5106 = vadd.f32 0.0, %v5105
    %5107 = vdwg.mxu0
    %v5108 = vmul.f32 %v5103, 0.35355338
    %v5109 = vmul.f32 %v5106, 0.35355338
    %v5110 = vadd.f32 %v5108, %v39
    %v5111 = vadd.f32 %v5109, %v40
    %v5112 = vsel %vm124, %v5110, -inf
    %5113 = vmax.xlane.f32.xlu0 %v5112
    %v5114 = vpop.xlane.xlu0 %5113
    %v5115 = vsel %vm124, %v5111, -inf
    %5116 = vmax.xlane.f32.xlu0 %v5115
    %v5117 = vpop.xlane.xlu0 %5116
    %v5118 = vsub.f32 %v5110, %v5114
    %v5119 = vsub.f32 %v5111, %v5117
    %v5120 = vmul.f32 %v5118, 1.442695
    %v5121 = vpow.pop %v5120
    %v5122 = vmul.f32 %v5119, 1.442695
    %v5123 = vpow.pop %v5122
    %v5124 = vsel %vm124, %v5121, 0.0
    %5125 = vadd.xlane.f32.xlu0 %v5124
    %v5126 = vpop.xlane.xlu0 %5125
    %v5127 = vsel %vm124, %v5123, 0.0
    %5128 = vadd.xlane.f32.xlu0 %v5127
    %v5129 = vpop.xlane.xlu0 %5128
    %v5130 = vrcp.pop %v5126
    %v5131 = vrcp.pop %v5129
    %v5132 = vmul.f32 %v5121, %v5130
    %v5133 = vmul.f32 %v5123, %v5131
    %5134 = vrot.lane.b32.xlu0 %v4665, 40
    %v5135 = vpop.permute.xlu0 %5134
    %5136 = vrot.lane.b32.xlu0 %v4668, 40
    %v5137 = vpop.permute.xlu0 %5136
    %v5141 = vsel %vm124, %v5132, 0
    %v5144 = vsel %vm124, %v5133, 0
    %5146 = vmatpush.msra.mxu0 0.0
    %5147 = vmatpush.msra.mxu0 0.0
    %5148 = vmatpush.msra.mxu0 0.0
    %5149 = vmatpush.msra.mxu0 0.0
    %5150 = vmatpush.msra.mxu0 0.0
    %5151 = vmatpush.msra.mxu0 0.0
    %5152 = vmatpush.msra.mxu0 0.0
    %5153 = vmatpush.msra.mxu0 0.0
    %5154 = vmatpush.msra.mxu0 0.0
    %5155 = vmatpush.msra.mxu0 0.0
    %5156 = vmatpush.msra.mxu0 0.0
    %5157 = vmatpush.msra.mxu0 0.0
    %5158 = vmatpush.msra.mxu0 0.0
    %5159 = vmatpush.msra.mxu0 0.0
    %5160 = vmatpush.msra.mxu0 %v5137
    %5161 = vmatpush.msra.mxu0 %v5135
    %5162 = vmatmul.f32.gmra.mxu0 %v5141
    %v5163 = vpop.f32.mrf.mxu0
    %v5164 = vadd.f32 0.0, %v5163
    %5165 = vmatmul.f32.gmra.mxu0 %v5144
    %v5166 = vpop.f32.mrf.mxu0
    %v5167 = vadd.f32 0.0, %v5166
    %5168 = vdwg.mxu0
    %5170 = vrot.lane.b32.xlu0 %v4638, 32
    %v5171 = vpop.permute.xlu0 %5170
    %v5174 = vsel %vm88, %v5164, 0
    %v5177 = vsel %vm88, %v5167, 0
    %5179 = vmatpush.msra.mxu0 0.0
    %5180 = vmatpush.msra.mxu0 0.0
    %5181 = vmatpush.msra.mxu0 0.0
    %5182 = vmatpush.msra.mxu0 0.0
    %5183 = vmatpush.msra.mxu0 0.0
    %5184 = vmatpush.msra.mxu0 0.0
    %5185 = vmatpush.msra.mxu0 0.0
    %5186 = vmatpush.msra.mxu0 0.0
    %5187 = vmatpush.msra.mxu0 0.0
    %5188 = vmatpush.msra.mxu0 0.0
    %5189 = vmatpush.msra.mxu0 0.0
    %5190 = vmatpush.msra.mxu0 0.0
    %5191 = vmatpush.msra.mxu0 0.0
    %5192 = vmatpush.msra.mxu0 0.0
    %5193 = vmatpush.msra.mxu0 0.0
    %5194 = vmatpush.msra.mxu0 %v5171
    %5195 = vmatmul.f32.gmra.mxu0 %v5174
    %v5196 = vpop.f32.mrf.mxu0
    %v5197 = vadd.f32 0.0, %v5196
    %5198 = vmatmul.f32.gmra.mxu0 %v5177
    %v5199 = vpop.f32.mrf.mxu0
    %v5200 = vadd.f32 0.0, %v5199
    %5201 = vdwg.mxu0
    %v5202 = vadd.f32 %v5067, %v5197
    %v5203 = vadd.f32 %v5068, %v5200
    %5205 = vrot.lane.b32.xlu0 %v4640, 32
    %v5206 = vpop.permute.xlu0 %5205
    %v5208 = vadd.f32 %v5202, %v5206
    %v5209 = vadd.f32 %v5203, %v5206
    %v5210 = vadd.f32 %v4632, %v5208
    %v5211 = vadd.f32 %v4633, %v5209
    %v5212 = vld [vmem:[%s10 + $0x1f] sm:$0x1]
    %v5213 = vld [vmem:[%s10 + $0x20] sm:$0x1]
    %v5214 = vsel %vm52, %v5210, 0.0
    %5215 = vadd.xlane.f32.xlu0 %v5214
    %v5216 = vpop.xlane.xlu0 %5215
    %v5217 = vsel %vm52, %v5211, 0.0
    %5218 = vadd.xlane.f32.xlu0 %v5217
    %v5219 = vpop.xlane.xlu0 %5218
    %v5220 = vmul.f32 %v5216, %v640
    %v5221 = vmul.f32 %v5219, %v640
    %v5222 = vsub.f32 %v5210, %v5220
    %v5223 = vsub.f32 %v5211, %v5221
    %v5224 = vmul.f32 %v5222, %v5222
    %v5225 = vmul.f32 %v5223, %v5223
    %v5226 = vsel %vm52, %v5224, 0.0
    %5227 = vadd.xlane.f32.xlu0 %v5226
    %v5228 = vpop.xlane.xlu0 %5227
    %v5229 = vsel %vm52, %v5225, 0.0
    %5230 = vadd.xlane.f32.xlu0 %v5229
    %v5231 = vpop.xlane.xlu0 %5230
    %v5232 = vmul.f32 %v5228, %v640
    %v5233 = vmul.f32 %v5231, %v640
    %v5234 = vadd.f32 %v5232, 1e-12
    %v5235 = vadd.f32 %v5233, 1e-12
    %v5236 = vrsqrt.pop %v5234
    %v5237 = vmul.f32 %v5236, %v5234
    %v5238 = vmul.f32 %v5237, %v5236
    %v5239 = vmul.f32 0.5, %v5238
    %v5240 = vsub.f32 1.5, %v5239
    %v5241 = vmul.f32 %v5236, %v5240
    %vm5242 = vweird.f32 %v5234
    %vm5243 = vweird.f32 %v5236
    %vm5244 = vmor %vm5242, %vm5243
    %v5245 = vsel %vm5244, %v5236, %v5241
    %v5246 = vrsqrt.pop %v5235
    %v5247 = vmul.f32 %v5246, %v5235
    %v5248 = vmul.f32 %v5247, %v5246
    %v5249 = vmul.f32 0.5, %v5248
    %v5250 = vsub.f32 1.5, %v5249
    %v5251 = vmul.f32 %v5246, %v5250
    %vm5252 = vweird.f32 %v5235
    %vm5253 = vweird.f32 %v5246
    %vm5254 = vmor %vm5252, %vm5253
    %v5255 = vsel %vm5254, %v5246, %v5251
    %v5256 = vmul.f32 %v5222, %v5245
    %v5257 = vmul.f32 %v5223, %v5255
    %v5258 = vperm.slane %v5212, 0
    %v5259 = vmul.f32 %v5256, %v5258
    %v5260 = vmul.f32 %v5257, %v5258
    %v5261 = vperm.slane %v5213, 0
    %v5262 = vadd.f32 %v5259, %v5261
    %v5263 = vadd.f32 %v5260, %v5261
    %s5264 = scalar_lea.vmem %s5, 128
    %v5265 = vld [vmem:[%s5264] sm:$0xff]
    %v5266 = vld [vmem:[%s5264 + $0x8] sm:$0xff]
    %v5267 = vld [vmem:[%s5264 + $0x10] sm:$0xff]
    %v5268 = vld [vmem:[%s5264 + $0x18] sm:$0xff]
    %v5269 = vld [vmem:[%s10 + $0x1d] sm:$0x1]
    %v5270 = vperm.slane %v5269, 0
    %v5272 = vsel %vm52, %v5262, 0
    %v5275 = vsel %vm52, %v5263, 0
    %5277 = vmatpush.msra.mxu0 0.0
    %5278 = vmatpush.msra.mxu0 0.0
    %5279 = vmatpush.msra.mxu0 0.0
    %5280 = vmatpush.msra.mxu0 0.0
    %5281 = vmatpush.msra.mxu0 0.0
    %5282 = vmatpush.msra.mxu0 0.0
    %5283 = vmatpush.msra.mxu0 0.0
    %5284 = vmatpush.msra.mxu0 0.0
    %5285 = vmatpush.msra.mxu0 0.0
    %5286 = vmatpush.msra.mxu0 0.0
    %5287 = vmatpush.msra.mxu0 0.0
    %5288 = vmatpush.msra.mxu0 0.0
    %5289 = vmatpush.msra.mxu0 %v5268
    %5290 = vmatpush.msra.mxu0 %v5267
    %5291 = vmatpush.msra.mxu0 %v5266
    %5292 = vmatpush.msra.mxu0 %v5265
    %5293 = vmatmul.f32.gmra.mxu0 %v5272
    %v5294 = vpop.f32.mrf.mxu0
    %v5295 = vadd.f32 %v5270, %v5294
    %5296 = vmatmul.f32.gmra.mxu0 %v5275
    %v5297 = vpop.f32.mrf.mxu0
    %v5298 = vadd.f32 %v5270, %v5297
    %5299 = vdwg.mxu0
    %v5300 = vmul.f32 %v5295, 0.5
    %v5301 = vmul.f32 %v5298, 0.5
    %v5302 = vmul.f32 %v5295, 0.044715
    %v5303 = vmul.f32 %v5298, 0.044715
    %v5304 = vmul.f32 %v5302, %v5295
    %v5305 = vmul.f32 %v5303, %v5298
    %v5306 = vmul.f32 %v5304, %v5295
    %v5307 = vmul.f32 %v5305, %v5298
    %v5308 = vadd.f32 %v5295, %v5306
    %v5309 = vadd.f32 %v5298, %v5307
    %v5310 = vmul.f32 %v5308, 0.7978846
    %v5311 = vmul.f32 %v5309, 0.7978846
    %v5312 = vtanh.pop %v5310
    %v5313 = vtanh.pop %v5311
    %v5314 = vadd.f32 %v5312, 1.0
    %v5315 = vadd.f32 %v5313, 1.0
    %v5316 = vmul.f32 %v5300, %v5314
    %v5317 = vmul.f32 %v5301, %v5315
    %s5318 = scalar_lea.vmem %s6, 256
    %v5319 = vld [vmem:[%s5318] sm:$0xff]
    %v5320 = vld [vmem:[%s5318 + $0x8] sm:$0xff]
    %v5321 = vld [vmem:[%s5318 + $0x10] sm:$0xff]
    %v5322 = vld [vmem:[%s5318 + $0x18] sm:$0xff]
    %v5323 = vld [vmem:[%s5318 + $0x20] sm:$0xff]
    %v5324 = vld [vmem:[%s5318 + $0x28] sm:$0xff]
    %v5325 = vld [vmem:[%s5318 + $0x30] sm:$0xff]
    %v5326 = vld [vmem:[%s5318 + $0x38] sm:$0xff]
    %v5327 = vld [vmem:[%s10 + $0x1e] sm:$0x1]
    %v5328 = vperm.slane %v5327, 0
    %v5330 = vsel %vm748, %v5316, 0
    %v5333 = vsel %vm748, %v5317, 0
    %5335 = vmatpush.msra.mxu0 0.0
    %5336 = vmatpush.msra.mxu0 0.0
    %5337 = vmatpush.msra.mxu0 0.0
    %5338 = vmatpush.msra.mxu0 0.0
    %5339 = vmatpush.msra.mxu0 0.0
    %5340 = vmatpush.msra.mxu0 0.0
    %5341 = vmatpush.msra.mxu0 0.0
    %5342 = vmatpush.msra.mxu0 0.0
    %5343 = vmatpush.msra.mxu0 %v5326
    %5344 = vmatpush.msra.mxu0 %v5325
    %5345 = vmatpush.msra.mxu0 %v5324
    %5346 = vmatpush.msra.mxu0 %v5323
    %5347 = vmatpush.msra.mxu0 %v5322
    %5348 = vmatpush.msra.mxu0 %v5321
    %5349 = vmatpush.msra.mxu0 %v5320
    %5350 = vmatpush.msra.mxu0 %v5319
    %5351 = vmatmul.f32.gmra.mxu0 %v5330
    %v5352 = vpop.f32.mrf.mxu0
    %v5353 = vadd.f32 %v5328, %v5352
    %5354 = vmatmul.f32.gmra.mxu0 %v5333
    %v5355 = vpop.f32.mrf.mxu0
    %v5356 = vadd.f32 %v5328, %v5355
    %5357 = vdwg.mxu0
    %v5358 = vadd.f32 %v5262, %v5353
    %v5359 = vadd.f32 %v5263, %v5356
    %v5360 = vld [vmem:[%s10 + $0x21] sm:$0x1]
    %v5361 = vld [vmem:[%s10 + $0x22] sm:$0x1]
    %v5362 = vsel %vm52, %v5358, 0.0
    %5363 = vadd.xlane.f32.xlu0 %v5362
    %v5364 = vpop.xlane.xlu0 %5363
    %v5365 = vsel %vm52, %v5359, 0.0
    %5366 = vadd.xlane.f32.xlu0 %v5365
    %v5367 = vpop.xlane.xlu0 %5366
    %v5368 = vmul.f32 %v5364, %v640
    %v5369 = vmul.f32 %v5367, %v640
    %v5370 = vsub.f32 %v5358, %v5368
    %v5371 = vsub.f32 %v5359, %v5369
    %v5372 = vmul.f32 %v5370, %v5370
    %v5373 = vmul.f32 %v5371, %v5371
    %v5374 = vsel %vm52, %v5372, 0.0
    %5375 = vadd.xlane.f32.xlu0 %v5374
    %v5376 = vpop.xlane.xlu0 %5375
    %v5377 = vsel %vm52, %v5373, 0.0
    %5378 = vadd.xlane.f32.xlu0 %v5377
    %v5379 = vpop.xlane.xlu0 %5378
    %v5380 = vmul.f32 %v5376, %v640
    %v5381 = vmul.f32 %v5379, %v640
    %v5382 = vadd.f32 %v5380, 1e-12
    %v5383 = vadd.f32 %v5381, 1e-12
    %v5384 = vrsqrt.pop %v5382
    %v5385 = vmul.f32 %v5384, %v5382
    %v5386 = vmul.f32 %v5385, %v5384
    %v5387 = vmul.f32 0.5, %v5386
    %v5388 = vsub.f32 1.5, %v5387
    %v5389 = vmul.f32 %v5384, %v5388
    %vm5390 = vweird.f32 %v5382
    %vm5391 = vweird.f32 %v5384
    %vm5392 = vmor %vm5390, %vm5391
    %v5393 = vsel %vm5392, %v5384, %v5389
    %v5394 = vrsqrt.pop %v5383
    %v5395 = vmul.f32 %v5394, %v5383
    %v5396 = vmul.f32 %v5395, %v5394
    %v5397 = vmul.f32 0.5, %v5396
    %v5398 = vsub.f32 1.5, %v5397
    %v5399 = vmul.f32 %v5394, %v5398
    %vm5400 = vweird.f32 %v5383
    %vm5401 = vweird.f32 %v5394
    %vm5402 = vmor %vm5400, %vm5401
    %v5403 = vsel %vm5402, %v5394, %v5399
    %v5404 = vmul.f32 %v5370, %v5393
    %v5405 = vmul.f32 %v5371, %v5403
    %v5406 = vperm.slane %v5360, 0
    %v5407 = vmul.f32 %v5404, %v5406
    %v5408 = vmul.f32 %v5405, %v5406
    %v5409 = vperm.slane %v5361, 0
    %v5410 = vadd.f32 %v5407, %v5409
    %v5411 = vadd.f32 %v5408, %v5409
    %s5412 = scalar_lea.vmem %s4, 160
    %v5413 = vld [vmem:[%s5412] sm:$0xff]
    %v5414 = vld [vmem:[%s5412 + $0x8] sm:$0xff]
    %v5415 = vld [vmem:[%s5412 + $0x10] sm:$0xff]
    %v5416 = vld [vmem:[%s5412 + $0x18] sm:$0xff]
    %v5417 = vld [vmem:[%s10 + $0x23] sm:$0x1]
    %v5418 = vperm.slane %v5417, 0
    %v5420 = vsel %vm52, %v5410, 0
    %v5423 = vsel %vm52, %v5411, 0
    %5425 = vmatpush.msra.mxu0 0.0
    %5426 = vmatpush.msra.mxu0 0.0
    %5427 = vmatpush.msra.mxu0 0.0
    %5428 = vmatpush.msra.mxu0 0.0
    %5429 = vmatpush.msra.mxu0 0.0
    %5430 = vmatpush.msra.mxu0 0.0
    %5431 = vmatpush.msra.mxu0 0.0
    %5432 = vmatpush.msra.mxu0 0.0
    %5433 = vmatpush.msra.mxu0 0.0
    %5434 = vmatpush.msra.mxu0 0.0
    %5435 = vmatpush.msra.mxu0 0.0
    %5436 = vmatpush.msra.mxu0 0.0
    %5437 = vmatpush.msra.mxu0 %v5416
    %5438 = vmatpush.msra.mxu0 %v5415
    %5439 = vmatpush.msra.mxu0 %v5414
    %5440 = vmatpush.msra.mxu0 %v5413
    %5441 = vmatmul.f32.gmra.mxu0 %v5420
    %v5442 = vpop.f32.mrf.mxu0
    %v5443 = vadd.f32 %v5418, %v5442
    %5444 = vmatmul.f32.gmra.mxu0 %v5423
    %v5445 = vpop.f32.mrf.mxu0
    %v5446 = vadd.f32 %v5418, %v5445
    %5447 = vdwg.mxu0
    %5450 = vrot.lane.b32.xlu0 %v5443, 96
    %v5451 = vpop.permute.xlu0 %5450
    %5452 = vrot.lane.b32.xlu0 %v5446, 96
    %v5453 = vpop.permute.xlu0 %5452
    %v5454 = vsel %vm88, %v5443, 0
    %v5456 = vsel %vm88, %v5446, 0
    %v5458 = vsel %vm88, %v5451, 0
    %v5460 = vsel %vm88, %v5453, 0
    %5462 = vmatpush.xpose.msra.mxu0 0.0
    %5463 = vmatpush.xpose.msra.mxu0 0.0
    %5464 = vmatpush.xpose.msra.mxu0 0.0
    %5465 = vmatpush.xpose.msra.mxu0 0.0
    %5466 = vmatpush.xpose.msra.mxu0 0.0
    %5467 = vmatpush.xpose.msra.mxu0 0.0
    %5468 = vmatpush.xpose.msra.mxu0 0.0
    %5469 = vmatpush.xpose.msra.mxu0 0.0
    %5470 = vmatpush.xpose.msra.mxu0 0.0
    %5471 = vmatpush.xpose.msra.mxu0 0.0
    %5472 = vmatpush.xpose.msra.mxu0 0.0
    %5473 = vmatpush.xpose.msra.mxu0 0.0
    %5474 = vmatpush.xpose.msra.mxu0 0.0
    %5475 = vmatpush.xpose.msra.mxu0 0.0
    %5476 = vmatpush.xpose.msra.mxu0 %v5460
    %5477 = vmatpush.xpose.msra.mxu0 %v5458
    %5478 = vmatmul.f32.gmra.mxu0 %v5454
    %v5479 = vpop.f32.mrf.mxu0
    %v5480 = vadd.f32 0.0, %v5479
    %5481 = vmatmul.f32.gmra.mxu0 %v5456
    %v5482 = vpop.f32.mrf.mxu0
    %v5483 = vadd.f32 0.0, %v5482
    %5484 = vdwg.mxu0
    %v5485 = vmul.f32 %v5480, 0.35355338
    %v5486 = vmul.f32 %v5483, 0.35355338
    %v5487 = vadd.f32 %v5485, %v39
    %v5488 = vadd.f32 %v5486, %v40
    %v5489 = vsel %vm124, %v5487, -inf
    %5490 = vmax.xlane.f32.xlu0 %v5489
    %v5491 = vpop.xlane.xlu0 %5490
    %v5492 = vsel %vm124, %v5488, -inf
    %5493 = vmax.xlane.f32.xlu0 %v5492
    %v5494 = vpop.xlane.xlu0 %5493
    %v5495 = vsub.f32 %v5487, %v5491
    %v5496 = vsub.f32 %v5488, %v5494
    %v5497 = vmul.f32 %v5495, 1.442695
    %v5498 = vpow.pop %v5497
    %v5499 = vmul.f32 %v5496, 1.442695
    %v5500 = vpow.pop %v5499
    %v5501 = vsel %vm124, %v5498, 0.0
    %5502 = vadd.xlane.f32.xlu0 %v5501
    %v5503 = vpop.xlane.xlu0 %5502
    %v5504 = vsel %vm124, %v5500, 0.0
    %5505 = vadd.xlane.f32.xlu0 %v5504
    %v5506 = vpop.xlane.xlu0 %5505
    %v5507 = vrcp.pop %v5503
    %v5508 = vrcp.pop %v5506
    %v5509 = vmul.f32 %v5498, %v5507
    %v5510 = vmul.f32 %v5500, %v5508
    %5511 = vrot.lane.b32.xlu0 %v5443, 64
    %v5512 = vpop.permute.xlu0 %5511
    %5513 = vrot.lane.b32.xlu0 %v5446, 64
    %v5514 = vpop.permute.xlu0 %5513
    %v5518 = vsel %vm124, %v5509, 0
    %v5521 = vsel %vm124, %v5510, 0
    %5523 = vmatpush.msra.mxu0 0.0
    %5524 = vmatpush.msra.mxu0 0.0
    %5525 = vmatpush.msra.mxu0 0.0
    %5526 = vmatpush.msra.mxu0 0.0
    %5527 = vmatpush.msra.mxu0 0.0
    %5528 = vmatpush.msra.mxu0 0.0
    %5529 = vmatpush.msra.mxu0 0.0
    %5530 = vmatpush.msra.mxu0 0.0
    %5531 = vmatpush.msra.mxu0 0.0
    %5532 = vmatpush.msra.mxu0 0.0
    %5533 = vmatpush.msra.mxu0 0.0
    %5534 = vmatpush.msra.mxu0 0.0
    %5535 = vmatpush.msra.mxu0 0.0
    %5536 = vmatpush.msra.mxu0 0.0
    %5537 = vmatpush.msra.mxu0 %v5514
    %5538 = vmatpush.msra.mxu0 %v5512
    %5539 = vmatmul.f32.gmra.mxu0 %v5518
    %v5540 = vpop.f32.mrf.mxu0
    %v5541 = vadd.f32 0.0, %v5540
    %5542 = vmatmul.f32.gmra.mxu0 %v5521
    %v5543 = vpop.f32.mrf.mxu0
    %v5544 = vadd.f32 0.0, %v5543
    %5545 = vdwg.mxu0
    %5546 = vrot.lane.b32.xlu0 %v5443, 120
    %v5547 = vpop.permute.xlu0 %5546
    %5548 = vrot.lane.b32.xlu0 %v5446, 120
    %v5549 = vpop.permute.xlu0 %5548
    %5550 = vrot.lane.b32.xlu0 %v5443, 88
    %v5551 = vpop.permute.xlu0 %5550
    %5552 = vrot.lane.b32.xlu0 %v5446, 88
    %v5553 = vpop.permute.xlu0 %5552
    %v5554 = vsel %vm88, %v5547, 0
    %v5556 = vsel %vm88, %v5549, 0
    %v5558 = vsel %vm88, %v5551, 0
    %v5560 = vsel %vm88, %v5553, 0
    %5562 = vmatpush.xpose.msra.mxu0 0.0
    %5563 = vmatpush.xpose.msra.mxu0 0.0
    %5564 = vmatpush.xpose.msra.mxu0 0.0
    %5565 = vmatpush.xpose.msra.mxu0 0.0
    %5566 = vmatpush.xpose.msra.mxu0 0.0
    %5567 = vmatpush.xpose.msra.mxu0 0.0
    %5568 = vmatpush.xpose.msra.mxu0 0.0
    %5569 = vmatpush.xpose.msra.mxu0 0.0
    %5570 = vmatpush.xpose.msra.mxu0 0.0
    %5571 = vmatpush.xpose.msra.mxu0 0.0
    %5572 = vmatpush.xpose.msra.mxu0 0.0
    %5573 = vmatpush.xpose.msra.mxu0 0.0
    %5574 = vmatpush.xpose.msra.mxu0 0.0
    %5575 = vmatpush.xpose.msra.mxu0 0.0
    %5576 = vmatpush.xpose.msra.mxu0 %v5560
    %5577 = vmatpush.xpose.msra.mxu0 %v5558
    %5578 = vmatmul.f32.gmra.mxu0 %v5554
    %v5579 = vpop.f32.mrf.mxu0
    %v5580 = vadd.f32 0.0, %v5579
    %5581 = vmatmul.f32.gmra.mxu0 %v5556
    %v5582 = vpop.f32.mrf.mxu0
    %v5583 = vadd.f32 0.0, %v5582
    %5584 = vdwg.mxu0
    %v5585 = vmul.f32 %v5580, 0.35355338
    %v5586 = vmul.f32 %v5583, 0.35355338
    %v5587 = vadd.f32 %v5585, %v39
    %v5588 = vadd.f32 %v5586, %v40
    %v5589 = vsel %vm124, %v5587, -inf
    %5590 = vmax.xlane.f32.xlu0 %v5589
    %v5591 = vpop.xlane.xlu0 %5590
    %v5592 = vsel %vm124, %v5588, -inf
    %5593 = vmax.xlane.f32.xlu0 %v5592
    %v5594 = vpop.xlane.xlu0 %5593
    %v5595 = vsub.f32 %v5587, %v5591
    %v5596 = vsub.f32 %v5588, %v5594
    %v5597 = vmul.f32 %v5595, 1.442695
    %v5598 = vpow.pop %v5597
    %v5599 = vmul.f32 %v5596, 1.442695
    %v5600 = vpow.pop %v5599
    %v5601 = vsel %vm124, %v5598, 0.0
    %5602 = vadd.xlane.f32.xlu0 %v5601
    %v5603 = vpop.xlane.xlu0 %5602
    %v5604 = vsel %vm124, %v5600, 0.0
    %5605 = vadd.xlane.f32.xlu0 %v5604
    %v5606 = vpop.xlane.xlu0 %5605
    %v5607 = vrcp.pop %v5603
    %v5608 = vrcp.pop %v5606
    %v5609 = vmul.f32 %v5598, %v5607
    %v5610 = vmul.f32 %v5600, %v5608
    %5611 = vrot.lane.b32.xlu0 %v5443, 56
    %v5612 = vpop.permute.xlu0 %5611
    %5613 = vrot.lane.b32.xlu0 %v5446, 56
    %v5614 = vpop.permute.xlu0 %5613
    %v5618 = vsel %vm124, %v5609, 0
    %v5621 = vsel %vm124, %v5610, 0
    %5623 = vmatpush.msra.mxu0 0.0
    %5624 = vmatpush.msra.mxu0 0.0
    %5625 = vmatpush.msra.mxu0 0.0
    %5626 = vmatpush.msra.mxu0 0.0
    %5627 = vmatpush.msra.mxu0 0.0
    %5628 = vmatpush.msra.mxu0 0.0
    %5629 = vmatpush.msra.mxu0 0.0
    %5630 = vmatpush.msra.mxu0 0.0
    %5631 = vmatpush.msra.mxu0 0.0
    %5632 = vmatpush.msra.mxu0 0.0
    %5633 = vmatpush.msra.mxu0 0.0
    %5634 = vmatpush.msra.mxu0 0.0
    %5635 = vmatpush.msra.mxu0 0.0
    %5636 = vmatpush.msra.mxu0 0.0
    %5637 = vmatpush.msra.mxu0 %v5614
    %5638 = vmatpush.msra.mxu0 %v5612
    %5639 = vmatmul.f32.gmra.mxu0 %v5618
    %v5640 = vpop.f32.mrf.mxu0
    %v5641 = vadd.f32 0.0, %v5640
    %5642 = vmatmul.f32.gmra.mxu0 %v5621
    %v5643 = vpop.f32.mrf.mxu0
    %v5644 = vadd.f32 0.0, %v5643
    %5645 = vdwg.mxu0
    %5647 = vrot.lane.b32.xlu0 %v5414, 32
    %v5648 = vpop.permute.xlu0 %5647
    %v5651 = vsel %vm88, %v5641, 0
    %v5654 = vsel %vm88, %v5644, 0
    %5656 = vmatpush.msra.mxu0 0.0
    %5657 = vmatpush.msra.mxu0 0.0
    %5658 = vmatpush.msra.mxu0 0.0
    %5659 = vmatpush.msra.mxu0 0.0
    %5660 = vmatpush.msra.mxu0 0.0
    %5661 = vmatpush.msra.mxu0 0.0
    %5662 = vmatpush.msra.mxu0 0.0
    %5663 = vmatpush.msra.mxu0 0.0
    %5664 = vmatpush.msra.mxu0 0.0
    %5665 = vmatpush.msra.mxu0 0.0
    %5666 = vmatpush.msra.mxu0 0.0
    %5667 = vmatpush.msra.mxu0 0.0
    %5668 = vmatpush.msra.mxu0 0.0
    %5669 = vmatpush.msra.mxu0 0.0
    %5670 = vmatpush.msra.mxu0 0.0
    %5671 = vmatpush.msra.mxu0 %v5648
    %5672 = vmatmul.f32.gmra.mxu0 %v5651
    %v5673 = vpop.f32.mrf.mxu0
    %v5674 = vadd.f32 0.0, %v5673
    %5675 = vmatmul.f32.gmra.mxu0 %v5654
    %v5676 = vpop.f32.mrf.mxu0
    %v5677 = vadd.f32 0.0, %v5676
    %5678 = vdwg.mxu0
    %5680 = vrot.lane.b32.xlu0 %v5413, 32
    %v5681 = vpop.permute.xlu0 %5680
    %v5684 = vsel %vm88, %v5541, 0
    %v5687 = vsel %vm88, %v5544, 0
    %5689 = vmatpush.msra.mxu0 0.0
    %5690 = vmatpush.msra.mxu0 0.0
    %5691 = vmatpush.msra.mxu0 0.0
    %5692 = vmatpush.msra.mxu0 0.0
    %5693 = vmatpush.msra.mxu0 0.0
    %5694 = vmatpush.msra.mxu0 0.0
    %5695 = vmatpush.msra.mxu0 0.0
    %5696 = vmatpush.msra.mxu0 0.0
    %5697 = vmatpush.msra.mxu0 0.0
    %5698 = vmatpush.msra.mxu0 0.0
    %5699 = vmatpush.msra.mxu0 0.0
    %5700 = vmatpush.msra.mxu0 0.0
    %5701 = vmatpush.msra.mxu0 0.0
    %5702 = vmatpush.msra.mxu0 0.0
    %5703 = vmatpush.msra.mxu0 0.0
    %5704 = vmatpush.msra.mxu0 %v5681
    %5705 = vmatmul.f32.gmra.mxu0 %v5684
    %v5706 = vpop.f32.mrf.mxu0
    %v5707 = vadd.f32 %v5674, %v5706
    %5708 = vmatmul.f32.gmra.mxu0 %v5687
    %v5709 = vpop.f32.mrf.mxu0
    %v5710 = vadd.f32 %v5677, %v5709
    %5711 = vdwg.mxu0
    %5712 = vrot.lane.b32.xlu0 %v5443, 112
    %v5713 = vpop.permute.xlu0 %5712
    %5714 = vrot.lane.b32.xlu0 %v5446, 112
    %v5715 = vpop.permute.xlu0 %5714
    %5716 = vrot.lane.b32.xlu0 %v5443, 80
    %v5717 = vpop.permute.xlu0 %5716
    %5718 = vrot.lane.b32.xlu0 %v5446, 80
    %v5719 = vpop.permute.xlu0 %5718
    %v5720 = vsel %vm88, %v5713, 0
    %v5722 = vsel %vm88, %v5715, 0
    %v5724 = vsel %vm88, %v5717, 0
    %v5726 = vsel %vm88, %v5719, 0
    %5728 = vmatpush.xpose.msra.mxu0 0.0
    %5729 = vmatpush.xpose.msra.mxu0 0.0
    %5730 = vmatpush.xpose.msra.mxu0 0.0
    %5731 = vmatpush.xpose.msra.mxu0 0.0
    %5732 = vmatpush.xpose.msra.mxu0 0.0
    %5733 = vmatpush.xpose.msra.mxu0 0.0
    %5734 = vmatpush.xpose.msra.mxu0 0.0
    %5735 = vmatpush.xpose.msra.mxu0 0.0
    %5736 = vmatpush.xpose.msra.mxu0 0.0
    %5737 = vmatpush.xpose.msra.mxu0 0.0
    %5738 = vmatpush.xpose.msra.mxu0 0.0
    %5739 = vmatpush.xpose.msra.mxu0 0.0
    %5740 = vmatpush.xpose.msra.mxu0 0.0
    %5741 = vmatpush.xpose.msra.mxu0 0.0
    %5742 = vmatpush.xpose.msra.mxu0 %v5726
    %5743 = vmatpush.xpose.msra.mxu0 %v5724
    %5744 = vmatmul.f32.gmra.mxu0 %v5720
    %v5745 = vpop.f32.mrf.mxu0
    %v5746 = vadd.f32 0.0, %v5745
    %5747 = vmatmul.f32.gmra.mxu0 %v5722
    %v5748 = vpop.f32.mrf.mxu0
    %v5749 = vadd.f32 0.0, %v5748
    %5750 = vdwg.mxu0
    %v5751 = vmul.f32 %v5746, 0.35355338
    %v5752 = vmul.f32 %v5749, 0.35355338
    %v5753 = vadd.f32 %v5751, %v39
    %v5754 = vadd.f32 %v5752, %v40
    %v5755 = vsel %vm124, %v5753, -inf
    %5756 = vmax.xlane.f32.xlu0 %v5755
    %v5757 = vpop.xlane.xlu0 %5756
    %v5758 = vsel %vm124, %v5754, -inf
    %5759 = vmax.xlane.f32.xlu0 %v5758
    %v5760 = vpop.xlane.xlu0 %5759
    %v5761 = vsub.f32 %v5753, %v5757
    %v5762 = vsub.f32 %v5754, %v5760
    %v5763 = vmul.f32 %v5761, 1.442695
    %v5764 = vpow.pop %v5763
    %v5765 = vmul.f32 %v5762, 1.442695
    %v5766 = vpow.pop %v5765
    %v5767 = vsel %vm124, %v5764, 0.0
    %5768 = vadd.xlane.f32.xlu0 %v5767
    %v5769 = vpop.xlane.xlu0 %5768
    %v5770 = vsel %vm124, %v5766, 0.0
    %5771 = vadd.xlane.f32.xlu0 %v5770
    %v5772 = vpop.xlane.xlu0 %5771
    %v5773 = vrcp.pop %v5769
    %v5774 = vrcp.pop %v5772
    %v5775 = vmul.f32 %v5764, %v5773
    %v5776 = vmul.f32 %v5766, %v5774
    %5777 = vrot.lane.b32.xlu0 %v5443, 48
    %v5778 = vpop.permute.xlu0 %5777
    %5779 = vrot.lane.b32.xlu0 %v5446, 48
    %v5780 = vpop.permute.xlu0 %5779
    %v5784 = vsel %vm124, %v5775, 0
    %v5787 = vsel %vm124, %v5776, 0
    %5789 = vmatpush.msra.mxu0 0.0
    %5790 = vmatpush.msra.mxu0 0.0
    %5791 = vmatpush.msra.mxu0 0.0
    %5792 = vmatpush.msra.mxu0 0.0
    %5793 = vmatpush.msra.mxu0 0.0
    %5794 = vmatpush.msra.mxu0 0.0
    %5795 = vmatpush.msra.mxu0 0.0
    %5796 = vmatpush.msra.mxu0 0.0
    %5797 = vmatpush.msra.mxu0 0.0
    %5798 = vmatpush.msra.mxu0 0.0
    %5799 = vmatpush.msra.mxu0 0.0
    %5800 = vmatpush.msra.mxu0 0.0
    %5801 = vmatpush.msra.mxu0 0.0
    %5802 = vmatpush.msra.mxu0 0.0
    %5803 = vmatpush.msra.mxu0 %v5780
    %5804 = vmatpush.msra.mxu0 %v5778
    %5805 = vmatmul.f32.gmra.mxu0 %v5784
    %v5806 = vpop.f32.mrf.mxu0
    %v5807 = vadd.f32 0.0, %v5806
    %5808 = vmatmul.f32.gmra.mxu0 %v5787
    %v5809 = vpop.f32.mrf.mxu0
    %v5810 = vadd.f32 0.0, %v5809
    %5811 = vdwg.mxu0
    %5813 = vrot.lane.b32.xlu0 %v5415, 32
    %v5814 = vpop.permute.xlu0 %5813
    %v5817 = vsel %vm88, %v5807, 0
    %v5820 = vsel %vm88, %v5810, 0
    %5822 = vmatpush.msra.mxu0 0.0
    %5823 = vmatpush.msra.mxu0 0.0
    %5824 = vmatpush.msra.mxu0 0.0
    %5825 = vmatpush.msra.mxu0 0.0
    %5826 = vmatpush.msra.mxu0 0.0
    %5827 = vmatpush.msra.mxu0 0.0
    %5828 = vmatpush.msra.mxu0 0.0
    %5829 = vmatpush.msra.mxu0 0.0
    %5830 = vmatpush.msra.mxu0 0.0
    %5831 = vmatpush.msra.mxu0 0.0
    %5832 = vmatpush.msra.mxu0 0.0
    %5833 = vmatpush.msra.mxu0 0.0
    %5834 = vmatpush.msra.mxu0 0.0
    %5835 = vmatpush.msra.mxu0 0.0
    %5836 = vmatpush.msra.mxu0 0.0
    %5837 = vmatpush.msra.mxu0 %v5814
    %5838 = vmatmul.f32.gmra.mxu0 %v5817
    %v5839 = vpop.f32.mrf.mxu0
    %v5840 = vadd.f32 0.0, %v5839
    %5841 = vmatmul.f32.gmra.mxu0 %v5820
    %v5842 = vpop.f32.mrf.mxu0
    %v5843 = vadd.f32 0.0, %v5842
    %5844 = vdwg.mxu0
    %v5845 = vadd.f32 %v5707, %v5840
    %v5846 = vadd.f32 %v5710, %v5843
    %5847 = vrot.lane.b32.xlu0 %v5443, 104
    %v5848 = vpop.permute.xlu0 %5847
    %5849 = vrot.lane.b32.xlu0 %v5446, 104
    %v5850 = vpop.permute.xlu0 %5849
    %5851 = vrot.lane.b32.xlu0 %v5443, 72
    %v5852 = vpop.permute.xlu0 %5851
    %5853 = vrot.lane.b32.xlu0 %v5446, 72
    %v5854 = vpop.permute.xlu0 %5853
    %v5855 = vsel %vm88, %v5848, 0
    %v5857 = vsel %vm88, %v5850, 0
    %v5859 = vsel %vm88, %v5852, 0
    %v5861 = vsel %vm88, %v5854, 0
    %5863 = vmatpush.xpose.msra.mxu0 0.0
    %5864 = vmatpush.xpose.msra.mxu0 0.0
    %5865 = vmatpush.xpose.msra.mxu0 0.0
    %5866 = vmatpush.xpose.msra.mxu0 0.0
    %5867 = vmatpush.xpose.msra.mxu0 0.0
    %5868 = vmatpush.xpose.msra.mxu0 0.0
    %5869 = vmatpush.xpose.msra.mxu0 0.0
    %5870 = vmatpush.xpose.msra.mxu0 0.0
    %5871 = vmatpush.xpose.msra.mxu0 0.0
    %5872 = vmatpush.xpose.msra.mxu0 0.0
    %5873 = vmatpush.xpose.msra.mxu0 0.0
    %5874 = vmatpush.xpose.msra.mxu0 0.0
    %5875 = vmatpush.xpose.msra.mxu0 0.0
    %5876 = vmatpush.xpose.msra.mxu0 0.0
    %5877 = vmatpush.xpose.msra.mxu0 %v5861
    %5878 = vmatpush.xpose.msra.mxu0 %v5859
    %5879 = vmatmul.f32.gmra.mxu0 %v5855
    %v5880 = vpop.f32.mrf.mxu0
    %v5881 = vadd.f32 0.0, %v5880
    %5882 = vmatmul.f32.gmra.mxu0 %v5857
    %v5883 = vpop.f32.mrf.mxu0
    %v5884 = vadd.f32 0.0, %v5883
    %5885 = vdwg.mxu0
    %v5886 = vmul.f32 %v5881, 0.35355338
    %v5887 = vmul.f32 %v5884, 0.35355338
    %v5888 = vadd.f32 %v5886, %v39
    %v5889 = vadd.f32 %v5887, %v40
    %v5890 = vsel %vm124, %v5888, -inf
    %5891 = vmax.xlane.f32.xlu0 %v5890
    %v5892 = vpop.xlane.xlu0 %5891
    %v5893 = vsel %vm124, %v5889, -inf
    %5894 = vmax.xlane.f32.xlu0 %v5893
    %v5895 = vpop.xlane.xlu0 %5894
    %v5896 = vsub.f32 %v5888, %v5892
    %v5897 = vsub.f32 %v5889, %v5895
    %v5898 = vmul.f32 %v5896, 1.442695
    %v5899 = vpow.pop %v5898
    %v5900 = vmul.f32 %v5897, 1.442695
    %v5901 = vpow.pop %v5900
    %v5902 = vsel %vm124, %v5899, 0.0
    %5903 = vadd.xlane.f32.xlu0 %v5902
    %v5904 = vpop.xlane.xlu0 %5903
    %v5905 = vsel %vm124, %v5901, 0.0
    %5906 = vadd.xlane.f32.xlu0 %v5905
    %v5907 = vpop.xlane.xlu0 %5906
    %v5908 = vrcp.pop %v5904
    %v5909 = vrcp.pop %v5907
    %v5910 = vmul.f32 %v5899, %v5908
    %v5911 = vmul.f32 %v5901, %v5909
    %5912 = vrot.lane.b32.xlu0 %v5443, 40
    %v5913 = vpop.permute.xlu0 %5912
    %5914 = vrot.lane.b32.xlu0 %v5446, 40
    %v5915 = vpop.permute.xlu0 %5914
    %v5919 = vsel %vm124, %v5910, 0
    %v5922 = vsel %vm124, %v5911, 0
    %5924 = vmatpush.msra.mxu0 0.0
    %5925 = vmatpush.msra.mxu0 0.0
    %5926 = vmatpush.msra.mxu0 0.0
    %5927 = vmatpush.msra.mxu0 0.0
    %5928 = vmatpush.msra.mxu0 0.0
    %5929 = vmatpush.msra.mxu0 0.0
    %5930 = vmatpush.msra.mxu0 0.0
    %5931 = vmatpush.msra.mxu0 0.0
    %5932 = vmatpush.msra.mxu0 0.0
    %5933 = vmatpush.msra.mxu0 0.0
    %5934 = vmatpush.msra.mxu0 0.0
    %5935 = vmatpush.msra.mxu0 0.0
    %5936 = vmatpush.msra.mxu0 0.0
    %5937 = vmatpush.msra.mxu0 0.0
    %5938 = vmatpush.msra.mxu0 %v5915
    %5939 = vmatpush.msra.mxu0 %v5913
    %5940 = vmatmul.f32.gmra.mxu0 %v5919
    %v5941 = vpop.f32.mrf.mxu0
    %v5942 = vadd.f32 0.0, %v5941
    %5943 = vmatmul.f32.gmra.mxu0 %v5922
    %v5944 = vpop.f32.mrf.mxu0
    %v5945 = vadd.f32 0.0, %v5944
    %5946 = vdwg.mxu0
    %5948 = vrot.lane.b32.xlu0 %v5416, 32
    %v5949 = vpop.permute.xlu0 %5948
    %v5952 = vsel %vm88, %v5942, 0
    %v5955 = vsel %vm88, %v5945, 0
    %5957 = vmatpush.msra.mxu0 0.0
    %5958 = vmatpush.msra.mxu0 0.0
    %5959 = vmatpush.msra.mxu0 0.0
    %5960 = vmatpush.msra.mxu0 0.0
    %5961 = vmatpush.msra.mxu0 0.0
    %5962 = vmatpush.msra.mxu0 0.0
    %5963 = vmatpush.msra.mxu0 0.0
    %5964 = vmatpush.msra.mxu0 0.0
    %5965 = vmatpush.msra.mxu0 0.0
    %5966 = vmatpush.msra.mxu0 0.0
    %5967 = vmatpush.msra.mxu0 0.0
    %5968 = vmatpush.msra.mxu0 0.0
    %5969 = vmatpush.msra.mxu0 0.0
    %5970 = vmatpush.msra.mxu0 0.0
    %5971 = vmatpush.msra.mxu0 0.0
    %5972 = vmatpush.msra.mxu0 %v5949
    %5973 = vmatmul.f32.gmra.mxu0 %v5952
    %v5974 = vpop.f32.mrf.mxu0
    %v5975 = vadd.f32 0.0, %v5974
    %5976 = vmatmul.f32.gmra.mxu0 %v5955
    %v5977 = vpop.f32.mrf.mxu0
    %v5978 = vadd.f32 0.0, %v5977
    %5979 = vdwg.mxu0
    %v5980 = vadd.f32 %v5845, %v5975
    %v5981 = vadd.f32 %v5846, %v5978
    %5983 = vrot.lane.b32.xlu0 %v5418, 32
    %v5984 = vpop.permute.xlu0 %5983
    %v5986 = vadd.f32 %v5980, %v5984
    %v5987 = vadd.f32 %v5981, %v5984
    %v5988 = vadd.f32 %v5410, %v5986
    %v5989 = vadd.f32 %v5411, %v5987
    %v5990 = vld [vmem:[%s10 + $0x26] sm:$0x1]
    %v5991 = vld [vmem:[%s10 + $0x27] sm:$0x1]
    %v5992 = vsel %vm52, %v5988, 0.0
    %5993 = vadd.xlane.f32.xlu0 %v5992
    %v5994 = vpop.xlane.xlu0 %5993
    %v5995 = vsel %vm52, %v5989, 0.0
    %5996 = vadd.xlane.f32.xlu0 %v5995
    %v5997 = vpop.xlane.xlu0 %5996
    %v5998 = vmul.f32 %v5994, %v640
    %v5999 = vmul.f32 %v5997, %v640
    %v6000 = vsub.f32 %v5988, %v5998
    %v6001 = vsub.f32 %v5989, %v5999
    %v6002 = vmul.f32 %v6000, %v6000
    %v6003 = vmul.f32 %v6001, %v6001
    %v6004 = vsel %vm52, %v6002, 0.0
    %6005 = vadd.xlane.f32.xlu0 %v6004
    %v6006 = vpop.xlane.xlu0 %6005
    %v6007 = vsel %vm52, %v6003, 0.0
    %6008 = vadd.xlane.f32.xlu0 %v6007
    %v6009 = vpop.xlane.xlu0 %6008
    %v6010 = vmul.f32 %v6006, %v640
    %v6011 = vmul.f32 %v6009, %v640
    %v6012 = vadd.f32 %v6010, 1e-12
    %v6013 = vadd.f32 %v6011, 1e-12
    %v6014 = vrsqrt.pop %v6012
    %v6015 = vmul.f32 %v6014, %v6012
    %v6016 = vmul.f32 %v6015, %v6014
    %v6017 = vmul.f32 0.5, %v6016
    %v6018 = vsub.f32 1.5, %v6017
    %v6019 = vmul.f32 %v6014, %v6018
    %vm6020 = vweird.f32 %v6012
    %vm6021 = vweird.f32 %v6014
    %vm6022 = vmor %vm6020, %vm6021
    %v6023 = vsel %vm6022, %v6014, %v6019
    %v6024 = vrsqrt.pop %v6013
    %v6025 = vmul.f32 %v6024, %v6013
    %v6026 = vmul.f32 %v6025, %v6024
    %v6027 = vmul.f32 0.5, %v6026
    %v6028 = vsub.f32 1.5, %v6027
    %v6029 = vmul.f32 %v6024, %v6028
    %vm6030 = vweird.f32 %v6013
    %vm6031 = vweird.f32 %v6024
    %vm6032 = vmor %vm6030, %vm6031
    %v6033 = vsel %vm6032, %v6024, %v6029
    %v6034 = vmul.f32 %v6000, %v6023
    %v6035 = vmul.f32 %v6001, %v6033
    %v6036 = vperm.slane %v5990, 0
    %v6037 = vmul.f32 %v6034, %v6036
    %v6038 = vmul.f32 %v6035, %v6036
    %v6039 = vperm.slane %v5991, 0
    %v6040 = vadd.f32 %v6037, %v6039
    %v6041 = vadd.f32 %v6038, %v6039
    %s6042 = scalar_lea.vmem %s5, 160
    %v6043 = vld [vmem:[%s6042] sm:$0xff]
    %v6044 = vld [vmem:[%s6042 + $0x8] sm:$0xff]
    %v6045 = vld [vmem:[%s6042 + $0x10] sm:$0xff]
    %v6046 = vld [vmem:[%s6042 + $0x18] sm:$0xff]
    %v6047 = vld [vmem:[%s10 + $0x24] sm:$0x1]
    %v6048 = vperm.slane %v6047, 0
    %v6050 = vsel %vm52, %v6040, 0
    %v6053 = vsel %vm52, %v6041, 0
    %6055 = vmatpush.msra.mxu0 0.0
    %6056 = vmatpush.msra.mxu0 0.0
    %6057 = vmatpush.msra.mxu0 0.0
    %6058 = vmatpush.msra.mxu0 0.0
    %6059 = vmatpush.msra.mxu0 0.0
    %6060 = vmatpush.msra.mxu0 0.0
    %6061 = vmatpush.msra.mxu0 0.0
    %6062 = vmatpush.msra.mxu0 0.0
    %6063 = vmatpush.msra.mxu0 0.0
    %6064 = vmatpush.msra.mxu0 0.0
    %6065 = vmatpush.msra.mxu0 0.0
    %6066 = vmatpush.msra.mxu0 0.0
    %6067 = vmatpush.msra.mxu0 %v6046
    %6068 = vmatpush.msra.mxu0 %v6045
    %6069 = vmatpush.msra.mxu0 %v6044
    %6070 = vmatpush.msra.mxu0 %v6043
    %6071 = vmatmul.f32.gmra.mxu0 %v6050
    %v6072 = vpop.f32.mrf.mxu0
    %v6073 = vadd.f32 %v6048, %v6072
    %6074 = vmatmul.f32.gmra.mxu0 %v6053
    %v6075 = vpop.f32.mrf.mxu0
    %v6076 = vadd.f32 %v6048, %v6075
    %6077 = vdwg.mxu0
    %v6078 = vmul.f32 %v6073, 0.5
    %v6079 = vmul.f32 %v6076, 0.5
    %v6080 = vmul.f32 %v6073, 0.044715
    %v6081 = vmul.f32 %v6076, 0.044715
    %v6082 = vmul.f32 %v6080, %v6073
    %v6083 = vmul.f32 %v6081, %v6076
    %v6084 = vmul.f32 %v6082, %v6073
    %v6085 = vmul.f32 %v6083, %v6076
    %v6086 = vadd.f32 %v6073, %v6084
    %v6087 = vadd.f32 %v6076, %v6085
    %v6088 = vmul.f32 %v6086, 0.7978846
    %v6089 = vmul.f32 %v6087, 0.7978846
    %v6090 = vtanh.pop %v6088
    %v6091 = vtanh.pop %v6089
    %v6092 = vadd.f32 %v6090, 1.0
    %v6093 = vadd.f32 %v6091, 1.0
    %v6094 = vmul.f32 %v6078, %v6092
    %v6095 = vmul.f32 %v6079, %v6093
    %s6096 = scalar_lea.vmem %s6, 320
    %v6097 = vld [vmem:[%s6096] sm:$0xff]
    %v6098 = vld [vmem:[%s6096 + $0x8] sm:$0xff]
    %v6099 = vld [vmem:[%s6096 + $0x10] sm:$0xff]
    %v6100 = vld [vmem:[%s6096 + $0x18] sm:$0xff]
    %v6101 = vld [vmem:[%s6096 + $0x20] sm:$0xff]
    %v6102 = vld [vmem:[%s6096 + $0x28] sm:$0xff]
    %v6103 = vld [vmem:[%s6096 + $0x30] sm:$0xff]
    %v6104 = vld [vmem:[%s6096 + $0x38] sm:$0xff]
    %v6105 = vld [vmem:[%s10 + $0x25] sm:$0x1]
    %v6106 = vperm.slane %v6105, 0
    %v6108 = vsel %vm748, %v6094, 0
    %v6111 = vsel %vm748, %v6095, 0
    %6113 = vmatpush.msra.mxu0 0.0
    %6114 = vmatpush.msra.mxu0 0.0
    %6115 = vmatpush.msra.mxu0 0.0
    %6116 = vmatpush.msra.mxu0 0.0
    %6117 = vmatpush.msra.mxu0 0.0
    %6118 = vmatpush.msra.mxu0 0.0
    %6119 = vmatpush.msra.mxu0 0.0
    %6120 = vmatpush.msra.mxu0 0.0
    %6121 = vmatpush.msra.mxu0 %v6104
    %6122 = vmatpush.msra.mxu0 %v6103
    %6123 = vmatpush.msra.mxu0 %v6102
    %6124 = vmatpush.msra.mxu0 %v6101
    %6125 = vmatpush.msra.mxu0 %v6100
    %6126 = vmatpush.msra.mxu0 %v6099
    %6127 = vmatpush.msra.mxu0 %v6098
    %6128 = vmatpush.msra.mxu0 %v6097
    %6129 = vmatmul.f32.gmra.mxu0 %v6108
    %v6130 = vpop.f32.mrf.mxu0
    %v6131 = vadd.f32 %v6106, %v6130
    %6132 = vmatmul.f32.gmra.mxu0 %v6111
    %v6133 = vpop.f32.mrf.mxu0
    %v6134 = vadd.f32 %v6106, %v6133
    %6135 = vdwg.mxu0
    %v6136 = vadd.f32 %v6040, %v6131
    %v6137 = vadd.f32 %v6041, %v6134
    %v6138 = vld [vmem:[%s10 + $0x28] sm:$0x1]
    %v6139 = vld [vmem:[%s10 + $0x29] sm:$0x1]
    %v6140 = vsel %vm52, %v6136, 0.0
    %6141 = vadd.xlane.f32.xlu0 %v6140
    %v6142 = vpop.xlane.xlu0 %6141
    %v6143 = vsel %vm52, %v6137, 0.0
    %6144 = vadd.xlane.f32.xlu0 %v6143
    %v6145 = vpop.xlane.xlu0 %6144
    %v6146 = vmul.f32 %v6142, %v640
    %v6147 = vmul.f32 %v6145, %v640
    %v6148 = vsub.f32 %v6136, %v6146
    %v6149 = vsub.f32 %v6137, %v6147
    %v6150 = vmul.f32 %v6148, %v6148
    %v6151 = vmul.f32 %v6149, %v6149
    %v6152 = vsel %vm52, %v6150, 0.0
    %6153 = vadd.xlane.f32.xlu0 %v6152
    %v6154 = vpop.xlane.xlu0 %6153
    %v6155 = vsel %vm52, %v6151, 0.0
    %6156 = vadd.xlane.f32.xlu0 %v6155
    %v6157 = vpop.xlane.xlu0 %6156
    %v6158 = vmul.f32 %v6154, %v640
    %v6159 = vmul.f32 %v6157, %v640
    %v6160 = vadd.f32 %v6158, 1e-12
    %v6161 = vadd.f32 %v6159, 1e-12
    %v6162 = vrsqrt.pop %v6160
    %v6163 = vmul.f32 %v6162, %v6160
    %v6164 = vmul.f32 %v6163, %v6162
    %v6165 = vmul.f32 0.5, %v6164
    %v6166 = vsub.f32 1.5, %v6165
    %v6167 = vmul.f32 %v6162, %v6166
    %vm6168 = vweird.f32 %v6160
    %vm6169 = vweird.f32 %v6162
    %vm6170 = vmor %vm6168, %vm6169
    %v6171 = vsel %vm6170, %v6162, %v6167
    %v6172 = vrsqrt.pop %v6161
    %v6173 = vmul.f32 %v6172, %v6161
    %v6174 = vmul.f32 %v6173, %v6172
    %v6175 = vmul.f32 0.5, %v6174
    %v6176 = vsub.f32 1.5, %v6175
    %v6177 = vmul.f32 %v6172, %v6176
    %vm6178 = vweird.f32 %v6161
    %vm6179 = vweird.f32 %v6172
    %vm6180 = vmor %vm6178, %vm6179
    %v6181 = vsel %vm6180, %v6172, %v6177
    %v6182 = vmul.f32 %v6148, %v6171
    %v6183 = vmul.f32 %v6149, %v6181
    %v6184 = vperm.slane %v6138, 0
    %v6185 = vmul.f32 %v6182, %v6184
    %v6186 = vmul.f32 %v6183, %v6184
    %v6187 = vperm.slane %v6139, 0
    %v6188 = vadd.f32 %v6185, %v6187
    %v6189 = vadd.f32 %v6186, %v6187
    %s6190 = scalar_lea.vmem %s2, 112
    %v6191 = vld [vmem:[%s6190] sm:$0xff]
    %v6192 = vld [vmem:[%s6190 + $0x8] sm:$0xff]
    %v6193 = vld [vmem:[%s6190 + $0x10] sm:$0xff]
    %v6194 = vld [vmem:[%s6190 + $0x18] sm:$0xff]
    %v6195 = vld [vmem:[%s6190 + $0x20] sm:$0xff]
    %v6196 = vld [vmem:[%s6190 + $0x28] sm:$0xff]
    %v6197 = vld [vmem:[%s6190 + $0x30] sm:$0xff]
    %v6198 = vld [vmem:[%s6190 + $0x38] sm:$0xff]
    %v6199 = vld [vmem:[%s6190 + $0x40] sm:$0xff]
    %v6200 = vld [vmem:[%s6190 + $0x48] sm:$0xff]
    %v6201 = vld [vmem:[%s6190 + $0x50] sm:$0xff]
    %v6202 = vld [vmem:[%s6190 + $0x58] sm:$0xff]
    %v6203 = vld [vmem:[%s6190 + $0x60] sm:$0xff]
    %v6204 = vld [vmem:[%s6190 + $0x68] sm:$0xff]
    %s6205 = scalar_lea.vmem %s3, 128
    %v6206 = vld [vmem:[%s6205] sm:$0xff]
    %v6207 = vld [vmem:[%s6205 + $0x8] sm:$0xff]
    %v6208 = vld [vmem:[%s6205 + $0x10] sm:$0xff]
    %v6209 = vld [vmem:[%s6205 + $0x18] sm:$0xff]
    %v6210 = vld [vmem:[%s6205 + $0x20] sm:$0xff]
    %v6211 = vld [vmem:[%s6205 + $0x28] sm:$0xff]
    %v6212 = vld [vmem:[%s6205 + $0x30] sm:$0xff]
    %v6213 = vld [vmem:[%s6205 + $0x38] sm:$0xff]
    %v6214 = vld [vmem:[%s6205 + $0x40] sm:$0xff]
    %v6215 = vld [vmem:[%s6205 + $0x48] sm:$0xff]
    %v6216 = vld [vmem:[%s6205 + $0x50] sm:$0xff]
    %v6217 = vld [vmem:[%s6205 + $0x58] sm:$0xff]
    %v6218 = vld [vmem:[%s6205 + $0x60] sm:$0xff]
    %v6219 = vld [vmem:[%s6205 + $0x68] sm:$0xff]
    %v6220 = vld [vmem:[%s6205 + $0x70] sm:$0xff]
    %v6221 = vld [vmem:[%s6205 + $0x78] sm:$0xff]
    %s6222 = scalar_lea.vmem %s7, 64
    %v6223 = vld [vmem:[%s6222] sm:$0xff]
    %v6224 = vld [vmem:[%s6222 + $0x8] sm:$0xff]
    %v6225 = vld [vmem:[%s6222 + $0x10] sm:$0xff]
    %v6226 = vld [vmem:[%s6222 + $0x18] sm:$0xff]
    %s6227 = scalar_lea.vmem %s7, 96
    %v6228 = vld [vmem:[%s6227] sm:$0xff]
    %v6229 = vld [vmem:[%s6227 + $0x8] sm:$0xff]
    %v6230 = vld [vmem:[%s6227 + $0x10] sm:$0xff]
    %v6231 = vld [vmem:[%s6227 + $0x18] sm:$0xff]
    %v6232 = vld [vmem:[%s10 + $0x33] sm:$0x1]
    %6233 = vmatpush.msra.mxu0 0.0
    %6234 = vmatpush.msra.mxu0 0.0
    %6235 = vmatpush.msra.mxu0 0.0
    %6236 = vmatpush.msra.mxu0 0.0
    %6237 = vmatpush.msra.mxu0 0.0
    %6238 = vmatpush.msra.mxu0 0.0
    %6239 = vmatpush.msra.mxu0 0.0
    %6240 = vmatpush.msra.mxu0 0.0
    %6241 = vmatpush.msra.mxu0 0.0
    %6242 = vmatpush.msra.mxu0 0.0
    %6243 = vmatpush.msra.mxu0 0.0
    %6244 = vmatpush.msra.mxu0 0.0
    %6245 = vmatpush.msra.mxu0 0.0
    %6246 = vmatpush.msra.mxu0 0.0
    %6247 = vmatpush.msra.mxu0 %v6189
    %6248 = vmatpush.msra.mxu0 %v6188
    %6249 = vmatmul.f32.gmra.mxu0 %v3207
    %v6250 = vpop.f32.mrf.mxu0
    %v6251 = vadd.f32 0.0, %v6250
    %6252 = vmatmul.f32.gmra.mxu0 %v3210
    %v6253 = vpop.f32.mrf.mxu0
    %v6254 = vadd.f32 0.0, %v6253
    %6255 = vdwg.mxu0
    %v6256 = vperm.slane %v6232, 0
    %v6258 = vsel %vm52, %v6251, 0
    %v6261 = vsel %vm52, %v6254, 0
    %6263 = vmatpush.msra.mxu0 0.0
    %6264 = vmatpush.msra.mxu0 0.0
    %6265 = vmatpush.msra.mxu0 0.0
    %6266 = vmatpush.msra.mxu0 0.0
    %6267 = vmatpush.msra.mxu0 0.0
    %6268 = vmatpush.msra.mxu0 0.0
    %6269 = vmatpush.msra.mxu0 0.0
    %6270 = vmatpush.msra.mxu0 0.0
    %6271 = vmatpush.msra.mxu0 0.0
    %6272 = vmatpush.msra.mxu0 0.0
    %6273 = vmatpush.msra.mxu0 0.0
    %6274 = vmatpush.msra.mxu0 0.0
    %6275 = vmatpush.msra.mxu0 %v6231
    %6276 = vmatpush.msra.mxu0 %v6230
    %6277 = vmatpush.msra.mxu0 %v6229
    %6278 = vmatpush.msra.mxu0 %v6228
    %6279 = vmatmul.f32.gmra.mxu0 %v6258
    %v6280 = vpop.f32.mrf.mxu0
    %v6281 = vadd.f32 %v6256, %v6280
    %6282 = vmatmul.f32.gmra.mxu0 %v6261
    %v6283 = vpop.f32.mrf.mxu0
    %v6284 = vadd.f32 %v6256, %v6283
    %6285 = vdwg.mxu0
    %v6287 = vsel %vm52, %v6188, 0
    %v6290 = vsel %vm52, %v6189, 0
    %6292 = vmatpush.msra.mxu0 0.0
    %6293 = vmatpush.msra.mxu0 0.0
    %6294 = vmatpush.msra.mxu0 0.0
    %6295 = vmatpush.msra.mxu0 0.0
    %6296 = vmatpush.msra.mxu0 0.0
    %6297 = vmatpush.msra.mxu0 0.0
    %6298 = vmatpush.msra.mxu0 0.0
    %6299 = vmatpush.msra.mxu0 0.0
    %6300 = vmatpush.msra.mxu0 0.0
    %6301 = vmatpush.msra.mxu0 0.0
    %6302 = vmatpush.msra.mxu0 0.0
    %6303 = vmatpush.msra.mxu0 0.0
    %6304 = vmatpush.msra.mxu0 %v6226
    %6305 = vmatpush.msra.mxu0 %v6225
    %6306 = vmatpush.msra.mxu0 %v6224
    %6307 = vmatpush.msra.mxu0 %v6223
    %6308 = vmatmul.f32.gmra.mxu0 %v6287
    %v6309 = vpop.f32.mrf.mxu0
    %v6310 = vadd.f32 0.0, %v6309
    %6311 = vmatmul.f32.gmra.mxu0 %v6290
    %v6312 = vpop.f32.mrf.mxu0
    %v6313 = vadd.f32 0.0, %v6312
    %6314 = vdwg.mxu0
    %v6315 = vmul.f32 %v6191, %v6310
    %v6316 = vmul.f32 %v6192, %v6313
    %v6317 = vmul.f32 %v6193, %v6310
    %v6318 = vmul.f32 %v6194, %v6313
    %v6319 = vmul.f32 %v6195, %v6310
    %v6320 = vmul.f32 %v6196, %v6313
    %v6321 = vmul.f32 %v6197, %v6310
    %v6322 = vmul.f32 %v6198, %v6313
    %v6323 = vmul.f32 %v6199, %v6310
    %v6324 = vmul.f32 %v6200, %v6313
    %v6325 = vmul.f32 %v6201, %v6310
    %v6326 = vmul.f32 %v6202, %v6313
    %v6327 = vmul.f32 %v6203, %v6310
    %v6328 = vmul.f32 %v6204, %v6313
    %v6329 = vmul.f32 %v6281, %v6310
    %v6330 = vmul.f32 %v6284, %v6313
    %v6331 = vsel %vm124, %v6315, 0.0
    %6332 = vadd.xlane.f32.xlu0 %v6331
    %v6333 = vpop.xlane.xlu0 %6332
    %v6334 = vsel %vm124, %v6316, 0.0
    %6335 = vadd.xlane.f32.xlu0 %v6334
    %v6336 = vpop.xlane.xlu0 %6335
    %v6337 = vsel %vm124, %v6317, 0.0
    %6338 = vadd.xlane.f32.xlu0 %v6337
    %v6339 = vpop.xlane.xlu0 %6338
    %v6340 = vsel %vm124, %v6318, 0.0
    %6341 = vadd.xlane.f32.xlu0 %v6340
    %v6342 = vpop.xlane.xlu0 %6341
    %v6343 = vsel %vm124, %v6319, 0.0
    %6344 = vadd.xlane.f32.xlu0 %v6343
    %v6345 = vpop.xlane.xlu0 %6344
    %v6346 = vsel %vm124, %v6320, 0.0
    %6347 = vadd.xlane.f32.xlu0 %v6346
    %v6348 = vpop.xlane.xlu0 %6347
    %v6349 = vsel %vm124, %v6321, 0.0
    %6350 = vadd.xlane.f32.xlu0 %v6349
    %v6351 = vpop.xlane.xlu0 %6350
    %v6352 = vsel %vm124, %v6322, 0.0
    %6353 = vadd.xlane.f32.xlu0 %v6352
    %v6354 = vpop.xlane.xlu0 %6353
    %v6355 = vsel %vm124, %v6323, 0.0
    %6356 = vadd.xlane.f32.xlu0 %v6355
    %v6357 = vpop.xlane.xlu0 %6356
    %v6358 = vsel %vm124, %v6324, 0.0
    %6359 = vadd.xlane.f32.xlu0 %v6358
    %v6360 = vpop.xlane.xlu0 %6359
    %v6361 = vsel %vm124, %v6325, 0.0
    %6362 = vadd.xlane.f32.xlu0 %v6361
    %v6363 = vpop.xlane.xlu0 %6362
    %v6364 = vsel %vm124, %v6326, 0.0
    %6365 = vadd.xlane.f32.xlu0 %v6364
    %v6366 = vpop.xlane.xlu0 %6365
    %v6367 = vsel %vm124, %v6327, 0.0
    %6368 = vadd.xlane.f32.xlu0 %v6367
    %v6369 = vpop.xlane.xlu0 %6368
    %v6370 = vsel %vm124, %v6328, 0.0
    %6371 = vadd.xlane.f32.xlu0 %v6370
    %v6372 = vpop.xlane.xlu0 %6371
    %v6373 = vsel %vm124, %v6329, 0.0
    %6374 = vadd.xlane.f32.xlu0 %v6373
    %v6375 = vpop.xlane.xlu0 %6374
    %v6376 = vsel %vm124, %v6330, 0.0
    %6377 = vadd.xlane.f32.xlu0 %v6376
    %v6378 = vpop.xlane.xlu0 %6377
    %v6379 = vsub.f32 1.0, %v6206
    %v6380 = vsub.f32 1.0, %v6207
    %v6381 = vsub.f32 1.0, %v6208
    %v6382 = vsub.f32 1.0, %v6209
    %v6383 = vsub.f32 1.0, %v6210
    %v6384 = vsub.f32 1.0, %v6211
    %v6385 = vsub.f32 1.0, %v6212
    %v6386 = vsub.f32 1.0, %v6213
    %v6387 = vsub.f32 1.0, %v6214
    %v6388 = vsub.f32 1.0, %v6215
    %v6389 = vsub.f32 1.0, %v6216
    %v6390 = vsub.f32 1.0, %v6217
    %v6391 = vsub.f32 1.0, %v6218
    %v6392 = vsub.f32 1.0, %v6219
    %v6393 = vsub.f32 1.0, %v6220
    %v6394 = vsub.f32 1.0, %v6221
    %v6395 = vmul.f32 %v6379, -10000.0
    %v6396 = vmul.f32 %v6380, -10000.0
    %v6397 = vmul.f32 %v6381, -10000.0
    %v6398 = vmul.f32 %v6382, -10000.0
    %v6399 = vmul.f32 %v6383, -10000.0
    %v6400 = vmul.f32 %v6384, -10000.0
    %v6401 = vmul.f32 %v6385, -10000.0
    %v6402 = vmul.f32 %v6386, -10000.0
    %v6403 = vmul.f32 %v6387, -10000.0
    %v6404 = vmul.f32 %v6388, -10000.0
    %v6405 = vmul.f32 %v6389, -10000.0
    %v6406 = vmul.f32 %v6390, -10000.0
    %v6407 = vmul.f32 %v6391, -10000.0
    %v6408 = vmul.f32 %v6392, -10000.0
    %v6409 = vmul.f32 %v6393, -10000.0
    %v6410 = vmul.f32 %v6394, -10000.0
    %v6411 = vadd.f32 %v6333, %v6395
    %v6412 = vadd.f32 %v6336, %v6396
    %v6413 = vadd.f32 %v6339, %v6397
    %v6414 = vadd.f32 %v6342, %v6398
    %v6415 = vadd.f32 %v6345, %v6399
    %v6416 = vadd.f32 %v6348, %v6400
    %v6417 = vadd.f32 %v6351, %v6401
    %v6418 = vadd.f32 %v6354, %v6402
    %v6419 = vadd.f32 %v6357, %v6403
    %v6420 = vadd.f32 %v6360, %v6404
    %v6421 = vadd.f32 %v6363, %v6405
    %v6422 = vadd.f32 %v6366, %v6406
    %v6423 = vadd.f32 %v6369, %v6407
    %v6424 = vadd.f32 %v6372, %v6408
    %v6425 = vadd.f32 %v6375, %v6409
    %v6426 = vadd.f32 %v6378, %v6410
    %v6427 = vsel %vm3406, %v6411, -inf
    %v6428 = vsel %vm3406, %v6413, -inf
    %v6429 = vsel %vm3406, %v6415, -inf
    %v6430 = vmax.f32 %v6427, %v6429
    %v6431 = vsel %vm3406, %v6417, -inf
    %v6432 = vmax.f32 %v6428, %v6431
    %v6433 = vsel %vm3406, %v6419, -inf
    %v6434 = vmax.f32 %v6430, %v6433
    %v6435 = vsel %vm3406, %v6421, -inf
    %v6436 = vmax.f32 %v6432, %v6435
    %v6437 = vsel %vm3406, %v6423, -inf
    %v6438 = vmax.f32 %v6434, %v6437
    %v6439 = vsel %vm3406, %v6425, -inf
    %v6440 = vmax.f32 %v6436, %v6439
    %v6441 = vmax.f32 %v6438, %v6440
    %v6442 = vsel %vm3406, %v6412, -inf
    %v6443 = vsel %vm3406, %v6414, -inf
    %v6444 = vsel %vm3406, %v6416, -inf
    %v6445 = vmax.f32 %v6442, %v6444
    %v6446 = vsel %vm3406, %v6418, -inf
    %v6447 = vmax.f32 %v6443, %v6446
    %v6448 = vsel %vm3406, %v6420, -inf
    %v6449 = vmax.f32 %v6445, %v6448
    %v6450 = vsel %vm3406, %v6422, -inf
    %v6451 = vmax.f32 %v6447, %v6450
    %v6452 = vsel %vm3406, %v6424, -inf
    %v6453 = vmax.f32 %v6449, %v6452
    %v6454 = vsel %vm3406, %v6426, -inf
    %v6455 = vmax.f32 %v6451, %v6454
    %v6456 = vmax.f32 %v6453, %v6455
    %v6457 = vsub.f32 %v6411, %v6441
    %v6458 = vsub.f32 %v6412, %v6456
    %v6459 = vsub.f32 %v6413, %v6441
    %v6460 = vsub.f32 %v6414, %v6456
    %v6461 = vsub.f32 %v6415, %v6441
    %v6462 = vsub.f32 %v6416, %v6456
    %v6463 = vsub.f32 %v6417, %v6441
    %v6464 = vsub.f32 %v6418, %v6456
    %v6465 = vsub.f32 %v6419, %v6441
    %v6466 = vsub.f32 %v6420, %v6456
    %v6467 = vsub.f32 %v6421, %v6441
    %v6468 = vsub.f32 %v6422, %v6456
    %v6469 = vsub.f32 %v6423, %v6441
    %v6470 = vsub.f32 %v6424, %v6456
    %v6471 = vsub.f32 %v6425, %v6441
    %v6472 = vsub.f32 %v6426, %v6456
    %v6473 = vmul.f32 %v6457, 1.442695
    %v6474 = vpow.pop %v6473
    %v6475 = vmul.f32 %v6458, 1.442695
    %v6476 = vpow.pop %v6475
    %v6477 = vmul.f32 %v6459, 1.442695
    %v6478 = vpow.pop %v6477
    %v6479 = vmul.f32 %v6460, 1.442695
    %v6480 = vpow.pop %v6479
    %v6481 = vmul.f32 %v6461, 1.442695
    %v6482 = vpow.pop %v6481
    %v6483 = vmul.f32 %v6462, 1.442695
    %v6484 = vpow.pop %v6483
    %v6485 = vmul.f32 %v6463, 1.442695
    %v6486 = vpow.pop %v6485
    %v6487 = vmul.f32 %v6464, 1.442695
    %v6488 = vpow.pop %v6487
    %v6489 = vmul.f32 %v6465, 1.442695
    %v6490 = vpow.pop %v6489
    %v6491 = vmul.f32 %v6466, 1.442695
    %v6492 = vpow.pop %v6491
    %v6493 = vmul.f32 %v6467, 1.442695
    %v6494 = vpow.pop %v6493
    %v6495 = vmul.f32 %v6468, 1.442695
    %v6496 = vpow.pop %v6495
    %v6497 = vmul.f32 %v6469, 1.442695
    %v6498 = vpow.pop %v6497
    %v6499 = vmul.f32 %v6470, 1.442695
    %v6500 = vpow.pop %v6499
    %v6501 = vmul.f32 %v6471, 1.442695
    %v6502 = vpow.pop %v6501
    %v6503 = vmul.f32 %v6472, 1.442695
    %v6504 = vpow.pop %v6503
    %v6505 = vsel %vm3406, %v6474, 0.0
    %v6506 = vsel %vm3406, %v6478, 0.0
    %v6507 = vadd.f32 %v6505, %v6506
    %v6508 = vsel %vm3406, %v6482, 0.0
    %v6509 = vadd.f32 %v6507, %v6508
    %v6510 = vsel %vm3406, %v6486, 0.0
    %v6511 = vadd.f32 %v6509, %v6510
    %v6512 = vsel %vm3406, %v6490, 0.0
    %v6513 = vadd.f32 %v6511, %v6512
    %v6514 = vsel %vm3406, %v6494, 0.0
    %v6515 = vadd.f32 %v6513, %v6514
    %v6516 = vsel %vm3406, %v6498, 0.0
    %v6517 = vadd.f32 %v6515, %v6516
    %v6518 = vsel %vm3406, %v6502, 0.0
    %v6519 = vadd.f32 %v6517, %v6518
    %v6520 = vsel %vm3406, %v6476, 0.0
    %v6521 = vsel %vm3406, %v6480, 0.0
    %v6522 = vadd.f32 %v6520, %v6521
    %v6523 = vsel %vm3406, %v6484, 0.0
    %v6524 = vadd.f32 %v6522, %v6523
    %v6525 = vsel %vm3406, %v6488, 0.0
    %v6526 = vadd.f32 %v6524, %v6525
    %v6527 = vsel %vm3406, %v6492, 0.0
    %v6528 = vadd.f32 %v6526, %v6527
    %v6529 = vsel %vm3406, %v6496, 0.0
    %v6530 = vadd.f32 %v6528, %v6529
    %v6531 = vsel %vm3406, %v6500, 0.0
    %v6532 = vadd.f32 %v6530, %v6531
    %v6533 = vsel %vm3406, %v6504, 0.0
    %v6534 = vadd.f32 %v6532, %v6533
    %v6535 = vrcp.pop %v6519
    %v6536 = vrcp.pop %v6534
    %v6537 = vmul.f32 %v6474, %v6535
    %v6538 = vmul.f32 %v6476, %v6536
    %v6539 = vmul.f32 %v6478, %v6535
    %v6540 = vmul.f32 %v6480, %v6536
    %v6541 = vmul.f32 %v6482, %v6535
    %v6542 = vmul.f32 %v6484, %v6536
    %v6543 = vmul.f32 %v6486, %v6535
    %v6544 = vmul.f32 %v6488, %v6536
    %v6545 = vmul.f32 %v6490, %v6535
    %v6546 = vmul.f32 %v6492, %v6536
    %v6547 = vmul.f32 %v6494, %v6535
    %v6548 = vmul.f32 %v6496, %v6536
    %v6549 = vmul.f32 %v6498, %v6535
    %v6550 = vmul.f32 %v6500, %v6536
    %v6551 = vmul.f32 %v6502, %v6535
    %v6552 = vmul.f32 %v6504, %v6536
    %v6553 = vmul.f32 %v6537, %v6206
    %v6554 = vmul.f32 %v6538, %v6207
    %v6555 = vmul.f32 %v6539, %v6208
    %v6556 = vmul.f32 %v6540, %v6209
    %v6557 = vmul.f32 %v6541, %v6210
    %v6558 = vmul.f32 %v6542, %v6211
    %v6559 = vmul.f32 %v6543, %v6212
    %v6560 = vmul.f32 %v6544, %v6213
    %v6561 = vmul.f32 %v6545, %v6214
    %v6562 = vmul.f32 %v6546, %v6215
    %v6563 = vmul.f32 %v6547, %v6216
    %v6564 = vmul.f32 %v6548, %v6217
    %v6565 = vmul.f32 %v6549, %v6218
    %v6566 = vmul.f32 %v6550, %v6219
    %v6567 = vmul.f32 %v6551, %v6220
    %v6568 = vmul.f32 %v6552, %v6221
    %6570 = vset.pattern.permute.xlu0 0
    %6571 = vperm.xlu0 %6570, %v6553
    %v6572 = vpop.permute.xlu0 %6571
    %6575 = vset.pattern.permute.xlu0 0
    %6576 = vperm.xlu0 %6575, %v6554
    %v6577 = vpop.permute.xlu0 %6576
    %6580 = vset.pattern.permute.xlu0 0
    %6581 = vperm.xlu0 %6580, %v6555
    %v6582 = vpop.permute.xlu0 %6581
    %6585 = vset.pattern.permute.xlu0 0
    %6586 = vperm.xlu0 %6585, %v6556
    %v6587 = vpop.permute.xlu0 %6586
    %6590 = vset.pattern.permute.xlu0 0
    %6591 = vperm.xlu0 %6590, %v6557
    %v6592 = vpop.permute.xlu0 %6591
    %6595 = vset.pattern.permute.xlu0 0
    %6596 = vperm.xlu0 %6595, %v6558
    %v6597 = vpop.permute.xlu0 %6596
    %6600 = vset.pattern.permute.xlu0 0
    %6601 = vperm.xlu0 %6600, %v6559
    %v6602 = vpop.permute.xlu0 %6601
    %6605 = vset.pattern.permute.xlu0 0
    %6606 = vperm.xlu0 %6605, %v6560
    %v6607 = vpop.permute.xlu0 %6606
    %6610 = vset.pattern.permute.xlu0 0
    %6611 = vperm.xlu0 %6610, %v6561
    %v6612 = vpop.permute.xlu0 %6611
    %6615 = vset.pattern.permute.xlu0 0
    %6616 = vperm.xlu0 %6615, %v6562
    %v6617 = vpop.permute.xlu0 %6616
    %6620 = vset.pattern.permute.xlu0 0
    %6621 = vperm.xlu0 %6620, %v6563
    %v6622 = vpop.permute.xlu0 %6621
    %6625 = vset.pattern.permute.xlu0 0
    %6626 = vperm.xlu0 %6625, %v6564
    %v6627 = vpop.permute.xlu0 %6626
    %6630 = vset.pattern.permute.xlu0 0
    %6631 = vperm.xlu0 %6630, %v6565
    %v6632 = vpop.permute.xlu0 %6631
    %6635 = vset.pattern.permute.xlu0 0
    %6636 = vperm.xlu0 %6635, %v6566
    %v6637 = vpop.permute.xlu0 %6636
    %6640 = vset.pattern.permute.xlu0 0
    %6641 = vperm.xlu0 %6640, %v6567
    %v6642 = vpop.permute.xlu0 %6641
    %6645 = vset.pattern.permute.xlu0 0
    %6646 = vperm.xlu0 %6645, %v6568
    %v6647 = vpop.permute.xlu0 %6646
    %v6649 = vmul.f32 %v6572, %v6191
    %v6650 = vmul.f32 %v6577, %v6192
    %v6651 = vmul.f32 %v6582, %v6193
    %v6652 = vmul.f32 %v6587, %v6194
    %v6653 = vmul.f32 %v6592, %v6195
    %v6654 = vmul.f32 %v6597, %v6196
    %v6655 = vmul.f32 %v6602, %v6197
    %v6656 = vmul.f32 %v6607, %v6198
    %v6657 = vmul.f32 %v6612, %v6199
    %v6658 = vmul.f32 %v6617, %v6200
    %v6659 = vmul.f32 %v6622, %v6201
    %v6660 = vmul.f32 %v6627, %v6202
    %v6661 = vmul.f32 %v6632, %v6203
    %v6662 = vmul.f32 %v6637, %v6204
    %v6663 = vmul.f32 %v6642, %v6281
    %v6664 = vmul.f32 %v6647, %v6284
    %v6665 = vsel %vm124, %v6649, 0.0
    %v6666 = vsel %vm124, %v6651, 0.0
    %v6667 = vadd.f32 %v6665, %v6666
    %v6668 = vsel %vm124, %v6653, 0.0
    %v6669 = vadd.f32 %v6667, %v6668
    %v6670 = vsel %vm124, %v6655, 0.0
    %v6671 = vadd.f32 %v6669, %v6670
    %v6672 = vsel %vm124, %v6657, 0.0
    %v6673 = vadd.f32 %v6671, %v6672
    %v6674 = vsel %vm124, %v6659, 0.0
    %v6675 = vadd.f32 %v6673, %v6674
    %v6676 = vsel %vm124, %v6661, 0.0
    %v6677 = vadd.f32 %v6675, %v6676
    %v6678 = vsel %vm124, %v6663, 0.0
    %v6679 = vadd.f32 %v6677, %v6678
    %v6680 = vsel %vm124, %v6650, 0.0
    %v6681 = vsel %vm124, %v6652, 0.0
    %v6682 = vadd.f32 %v6680, %v6681
    %v6683 = vsel %vm124, %v6654, 0.0
    %v6684 = vadd.f32 %v6682, %v6683
    %v6685 = vsel %vm124, %v6656, 0.0
    %v6686 = vadd.f32 %v6684, %v6685
    %v6687 = vsel %vm124, %v6658, 0.0
    %v6688 = vadd.f32 %v6686, %v6687
    %v6689 = vsel %vm124, %v6660, 0.0
    %v6690 = vadd.f32 %v6688, %v6689
    %v6691 = vsel %vm124, %v6662, 0.0
    %v6692 = vadd.f32 %v6690, %v6691
    %v6693 = vsel %vm124, %v6664, 0.0
    %v6694 = vadd.f32 %v6692, %v6693
    %6697 = vrot.lane.b32.xlu0 %v6679, 32
    %v6698 = vpop.permute.xlu0 %6697
    %6699 = vrot.lane.b32.xlu0 %v6694, 32
    %v6700 = vpop.permute.xlu0 %6699
    %v6703 = vsel %vm52, %v6188, %v6698
    %v6704 = vsel %vm52, %v6189, %v6700
    %v6705 = vld [vmem:[%s10 + $0x34] sm:$0x1]
    %v6706 = vld [vmem:[%s10 + $0x35] sm:$0x1]
    %v6707 = vld [vmem:[%s10 + $0x36] sm:$0x1]
    %v6708 = vld [vmem:[%s10 + $0x37] sm:$0x1]
    %v6709 = vperm.slane %v6705, 0
    %v6710 = vmul.f32 %v6703, %v6709
    %v6711 = vmul.f32 %v6704, %v6709
    %v6712 = vsel %vm3692, %v6710, 0.0
    %6713 = vadd.xlane.f32.xlu0 %v6712
    %v6714 = vpop.xlane.xlu0 %6713
    %v6715 = vsel %vm3692, %v6711, 0.0
    %6716 = vadd.xlane.f32.xlu0 %v6715
    %v6717 = vpop.xlane.xlu0 %6716
    %v6718 = vperm.slane %v6707, 0
    %v6719 = vmul.f32 %v6703, %v6718
    %v6720 = vmul.f32 %v6704, %v6718
    %v6721 = vperm.slane %v6706, 0
    %v6722 = vadd.f32 %v6719, %v6721
    %v6723 = vadd.f32 %v6720, %v6721
    %v6725 = vsel %vm3692, %v6722, 0
    %v6728 = vsel %vm3692, %v6723, 0
    %v6731 = vsel %vm3692, %v6703, 0
    %v6734 = vsel %vm3692, %v6704, 0
    %6736 = vmatpush.xpose.msra.mxu0 0.0
    %6737 = vmatpush.xpose.msra.mxu0 0.0
    %6738 = vmatpush.xpose.msra.mxu0 0.0
    %6739 = vmatpush.xpose.msra.mxu0 0.0
    %6740 = vmatpush.xpose.msra.mxu0 0.0
    %6741 = vmatpush.xpose.msra.mxu0 0.0
    %6742 = vmatpush.xpose.msra.mxu0 0.0
    %6743 = vmatpush.xpose.msra.mxu0 0.0
    %6744 = vmatpush.xpose.msra.mxu0 0.0
    %6745 = vmatpush.xpose.msra.mxu0 0.0
    %6746 = vmatpush.xpose.msra.mxu0 0.0
    %6747 = vmatpush.xpose.msra.mxu0 0.0
    %6748 = vmatpush.xpose.msra.mxu0 0.0
    %6749 = vmatpush.xpose.msra.mxu0 0.0
    %6750 = vmatpush.xpose.msra.mxu0 %v6734
    %6751 = vmatpush.xpose.msra.mxu0 %v6731
    %6752 = vmatmul.f32.gmra.mxu0 %v6725
    %v6753 = vpop.f32.mrf.mxu0
    %v6754 = vadd.f32 %v6714, %v6753
    %6755 = vmatmul.f32.gmra.mxu0 %v6728
    %v6756 = vpop.f32.mrf.mxu0
    %v6757 = vadd.f32 %v6717, %v6756
    %6758 = vdwg.mxu0
    %s6760 = vtos %v6708
    %v6761 = vstv %s6760
    %v6763 = vadd.f32 %v6754, %v6761
    %v6764 = vadd.f32 %v6757, %v6761
    %v6765 = vadd.f32 %v6763, %v39
    %v6766 = vadd.f32 %v6764, %v40
    %v6767 = vsel %vm124, %v6765, -inf
    %6768 = vmax.xlane.f32.xlu0 %v6767
    %v6769 = vpop.xlane.xlu0 %6768
    %v6770 = vsel %vm124, %v6766, -inf
    %6771 = vmax.xlane.f32.xlu0 %v6770
    %v6772 = vpop.xlane.xlu0 %6771
    %v6773 = vsub.f32 %v6765, %v6769
    %v6774 = vsub.f32 %v6766, %v6772
    %v6775 = vmul.f32 %v6773, 1.442695
    %v6776 = vpow.pop %v6775
    %v6777 = vmul.f32 %v6774, 1.442695
    %v6778 = vpow.pop %v6777
    %v6779 = vsel %vm124, %v6776, 0.0
    %6780 = vadd.xlane.f32.xlu0 %v6779
    %v6781 = vpop.xlane.xlu0 %6780
    %v6782 = vsel %vm124, %v6778, 0.0
    %6783 = vadd.xlane.f32.xlu0 %v6782
    %v6784 = vpop.xlane.xlu0 %6783
    %v6785 = vrcp.pop %v6781
    %v6786 = vrcp.pop %v6784
    %v6787 = vmul.f32 %v6776, %v6785
    %v6788 = vmul.f32 %v6778, %v6786
    %v6790 = vsel %vm124, %v6787, 0
    %v6793 = vsel %vm124, %v6788, 0
    %6795 = vmatpush.msra.mxu0 0.0
    %6796 = vmatpush.msra.mxu0 0.0
    %6797 = vmatpush.msra.mxu0 0.0
    %6798 = vmatpush.msra.mxu0 0.0
    %6799 = vmatpush.msra.mxu0 0.0
    %6800 = vmatpush.msra.mxu0 0.0
    %6801 = vmatpush.msra.mxu0 0.0
    %6802 = vmatpush.msra.mxu0 0.0
    %6803 = vmatpush.msra.mxu0 0.0
    %6804 = vmatpush.msra.mxu0 0.0
    %6805 = vmatpush.msra.mxu0 0.0
    %6806 = vmatpush.msra.mxu0 0.0
    %6807 = vmatpush.msra.mxu0 0.0
    %6808 = vmatpush.msra.mxu0 0.0
    %6809 = vmatpush.msra.mxu0 %v6704
    %6810 = vmatpush.msra.mxu0 %v6703
    %6811 = vmatmul.f32.gmra.mxu0 %v6790
    %v6812 = vpop.f32.mrf.mxu0
    %v6813 = vadd.f32 0.0, %v6812
    %6814 = vmatmul.f32.gmra.mxu0 %v6793
    %v6815 = vpop.f32.mrf.mxu0
    %v6816 = vadd.f32 0.0, %v6815
    %6817 = vdwg.mxu0
    %6818 = vmatpush.msra.mxu0 0.0
    %6819 = vmatpush.msra.mxu0 0.0
    %6820 = vmatpush.msra.mxu0 0.0
    %6821 = vmatpush.msra.mxu0 0.0
    %6822 = vmatpush.msra.mxu0 0.0
    %6823 = vmatpush.msra.mxu0 0.0
    %6824 = vmatpush.msra.mxu0 0.0
    %6825 = vmatpush.msra.mxu0 0.0
    %6826 = vmatpush.msra.mxu0 0.0
    %6827 = vmatpush.msra.mxu0 0.0
    %6828 = vmatpush.msra.mxu0 0.0
    %6829 = vmatpush.msra.mxu0 0.0
    %6830 = vmatpush.msra.mxu0 0.0
    %6831 = vmatpush.msra.mxu0 0.0
    %6832 = vmatpush.msra.mxu0 %v6816
    %6833 = vmatpush.msra.mxu0 %v6813
    %6834 = vmatmul.f32.gmra.mxu0 %v6790
    %v6835 = vpop.f32.mrf.mxu0
    %v6836 = vadd.f32 0.0, %v6835
    %6837 = vmatmul.f32.gmra.mxu0 %v6793
    %v6838 = vpop.f32.mrf.mxu0
    %v6839 = vadd.f32 0.0, %v6838
    %6840 = vdwg.mxu0
    %s6841 = scalar_lea.vmem %s8, 192
    %v6842 = vld [vmem:[%s6841] sm:$0xff]
    %v6843 = vld [vmem:[%s6841 + $0x8] sm:$0xff]
    %v6844 = vld [vmem:[%s6841 + $0x10] sm:$0xff]
    %v6845 = vld [vmem:[%s6841 + $0x18] sm:$0xff]
    %v6846 = vld [vmem:[%s6841 + $0x20] sm:$0xff]
    %v6847 = vld [vmem:[%s6841 + $0x28] sm:$0xff]
    %s6848 = scalar_lea.vmem %s8, 240
    %v6849 = vld [vmem:[%s6848] sm:$0xff]
    %v6850 = vld [vmem:[%s6848 + $0x8] sm:$0xff]
    %v6851 = vld [vmem:[%s6848 + $0x10] sm:$0xff]
    %v6852 = vld [vmem:[%s6848 + $0x18] sm:$0xff]
    %v6853 = vld [vmem:[%s6848 + $0x20] sm:$0xff]
    %v6854 = vld [vmem:[%s6848 + $0x28] sm:$0xff]
    %v6856 = vsel %vm3692, %v6813, 0
    %v6859 = vsel %vm3692, %v6816, 0
    %6861 = vmatpush.msra.mxu0 0.0
    %6862 = vmatpush.msra.mxu0 0.0
    %6863 = vmatpush.msra.mxu0 0.0
    %6864 = vmatpush.msra.mxu0 0.0
    %6865 = vmatpush.msra.mxu0 0.0
    %6866 = vmatpush.msra.mxu0 0.0
    %6867 = vmatpush.msra.mxu0 0.0
    %6868 = vmatpush.msra.mxu0 0.0
    %6869 = vmatpush.msra.mxu0 0.0
    %6870 = vmatpush.msra.mxu0 0.0
    %6871 = vmatpush.msra.mxu0 %v6854
    %6872 = vmatpush.msra.mxu0 %v6853
    %6873 = vmatpush.msra.mxu0 %v6852
    %6874 = vmatpush.msra.mxu0 %v6851
    %6875 = vmatpush.msra.mxu0 %v6850
    %6876 = vmatpush.msra.mxu0 %v6849
    %6877 = vmatmul.f32.gmra.mxu0 %v6856
    %v6878 = vpop.f32.mrf.mxu0
    %v6879 = vadd.f32 0.0, %v6878
    %6880 = vmatmul.f32.gmra.mxu0 %v6859
    %v6881 = vpop.f32.mrf.mxu0
    %v6882 = vadd.f32 0.0, %v6881
    %6883 = vdwg.mxu0
    %6884 = vmatpush.msra.mxu0 0.0
    %6885 = vmatpush.msra.mxu0 0.0
    %6886 = vmatpush.msra.mxu0 0.0
    %6887 = vmatpush.msra.mxu0 0.0
    %6888 = vmatpush.msra.mxu0 0.0
    %6889 = vmatpush.msra.mxu0 0.0
    %6890 = vmatpush.msra.mxu0 0.0
    %6891 = vmatpush.msra.mxu0 0.0
    %6892 = vmatpush.msra.mxu0 0.0
    %6893 = vmatpush.msra.mxu0 0.0
    %6894 = vmatpush.msra.mxu0 %v6847
    %6895 = vmatpush.msra.mxu0 %v6846
    %6896 = vmatpush.msra.mxu0 %v6845
    %6897 = vmatpush.msra.mxu0 %v6844
    %6898 = vmatpush.msra.mxu0 %v6843
    %6899 = vmatpush.msra.mxu0 %v6842
    %6900 = vmatmul.f32.gmra.mxu0 %v6731
    %v6901 = vpop.f32.mrf.mxu0
    %v6902 = vadd.f32 %v6879, %v6901
    %6903 = vmatmul.f32.gmra.mxu0 %v6734
    %v6904 = vpop.f32.mrf.mxu0
    %v6905 = vadd.f32 %v6882, %v6904
    %6906 = vdwg.mxu0
    %s6907 = scalar_lea.vmem %s8, 288
    %v6908 = vld [vmem:[%s6907] sm:$0xff]
    %v6909 = vld [vmem:[%s6907 + $0x8] sm:$0xff]
    %v6910 = vld [vmem:[%s6907 + $0x10] sm:$0xff]
    %v6911 = vld [vmem:[%s6907 + $0x18] sm:$0xff]
    %v6912 = vld [vmem:[%s6907 + $0x20] sm:$0xff]
    %v6913 = vld [vmem:[%s6907 + $0x28] sm:$0xff]
    %v6915 = vsel %vm3692, %v6836, 0
    %v6918 = vsel %vm3692, %v6839, 0
    %6920 = vmatpush.msra.mxu0 0.0
    %6921 = vmatpush.msra.mxu0 0.0
    %6922 = vmatpush.msra.mxu0 0.0
    %6923 = vmatpush.msra.mxu0 0.0
    %6924 = vmatpush.msra.mxu0 0.0
    %6925 = vmatpush.msra.mxu0 0.0
    %6926 = vmatpush.msra.mxu0 0.0
    %6927 = vmatpush.msra.mxu0 0.0
    %6928 = vmatpush.msra.mxu0 0.0
    %6929 = vmatpush.msra.mxu0 0.0
    %6930 = vmatpush.msra.mxu0 %v6913
    %6931 = vmatpush.msra.mxu0 %v6912
    %6932 = vmatpush.msra.mxu0 %v6911
    %6933 = vmatpush.msra.mxu0 %v6910
    %6934 = vmatpush.msra.mxu0 %v6909
    %6935 = vmatpush.msra.mxu0 %v6908
    %6936 = vmatmul.f32.gmra.mxu0 %v6915
    %v6937 = vpop.f32.mrf.mxu0
    %v6938 = vadd.f32 0.0, %v6937
    %6939 = vmatmul.f32.gmra.mxu0 %v6918
    %v6940 = vpop.f32.mrf.mxu0
    %v6941 = vadd.f32 0.0, %v6940
    %6942 = vdwg.mxu0
    %v6943 = vadd.f32 %v6902, %v6938
    %v6944 = vadd.f32 %v6905, %v6941
    %v6945 = vmul.f32 %v6703, %v6813
    %v6946 = vmul.f32 %v6704, %v6816
    %s6947 = scalar_lea.vmem %s8, 336
    %v6948 = vld [vmem:[%s6947] sm:$0xff]
    %v6949 = vld [vmem:[%s6947 + $0x8] sm:$0xff]
    %v6950 = vld [vmem:[%s6947 + $0x10] sm:$0xff]
    %v6951 = vld [vmem:[%s6947 + $0x18] sm:$0xff]
    %v6952 = vld [vmem:[%s6947 + $0x20] sm:$0xff]
    %v6953 = vld [vmem:[%s6947 + $0x28] sm:$0xff]
    %v6955 = vsel %vm3692, %v6945, 0
    %v6958 = vsel %vm3692, %v6946, 0
    %6960 = vmatpush.msra.mxu0 0.0
    %6961 = vmatpush.msra.mxu0 0.0
    %6962 = vmatpush.msra.mxu0 0.0
    %6963 = vmatpush.msra.mxu0 0.0
    %6964 = vmatpush.msra.mxu0 0.0
    %6965 = vmatpush.msra.mxu0 0.0
    %6966 = vmatpush.msra.mxu0 0.0
    %6967 = vmatpush.msra.mxu0 0.0
    %6968 = vmatpush.msra.mxu0 0.0
    %6969 = vmatpush.msra.mxu0 0.0
    %6970 = vmatpush.msra.mxu0 %v6953
    %6971 = vmatpush.msra.mxu0 %v6952
    %6972 = vmatpush.msra.mxu0 %v6951
    %6973 = vmatpush.msra.mxu0 %v6950
    %6974 = vmatpush.msra.mxu0 %v6949
    %6975 = vmatpush.msra.mxu0 %v6948
    %6976 = vmatmul.f32.gmra.mxu0 %v6955
    %v6977 = vpop.f32.mrf.mxu0
    %v6978 = vadd.f32 0.0, %v6977
    %6979 = vmatmul.f32.gmra.mxu0 %v6958
    %v6980 = vpop.f32.mrf.mxu0
    %v6981 = vadd.f32 0.0, %v6980
    %6982 = vdwg.mxu0
    %v6983 = vadd.f32 %v6943, %v6978
    %v6984 = vadd.f32 %v6944, %v6981
    %v6985 = vld [vmem:[%s10 + $0x38] sm:$0x1]
    %v6986 = vperm.slane %v6985, 0
    %v6987 = vadd.f32 %v6983, %v6986
    %v6988 = vadd.f32 %v6984, %v6986
    %s6989 = scalar_lea.vmem %s9, 32
    %v6990 = vld [vmem:[%s6989] sm:$0xff]
    %v6991 = vld [vmem:[%s6989 + $0x8] sm:$0xff]
    %v6992 = vld [vmem:[%s6989 + $0x10] sm:$0xff]
    %v6993 = vld [vmem:[%s6989 + $0x18] sm:$0xff]
    %v6994 = vld [vmem:[%s10 + $0x39] sm:$0x1]
    %v6995 = vperm.slane %v6994, 0
    %6996 = vmatpush.msra.mxu0 0.0
    %6997 = vmatpush.msra.mxu0 0.0
    %6998 = vmatpush.msra.mxu0 0.0
    %6999 = vmatpush.msra.mxu0 0.0
    %7000 = vmatpush.msra.mxu0 0.0
    %7001 = vmatpush.msra.mxu0 0.0
    %7002 = vmatpush.msra.mxu0 0.0
    %7003 = vmatpush.msra.mxu0 0.0
    %7004 = vmatpush.msra.mxu0 0.0
    %7005 = vmatpush.msra.mxu0 0.0
    %7006 = vmatpush.msra.mxu0 0.0
    %7007 = vmatpush.msra.mxu0 0.0
    %7008 = vmatpush.msra.mxu0 %v6993
    %7009 = vmatpush.msra.mxu0 %v6992
    %7010 = vmatpush.msra.mxu0 %v6991
    %7011 = vmatpush.msra.mxu0 %v6990
    %7012 = vmatmul.f32.gmra.mxu0 %v6287
    %v7013 = vpop.f32.mrf.mxu0
    %v7014 = vadd.f32 %v6995, %v7013
    %7015 = vmatmul.f32.gmra.mxu0 %v6290
    %v7016 = vpop.f32.mrf.mxu0
    %v7017 = vadd.f32 %v6995, %v7016
    %7018 = vdwg.mxu0
    %7023 = vrot.lane.b32.xlu0 %v6990, 96
    %v7024 = vpop.permute.xlu0 %7023
    %7025 = vrot.lane.b32.xlu0 %v6991, 96
    %v7026 = vpop.permute.xlu0 %7025
    %7027 = vrot.lane.b32.xlu0 %v6992, 96
    %v7028 = vpop.permute.xlu0 %7027
    %7029 = vrot.lane.b32.xlu0 %v6993, 96
    %v7030 = vpop.permute.xlu0 %7029
    %7036 = vrot.lane.b32.xlu0 %v6995, 96
    %v7037 = vpop.permute.xlu0 %7036
    %v7040 = vsel %vm52, %v6987, 0
    %v7043 = vsel %vm52, %v6988, 0
    %7045 = vmatpush.msra.mxu0 0.0
    %7046 = vmatpush.msra.mxu0 0.0
    %7047 = vmatpush.msra.mxu0 0.0
    %7048 = vmatpush.msra.mxu0 0.0
    %7049 = vmatpush.msra.mxu0 0.0
    %7050 = vmatpush.msra.mxu0 0.0
    %7051 = vmatpush.msra.mxu0 0.0
    %7052 = vmatpush.msra.mxu0 0.0
    %7053 = vmatpush.msra.mxu0 0.0
    %7054 = vmatpush.msra.mxu0 0.0
    %7055 = vmatpush.msra.mxu0 0.0
    %7056 = vmatpush.msra.mxu0 0.0
    %7057 = vmatpush.msra.mxu0 %v7030
    %7058 = vmatpush.msra.mxu0 %v7028
    %7059 = vmatpush.msra.mxu0 %v7026
    %7060 = vmatpush.msra.mxu0 %v7024
    %7061 = vmatmul.f32.gmra.mxu0 %v7040
    %v7062 = vpop.f32.mrf.mxu0
    %v7063 = vadd.f32 %v7037, %v7062
    %7064 = vmatmul.f32.gmra.mxu0 %v7043
    %v7065 = vpop.f32.mrf.mxu0
    %v7066 = vadd.f32 %v7037, %v7065
    %7067 = vdwg.mxu0
    %v7069 = vsel %vm88, %v7014, 0
    %v7072 = vsel %vm88, %v7017, 0
    %v7075 = vsel %vm88, %v7063, 0
    %v7078 = vsel %vm88, %v7066, 0
    %7080 = vmatpush.xpose.msra.mxu0 0.0
    %7081 = vmatpush.xpose.msra.mxu0 0.0
    %7082 = vmatpush.xpose.msra.mxu0 0.0
    %7083 = vmatpush.xpose.msra.mxu0 0.0
    %7084 = vmatpush.xpose.msra.mxu0 0.0
    %7085 = vmatpush.xpose.msra.mxu0 0.0
    %7086 = vmatpush.xpose.msra.mxu0 0.0
    %7087 = vmatpush.xpose.msra.mxu0 0.0
    %7088 = vmatpush.xpose.msra.mxu0 0.0
    %7089 = vmatpush.xpose.msra.mxu0 0.0
    %7090 = vmatpush.xpose.msra.mxu0 0.0
    %7091 = vmatpush.xpose.msra.mxu0 0.0
    %7092 = vmatpush.xpose.msra.mxu0 0.0
    %7093 = vmatpush.xpose.msra.mxu0 0.0
    %7094 = vmatpush.xpose.msra.mxu0 %v7078
    %7095 = vmatpush.xpose.msra.mxu0 %v7075
    %7096 = vmatmul.f32.gmra.mxu0 %v7069
    %v7097 = vpop.f32.mrf.mxu0
    %v7098 = vadd.f32 0.0, %v7097
    %7099 = vmatmul.f32.gmra.mxu0 %v7072
    %v7100 = vpop.f32.mrf.mxu0
    %v7101 = vadd.f32 0.0, %v7100
    %7102 = vdwg.mxu0
    %v7103 = vmul.f32 %v7098, 0.35355338
    %v7104 = vmul.f32 %v7101, 0.35355338
    %v7105 = vadd.f32 %v7103, %v39
    %v7106 = vadd.f32 %v7104, %v40
    %v7107 = vsel %vm124, %v7105, -inf
    %7108 = vmax.xlane.f32.xlu0 %v7107
    %v7109 = vpop.xlane.xlu0 %7108
    %v7110 = vsel %vm124, %v7106, -inf
    %7111 = vmax.xlane.f32.xlu0 %v7110
    %v7112 = vpop.xlane.xlu0 %7111
    %v7113 = vsub.f32 %v7105, %v7109
    %v7114 = vsub.f32 %v7106, %v7112
    %v7115 = vmul.f32 %v7113, 1.442695
    %v7116 = vpow.pop %v7115
    %v7117 = vmul.f32 %v7114, 1.442695
    %v7118 = vpow.pop %v7117
    %v7119 = vsel %vm124, %v7116, 0.0
    %7120 = vadd.xlane.f32.xlu0 %v7119
    %v7121 = vpop.xlane.xlu0 %7120
    %v7122 = vsel %vm124, %v7118, 0.0
    %7123 = vadd.xlane.f32.xlu0 %v7122
    %v7124 = vpop.xlane.xlu0 %7123
    %v7125 = vrcp.pop %v7121
    %v7126 = vrcp.pop %v7124
    %v7127 = vmul.f32 %v7116, %v7125
    %v7128 = vmul.f32 %v7118, %v7126
    %7129 = vrot.lane.b32.xlu0 %v7063, 96
    %v7130 = vpop.permute.xlu0 %7129
    %7131 = vrot.lane.b32.xlu0 %v7066, 96
    %v7132 = vpop.permute.xlu0 %7131
    %v7136 = vsel %vm124, %v7127, 0
    %v7139 = vsel %vm124, %v7128, 0
    %7141 = vmatpush.msra.mxu0 0.0
    %7142 = vmatpush.msra.mxu0 0.0
    %7143 = vmatpush.msra.mxu0 0.0
    %7144 = vmatpush.msra.mxu0 0.0
    %7145 = vmatpush.msra.mxu0 0.0
    %7146 = vmatpush.msra.mxu0 0.0
    %7147 = vmatpush.msra.mxu0 0.0
    %7148 = vmatpush.msra.mxu0 0.0
    %7149 = vmatpush.msra.mxu0 0.0
    %7150 = vmatpush.msra.mxu0 0.0
    %7151 = vmatpush.msra.mxu0 0.0
    %7152 = vmatpush.msra.mxu0 0.0
    %7153 = vmatpush.msra.mxu0 0.0
    %7154 = vmatpush.msra.mxu0 0.0
    %7155 = vmatpush.msra.mxu0 %v7132
    %7156 = vmatpush.msra.mxu0 %v7130
    %7157 = vmatmul.f32.gmra.mxu0 %v7136
    %v7158 = vpop.f32.mrf.mxu0
    %v7159 = vadd.f32 0.0, %v7158
    %7160 = vmatmul.f32.gmra.mxu0 %v7139
    %v7161 = vpop.f32.mrf.mxu0
    %v7162 = vadd.f32 0.0, %v7161
    %7163 = vdwg.mxu0
    %7164 = vrot.lane.b32.xlu0 %v7014, 120
    %v7165 = vpop.permute.xlu0 %7164
    %7166 = vrot.lane.b32.xlu0 %v7017, 120
    %v7167 = vpop.permute.xlu0 %7166
    %7168 = vrot.lane.b32.xlu0 %v7063, 120
    %v7169 = vpop.permute.xlu0 %7168
    %7170 = vrot.lane.b32.xlu0 %v7066, 120
    %v7171 = vpop.permute.xlu0 %7170
    %v7172 = vsel %vm88, %v7165, 0
    %v7174 = vsel %vm88, %v7167, 0
    %v7176 = vsel %vm88, %v7169, 0
    %v7178 = vsel %vm88, %v7171, 0
    %7180 = vmatpush.xpose.msra.mxu0 0.0
    %7181 = vmatpush.xpose.msra.mxu0 0.0
    %7182 = vmatpush.xpose.msra.mxu0 0.0
    %7183 = vmatpush.xpose.msra.mxu0 0.0
    %7184 = vmatpush.xpose.msra.mxu0 0.0
    %7185 = vmatpush.xpose.msra.mxu0 0.0
    %7186 = vmatpush.xpose.msra.mxu0 0.0
    %7187 = vmatpush.xpose.msra.mxu0 0.0
    %7188 = vmatpush.xpose.msra.mxu0 0.0
    %7189 = vmatpush.xpose.msra.mxu0 0.0
    %7190 = vmatpush.xpose.msra.mxu0 0.0
    %7191 = vmatpush.xpose.msra.mxu0 0.0
    %7192 = vmatpush.xpose.msra.mxu0 0.0
    %7193 = vmatpush.xpose.msra.mxu0 0.0
    %7194 = vmatpush.xpose.msra.mxu0 %v7178
    %7195 = vmatpush.xpose.msra.mxu0 %v7176
    %7196 = vmatmul.f32.gmra.mxu0 %v7172
    %v7197 = vpop.f32.mrf.mxu0
    %v7198 = vadd.f32 0.0, %v7197
    %7199 = vmatmul.f32.gmra.mxu0 %v7174
    %v7200 = vpop.f32.mrf.mxu0
    %v7201 = vadd.f32 0.0, %v7200
    %7202 = vdwg.mxu0
    %v7203 = vmul.f32 %v7198, 0.35355338
    %v7204 = vmul.f32 %v7201, 0.35355338
    %v7205 = vadd.f32 %v7203, %v39
    %v7206 = vadd.f32 %v7204, %v40
    %v7207 = vsel %vm124, %v7205, -inf
    %7208 = vmax.xlane.f32.xlu0 %v7207
    %v7209 = vpop.xlane.xlu0 %7208
    %v7210 = vsel %vm124, %v7206, -inf
    %7211 = vmax.xlane.f32.xlu0 %v7210
    %v7212 = vpop.xlane.xlu0 %7211
    %v7213 = vsub.f32 %v7205, %v7209
    %v7214 = vsub.f32 %v7206, %v7212
    %v7215 = vmul.f32 %v7213, 1.442695
    %v7216 = vpow.pop %v7215
    %v7217 = vmul.f32 %v7214, 1.442695
    %v7218 = vpow.pop %v7217
    %v7219 = vsel %vm124, %v7216, 0.0
    %7220 = vadd.xlane.f32.xlu0 %v7219
    %v7221 = vpop.xlane.xlu0 %7220
    %v7222 = vsel %vm124, %v7218, 0.0
    %7223 = vadd.xlane.f32.xlu0 %v7222
    %v7224 = vpop.xlane.xlu0 %7223
    %v7225 = vrcp.pop %v7221
    %v7226 = vrcp.pop %v7224
    %v7227 = vmul.f32 %v7216, %v7225
    %v7228 = vmul.f32 %v7218, %v7226
    %7229 = vrot.lane.b32.xlu0 %v7063, 88
    %v7230 = vpop.permute.xlu0 %7229
    %7231 = vrot.lane.b32.xlu0 %v7066, 88
    %v7232 = vpop.permute.xlu0 %7231
    %v7236 = vsel %vm124, %v7227, 0
    %v7239 = vsel %vm124, %v7228, 0
    %7241 = vmatpush.msra.mxu0 0.0
    %7242 = vmatpush.msra.mxu0 0.0
    %7243 = vmatpush.msra.mxu0 0.0
    %7244 = vmatpush.msra.mxu0 0.0
    %7245 = vmatpush.msra.mxu0 0.0
    %7246 = vmatpush.msra.mxu0 0.0
    %7247 = vmatpush.msra.mxu0 0.0
    %7248 = vmatpush.msra.mxu0 0.0
    %7249 = vmatpush.msra.mxu0 0.0
    %7250 = vmatpush.msra.mxu0 0.0
    %7251 = vmatpush.msra.mxu0 0.0
    %7252 = vmatpush.msra.mxu0 0.0
    %7253 = vmatpush.msra.mxu0 0.0
    %7254 = vmatpush.msra.mxu0 0.0
    %7255 = vmatpush.msra.mxu0 %v7232
    %7256 = vmatpush.msra.mxu0 %v7230
    %7257 = vmatmul.f32.gmra.mxu0 %v7236
    %v7258 = vpop.f32.mrf.mxu0
    %v7259 = vadd.f32 0.0, %v7258
    %7260 = vmatmul.f32.gmra.mxu0 %v7239
    %v7261 = vpop.f32.mrf.mxu0
    %v7262 = vadd.f32 0.0, %v7261
    %7263 = vdwg.mxu0
    %7264 = vrot.lane.b32.xlu0 %v6991, 32
    %v7265 = vpop.permute.xlu0 %7264
    %v7268 = vsel %vm88, %v7259, 0
    %v7271 = vsel %vm88, %v7262, 0
    %7273 = vmatpush.msra.mxu0 0.0
    %7274 = vmatpush.msra.mxu0 0.0
    %7275 = vmatpush.msra.mxu0 0.0
    %7276 = vmatpush.msra.mxu0 0.0
    %7277 = vmatpush.msra.mxu0 0.0
    %7278 = vmatpush.msra.mxu0 0.0
    %7279 = vmatpush.msra.mxu0 0.0
    %7280 = vmatpush.msra.mxu0 0.0
    %7281 = vmatpush.msra.mxu0 0.0
    %7282 = vmatpush.msra.mxu0 0.0
    %7283 = vmatpush.msra.mxu0 0.0
    %7284 = vmatpush.msra.mxu0 0.0
    %7285 = vmatpush.msra.mxu0 0.0
    %7286 = vmatpush.msra.mxu0 0.0
    %7287 = vmatpush.msra.mxu0 0.0
    %7288 = vmatpush.msra.mxu0 %v7265
    %7289 = vmatmul.f32.gmra.mxu0 %v7268
    %v7290 = vpop.f32.mrf.mxu0
    %v7291 = vadd.f32 0.0, %v7290
    %7292 = vmatmul.f32.gmra.mxu0 %v7271
    %v7293 = vpop.f32.mrf.mxu0
    %v7294 = vadd.f32 0.0, %v7293
    %7295 = vdwg.mxu0
    %7296 = vrot.lane.b32.xlu0 %v6990, 32
    %v7297 = vpop.permute.xlu0 %7296
    %v7300 = vsel %vm88, %v7159, 0
    %v7303 = vsel %vm88, %v7162, 0
    %7305 = vmatpush.msra.mxu0 0.0
    %7306 = vmatpush.msra.mxu0 0.0
    %7307 = vmatpush.msra.mxu0 0.0
    %7308 = vmatpush.msra.mxu0 0.0
    %7309 = vmatpush.msra.mxu0 0.0
    %7310 = vmatpush.msra.mxu0 0.0
    %7311 = vmatpush.msra.mxu0 0.0
    %7312 = vmatpush.msra.mxu0 0.0
    %7313 = vmatpush.msra.mxu0 0.0
    %7314 = vmatpush.msra.mxu0 0.0
    %7315 = vmatpush.msra.mxu0 0.0
    %7316 = vmatpush.msra.mxu0 0.0
    %7317 = vmatpush.msra.mxu0 0.0
    %7318 = vmatpush.msra.mxu0 0.0
    %7319 = vmatpush.msra.mxu0 0.0
    %7320 = vmatpush.msra.mxu0 %v7297
    %7321 = vmatmul.f32.gmra.mxu0 %v7300
    %v7322 = vpop.f32.mrf.mxu0
    %v7323 = vadd.f32 %v7291, %v7322
    %7324 = vmatmul.f32.gmra.mxu0 %v7303
    %v7325 = vpop.f32.mrf.mxu0
    %v7326 = vadd.f32 %v7294, %v7325
    %7327 = vdwg.mxu0
    %7328 = vrot.lane.b32.xlu0 %v7014, 112
    %v7329 = vpop.permute.xlu0 %7328
    %7330 = vrot.lane.b32.xlu0 %v7017, 112
    %v7331 = vpop.permute.xlu0 %7330
    %7332 = vrot.lane.b32.xlu0 %v7063, 112
    %v7333 = vpop.permute.xlu0 %7332
    %7334 = vrot.lane.b32.xlu0 %v7066, 112
    %v7335 = vpop.permute.xlu0 %7334
    %v7336 = vsel %vm88, %v7329, 0
    %v7338 = vsel %vm88, %v7331, 0
    %v7340 = vsel %vm88, %v7333, 0
    %v7342 = vsel %vm88, %v7335, 0
    %7344 = vmatpush.xpose.msra.mxu0 0.0
    %7345 = vmatpush.xpose.msra.mxu0 0.0
    %7346 = vmatpush.xpose.msra.mxu0 0.0
    %7347 = vmatpush.xpose.msra.mxu0 0.0
    %7348 = vmatpush.xpose.msra.mxu0 0.0
    %7349 = vmatpush.xpose.msra.mxu0 0.0
    %7350 = vmatpush.xpose.msra.mxu0 0.0
    %7351 = vmatpush.xpose.msra.mxu0 0.0
    %7352 = vmatpush.xpose.msra.mxu0 0.0
    %7353 = vmatpush.xpose.msra.mxu0 0.0
    %7354 = vmatpush.xpose.msra.mxu0 0.0
    %7355 = vmatpush.xpose.msra.mxu0 0.0
    %7356 = vmatpush.xpose.msra.mxu0 0.0
    %7357 = vmatpush.xpose.msra.mxu0 0.0
    %7358 = vmatpush.xpose.msra.mxu0 %v7342
    %7359 = vmatpush.xpose.msra.mxu0 %v7340
    %7360 = vmatmul.f32.gmra.mxu0 %v7336
    %v7361 = vpop.f32.mrf.mxu0
    %v7362 = vadd.f32 0.0, %v7361
    %7363 = vmatmul.f32.gmra.mxu0 %v7338
    %v7364 = vpop.f32.mrf.mxu0
    %v7365 = vadd.f32 0.0, %v7364
    %7366 = vdwg.mxu0
    %v7367 = vmul.f32 %v7362, 0.35355338
    %v7368 = vmul.f32 %v7365, 0.35355338
    %v7369 = vadd.f32 %v7367, %v39
    %v7370 = vadd.f32 %v7368, %v40
    %v7371 = vsel %vm124, %v7369, -inf
    %7372 = vmax.xlane.f32.xlu0 %v7371
    %v7373 = vpop.xlane.xlu0 %7372
    %v7374 = vsel %vm124, %v7370, -inf
    %7375 = vmax.xlane.f32.xlu0 %v7374
    %v7376 = vpop.xlane.xlu0 %7375
    %v7377 = vsub.f32 %v7369, %v7373
    %v7378 = vsub.f32 %v7370, %v7376
    %v7379 = vmul.f32 %v7377, 1.442695
    %v7380 = vpow.pop %v7379
    %v7381 = vmul.f32 %v7378, 1.442695
    %v7382 = vpow.pop %v7381
    %v7383 = vsel %vm124, %v7380, 0.0
    %7384 = vadd.xlane.f32.xlu0 %v7383
    %v7385 = vpop.xlane.xlu0 %7384
    %v7386 = vsel %vm124, %v7382, 0.0
    %7387 = vadd.xlane.f32.xlu0 %v7386
    %v7388 = vpop.xlane.xlu0 %7387
    %v7389 = vrcp.pop %v7385
    %v7390 = vrcp.pop %v7388
    %v7391 = vmul.f32 %v7380, %v7389
    %v7392 = vmul.f32 %v7382, %v7390
    %7393 = vrot.lane.b32.xlu0 %v7063, 80
    %v7394 = vpop.permute.xlu0 %7393
    %7395 = vrot.lane.b32.xlu0 %v7066, 80
    %v7396 = vpop.permute.xlu0 %7395
    %v7400 = vsel %vm124, %v7391, 0
    %v7403 = vsel %vm124, %v7392, 0
    %7405 = vmatpush.msra.mxu0 0.0
    %7406 = vmatpush.msra.mxu0 0.0
    %7407 = vmatpush.msra.mxu0 0.0
    %7408 = vmatpush.msra.mxu0 0.0
    %7409 = vmatpush.msra.mxu0 0.0
    %7410 = vmatpush.msra.mxu0 0.0
    %7411 = vmatpush.msra.mxu0 0.0
    %7412 = vmatpush.msra.mxu0 0.0
    %7413 = vmatpush.msra.mxu0 0.0
    %7414 = vmatpush.msra.mxu0 0.0
    %7415 = vmatpush.msra.mxu0 0.0
    %7416 = vmatpush.msra.mxu0 0.0
    %7417 = vmatpush.msra.mxu0 0.0
    %7418 = vmatpush.msra.mxu0 0.0
    %7419 = vmatpush.msra.mxu0 %v7396
    %7420 = vmatpush.msra.mxu0 %v7394
    %7421 = vmatmul.f32.gmra.mxu0 %v7400
    %v7422 = vpop.f32.mrf.mxu0
    %v7423 = vadd.f32 0.0, %v7422
    %7424 = vmatmul.f32.gmra.mxu0 %v7403
    %v7425 = vpop.f32.mrf.mxu0
    %v7426 = vadd.f32 0.0, %v7425
    %7427 = vdwg.mxu0
    %7428 = vrot.lane.b32.xlu0 %v6992, 32
    %v7429 = vpop.permute.xlu0 %7428
    %v7432 = vsel %vm88, %v7423, 0
    %v7435 = vsel %vm88, %v7426, 0
    %7437 = vmatpush.msra.mxu0 0.0
    %7438 = vmatpush.msra.mxu0 0.0
    %7439 = vmatpush.msra.mxu0 0.0
    %7440 = vmatpush.msra.mxu0 0.0
    %7441 = vmatpush.msra.mxu0 0.0
    %7442 = vmatpush.msra.mxu0 0.0
    %7443 = vmatpush.msra.mxu0 0.0
    %7444 = vmatpush.msra.mxu0 0.0
    %7445 = vmatpush.msra.mxu0 0.0
    %7446 = vmatpush.msra.mxu0 0.0
    %7447 = vmatpush.msra.mxu0 0.0
    %7448 = vmatpush.msra.mxu0 0.0
    %7449 = vmatpush.msra.mxu0 0.0
    %7450 = vmatpush.msra.mxu0 0.0
    %7451 = vmatpush.msra.mxu0 0.0
    %7452 = vmatpush.msra.mxu0 %v7429
    %7453 = vmatmul.f32.gmra.mxu0 %v7432
    %v7454 = vpop.f32.mrf.mxu0
    %v7455 = vadd.f32 0.0, %v7454
    %7456 = vmatmul.f32.gmra.mxu0 %v7435
    %v7457 = vpop.f32.mrf.mxu0
    %v7458 = vadd.f32 0.0, %v7457
    %7459 = vdwg.mxu0
    %v7460 = vadd.f32 %v7323, %v7455
    %v7461 = vadd.f32 %v7326, %v7458
    %7462 = vrot.lane.b32.xlu0 %v7014, 104
    %v7463 = vpop.permute.xlu0 %7462
    %7464 = vrot.lane.b32.xlu0 %v7017, 104
    %v7465 = vpop.permute.xlu0 %7464
    %7466 = vrot.lane.b32.xlu0 %v7063, 104
    %v7467 = vpop.permute.xlu0 %7466
    %7468 = vrot.lane.b32.xlu0 %v7066, 104
    %v7469 = vpop.permute.xlu0 %7468
    %v7470 = vsel %vm88, %v7463, 0
    %v7472 = vsel %vm88, %v7465, 0
    %v7474 = vsel %vm88, %v7467, 0
    %v7476 = vsel %vm88, %v7469, 0
    %7478 = vmatpush.xpose.msra.mxu0 0.0
    %7479 = vmatpush.xpose.msra.mxu0 0.0
    %7480 = vmatpush.xpose.msra.mxu0 0.0
    %7481 = vmatpush.xpose.msra.mxu0 0.0
    %7482 = vmatpush.xpose.msra.mxu0 0.0
    %7483 = vmatpush.xpose.msra.mxu0 0.0
    %7484 = vmatpush.xpose.msra.mxu0 0.0
    %7485 = vmatpush.xpose.msra.mxu0 0.0
    %7486 = vmatpush.xpose.msra.mxu0 0.0
    %7487 = vmatpush.xpose.msra.mxu0 0.0
    %7488 = vmatpush.xpose.msra.mxu0 0.0
    %7489 = vmatpush.xpose.msra.mxu0 0.0
    %7490 = vmatpush.xpose.msra.mxu0 0.0
    %7491 = vmatpush.xpose.msra.mxu0 0.0
    %7492 = vmatpush.xpose.msra.mxu0 %v7476
    %7493 = vmatpush.xpose.msra.mxu0 %v7474
    %7494 = vmatmul.f32.gmra.mxu0 %v7470
    %v7495 = vpop.f32.mrf.mxu0
    %v7496 = vadd.f32 0.0, %v7495
    %7497 = vmatmul.f32.gmra.mxu0 %v7472
    %v7498 = vpop.f32.mrf.mxu0
    %v7499 = vadd.f32 0.0, %v7498
    %7500 = vdwg.mxu0
    %v7501 = vmul.f32 %v7496, 0.35355338
    %v7502 = vmul.f32 %v7499, 0.35355338
    %v7503 = vadd.f32 %v7501, %v39
    %v7504 = vadd.f32 %v7502, %v40
    %v7505 = vsel %vm124, %v7503, -inf
    %7506 = vmax.xlane.f32.xlu0 %v7505
    %v7507 = vpop.xlane.xlu0 %7506
    %v7508 = vsel %vm124, %v7504, -inf
    %7509 = vmax.xlane.f32.xlu0 %v7508
    %v7510 = vpop.xlane.xlu0 %7509
    %v7511 = vsub.f32 %v7503, %v7507
    %v7512 = vsub.f32 %v7504, %v7510
    %v7513 = vmul.f32 %v7511, 1.442695
    %v7514 = vpow.pop %v7513
    %v7515 = vmul.f32 %v7512, 1.442695
    %v7516 = vpow.pop %v7515
    %v7517 = vsel %vm124, %v7514, 0.0
    %7518 = vadd.xlane.f32.xlu0 %v7517
    %v7519 = vpop.xlane.xlu0 %7518
    %v7520 = vsel %vm124, %v7516, 0.0
    %7521 = vadd.xlane.f32.xlu0 %v7520
    %v7522 = vpop.xlane.xlu0 %7521
    %v7523 = vrcp.pop %v7519
    %v7524 = vrcp.pop %v7522
    %v7525 = vmul.f32 %v7514, %v7523
    %v7526 = vmul.f32 %v7516, %v7524
    %7527 = vrot.lane.b32.xlu0 %v7063, 72
    %v7528 = vpop.permute.xlu0 %7527
    %7529 = vrot.lane.b32.xlu0 %v7066, 72
    %v7530 = vpop.permute.xlu0 %7529
    %v7534 = vsel %vm124, %v7525, 0
    %v7537 = vsel %vm124, %v7526, 0
    %7539 = vmatpush.msra.mxu0 0.0
    %7540 = vmatpush.msra.mxu0 0.0
    %7541 = vmatpush.msra.mxu0 0.0
    %7542 = vmatpush.msra.mxu0 0.0
    %7543 = vmatpush.msra.mxu0 0.0
    %7544 = vmatpush.msra.mxu0 0.0
    %7545 = vmatpush.msra.mxu0 0.0
    %7546 = vmatpush.msra.mxu0 0.0
    %7547 = vmatpush.msra.mxu0 0.0
    %7548 = vmatpush.msra.mxu0 0.0
    %7549 = vmatpush.msra.mxu0 0.0
    %7550 = vmatpush.msra.mxu0 0.0
    %7551 = vmatpush.msra.mxu0 0.0
    %7552 = vmatpush.msra.mxu0 0.0
    %7553 = vmatpush.msra.mxu0 %v7530
    %7554 = vmatpush.msra.mxu0 %v7528
    %7555 = vmatmul.f32.gmra.mxu0 %v7534
    %v7556 = vpop.f32.mrf.mxu0
    %v7557 = vadd.f32 0.0, %v7556
    %7558 = vmatmul.f32.gmra.mxu0 %v7537
    %v7559 = vpop.f32.mrf.mxu0
    %v7560 = vadd.f32 0.0, %v7559
    %7561 = vdwg.mxu0
    %7562 = vrot.lane.b32.xlu0 %v6993, 32
    %v7563 = vpop.permute.xlu0 %7562
    %v7566 = vsel %vm88, %v7557, 0
    %v7569 = vsel %vm88, %v7560, 0
    %7571 = vmatpush.msra.mxu0 0.0
    %7572 = vmatpush.msra.mxu0 0.0
    %7573 = vmatpush.msra.mxu0 0.0
    %7574 = vmatpush.msra.mxu0 0.0
    %7575 = vmatpush.msra.mxu0 0.0
    %7576 = vmatpush.msra.mxu0 0.0
    %7577 = vmatpush.msra.mxu0 0.0
    %7578 = vmatpush.msra.mxu0 0.0
    %7579 = vmatpush.msra.mxu0 0.0
    %7580 = vmatpush.msra.mxu0 0.0
    %7581 = vmatpush.msra.mxu0 0.0
    %7582 = vmatpush.msra.mxu0 0.0
    %7583 = vmatpush.msra.mxu0 0.0
    %7584 = vmatpush.msra.mxu0 0.0
    %7585 = vmatpush.msra.mxu0 0.0
    %7586 = vmatpush.msra.mxu0 %v7563
    %7587 = vmatmul.f32.gmra.mxu0 %v7566
    %v7588 = vpop.f32.mrf.mxu0
    %v7589 = vadd.f32 0.0, %v7588
    %7590 = vmatmul.f32.gmra.mxu0 %v7569
    %v7591 = vpop.f32.mrf.mxu0
    %v7592 = vadd.f32 0.0, %v7591
    %7593 = vdwg.mxu0
    %v7594 = vadd.f32 %v7460, %v7589
    %v7595 = vadd.f32 %v7461, %v7592
    %7596 = vrot.lane.b32.xlu0 %v6995, 32
    %v7597 = vpop.permute.xlu0 %7596
    %v7599 = vadd.f32 %v7594, %v7597
    %v7600 = vadd.f32 %v7595, %v7597
    %v7601 = vadd.f32 %v6188, %v7599
    %v7602 = vadd.f32 %v6189, %v7600
    %v7603 = vld [vmem:[%s10 + $0x3a] sm:$0x1]
    %v7604 = vld [vmem:[%s10 + $0x3b] sm:$0x1]
    %v7605 = vsel %vm52, %v7601, 0.0
    %7606 = vadd.xlane.f32.xlu0 %v7605
    %v7607 = vpop.xlane.xlu0 %7606
    %v7608 = vsel %vm52, %v7602, 0.0
    %7609 = vadd.xlane.f32.xlu0 %v7608
    %v7610 = vpop.xlane.xlu0 %7609
    %v7611 = vmul.f32 %v7607, %v640
    %v7612 = vmul.f32 %v7610, %v640
    %v7613 = vsub.f32 %v7601, %v7611
    %v7614 = vsub.f32 %v7602, %v7612
    %v7615 = vmul.f32 %v7613, %v7613
    %v7616 = vmul.f32 %v7614, %v7614
    %v7617 = vsel %vm52, %v7615, 0.0
    %7618 = vadd.xlane.f32.xlu0 %v7617
    %v7619 = vpop.xlane.xlu0 %7618
    %v7620 = vsel %vm52, %v7616, 0.0
    %7621 = vadd.xlane.f32.xlu0 %v7620
    %v7622 = vpop.xlane.xlu0 %7621
    %v7623 = vmul.f32 %v7619, %v640
    %v7624 = vmul.f32 %v7622, %v640
    %v7625 = vadd.f32 %v7623, 1e-12
    %v7626 = vadd.f32 %v7624, 1e-12
    %v7627 = vrsqrt.pop %v7625
    %v7628 = vmul.f32 %v7627, %v7625
    %v7629 = vmul.f32 %v7628, %v7627
    %v7630 = vmul.f32 0.5, %v7629
    %v7631 = vsub.f32 1.5, %v7630
    %v7632 = vmul.f32 %v7627, %v7631
    %vm7633 = vweird.f32 %v7625
    %vm7634 = vweird.f32 %v7627
    %vm7635 = vmor %vm7633, %vm7634
    %v7636 = vsel %vm7635, %v7627, %v7632
    %v7637 = vrsqrt.pop %v7626
    %v7638 = vmul.f32 %v7637, %v7626
    %v7639 = vmul.f32 %v7638, %v7637
    %v7640 = vmul.f32 0.5, %v7639
    %v7641 = vsub.f32 1.5, %v7640
    %v7642 = vmul.f32 %v7637, %v7641
    %vm7643 = vweird.f32 %v7626
    %vm7644 = vweird.f32 %v7637
    %vm7645 = vmor %vm7643, %vm7644
    %v7646 = vsel %vm7645, %v7637, %v7642
    %v7647 = vmul.f32 %v7613, %v7636
    %v7648 = vmul.f32 %v7614, %v7646
    %v7649 = vperm.slane %v7603, 0
    %v7650 = vmul.f32 %v7647, %v7649
    %v7651 = vmul.f32 %v7648, %v7649
    %v7652 = vperm.slane %v7604, 0
    %v7653 = vadd.f32 %v7650, %v7652
    %v7654 = vadd.f32 %v7651, %v7652
    %7655 = vst.msk [vmem:[#allocation2] sm:$0xff] %vm52, %v7653
    %7656 = vst.msk [vmem:[#allocation2 + $0x8] sm:$0xff] %vm52, %v7654
    // Predicated region
    $region46: #{double_base_mix_encoder_forward.1} parent=1 // pred_check
      _
    $region47: #{double_base_mix_encoder_forward.1} parent=1 // pred_check_branch
      %7658 = sbr.rel (0) target = $region49
    $region48: #{double_base_mix_encoder_forward.1} parent=1 // pred_region
      %7660 = vsyncadd [#allocation3], 0
      %s7661 = sshll.u32 [#allocation2], 4
      %s7662 = int_to_ptr.vmem [resolvable:$true] %s7661
      %s7663 = sshll.u32 %s11, 4
      %s7664 = int_to_ptr.hbm [resolvable:$true] %s7663
      %7669 = dma.vmem_to_hbm [thread:$0]  %s7662, 256, %s7664, [#allocation3], 128, 128, 8
    $region49: #{double_base_mix_encoder_forward.1} parent=1 // pred_fallthru
      _
    // Predicated region
    $region50: #{double_base_mix_encoder_forward.1} parent=1 // pred_check
      _
    $region51: #{double_base_mix_encoder_forward.1} parent=1 // pred_check_branch
      %7671 = sbr.rel (0) target = $region53
    $region52: #{double_base_mix_encoder_forward.1} parent=1 // pred_region
      %7673 = dma.done [#allocation3], 256
    $region53: #{double_base_mix_encoder_forward.1} parent=1 // pred_fallthru
      _
    %7674 = vsyncpa [#allocation3], 1

</llo_original>
